<compile_context>
chip_gen: v6e
topology: v6e:2x2x1
jax: 0.10.0
libtpu: 0.0.40
codegen_flags: <defaults>
</compile_context>

<pallas_src>
import functools
import math

import jax
import jax.numpy as jnp
from jax.experimental import pallas as pl
from jax.experimental.pallas import tpu as pltpu


def _darnn_kernel(
    x_ref, xp_ref, y_ref,
    We_h_ref, We_s_ref, We_b_ref, Ue_w_ref, ve_w_ref,
    e_wih_ref, e_whh_ref, e_b_ref,
    Wd_d_ref, Wd_s_ref, Wd_b_ref, Ud_w_ref, vd_w_ref,
    wt_c_ref, wt_y_ref, wt_b_ref,
    d_wih_ref, d_whh_ref, d_b_ref,
    Wy_d_ref, Wy_c_ref, Wy_b_ref, vy_w_ref, vy_b_ref,
    out_ref,
    *, timestep,
):
    f32 = jnp.float32
    x = x_ref[...]                            # (B, T, N)
    xp = xp_ref[...]                          # (B, N, T)
    yh = y_ref[...]                           # (B, T, 1)
    B, T, N = x.shape
    M = e_whh_ref.shape[0]                    # encoder hidden
    P = d_whh_ref.shape[0]                    # decoder hidden

    # ---- hoist all loop-invariant loads (static unroll would re-emit them) ----
    We_h = We_h_ref[...]; We_s = We_s_ref[...]
    Ue_w = Ue_w_ref[...]
    e_wih = e_wih_ref[...]; e_whh = e_whh_ref[...]
    Wd_d = Wd_d_ref[...]; Wd_s = Wd_s_ref[...]
    Ud_w = Ud_w_ref[...]
    wt_c = wt_c_ref[...]; wt_y = wt_y_ref[...]
    d_wih = d_wih_ref[...]; d_whh = d_whh_ref[...]
    Wy_d = Wy_d_ref[...]; Wy_c = Wy_c_ref[...]
    vy_w = vy_w_ref[...]

    # ---- pre-broadcast biases / attention vectors once ----
    We_b = jnp.broadcast_to(We_b_ref[...], (B, T))
    e_b = jnp.broadcast_to(e_b_ref[...], (B, 4 * M))
    Wd_b = jnp.broadcast_to(Wd_b_ref[...], (B, M))
    wt_b = jnp.broadcast_to(wt_b_ref[...], (B, 1))
    d_b = jnp.broadcast_to(d_b_ref[...], (B, 4 * P))
    Wy_b = jnp.broadcast_to(Wy_b_ref[...], (B, P))
    vy_b = jnp.broadcast_to(vy_b_ref[...], (B, 1))
    ve = jnp.broadcast_to(ve_w_ref[...].reshape(1, 1, T), (B, N, T))
    vd = jnp.broadcast_to(vd_w_ref[...].reshape(1, 1, M), (B, T, M))

    def softmax_lane(e):
        # softmax over the minor (lane) axis; divide goes to the EUP slot.
        m = jnp.max(e, axis=-1, keepdims=True)
        p = jnp.exp(e - m)
        return p * pl.reciprocal(jnp.sum(p, axis=-1, keepdims=True), approx=True)

    def lstm_gates(x_part, h, whh, b, H):
        # fused pre-activations (B, 4H); gate order (i, f, g, o) as in nn.LSTMCell.
        gates = x_part + jnp.dot(h, whh, preferred_element_type=f32) + b
        sig = jax.nn.sigmoid(gates)
        gi = sig[:, 0:H]
        gf = sig[:, H:2 * H]
        go = sig[:, 3 * H:4 * H]
        gg = jnp.tanh(gates[:, 2 * H:3 * H])
        return gi, gf, gg, go

    # ------------------- InputAttentionEncoder -------------------
    # U_e(inputs.permute(0,2,1)) is loop invariant -> hoist.
    Uy = jnp.dot(xp.reshape(B * N, T), Ue_w,
                 preferred_element_type=f32).reshape(B, N, T)        # (B, N, T)

    h = jnp.zeros((B, M), f32)
    s = jnp.zeros((B, M), f32)
    enc_list = []
    for t in range(timestep):
        xw = (jnp.dot(h, We_h, preferred_element_type=f32)
              + jnp.dot(s, We_s, preferred_element_type=f32) + We_b)  # (B, T)
        z = jnp.tanh(xw[:, None, :] + Uy)                             # (B, N, T)
        e = jnp.sum(z * ve, axis=2)                                   # (B, N)
        alpha = softmax_lane(e)                                       # (B, N)
        wi = alpha * x[:, t, :]                                       # (B, N)
        gi, gf, gg, go = lstm_gates(
            jnp.dot(wi, e_wih, preferred_element_type=f32), h, e_whh, e_b, M)
        s = gf * s + gi * gg
        h = go * jnp.tanh(s)
        enc_list.append(h)                                            # encoded_inputs[:, t, :]

    enc = jnp.stack(enc_list, axis=1)                                 # (B, T, M)

    # ------------------- TemporalAttentionDecoder -------------------
    Ud_enc = jnp.dot(enc.reshape(B * T, M), Ud_w,
                     preferred_element_type=f32).reshape(B, T, M)     # loop invariant

    d = jnp.zeros((B, P), f32)
    sp = jnp.zeros((B, P), f32)
    c_t = jnp.zeros((B, M), f32)
    for t in range(timestep - 1):
        x1 = (jnp.dot(d, Wd_d, preferred_element_type=f32)
              + jnp.dot(sp, Wd_s, preferred_element_type=f32) + Wd_b)  # (B, M)
        z1 = jnp.tanh(x1[:, None, :] + Ud_enc)                         # (B, T, M)
        l = jnp.sum(z1 * vd, axis=2)                                   # (B, T) lane-major
        beta = softmax_lane(l)                                         # (B, T)
        c_t = jnp.sum(beta[:, :, None] * enc, axis=1)                  # (B, M)
        y_tilda = (jnp.dot(c_t, wt_c, preferred_element_type=f32)
                   + yh[:, t, :] * wt_y + wt_b)                        # (B, 1)
        gi, gf, gg, go = lstm_gates(y_tilda * d_wih, d, d_whh, d_b, P)
        sp = gf * sp + gi * gg
        d = go * jnp.tanh(sp)

    hy = (jnp.dot(d, Wy_d, preferred_element_type=f32)
          + jnp.dot(c_t, Wy_c, preferred_element_type=f32) + Wy_b)     # (B, P)
    out_ref[...] = jnp.dot(hy, vy_w, preferred_element_type=f32) + vy_b  # (B, 1)


# ----------------------- parameter construction (deterministic) -----------------------
def _uniform(key, shape, bound):
    return jax.random.uniform(key, shape, jnp.float32, -bound, bound)


def init_darnn_params(key, input_size, enc_hidden, dec_hidden, timestep):
    N, M, P, T = input_size, enc_hidden, dec_hidden, timestep
    keys = iter(jax.random.split(key, 32))

    def linear(in_f, out_f, bias=True):
        bnd = 1.0 / math.sqrt(in_f)
        w = _uniform(next(keys), (out_f, in_f), bnd)          # torch nn.Linear layout
        b = _uniform(next(keys), (out_f,), bnd) if bias else None
        return w, b

    def lstm(in_f, hid):
        bnd = 1.0 / math.sqrt(hid)
        w_ih = _uniform(next(keys), (4 * hid, in_f), bnd)
        w_hh = _uniform(next(keys), (4 * hid, hid), bnd)
        b_ih = _uniform(next(keys), (4 * hid,), bnd)
        b_hh = _uniform(next(keys), (4 * hid,), bnd)
        # fused-gate layouts: gate blocks (i, f, g, o) along the 4*hid output axis
        wih = w_ih.T                                           # (in, 4*hid)
        whh = w_hh.T                                           # (hid, 4*hid)
        b = (b_ih + b_hh).reshape(1, 4 * hid)                  # (1, 4*hid)
        return wih, whh, b

    # encoder
    We_w, We_b = linear(2 * M, T)                 # (T, 2M)
    Ue_w, _ = linear(T, T, bias=False)
    ve_w, _ = linear(T, 1, bias=False)            # (1, T)
    e_wih, e_whh, e_b = lstm(N, M)
    # decoder
    Wd_w, Wd_b = linear(2 * P, M)                 # (M, 2P)
    Ud_w, _ = linear(M, M, bias=False)
    vd_w, _ = linear(M, 1, bias=False)            # (1, M)
    wt_w, wt_b = linear(M + 1, 1)                 # (1, M+1)
    d_wih, d_whh, d_b = lstm(1, P)
    Wy_w, Wy_b = linear(P + M, P)                 # (P, P+M)
    vy_w, vy_b = linear(P, 1)                     # (1, P)

    # split-weight layouts replacing the torch.cat's (concat order is baked in here)
    We_wT = We_w.T                                # (2M, T): rows [h | s]
    Wd_wT = Wd_w.T                                # (2P, M): rows [d | s']
    wt_wT = wt_w.T                                # (M+1, 1): rows [c_t | y]
    Wy_wT = Wy_w.T                                # (P+M, P): rows [d | c_t]

    return (
        We_wT[:M], We_wT[M:], We_b.reshape(1, T),            # We_h, We_s, We_b
        Ue_w.T, ve_w.reshape(1, T),                          # Ue_w, ve_w
        e_wih, e_whh, e_b,                                   # (N,4M), (M,4M), (1,4M)
        Wd_wT[:P], Wd_wT[P:], Wd_b.reshape(1, M),            # Wd_d, Wd_s, Wd_b
        Ud_w.T, vd_w.reshape(1, M),                          # Ud_w, vd_w
        wt_wT[:M], wt_wT[M:].reshape(1, 1), wt_b.reshape(1, 1),  # wt_c, wt_y, wt_b
        d_wih, d_whh, d_b,                                   # (1,4P), (P,4P), (1,4P)
        Wy_wT[:P], Wy_wT[P:], Wy_b.reshape(1, P),            # Wy_d, Wy_c, Wy_b
        vy_w.T, vy_b.reshape(1, 1),                          # vy_w, vy_b
    )


# ----------------------------------- wrapper -----------------------------------
def darnn_forward(X_history, y_history, params, *, timestep, batch_block=None):
    B, T, N = X_history.shape
    assert T == timestep
    bb = B if batch_block is None else batch_block   # batch_block=B//2 to use both v7x TCs
    assert B % bb == 0

    x = X_history.astype(jnp.float32)
    xp = jnp.transpose(x, (0, 2, 1))                 # (B, N, T)  plain-JAX glue
    y = y_history.astype(jnp.float32)

    def full_spec(p):                                # whole-array VMEM-resident weights
        nd = p.ndim
        return pl.BlockSpec(p.shape, lambda i, _nd=nd: (0,) * _nd)

    in_specs = [
        pl.BlockSpec((bb, T, N), lambda i: (i, 0, 0)),
        pl.BlockSpec((bb, N, T), lambda i: (i, 0, 0)),
        pl.BlockSpec((bb, T, 1), lambda i: (i, 0, 0)),
    ] + [full_spec(p) for p in params]
    out_specs = pl.BlockSpec((bb, 1), lambda i: (i, 0))

    return pl.pallas_call(
        functools.partial(_darnn_kernel, timestep=timestep),
        out_shape=jax.ShapeDtypeStruct((B, 1), jnp.float32),
        grid=(B // bb,),
        in_specs=in_specs,
        out_specs=out_specs,
        compiler_params=pltpu.CompilerParams(
            dimension_semantics=("parallel",)),
    )(x, xp, y, *params)


if __name__ == "__main__":
    # small shapes: batch=2, input_size (num series)=4, timestep=8, hidden sizes=32
    B, N, T, M, P = 2, 4, 8, 32, 32
    key = jax.random.PRNGKey(0)
    kx, ky, kp = jax.random.split(key, 3)
    X_history = jax.random.normal(kx, (B, T, N), jnp.float32)
    y_history = jax.random.normal(ky, (B, T, 1), jnp.float32)
    params = init_darnn_params(kp, N, M, P, T)

    out = darnn_forward(X_history, y_history, params, timestep=T)
    out = jax.block_until_ready(out)
    assert out.shape == (B, 1)
    assert bool(jnp.all(jnp.isfinite(out)))
    print("KERNEL_OK")
</pallas_src>

<mosaic_0001>
module attributes {stable_mosaic.version = 11 : i64} {
  func.func @_darnn_kernel(%arg0: i32, %arg1: memref<2x8x4xf32, #tpu.memory_space<vmem>>, %arg2: memref<2x4x8xf32, #tpu.memory_space<vmem>>, %arg3: memref<2x8x1xf32, #tpu.memory_space<vmem>>, %arg4: memref<32x8xf32, #tpu.memory_space<vmem>>, %arg5: memref<32x8xf32, #tpu.memory_space<vmem>>, %arg6: memref<1x8xf32, #tpu.memory_space<vmem>>, %arg7: memref<8x8xf32, #tpu.memory_space<vmem>>, %arg8: memref<1x8xf32, #tpu.memory_space<vmem>>, %arg9: memref<4x128xf32, #tpu.memory_space<vmem>>, %arg10: memref<32x128xf32, #tpu.memory_space<vmem>>, %arg11: memref<1x128xf32, #tpu.memory_space<vmem>>, %arg12: memref<32x32xf32, #tpu.memory_space<vmem>>, %arg13: memref<32x32xf32, #tpu.memory_space<vmem>>, %arg14: memref<1x32xf32, #tpu.memory_space<vmem>>, %arg15: memref<32x32xf32, #tpu.memory_space<vmem>>, %arg16: memref<1x32xf32, #tpu.memory_space<vmem>>, %arg17: memref<32x1xf32, #tpu.memory_space<vmem>>, %arg18: memref<1x1xf32, #tpu.memory_space<vmem>>, %arg19: memref<1x1xf32, #tpu.memory_space<vmem>>, %arg20: memref<1x128xf32, #tpu.memory_space<vmem>>, %arg21: memref<32x128xf32, #tpu.memory_space<vmem>>, %arg22: memref<1x128xf32, #tpu.memory_space<vmem>>, %arg23: memref<32x32xf32, #tpu.memory_space<vmem>>, %arg24: memref<32x32xf32, #tpu.memory_space<vmem>>, %arg25: memref<1x32xf32, #tpu.memory_space<vmem>>, %arg26: memref<32x1xf32, #tpu.memory_space<vmem>>, %arg27: memref<1x1xf32, #tpu.memory_space<vmem>>, %arg28: memref<2x1xf32, #tpu.memory_space<vmem>>) attributes {dimension_semantics = [#tpu.dimension_semantics<parallel>], iteration_bounds = array<i64: 1>, scalar_prefetch = 0 : i64, scratch_operands = 0 : i64, tpu.core_type = #tpu.core_type<tc>, window_params = [{transform_indices = @transform_0, window_bounds = array<i64: 2, 8, 4>}, {transform_indices = @transform_1, window_bounds = array<i64: 2, 4, 8>}, {transform_indices = @transform_2, window_bounds = array<i64: 2, 8, 1>}, {pipeline_mode = #tpu.pipeline_mode<synchronous>, transform_indices = @transform_3, window_bounds = array<i64: 32, 8>}, {pipeline_mode = #tpu.pipeline_mode<synchronous>, transform_indices = @transform_4, window_bounds = array<i64: 32, 8>}, {pipeline_mode = #tpu.pipeline_mode<synchronous>, transform_indices = @transform_5, window_bounds = array<i64: 1, 8>}, {pipeline_mode = #tpu.pipeline_mode<synchronous>, transform_indices = @transform_6, window_bounds = array<i64: 8, 8>}, {pipeline_mode = #tpu.pipeline_mode<synchronous>, transform_indices = @transform_7, window_bounds = array<i64: 1, 8>}, {pipeline_mode = #tpu.pipeline_mode<synchronous>, transform_indices = @transform_8, window_bounds = array<i64: 4, 128>}, {pipeline_mode = #tpu.pipeline_mode<synchronous>, transform_indices = @transform_9, window_bounds = array<i64: 32, 128>}, {pipeline_mode = #tpu.pipeline_mode<synchronous>, transform_indices = @transform_10, window_bounds = array<i64: 1, 128>}, {pipeline_mode = #tpu.pipeline_mode<synchronous>, transform_indices = @transform_11, window_bounds = array<i64: 32, 32>}, {pipeline_mode = #tpu.pipeline_mode<synchronous>, transform_indices = @transform_12, window_bounds = array<i64: 32, 32>}, {pipeline_mode = #tpu.pipeline_mode<synchronous>, transform_indices = @transform_13, window_bounds = array<i64: 1, 32>}, {pipeline_mode = #tpu.pipeline_mode<synchronous>, transform_indices = @transform_14, window_bounds = array<i64: 32, 32>}, {pipeline_mode = #tpu.pipeline_mode<synchronous>, transform_indices = @transform_15, window_bounds = array<i64: 1, 32>}, {pipeline_mode = #tpu.pipeline_mode<synchronous>, transform_indices = @transform_16, window_bounds = array<i64: 32, 1>}, {pipeline_mode = #tpu.pipeline_mode<synchronous>, transform_indices = @transform_17, window_bounds = array<i64: 1, 1>}, {pipeline_mode = #tpu.pipeline_mode<synchronous>, transform_indices = @transform_18, window_bounds = array<i64: 1, 1>}, {pipeline_mode = #tpu.pipeline_mode<synchronous>, transform_indices = @transform_19, window_bounds = array<i64: 1, 128>}, {pipeline_mode = #tpu.pipeline_mode<synchronous>, transform_indices = @transform_20, window_bounds = array<i64: 32, 128>}, {pipeline_mode = #tpu.pipeline_mode<synchronous>, transform_indices = @transform_21, window_bounds = array<i64: 1, 128>}, {pipeline_mode = #tpu.pipeline_mode<synchronous>, transform_indices = @transform_22, window_bounds = array<i64: 32, 32>}, {pipeline_mode = #tpu.pipeline_mode<synchronous>, transform_indices = @transform_23, window_bounds = array<i64: 32, 32>}, {pipeline_mode = #tpu.pipeline_mode<synchronous>, transform_indices = @transform_24, window_bounds = array<i64: 1, 32>}, {pipeline_mode = #tpu.pipeline_mode<synchronous>, transform_indices = @transform_25, window_bounds = array<i64: 32, 1>}, {pipeline_mode = #tpu.pipeline_mode<synchronous>, transform_indices = @transform_26, window_bounds = array<i64: 1, 1>}, {transform_indices = @transform_27, window_bounds = array<i64: 2, 1>}]} {
    %c0 = arith.constant 0 : index
    %c0_0 = arith.constant 0 : index
    %c0_1 = arith.constant 0 : index
    %0 = vector.load %arg1[%c0, %c0_0, %c0_1] : memref<2x8x4xf32, #tpu.memory_space<vmem>>, vector<2x8x4xf32>
    %c0_2 = arith.constant 0 : index
    %c0_3 = arith.constant 0 : index
    %c0_4 = arith.constant 0 : index
    %1 = vector.load %arg2[%c0_2, %c0_3, %c0_4] : memref<2x4x8xf32, #tpu.memory_space<vmem>>, vector<2x4x8xf32>
    %c0_5 = arith.constant 0 : index
    %c0_6 = arith.constant 0 : index
    %c0_7 = arith.constant 0 : index
    %2 = vector.load %arg3[%c0_5, %c0_6, %c0_7] : memref<2x8x1xf32, #tpu.memory_space<vmem>>, vector<2x8x1xf32>
    %c0_8 = arith.constant 0 : index
    %c0_9 = arith.constant 0 : index
    %3 = vector.load %arg4[%c0_8, %c0_9] : memref<32x8xf32, #tpu.memory_space<vmem>>, vector<32x8xf32>
    %c0_10 = arith.constant 0 : index
    %c0_11 = arith.constant 0 : index
    %4 = vector.load %arg5[%c0_10, %c0_11] : memref<32x8xf32, #tpu.memory_space<vmem>>, vector<32x8xf32>
    %c0_12 = arith.constant 0 : index
    %c0_13 = arith.constant 0 : index
    %5 = vector.load %arg7[%c0_12, %c0_13] : memref<8x8xf32, #tpu.memory_space<vmem>>, vector<8x8xf32>
    %c0_14 = arith.constant 0 : index
    %c0_15 = arith.constant 0 : index
    %6 = vector.load %arg9[%c0_14, %c0_15] : memref<4x128xf32, #tpu.memory_space<vmem>>, vector<4x128xf32>
    %c0_16 = arith.constant 0 : index
    %c0_17 = arith.constant 0 : index
    %7 = vector.load %arg10[%c0_16, %c0_17] : memref<32x128xf32, #tpu.memory_space<vmem>>, vector<32x128xf32>
    %c0_18 = arith.constant 0 : index
    %c0_19 = arith.constant 0 : index
    %8 = vector.load %arg12[%c0_18, %c0_19] : memref<32x32xf32, #tpu.memory_space<vmem>>, vector<32x32xf32>
    %c0_20 = arith.constant 0 : index
    %c0_21 = arith.constant 0 : index
    %9 = vector.load %arg13[%c0_20, %c0_21] : memref<32x32xf32, #tpu.memory_space<vmem>>, vector<32x32xf32>
    %c0_22 = arith.constant 0 : index
    %c0_23 = arith.constant 0 : index
    %10 = vector.load %arg15[%c0_22, %c0_23] : memref<32x32xf32, #tpu.memory_space<vmem>>, vector<32x32xf32>
    %c0_24 = arith.constant 0 : index
    %c0_25 = arith.constant 0 : index
    %11 = vector.load %arg17[%c0_24, %c0_25] : memref<32x1xf32, #tpu.memory_space<vmem>>, vector<32x1xf32>
    %c0_26 = arith.constant 0 : index
    %c0_27 = arith.constant 0 : index
    %12 = vector.load %arg18[%c0_26, %c0_27] : memref<1x1xf32, #tpu.memory_space<vmem>>, vector<1x1xf32>
    %c0_28 = arith.constant 0 : index
    %c0_29 = arith.constant 0 : index
    %13 = vector.load %arg20[%c0_28, %c0_29] : memref<1x128xf32, #tpu.memory_space<vmem>>, vector<1x128xf32>
    %c0_30 = arith.constant 0 : index
    %c0_31 = arith.constant 0 : index
    %14 = vector.load %arg21[%c0_30, %c0_31] : memref<32x128xf32, #tpu.memory_space<vmem>>, vector<32x128xf32>
    %c0_32 = arith.constant 0 : index
    %c0_33 = arith.constant 0 : index
    %15 = vector.load %arg23[%c0_32, %c0_33] : memref<32x32xf32, #tpu.memory_space<vmem>>, vector<32x32xf32>
    %c0_34 = arith.constant 0 : index
    %c0_35 = arith.constant 0 : index
    %16 = vector.load %arg24[%c0_34, %c0_35] : memref<32x32xf32, #tpu.memory_space<vmem>>, vector<32x32xf32>
    %c0_36 = arith.constant 0 : index
    %c0_37 = arith.constant 0 : index
    %17 = vector.load %arg26[%c0_36, %c0_37] : memref<32x1xf32, #tpu.memory_space<vmem>>, vector<32x1xf32>
    %c0_38 = arith.constant 0 : index
    %c0_39 = arith.constant 0 : index
    %18 = vector.load %arg6[%c0_38, %c0_39] : memref<1x8xf32, #tpu.memory_space<vmem>>, vector<1x8xf32>
    %19 = vector.shape_cast %18 : vector<1x8xf32> to vector<1x8xf32>
    %20 = vector.broadcast %19 : vector<1x8xf32> to vector<2x8xf32>
    %c0_40 = arith.constant 0 : index
    %c0_41 = arith.constant 0 : index
    %21 = vector.load %arg11[%c0_40, %c0_41] : memref<1x128xf32, #tpu.memory_space<vmem>>, vector<1x128xf32>
    %22 = vector.shape_cast %21 : vector<1x128xf32> to vector<1x128xf32>
    %23 = vector.broadcast %22 : vector<1x128xf32> to vector<2x128xf32>
    %c0_42 = arith.constant 0 : index
    %c0_43 = arith.constant 0 : index
    %24 = vector.load %arg14[%c0_42, %c0_43] : memref<1x32xf32, #tpu.memory_space<vmem>>, vector<1x32xf32>
    %25 = vector.shape_cast %24 : vector<1x32xf32> to vector<1x32xf32>
    %26 = vector.broadcast %25 : vector<1x32xf32> to vector<2x32xf32>
    %c0_44 = arith.constant 0 : index
    %c0_45 = arith.constant 0 : index
    %27 = vector.load %arg19[%c0_44, %c0_45] : memref<1x1xf32, #tpu.memory_space<vmem>>, vector<1x1xf32>
    %28 = vector.shape_cast %27 : vector<1x1xf32> to vector<1x1xf32>
    %29 = vector.broadcast %28 : vector<1x1xf32> to vector<2x1xf32>
    %c0_46 = arith.constant 0 : index
    %c0_47 = arith.constant 0 : index
    %30 = vector.load %arg22[%c0_46, %c0_47] : memref<1x128xf32, #tpu.memory_space<vmem>>, vector<1x128xf32>
    %31 = vector.shape_cast %30 : vector<1x128xf32> to vector<1x128xf32>
    %32 = vector.broadcast %31 : vector<1x128xf32> to vector<2x128xf32>
    %c0_48 = arith.constant 0 : index
    %c0_49 = arith.constant 0 : index
    %33 = vector.load %arg25[%c0_48, %c0_49] : memref<1x32xf32, #tpu.memory_space<vmem>>, vector<1x32xf32>
    %34 = vector.shape_cast %33 : vector<1x32xf32> to vector<1x32xf32>
    %35 = vector.broadcast %34 : vector<1x32xf32> to vector<2x32xf32>
    %c0_50 = arith.constant 0 : index
    %c0_51 = arith.constant 0 : index
    %36 = vector.load %arg27[%c0_50, %c0_51] : memref<1x1xf32, #tpu.memory_space<vmem>>, vector<1x1xf32>
    %37 = vector.shape_cast %36 : vector<1x1xf32> to vector<1x1xf32>
    %38 = vector.broadcast %37 : vector<1x1xf32> to vector<2x1xf32>
    %c0_52 = arith.constant 0 : index
    %c0_53 = arith.constant 0 : index
    %39 = vector.load %arg8[%c0_52, %c0_53] : memref<1x8xf32, #tpu.memory_space<vmem>>, vector<1x8xf32>
    %40 = vector.shape_cast %39 : vector<1x8xf32> to vector<1x1x8xf32>
    %41 = vector.shape_cast %40 : vector<1x1x8xf32> to vector<1x1x8xf32>
    %42 = vector.broadcast %41 : vector<1x1x8xf32> to vector<2x4x8xf32>
    %c0_54 = arith.constant 0 : index
    %c0_55 = arith.constant 0 : index
    %43 = vector.load %arg16[%c0_54, %c0_55] : memref<1x32xf32, #tpu.memory_space<vmem>>, vector<1x32xf32>
    %44 = vector.shape_cast %43 : vector<1x32xf32> to vector<1x1x32xf32>
    %45 = vector.shape_cast %44 : vector<1x1x32xf32> to vector<1x1x32xf32>
    %46 = vector.broadcast %45 : vector<1x1x32xf32> to vector<2x8x32xf32>
    %47 = vector.shape_cast %1 : vector<2x4x8xf32> to vector<8x8xf32>
    %cst = arith.constant dense<0.000000e+00> : vector<8x8xf32>
    %48 = tpu.matmul %47, %5, %cst {dimension_numbers = #tpu.dot_dimension_numbers<[1], [0], [0], [1], [0, 0, 1, 1], [], []>} : vector<8x8xf32>, vector<8x8xf32>, vector<8x8xf32> -> vector<8x8xf32>
    %49 = vector.shape_cast %48 : vector<8x8xf32> to vector<2x4x8xf32>
    %cst_56 = arith.constant 0.000000e+00 : f32
    %50 = vector.broadcast %cst_56 : f32 to vector<2x32xf32>
    %cst_57 = arith.constant 0.000000e+00 : f32
    %51 = vector.broadcast %cst_57 : f32 to vector<2x32xf32>
    %cst_58 = arith.constant dense<0.000000e+00> : vector<2x8xf32>
    %52 = tpu.matmul %50, %3, %cst_58 {dimension_numbers = #tpu.dot_dimension_numbers<[1], [0], [0], [1], [0, 0, 1, 1], [], []>} : vector<2x32xf32>, vector<32x8xf32>, vector<2x8xf32> -> vector<2x8xf32>
    %cst_59 = arith.constant dense<0.000000e+00> : vector<2x8xf32>
    %53 = tpu.matmul %51, %4, %cst_59 {dimension_numbers = #tpu.dot_dimension_numbers<[1], [0], [0], [1], [0, 0, 1, 1], [], []>} : vector<2x32xf32>, vector<32x8xf32>, vector<2x8xf32> -> vector<2x8xf32>
    %54 = arith.addf %52, %53 : vector<2x8xf32>
    %55 = arith.addf %54, %20 : vector<2x8xf32>
    %56 = vector.shape_cast %55 : vector<2x8xf32> to vector<2x1x8xf32>
    %57 = vector.broadcast %56 : vector<2x1x8xf32> to vector<2x4x8xf32>
    %58 = arith.addf %57, %49 : vector<2x4x8xf32>
    %59 = math.tanh %58 : vector<2x4x8xf32>
    %60 = arith.mulf %59, %42 : vector<2x4x8xf32>
    %cst_60 = arith.constant dense<0.000000e+00> : vector<2x4xf32>
    %61 = vector.multi_reduction <add>, %60, %cst_60 [2] : vector<2x4x8xf32> to vector<2x4xf32>
    %cst_61 = arith.constant dense<0xFF800000> : vector<2xf32>
    %62 = vector.multi_reduction <maximumf>, %61, %cst_61 [1] : vector<2x4xf32> to vector<2xf32>
    %63 = vector.shape_cast %62 : vector<2xf32> to vector<2x1xf32>
    %64 = vector.broadcast %63 : vector<2x1xf32> to vector<2x4xf32>
    %65 = arith.subf %61, %64 : vector<2x4xf32>
    %66 = math.exp %65 : vector<2x4xf32>
    %cst_62 = arith.constant dense<0.000000e+00> : vector<2xf32>
    %67 = vector.multi_reduction <add>, %66, %cst_62 [1] : vector<2x4xf32> to vector<2xf32>
    %68 = vector.shape_cast %67 : vector<2xf32> to vector<2x1xf32>
    %69 = tpu.reciprocal %68 {approx = true} : vector<2x1xf32> -> vector<2x1xf32>
    %70 = vector.broadcast %69 : vector<2x1xf32> to vector<2x4xf32>
    %71 = arith.mulf %66, %70 : vector<2x4xf32>
    %72 = vector.extract_strided_slice %0 {offsets = [0, 0, 0], sizes = [2, 1, 4], strides = [1, 1, 1]} : vector<2x8x4xf32> to vector<2x1x4xf32>
    %73 = vector.shape_cast %72 : vector<2x1x4xf32> to vector<2x4xf32>
    %74 = arith.mulf %71, %73 : vector<2x4xf32>
    %cst_63 = arith.constant dense<0.000000e+00> : vector<2x128xf32>
    %75 = tpu.matmul %74, %6, %cst_63 {dimension_numbers = #tpu.dot_dimension_numbers<[1], [0], [0], [1], [0, 0, 1, 1], [], []>} : vector<2x4xf32>, vector<4x128xf32>, vector<2x128xf32> -> vector<2x128xf32>
    %cst_64 = arith.constant dense<0.000000e+00> : vector<2x128xf32>
    %76 = tpu.matmul %50, %7, %cst_64 {dimension_numbers = #tpu.dot_dimension_numbers<[1], [0], [0], [1], [0, 0, 1, 1], [], []>} : vector<2x32xf32>, vector<32x128xf32>, vector<2x128xf32> -> vector<2x128xf32>
    %77 = arith.addf %75, %76 : vector<2x128xf32>
    %78 = arith.addf %77, %23 : vector<2x128xf32>
    %79 = arith.negf %78 : vector<2x128xf32>
    %80 = math.exp %79 : vector<2x128xf32>
    %cst_65 = arith.constant 1.000000e+00 : f32
    %81 = vector.broadcast %cst_65 : f32 to vector<2x128xf32>
    %82 = arith.addf %81, %80 : vector<2x128xf32>
    %83 = arith.divf %81, %82 : vector<2x128xf32>
    %84 = vector.extract_strided_slice %83 {offsets = [0, 0], sizes = [2, 32], strides = [1, 1]} : vector<2x128xf32> to vector<2x32xf32>
    %85 = vector.extract_strided_slice %83 {offsets = [0, 32], sizes = [2, 32], strides = [1, 1]} : vector<2x128xf32> to vector<2x32xf32>
    %86 = vector.extract_strided_slice %83 {offsets = [0, 96], sizes = [2, 32], strides = [1, 1]} : vector<2x128xf32> to vector<2x32xf32>
    %87 = vector.extract_strided_slice %78 {offsets = [0, 64], sizes = [2, 32], strides = [1, 1]} : vector<2x128xf32> to vector<2x32xf32>
    %88 = math.tanh %87 : vector<2x32xf32>
    %89 = arith.mulf %85, %51 : vector<2x32xf32>
    %90 = arith.mulf %84, %88 : vector<2x32xf32>
    %91 = arith.addf %89, %90 : vector<2x32xf32>
    %92 = math.tanh %91 : vector<2x32xf32>
    %93 = arith.mulf %86, %92 : vector<2x32xf32>
    %cst_66 = arith.constant dense<0.000000e+00> : vector<2x8xf32>
    %94 = tpu.matmul %93, %3, %cst_66 {dimension_numbers = #tpu.dot_dimension_numbers<[1], [0], [0], [1], [0, 0, 1, 1], [], []>} : vector<2x32xf32>, vector<32x8xf32>, vector<2x8xf32> -> vector<2x8xf32>
    %cst_67 = arith.constant dense<0.000000e+00> : vector<2x8xf32>
    %95 = tpu.matmul %91, %4, %cst_67 {dimension_numbers = #tpu.dot_dimension_numbers<[1], [0], [0], [1], [0, 0, 1, 1], [], []>} : vector<2x32xf32>, vector<32x8xf32>, vector<2x8xf32> -> vector<2x8xf32>
    %96 = arith.addf %94, %95 : vector<2x8xf32>
    %97 = arith.addf %96, %20 : vector<2x8xf32>
    %98 = vector.shape_cast %97 : vector<2x8xf32> to vector<2x1x8xf32>
    %99 = vector.broadcast %98 : vector<2x1x8xf32> to vector<2x4x8xf32>
    %100 = arith.addf %99, %49 : vector<2x4x8xf32>
    %101 = math.tanh %100 : vector<2x4x8xf32>
    %102 = arith.mulf %101, %42 : vector<2x4x8xf32>
    %cst_68 = arith.constant dense<0.000000e+00> : vector<2x4xf32>
    %103 = vector.multi_reduction <add>, %102, %cst_68 [2] : vector<2x4x8xf32> to vector<2x4xf32>
    %cst_69 = arith.constant dense<0xFF800000> : vector<2xf32>
    %104 = vector.multi_reduction <maximumf>, %103, %cst_69 [1] : vector<2x4xf32> to vector<2xf32>
    %105 = vector.shape_cast %104 : vector<2xf32> to vector<2x1xf32>
    %106 = vector.broadcast %105 : vector<2x1xf32> to vector<2x4xf32>
    %107 = arith.subf %103, %106 : vector<2x4xf32>
    %108 = math.exp %107 : vector<2x4xf32>
    %cst_70 = arith.constant dense<0.000000e+00> : vector<2xf32>
    %109 = vector.multi_reduction <add>, %108, %cst_70 [1] : vector<2x4xf32> to vector<2xf32>
    %110 = vector.shape_cast %109 : vector<2xf32> to vector<2x1xf32>
    %111 = tpu.reciprocal %110 {approx = true} : vector<2x1xf32> -> vector<2x1xf32>
    %112 = vector.broadcast %111 : vector<2x1xf32> to vector<2x4xf32>
    %113 = arith.mulf %108, %112 : vector<2x4xf32>
    %114 = vector.extract_strided_slice %0 {offsets = [0, 1, 0], sizes = [2, 1, 4], strides = [1, 1, 1]} : vector<2x8x4xf32> to vector<2x1x4xf32>
    %115 = vector.shape_cast %114 : vector<2x1x4xf32> to vector<2x4xf32>
    %116 = arith.mulf %113, %115 : vector<2x4xf32>
    %cst_71 = arith.constant dense<0.000000e+00> : vector<2x128xf32>
    %117 = tpu.matmul %116, %6, %cst_71 {dimension_numbers = #tpu.dot_dimension_numbers<[1], [0], [0], [1], [0, 0, 1, 1], [], []>} : vector<2x4xf32>, vector<4x128xf32>, vector<2x128xf32> -> vector<2x128xf32>
    %cst_72 = arith.constant dense<0.000000e+00> : vector<2x128xf32>
    %118 = tpu.matmul %93, %7, %cst_72 {dimension_numbers = #tpu.dot_dimension_numbers<[1], [0], [0], [1], [0, 0, 1, 1], [], []>} : vector<2x32xf32>, vector<32x128xf32>, vector<2x128xf32> -> vector<2x128xf32>
    %119 = arith.addf %117, %118 : vector<2x128xf32>
    %120 = arith.addf %119, %23 : vector<2x128xf32>
    %121 = arith.negf %120 : vector<2x128xf32>
    %122 = math.exp %121 : vector<2x128xf32>
    %cst_73 = arith.constant 1.000000e+00 : f32
    %123 = vector.broadcast %cst_73 : f32 to vector<2x128xf32>
    %124 = arith.addf %123, %122 : vector<2x128xf32>
    %125 = arith.divf %123, %124 : vector<2x128xf32>
    %126 = vector.extract_strided_slice %125 {offsets = [0, 0], sizes = [2, 32], strides = [1, 1]} : vector<2x128xf32> to vector<2x32xf32>
    %127 = vector.extract_strided_slice %125 {offsets = [0, 32], sizes = [2, 32], strides = [1, 1]} : vector<2x128xf32> to vector<2x32xf32>
    %128 = vector.extract_strided_slice %125 {offsets = [0, 96], sizes = [2, 32], strides = [1, 1]} : vector<2x128xf32> to vector<2x32xf32>
    %129 = vector.extract_strided_slice %120 {offsets = [0, 64], sizes = [2, 32], strides = [1, 1]} : vector<2x128xf32> to vector<2x32xf32>
    %130 = math.tanh %129 : vector<2x32xf32>
    %131 = arith.mulf %127, %91 : vector<2x32xf32>
    %132 = arith.mulf %126, %130 : vector<2x32xf32>
    %133 = arith.addf %131, %132 : vector<2x32xf32>
    %134 = math.tanh %133 : vector<2x32xf32>
    %135 = arith.mulf %128, %134 : vector<2x32xf32>
    %cst_74 = arith.constant dense<0.000000e+00> : vector<2x8xf32>
    %136 = tpu.matmul %135, %3, %cst_74 {dimension_numbers = #tpu.dot_dimension_numbers<[1], [0], [0], [1], [0, 0, 1, 1], [], []>} : vector<2x32xf32>, vector<32x8xf32>, vector<2x8xf32> -> vector<2x8xf32>
    %cst_75 = arith.constant dense<0.000000e+00> : vector<2x8xf32>
    %137 = tpu.matmul %133, %4, %cst_75 {dimension_numbers = #tpu.dot_dimension_numbers<[1], [0], [0], [1], [0, 0, 1, 1], [], []>} : vector<2x32xf32>, vector<32x8xf32>, vector<2x8xf32> -> vector<2x8xf32>
    %138 = arith.addf %136, %137 : vector<2x8xf32>
    %139 = arith.addf %138, %20 : vector<2x8xf32>
    %140 = vector.shape_cast %139 : vector<2x8xf32> to vector<2x1x8xf32>
    %141 = vector.broadcast %140 : vector<2x1x8xf32> to vector<2x4x8xf32>
    %142 = arith.addf %141, %49 : vector<2x4x8xf32>
    %143 = math.tanh %142 : vector<2x4x8xf32>
    %144 = arith.mulf %143, %42 : vector<2x4x8xf32>
    %cst_76 = arith.constant dense<0.000000e+00> : vector<2x4xf32>
    %145 = vector.multi_reduction <add>, %144, %cst_76 [2] : vector<2x4x8xf32> to vector<2x4xf32>
    %cst_77 = arith.constant dense<0xFF800000> : vector<2xf32>
    %146 = vector.multi_reduction <maximumf>, %145, %cst_77 [1] : vector<2x4xf32> to vector<2xf32>
    %147 = vector.shape_cast %146 : vector<2xf32> to vector<2x1xf32>
    %148 = vector.broadcast %147 : vector<2x1xf32> to vector<2x4xf32>
    %149 = arith.subf %145, %148 : vector<2x4xf32>
    %150 = math.exp %149 : vector<2x4xf32>
    %cst_78 = arith.constant dense<0.000000e+00> : vector<2xf32>
    %151 = vector.multi_reduction <add>, %150, %cst_78 [1] : vector<2x4xf32> to vector<2xf32>
    %152 = vector.shape_cast %151 : vector<2xf32> to vector<2x1xf32>
    %153 = tpu.reciprocal %152 {approx = true} : vector<2x1xf32> -> vector<2x1xf32>
    %154 = vector.broadcast %153 : vector<2x1xf32> to vector<2x4xf32>
    %155 = arith.mulf %150, %154 : vector<2x4xf32>
    %156 = vector.extract_strided_slice %0 {offsets = [0, 2, 0], sizes = [2, 1, 4], strides = [1, 1, 1]} : vector<2x8x4xf32> to vector<2x1x4xf32>
    %157 = vector.shape_cast %156 : vector<2x1x4xf32> to vector<2x4xf32>
    %158 = arith.mulf %155, %157 : vector<2x4xf32>
    %cst_79 = arith.constant dense<0.000000e+00> : vector<2x128xf32>
    %159 = tpu.matmul %158, %6, %cst_79 {dimension_numbers = #tpu.dot_dimension_numbers<[1], [0], [0], [1], [0, 0, 1, 1], [], []>} : vector<2x4xf32>, vector<4x128xf32>, vector<2x128xf32> -> vector<2x128xf32>
    %cst_80 = arith.constant dense<0.000000e+00> : vector<2x128xf32>
    %160 = tpu.matmul %135, %7, %cst_80 {dimension_numbers = #tpu.dot_dimension_numbers<[1], [0], [0], [1], [0, 0, 1, 1], [], []>} : vector<2x32xf32>, vector<32x128xf32>, vector<2x128xf32> -> vector<2x128xf32>
    %161 = arith.addf %159, %160 : vector<2x128xf32>
    %162 = arith.addf %161, %23 : vector<2x128xf32>
    %163 = arith.negf %162 : vector<2x128xf32>
    %164 = math.exp %163 : vector<2x128xf32>
    %cst_81 = arith.constant 1.000000e+00 : f32
    %165 = vector.broadcast %cst_81 : f32 to vector<2x128xf32>
    %166 = arith.addf %165, %164 : vector<2x128xf32>
    %167 = arith.divf %165, %166 : vector<2x128xf32>
    %168 = vector.extract_strided_slice %167 {offsets = [0, 0], sizes = [2, 32], strides = [1, 1]} : vector<2x128xf32> to vector<2x32xf32>
    %169 = vector.extract_strided_slice %167 {offsets = [0, 32], sizes = [2, 32], strides = [1, 1]} : vector<2x128xf32> to vector<2x32xf32>
    %170 = vector.extract_strided_slice %167 {offsets = [0, 96], sizes = [2, 32], strides = [1, 1]} : vector<2x128xf32> to vector<2x32xf32>
    %171 = vector.extract_strided_slice %162 {offsets = [0, 64], sizes = [2, 32], strides = [1, 1]} : vector<2x128xf32> to vector<2x32xf32>
    %172 = math.tanh %171 : vector<2x32xf32>
    %173 = arith.mulf %169, %133 : vector<2x32xf32>
    %174 = arith.mulf %168, %172 : vector<2x32xf32>
    %175 = arith.addf %173, %174 : vector<2x32xf32>
    %176 = math.tanh %175 : vector<2x32xf32>
    %177 = arith.mulf %170, %176 : vector<2x32xf32>
    %cst_82 = arith.constant dense<0.000000e+00> : vector<2x8xf32>
    %178 = tpu.matmul %177, %3, %cst_82 {dimension_numbers = #tpu.dot_dimension_numbers<[1], [0], [0], [1], [0, 0, 1, 1], [], []>} : vector<2x32xf32>, vector<32x8xf32>, vector<2x8xf32> -> vector<2x8xf32>
    %cst_83 = arith.constant dense<0.000000e+00> : vector<2x8xf32>
    %179 = tpu.matmul %175, %4, %cst_83 {dimension_numbers = #tpu.dot_dimension_numbers<[1], [0], [0], [1], [0, 0, 1, 1], [], []>} : vector<2x32xf32>, vector<32x8xf32>, vector<2x8xf32> -> vector<2x8xf32>
    %180 = arith.addf %178, %179 : vector<2x8xf32>
    %181 = arith.addf %180, %20 : vector<2x8xf32>
    %182 = vector.shape_cast %181 : vector<2x8xf32> to vector<2x1x8xf32>
    %183 = vector.broadcast %182 : vector<2x1x8xf32> to vector<2x4x8xf32>
    %184 = arith.addf %183, %49 : vector<2x4x8xf32>
    %185 = math.tanh %184 : vector<2x4x8xf32>
    %186 = arith.mulf %185, %42 : vector<2x4x8xf32>
    %cst_84 = arith.constant dense<0.000000e+00> : vector<2x4xf32>
    %187 = vector.multi_reduction <add>, %186, %cst_84 [2] : vector<2x4x8xf32> to vector<2x4xf32>
    %cst_85 = arith.constant dense<0xFF800000> : vector<2xf32>
    %188 = vector.multi_reduction <maximumf>, %187, %cst_85 [1] : vector<2x4xf32> to vector<2xf32>
    %189 = vector.shape_cast %188 : vector<2xf32> to vector<2x1xf32>
    %190 = vector.broadcast %189 : vector<2x1xf32> to vector<2x4xf32>
    %191 = arith.subf %187, %190 : vector<2x4xf32>
    %192 = math.exp %191 : vector<2x4xf32>
    %cst_86 = arith.constant dense<0.000000e+00> : vector<2xf32>
    %193 = vector.multi_reduction <add>, %192, %cst_86 [1] : vector<2x4xf32> to vector<2xf32>
    %194 = vector.shape_cast %193 : vector<2xf32> to vector<2x1xf32>
    %195 = tpu.reciprocal %194 {approx = true} : vector<2x1xf32> -> vector<2x1xf32>
    %196 = vector.broadcast %195 : vector<2x1xf32> to vector<2x4xf32>
    %197 = arith.mulf %192, %196 : vector<2x4xf32>
    %198 = vector.extract_strided_slice %0 {offsets = [0, 3, 0], sizes = [2, 1, 4], strides = [1, 1, 1]} : vector<2x8x4xf32> to vector<2x1x4xf32>
    %199 = vector.shape_cast %198 : vector<2x1x4xf32> to vector<2x4xf32>
    %200 = arith.mulf %197, %199 : vector<2x4xf32>
    %cst_87 = arith.constant dense<0.000000e+00> : vector<2x128xf32>
    %201 = tpu.matmul %200, %6, %cst_87 {dimension_numbers = #tpu.dot_dimension_numbers<[1], [0], [0], [1], [0, 0, 1, 1], [], []>} : vector<2x4xf32>, vector<4x128xf32>, vector<2x128xf32> -> vector<2x128xf32>
    %cst_88 = arith.constant dense<0.000000e+00> : vector<2x128xf32>
    %202 = tpu.matmul %177, %7, %cst_88 {dimension_numbers = #tpu.dot_dimension_numbers<[1], [0], [0], [1], [0, 0, 1, 1], [], []>} : vector<2x32xf32>, vector<32x128xf32>, vector<2x128xf32> -> vector<2x128xf32>
    %203 = arith.addf %201, %202 : vector<2x128xf32>
    %204 = arith.addf %203, %23 : vector<2x128xf32>
    %205 = arith.negf %204 : vector<2x128xf32>
    %206 = math.exp %205 : vector<2x128xf32>
    %cst_89 = arith.constant 1.000000e+00 : f32
    %207 = vector.broadcast %cst_89 : f32 to vector<2x128xf32>
    %208 = arith.addf %207, %206 : vector<2x128xf32>
    %209 = arith.divf %207, %208 : vector<2x128xf32>
    %210 = vector.extract_strided_slice %209 {offsets = [0, 0], sizes = [2, 32], strides = [1, 1]} : vector<2x128xf32> to vector<2x32xf32>
    %211 = vector.extract_strided_slice %209 {offsets = [0, 32], sizes = [2, 32], strides = [1, 1]} : vector<2x128xf32> to vector<2x32xf32>
    %212 = vector.extract_strided_slice %209 {offsets = [0, 96], sizes = [2, 32], strides = [1, 1]} : vector<2x128xf32> to vector<2x32xf32>
    %213 = vector.extract_strided_slice %204 {offsets = [0, 64], sizes = [2, 32], strides = [1, 1]} : vector<2x128xf32> to vector<2x32xf32>
    %214 = math.tanh %213 : vector<2x32xf32>
    %215 = arith.mulf %211, %175 : vector<2x32xf32>
    %216 = arith.mulf %210, %214 : vector<2x32xf32>
    %217 = arith.addf %215, %216 : vector<2x32xf32>
    %218 = math.tanh %217 : vector<2x32xf32>
    %219 = arith.mulf %212, %218 : vector<2x32xf32>
    %cst_90 = arith.constant dense<0.000000e+00> : vector<2x8xf32>
    %220 = tpu.matmul %219, %3, %cst_90 {dimension_numbers = #tpu.dot_dimension_numbers<[1], [0], [0], [1], [0, 0, 1, 1], [], []>} : vector<2x32xf32>, vector<32x8xf32>, vector<2x8xf32> -> vector<2x8xf32>
    %cst_91 = arith.constant dense<0.000000e+00> : vector<2x8xf32>
    %221 = tpu.matmul %217, %4, %cst_91 {dimension_numbers = #tpu.dot_dimension_numbers<[1], [0], [0], [1], [0, 0, 1, 1], [], []>} : vector<2x32xf32>, vector<32x8xf32>, vector<2x8xf32> -> vector<2x8xf32>
    %222 = arith.addf %220, %221 : vector<2x8xf32>
    %223 = arith.addf %222, %20 : vector<2x8xf32>
    %224 = vector.shape_cast %223 : vector<2x8xf32> to vector<2x1x8xf32>
    %225 = vector.broadcast %224 : vector<2x1x8xf32> to vector<2x4x8xf32>
    %226 = arith.addf %225, %49 : vector<2x4x8xf32>
    %227 = math.tanh %226 : vector<2x4x8xf32>
    %228 = arith.mulf %227, %42 : vector<2x4x8xf32>
    %cst_92 = arith.constant dense<0.000000e+00> : vector<2x4xf32>
    %229 = vector.multi_reduction <add>, %228, %cst_92 [2] : vector<2x4x8xf32> to vector<2x4xf32>
    %cst_93 = arith.constant dense<0xFF800000> : vector<2xf32>
    %230 = vector.multi_reduction <maximumf>, %229, %cst_93 [1] : vector<2x4xf32> to vector<2xf32>
    %231 = vector.shape_cast %230 : vector<2xf32> to vector<2x1xf32>
    %232 = vector.broadcast %231 : vector<2x1xf32> to vector<2x4xf32>
    %233 = arith.subf %229, %232 : vector<2x4xf32>
    %234 = math.exp %233 : vector<2x4xf32>
    %cst_94 = arith.constant dense<0.000000e+00> : vector<2xf32>
    %235 = vector.multi_reduction <add>, %234, %cst_94 [1] : vector<2x4xf32> to vector<2xf32>
    %236 = vector.shape_cast %235 : vector<2xf32> to vector<2x1xf32>
    %237 = tpu.reciprocal %236 {approx = true} : vector<2x1xf32> -> vector<2x1xf32>
    %238 = vector.broadcast %237 : vector<2x1xf32> to vector<2x4xf32>
    %239 = arith.mulf %234, %238 : vector<2x4xf32>
    %240 = vector.extract_strided_slice %0 {offsets = [0, 4, 0], sizes = [2, 1, 4], strides = [1, 1, 1]} : vector<2x8x4xf32> to vector<2x1x4xf32>
    %241 = vector.shape_cast %240 : vector<2x1x4xf32> to vector<2x4xf32>
    %242 = arith.mulf %239, %241 : vector<2x4xf32>
    %cst_95 = arith.constant dense<0.000000e+00> : vector<2x128xf32>
    %243 = tpu.matmul %242, %6, %cst_95 {dimension_numbers = #tpu.dot_dimension_numbers<[1], [0], [0], [1], [0, 0, 1, 1], [], []>} : vector<2x4xf32>, vector<4x128xf32>, vector<2x128xf32> -> vector<2x128xf32>
    %cst_96 = arith.constant dense<0.000000e+00> : vector<2x128xf32>
    %244 = tpu.matmul %219, %7, %cst_96 {dimension_numbers = #tpu.dot_dimension_numbers<[1], [0], [0], [1], [0, 0, 1, 1], [], []>} : vector<2x32xf32>, vector<32x128xf32>, vector<2x128xf32> -> vector<2x128xf32>
    %245 = arith.addf %243, %244 : vector<2x128xf32>
    %246 = arith.addf %245, %23 : vector<2x128xf32>
    %247 = arith.negf %246 : vector<2x128xf32>
    %248 = math.exp %247 : vector<2x128xf32>
    %cst_97 = arith.constant 1.000000e+00 : f32
    %249 = vector.broadcast %cst_97 : f32 to vector<2x128xf32>
    %250 = arith.addf %249, %248 : vector<2x128xf32>
    %251 = arith.divf %249, %250 : vector<2x128xf32>
    %252 = vector.extract_strided_slice %251 {offsets = [0, 0], sizes = [2, 32], strides = [1, 1]} : vector<2x128xf32> to vector<2x32xf32>
    %253 = vector.extract_strided_slice %251 {offsets = [0, 32], sizes = [2, 32], strides = [1, 1]} : vector<2x128xf32> to vector<2x32xf32>
    %254 = vector.extract_strided_slice %251 {offsets = [0, 96], sizes = [2, 32], strides = [1, 1]} : vector<2x128xf32> to vector<2x32xf32>
    %255 = vector.extract_strided_slice %246 {offsets = [0, 64], sizes = [2, 32], strides = [1, 1]} : vector<2x128xf32> to vector<2x32xf32>
    %256 = math.tanh %255 : vector<2x32xf32>
    %257 = arith.mulf %253, %217 : vector<2x32xf32>
    %258 = arith.mulf %252, %256 : vector<2x32xf32>
    %259 = arith.addf %257, %258 : vector<2x32xf32>
    %260 = math.tanh %259 : vector<2x32xf32>
    %261 = arith.mulf %254, %260 : vector<2x32xf32>
    %cst_98 = arith.constant dense<0.000000e+00> : vector<2x8xf32>
    %262 = tpu.matmul %261, %3, %cst_98 {dimension_numbers = #tpu.dot_dimension_numbers<[1], [0], [0], [1], [0, 0, 1, 1], [], []>} : vector<2x32xf32>, vector<32x8xf32>, vector<2x8xf32> -> vector<2x8xf32>
    %cst_99 = arith.constant dense<0.000000e+00> : vector<2x8xf32>
    %263 = tpu.matmul %259, %4, %cst_99 {dimension_numbers = #tpu.dot_dimension_numbers<[1], [0], [0], [1], [0, 0, 1, 1], [], []>} : vector<2x32xf32>, vector<32x8xf32>, vector<2x8xf32> -> vector<2x8xf32>
    %264 = arith.addf %262, %263 : vector<2x8xf32>
    %265 = arith.addf %264, %20 : vector<2x8xf32>
    %266 = vector.shape_cast %265 : vector<2x8xf32> to vector<2x1x8xf32>
    %267 = vector.broadcast %266 : vector<2x1x8xf32> to vector<2x4x8xf32>
    %268 = arith.addf %267, %49 : vector<2x4x8xf32>
    %269 = math.tanh %268 : vector<2x4x8xf32>
    %270 = arith.mulf %269, %42 : vector<2x4x8xf32>
    %cst_100 = arith.constant dense<0.000000e+00> : vector<2x4xf32>
    %271 = vector.multi_reduction <add>, %270, %cst_100 [2] : vector<2x4x8xf32> to vector<2x4xf32>
    %cst_101 = arith.constant dense<0xFF800000> : vector<2xf32>
    %272 = vector.multi_reduction <maximumf>, %271, %cst_101 [1] : vector<2x4xf32> to vector<2xf32>
    %273 = vector.shape_cast %272 : vector<2xf32> to vector<2x1xf32>
    %274 = vector.broadcast %273 : vector<2x1xf32> to vector<2x4xf32>
    %275 = arith.subf %271, %274 : vector<2x4xf32>
    %276 = math.exp %275 : vector<2x4xf32>
    %cst_102 = arith.constant dense<0.000000e+00> : vector<2xf32>
    %277 = vector.multi_reduction <add>, %276, %cst_102 [1] : vector<2x4xf32> to vector<2xf32>
    %278 = vector.shape_cast %277 : vector<2xf32> to vector<2x1xf32>
    %279 = tpu.reciprocal %278 {approx = true} : vector<2x1xf32> -> vector<2x1xf32>
    %280 = vector.broadcast %279 : vector<2x1xf32> to vector<2x4xf32>
    %281 = arith.mulf %276, %280 : vector<2x4xf32>
    %282 = vector.extract_strided_slice %0 {offsets = [0, 5, 0], sizes = [2, 1, 4], strides = [1, 1, 1]} : vector<2x8x4xf32> to vector<2x1x4xf32>
    %283 = vector.shape_cast %282 : vector<2x1x4xf32> to vector<2x4xf32>
    %284 = arith.mulf %281, %283 : vector<2x4xf32>
    %cst_103 = arith.constant dense<0.000000e+00> : vector<2x128xf32>
    %285 = tpu.matmul %284, %6, %cst_103 {dimension_numbers = #tpu.dot_dimension_numbers<[1], [0], [0], [1], [0, 0, 1, 1], [], []>} : vector<2x4xf32>, vector<4x128xf32>, vector<2x128xf32> -> vector<2x128xf32>
    %cst_104 = arith.constant dense<0.000000e+00> : vector<2x128xf32>
    %286 = tpu.matmul %261, %7, %cst_104 {dimension_numbers = #tpu.dot_dimension_numbers<[1], [0], [0], [1], [0, 0, 1, 1], [], []>} : vector<2x32xf32>, vector<32x128xf32>, vector<2x128xf32> -> vector<2x128xf32>
    %287 = arith.addf %285, %286 : vector<2x128xf32>
    %288 = arith.addf %287, %23 : vector<2x128xf32>
    %289 = arith.negf %288 : vector<2x128xf32>
    %290 = math.exp %289 : vector<2x128xf32>
    %cst_105 = arith.constant 1.000000e+00 : f32
    %291 = vector.broadcast %cst_105 : f32 to vector<2x128xf32>
    %292 = arith.addf %291, %290 : vector<2x128xf32>
    %293 = arith.divf %291, %292 : vector<2x128xf32>
    %294 = vector.extract_strided_slice %293 {offsets = [0, 0], sizes = [2, 32], strides = [1, 1]} : vector<2x128xf32> to vector<2x32xf32>
    %295 = vector.extract_strided_slice %293 {offsets = [0, 32], sizes = [2, 32], strides = [1, 1]} : vector<2x128xf32> to vector<2x32xf32>
    %296 = vector.extract_strided_slice %293 {offsets = [0, 96], sizes = [2, 32], strides = [1, 1]} : vector<2x128xf32> to vector<2x32xf32>
    %297 = vector.extract_strided_slice %288 {offsets = [0, 64], sizes = [2, 32], strides = [1, 1]} : vector<2x128xf32> to vector<2x32xf32>
    %298 = math.tanh %297 : vector<2x32xf32>
    %299 = arith.mulf %295, %259 : vector<2x32xf32>
    %300 = arith.mulf %294, %298 : vector<2x32xf32>
    %301 = arith.addf %299, %300 : vector<2x32xf32>
    %302 = math.tanh %301 : vector<2x32xf32>
    %303 = arith.mulf %296, %302 : vector<2x32xf32>
    %cst_106 = arith.constant dense<0.000000e+00> : vector<2x8xf32>
    %304 = tpu.matmul %303, %3, %cst_106 {dimension_numbers = #tpu.dot_dimension_numbers<[1], [0], [0], [1], [0, 0, 1, 1], [], []>} : vector<2x32xf32>, vector<32x8xf32>, vector<2x8xf32> -> vector<2x8xf32>
    %cst_107 = arith.constant dense<0.000000e+00> : vector<2x8xf32>
    %305 = tpu.matmul %301, %4, %cst_107 {dimension_numbers = #tpu.dot_dimension_numbers<[1], [0], [0], [1], [0, 0, 1, 1], [], []>} : vector<2x32xf32>, vector<32x8xf32>, vector<2x8xf32> -> vector<2x8xf32>
    %306 = arith.addf %304, %305 : vector<2x8xf32>
    %307 = arith.addf %306, %20 : vector<2x8xf32>
    %308 = vector.shape_cast %307 : vector<2x8xf32> to vector<2x1x8xf32>
    %309 = vector.broadcast %308 : vector<2x1x8xf32> to vector<2x4x8xf32>
    %310 = arith.addf %309, %49 : vector<2x4x8xf32>
    %311 = math.tanh %310 : vector<2x4x8xf32>
    %312 = arith.mulf %311, %42 : vector<2x4x8xf32>
    %cst_108 = arith.constant dense<0.000000e+00> : vector<2x4xf32>
    %313 = vector.multi_reduction <add>, %312, %cst_108 [2] : vector<2x4x8xf32> to vector<2x4xf32>
    %cst_109 = arith.constant dense<0xFF800000> : vector<2xf32>
    %314 = vector.multi_reduction <maximumf>, %313, %cst_109 [1] : vector<2x4xf32> to vector<2xf32>
    %315 = vector.shape_cast %314 : vector<2xf32> to vector<2x1xf32>
    %316 = vector.broadcast %315 : vector<2x1xf32> to vector<2x4xf32>
    %317 = arith.subf %313, %316 : vector<2x4xf32>
    %318 = math.exp %317 : vector<2x4xf32>
    %cst_110 = arith.constant dense<0.000000e+00> : vector<2xf32>
    %319 = vector.multi_reduction <add>, %318, %cst_110 [1] : vector<2x4xf32> to vector<2xf32>
    %320 = vector.shape_cast %319 : vector<2xf32> to vector<2x1xf32>
    %321 = tpu.reciprocal %320 {approx = true} : vector<2x1xf32> -> vector<2x1xf32>
    %322 = vector.broadcast %321 : vector<2x1xf32> to vector<2x4xf32>
    %323 = arith.mulf %318, %322 : vector<2x4xf32>
    %324 = vector.extract_strided_slice %0 {offsets = [0, 6, 0], sizes = [2, 1, 4], strides = [1, 1, 1]} : vector<2x8x4xf32> to vector<2x1x4xf32>
    %325 = vector.shape_cast %324 : vector<2x1x4xf32> to vector<2x4xf32>
    %326 = arith.mulf %323, %325 : vector<2x4xf32>
    %cst_111 = arith.constant dense<0.000000e+00> : vector<2x128xf32>
    %327 = tpu.matmul %326, %6, %cst_111 {dimension_numbers = #tpu.dot_dimension_numbers<[1], [0], [0], [1], [0, 0, 1, 1], [], []>} : vector<2x4xf32>, vector<4x128xf32>, vector<2x128xf32> -> vector<2x128xf32>
    %cst_112 = arith.constant dense<0.000000e+00> : vector<2x128xf32>
    %328 = tpu.matmul %303, %7, %cst_112 {dimension_numbers = #tpu.dot_dimension_numbers<[1], [0], [0], [1], [0, 0, 1, 1], [], []>} : vector<2x32xf32>, vector<32x128xf32>, vector<2x128xf32> -> vector<2x128xf32>
    %329 = arith.addf %327, %328 : vector<2x128xf32>
    %330 = arith.addf %329, %23 : vector<2x128xf32>
    %331 = arith.negf %330 : vector<2x128xf32>
    %332 = math.exp %331 : vector<2x128xf32>
    %cst_113 = arith.constant 1.000000e+00 : f32
    %333 = vector.broadcast %cst_113 : f32 to vector<2x128xf32>
    %334 = arith.addf %333, %332 : vector<2x128xf32>
    %335 = arith.divf %333, %334 : vector<2x128xf32>
    %336 = vector.extract_strided_slice %335 {offsets = [0, 0], sizes = [2, 32], strides = [1, 1]} : vector<2x128xf32> to vector<2x32xf32>
    %337 = vector.extract_strided_slice %335 {offsets = [0, 32], sizes = [2, 32], strides = [1, 1]} : vector<2x128xf32> to vector<2x32xf32>
    %338 = vector.extract_strided_slice %335 {offsets = [0, 96], sizes = [2, 32], strides = [1, 1]} : vector<2x128xf32> to vector<2x32xf32>
    %339 = vector.extract_strided_slice %330 {offsets = [0, 64], sizes = [2, 32], strides = [1, 1]} : vector<2x128xf32> to vector<2x32xf32>
    %340 = math.tanh %339 : vector<2x32xf32>
    %341 = arith.mulf %337, %301 : vector<2x32xf32>
    %342 = arith.mulf %336, %340 : vector<2x32xf32>
    %343 = arith.addf %341, %342 : vector<2x32xf32>
    %344 = math.tanh %343 : vector<2x32xf32>
    %345 = arith.mulf %338, %344 : vector<2x32xf32>
    %cst_114 = arith.constant dense<0.000000e+00> : vector<2x8xf32>
    %346 = tpu.matmul %345, %3, %cst_114 {dimension_numbers = #tpu.dot_dimension_numbers<[1], [0], [0], [1], [0, 0, 1, 1], [], []>} : vector<2x32xf32>, vector<32x8xf32>, vector<2x8xf32> -> vector<2x8xf32>
    %cst_115 = arith.constant dense<0.000000e+00> : vector<2x8xf32>
    %347 = tpu.matmul %343, %4, %cst_115 {dimension_numbers = #tpu.dot_dimension_numbers<[1], [0], [0], [1], [0, 0, 1, 1], [], []>} : vector<2x32xf32>, vector<32x8xf32>, vector<2x8xf32> -> vector<2x8xf32>
    %348 = arith.addf %346, %347 : vector<2x8xf32>
    %349 = arith.addf %348, %20 : vector<2x8xf32>
    %350 = vector.shape_cast %349 : vector<2x8xf32> to vector<2x1x8xf32>
    %351 = vector.broadcast %350 : vector<2x1x8xf32> to vector<2x4x8xf32>
    %352 = arith.addf %351, %49 : vector<2x4x8xf32>
    %353 = math.tanh %352 : vector<2x4x8xf32>
    %354 = arith.mulf %353, %42 : vector<2x4x8xf32>
    %cst_116 = arith.constant dense<0.000000e+00> : vector<2x4xf32>
    %355 = vector.multi_reduction <add>, %354, %cst_116 [2] : vector<2x4x8xf32> to vector<2x4xf32>
    %cst_117 = arith.constant dense<0xFF800000> : vector<2xf32>
    %356 = vector.multi_reduction <maximumf>, %355, %cst_117 [1] : vector<2x4xf32> to vector<2xf32>
    %357 = vector.shape_cast %356 : vector<2xf32> to vector<2x1xf32>
    %358 = vector.broadcast %357 : vector<2x1xf32> to vector<2x4xf32>
    %359 = arith.subf %355, %358 : vector<2x4xf32>
    %360 = math.exp %359 : vector<2x4xf32>
    %cst_118 = arith.constant dense<0.000000e+00> : vector<2xf32>
    %361 = vector.multi_reduction <add>, %360, %cst_118 [1] : vector<2x4xf32> to vector<2xf32>
    %362 = vector.shape_cast %361 : vector<2xf32> to vector<2x1xf32>
    %363 = tpu.reciprocal %362 {approx = true} : vector<2x1xf32> -> vector<2x1xf32>
    %364 = vector.broadcast %363 : vector<2x1xf32> to vector<2x4xf32>
    %365 = arith.mulf %360, %364 : vector<2x4xf32>
    %366 = vector.extract_strided_slice %0 {offsets = [0, 7, 0], sizes = [2, 1, 4], strides = [1, 1, 1]} : vector<2x8x4xf32> to vector<2x1x4xf32>
    %367 = vector.shape_cast %366 : vector<2x1x4xf32> to vector<2x4xf32>
    %368 = arith.mulf %365, %367 : vector<2x4xf32>
    %cst_119 = arith.constant dense<0.000000e+00> : vector<2x128xf32>
    %369 = tpu.matmul %368, %6, %cst_119 {dimension_numbers = #tpu.dot_dimension_numbers<[1], [0], [0], [1], [0, 0, 1, 1], [], []>} : vector<2x4xf32>, vector<4x128xf32>, vector<2x128xf32> -> vector<2x128xf32>
    %cst_120 = arith.constant dense<0.000000e+00> : vector<2x128xf32>
    %370 = tpu.matmul %345, %7, %cst_120 {dimension_numbers = #tpu.dot_dimension_numbers<[1], [0], [0], [1], [0, 0, 1, 1], [], []>} : vector<2x32xf32>, vector<32x128xf32>, vector<2x128xf32> -> vector<2x128xf32>
    %371 = arith.addf %369, %370 : vector<2x128xf32>
    %372 = arith.addf %371, %23 : vector<2x128xf32>
    %373 = arith.negf %372 : vector<2x128xf32>
    %374 = math.exp %373 : vector<2x128xf32>
    %cst_121 = arith.constant 1.000000e+00 : f32
    %375 = vector.broadcast %cst_121 : f32 to vector<2x128xf32>
    %376 = arith.addf %375, %374 : vector<2x128xf32>
    %377 = arith.divf %375, %376 : vector<2x128xf32>
    %378 = vector.extract_strided_slice %377 {offsets = [0, 0], sizes = [2, 32], strides = [1, 1]} : vector<2x128xf32> to vector<2x32xf32>
    %379 = vector.extract_strided_slice %377 {offsets = [0, 32], sizes = [2, 32], strides = [1, 1]} : vector<2x128xf32> to vector<2x32xf32>
    %380 = vector.extract_strided_slice %377 {offsets = [0, 96], sizes = [2, 32], strides = [1, 1]} : vector<2x128xf32> to vector<2x32xf32>
    %381 = vector.extract_strided_slice %372 {offsets = [0, 64], sizes = [2, 32], strides = [1, 1]} : vector<2x128xf32> to vector<2x32xf32>
    %382 = math.tanh %381 : vector<2x32xf32>
    %383 = arith.mulf %379, %343 : vector<2x32xf32>
    %384 = arith.mulf %378, %382 : vector<2x32xf32>
    %385 = arith.addf %383, %384 : vector<2x32xf32>
    %386 = math.tanh %385 : vector<2x32xf32>
    %387 = arith.mulf %380, %386 : vector<2x32xf32>
    %388 = vector.shape_cast %93 : vector<2x32xf32> to vector<2x1x32xf32>
    %389 = vector.shape_cast %135 : vector<2x32xf32> to vector<2x1x32xf32>
    %390 = vector.shape_cast %177 : vector<2x32xf32> to vector<2x1x32xf32>
    %391 = vector.shape_cast %219 : vector<2x32xf32> to vector<2x1x32xf32>
    %392 = vector.shape_cast %261 : vector<2x32xf32> to vector<2x1x32xf32>
    %393 = vector.shape_cast %303 : vector<2x32xf32> to vector<2x1x32xf32>
    %394 = vector.shape_cast %345 : vector<2x32xf32> to vector<2x1x32xf32>
    %395 = vector.shape_cast %387 : vector<2x32xf32> to vector<2x1x32xf32>
    %396 = tpu.concatenate %388, %389, %390, %391, %392, %393, %394, %395 in 1 : vector<2x1x32xf32>, vector<2x1x32xf32>, vector<2x1x32xf32>, vector<2x1x32xf32>, vector<2x1x32xf32>, vector<2x1x32xf32>, vector<2x1x32xf32>, vector<2x1x32xf32> -> vector<2x8x32xf32>
    %397 = vector.shape_cast %396 : vector<2x8x32xf32> to vector<16x32xf32>
    %cst_122 = arith.constant dense<0.000000e+00> : vector<16x32xf32>
    %398 = tpu.matmul %397, %10, %cst_122 {dimension_numbers = #tpu.dot_dimension_numbers<[1], [0], [0], [1], [0, 0, 1, 1], [], []>} : vector<16x32xf32>, vector<32x32xf32>, vector<16x32xf32> -> vector<16x32xf32>
    %399 = vector.shape_cast %398 : vector<16x32xf32> to vector<2x8x32xf32>
    %cst_123 = arith.constant 0.000000e+00 : f32
    %400 = vector.broadcast %cst_123 : f32 to vector<2x32xf32>
    %cst_124 = arith.constant 0.000000e+00 : f32
    %401 = vector.broadcast %cst_124 : f32 to vector<2x32xf32>
    %cst_125 = arith.constant dense<0.000000e+00> : vector<2x32xf32>
    %402 = tpu.matmul %400, %8, %cst_125 {dimension_numbers = #tpu.dot_dimension_numbers<[1], [0], [0], [1], [0, 0, 1, 1], [], []>} : vector<2x32xf32>, vector<32x32xf32>, vector<2x32xf32> -> vector<2x32xf32>
    %cst_126 = arith.constant dense<0.000000e+00> : vector<2x32xf32>
    %403 = tpu.matmul %401, %9, %cst_126 {dimension_numbers = #tpu.dot_dimension_numbers<[1], [0], [0], [1], [0, 0, 1, 1], [], []>} : vector<2x32xf32>, vector<32x32xf32>, vector<2x32xf32> -> vector<2x32xf32>
    %404 = arith.addf %402, %403 : vector<2x32xf32>
    %405 = arith.addf %404, %26 : vector<2x32xf32>
    %406 = vector.shape_cast %405 : vector<2x32xf32> to vector<2x1x32xf32>
    %407 = vector.broadcast %406 : vector<2x1x32xf32> to vector<2x8x32xf32>
    %408 = arith.addf %407, %399 : vector<2x8x32xf32>
    %409 = math.tanh %408 : vector<2x8x32xf32>
    %410 = arith.mulf %409, %46 : vector<2x8x32xf32>
    %cst_127 = arith.constant dense<0.000000e+00> : vector<2x8xf32>
    %411 = vector.multi_reduction <add>, %410, %cst_127 [2] : vector<2x8x32xf32> to vector<2x8xf32>
    %cst_128 = arith.constant dense<0xFF800000> : vector<2xf32>
    %412 = vector.multi_reduction <maximumf>, %411, %cst_128 [1] : vector<2x8xf32> to vector<2xf32>
    %413 = vector.shape_cast %412 : vector<2xf32> to vector<2x1xf32>
    %414 = vector.broadcast %413 : vector<2x1xf32> to vector<2x8xf32>
    %415 = arith.subf %411, %414 : vector<2x8xf32>
    %416 = math.exp %415 : vector<2x8xf32>
    %cst_129 = arith.constant dense<0.000000e+00> : vector<2xf32>
    %417 = vector.multi_reduction <add>, %416, %cst_129 [1] : vector<2x8xf32> to vector<2xf32>
    %418 = vector.shape_cast %417 : vector<2xf32> to vector<2x1xf32>
    %419 = tpu.reciprocal %418 {approx = true} : vector<2x1xf32> -> vector<2x1xf32>
    %420 = vector.broadcast %419 : vector<2x1xf32> to vector<2x8xf32>
    %421 = arith.mulf %416, %420 : vector<2x8xf32>
    %422 = vector.shape_cast %421 : vector<2x8xf32> to vector<2x8x1xf32>
    %423 = vector.broadcast %422 : vector<2x8x1xf32> to vector<2x8x32xf32>
    %424 = arith.mulf %423, %396 : vector<2x8x32xf32>
    %cst_130 = arith.constant dense<0.000000e+00> : vector<2x32xf32>
    %425 = vector.multi_reduction <add>, %424, %cst_130 [1] : vector<2x8x32xf32> to vector<2x32xf32>
    %cst_131 = arith.constant dense<0.000000e+00> : vector<2x1xf32>
    %426 = tpu.matmul %425, %11, %cst_131 {dimension_numbers = #tpu.dot_dimension_numbers<[1], [0], [0], [1], [0, 0, 1, 1], [], []>} : vector<2x32xf32>, vector<32x1xf32>, vector<2x1xf32> -> vector<2x1xf32>
    %427 = vector.extract_strided_slice %2 {offsets = [0, 0, 0], sizes = [2, 1, 1], strides = [1, 1, 1]} : vector<2x8x1xf32> to vector<2x1x1xf32>
    %428 = vector.shape_cast %427 : vector<2x1x1xf32> to vector<2x1xf32>
    %429 = vector.broadcast %12 : vector<1x1xf32> to vector<2x1xf32>
    %430 = arith.mulf %428, %429 : vector<2x1xf32>
    %431 = arith.addf %426, %430 : vector<2x1xf32>
    %432 = arith.addf %431, %29 : vector<2x1xf32>
    %433 = vector.broadcast %432 : vector<2x1xf32> to vector<2x128xf32>
    %434 = vector.broadcast %13 : vector<1x128xf32> to vector<2x128xf32>
    %435 = arith.mulf %433, %434 : vector<2x128xf32>
    %cst_132 = arith.constant dense<0.000000e+00> : vector<2x128xf32>
    %436 = tpu.matmul %400, %14, %cst_132 {dimension_numbers = #tpu.dot_dimension_numbers<[1], [0], [0], [1], [0, 0, 1, 1], [], []>} : vector<2x32xf32>, vector<32x128xf32>, vector<2x128xf32> -> vector<2x128xf32>
    %437 = arith.addf %435, %436 : vector<2x128xf32>
    %438 = arith.addf %437, %32 : vector<2x128xf32>
    %439 = arith.negf %438 : vector<2x128xf32>
    %440 = math.exp %439 : vector<2x128xf32>
    %cst_133 = arith.constant 1.000000e+00 : f32
    %441 = vector.broadcast %cst_133 : f32 to vector<2x128xf32>
    %442 = arith.addf %441, %440 : vector<2x128xf32>
    %443 = arith.divf %441, %442 : vector<2x128xf32>
    %444 = vector.extract_strided_slice %443 {offsets = [0, 0], sizes = [2, 32], strides = [1, 1]} : vector<2x128xf32> to vector<2x32xf32>
    %445 = vector.extract_strided_slice %443 {offsets = [0, 32], sizes = [2, 32], strides = [1, 1]} : vector<2x128xf32> to vector<2x32xf32>
    %446 = vector.extract_strided_slice %443 {offsets = [0, 96], sizes = [2, 32], strides = [1, 1]} : vector<2x128xf32> to vector<2x32xf32>
    %447 = vector.extract_strided_slice %438 {offsets = [0, 64], sizes = [2, 32], strides = [1, 1]} : vector<2x128xf32> to vector<2x32xf32>
    %448 = math.tanh %447 : vector<2x32xf32>
    %449 = arith.mulf %445, %401 : vector<2x32xf32>
    %450 = arith.mulf %444, %448 : vector<2x32xf32>
    %451 = arith.addf %449, %450 : vector<2x32xf32>
    %452 = math.tanh %451 : vector<2x32xf32>
    %453 = arith.mulf %446, %452 : vector<2x32xf32>
    %cst_134 = arith.constant dense<0.000000e+00> : vector<2x32xf32>
    %454 = tpu.matmul %453, %8, %cst_134 {dimension_numbers = #tpu.dot_dimension_numbers<[1], [0], [0], [1], [0, 0, 1, 1], [], []>} : vector<2x32xf32>, vector<32x32xf32>, vector<2x32xf32> -> vector<2x32xf32>
    %cst_135 = arith.constant dense<0.000000e+00> : vector<2x32xf32>
    %455 = tpu.matmul %451, %9, %cst_135 {dimension_numbers = #tpu.dot_dimension_numbers<[1], [0], [0], [1], [0, 0, 1, 1], [], []>} : vector<2x32xf32>, vector<32x32xf32>, vector<2x32xf32> -> vector<2x32xf32>
    %456 = arith.addf %454, %455 : vector<2x32xf32>
    %457 = arith.addf %456, %26 : vector<2x32xf32>
    %458 = vector.shape_cast %457 : vector<2x32xf32> to vector<2x1x32xf32>
    %459 = vector.broadcast %458 : vector<2x1x32xf32> to vector<2x8x32xf32>
    %460 = arith.addf %459, %399 : vector<2x8x32xf32>
    %461 = math.tanh %460 : vector<2x8x32xf32>
    %462 = arith.mulf %461, %46 : vector<2x8x32xf32>
    %cst_136 = arith.constant dense<0.000000e+00> : vector<2x8xf32>
    %463 = vector.multi_reduction <add>, %462, %cst_136 [2] : vector<2x8x32xf32> to vector<2x8xf32>
    %cst_137 = arith.constant dense<0xFF800000> : vector<2xf32>
    %464 = vector.multi_reduction <maximumf>, %463, %cst_137 [1] : vector<2x8xf32> to vector<2xf32>
    %465 = vector.shape_cast %464 : vector<2xf32> to vector<2x1xf32>
    %466 = vector.broadcast %465 : vector<2x1xf32> to vector<2x8xf32>
    %467 = arith.subf %463, %466 : vector<2x8xf32>
    %468 = math.exp %467 : vector<2x8xf32>
    %cst_138 = arith.constant dense<0.000000e+00> : vector<2xf32>
    %469 = vector.multi_reduction <add>, %468, %cst_138 [1] : vector<2x8xf32> to vector<2xf32>
    %470 = vector.shape_cast %469 : vector<2xf32> to vector<2x1xf32>
    %471 = tpu.reciprocal %470 {approx = true} : vector<2x1xf32> -> vector<2x1xf32>
    %472 = vector.broadcast %471 : vector<2x1xf32> to vector<2x8xf32>
    %473 = arith.mulf %468, %472 : vector<2x8xf32>
    %474 = vector.shape_cast %473 : vector<2x8xf32> to vector<2x8x1xf32>
    %475 = vector.broadcast %474 : vector<2x8x1xf32> to vector<2x8x32xf32>
    %476 = arith.mulf %475, %396 : vector<2x8x32xf32>
    %cst_139 = arith.constant dense<0.000000e+00> : vector<2x32xf32>
    %477 = vector.multi_reduction <add>, %476, %cst_139 [1] : vector<2x8x32xf32> to vector<2x32xf32>
    %cst_140 = arith.constant dense<0.000000e+00> : vector<2x1xf32>
    %478 = tpu.matmul %477, %11, %cst_140 {dimension_numbers = #tpu.dot_dimension_numbers<[1], [0], [0], [1], [0, 0, 1, 1], [], []>} : vector<2x32xf32>, vector<32x1xf32>, vector<2x1xf32> -> vector<2x1xf32>
    %479 = vector.extract_strided_slice %2 {offsets = [0, 1, 0], sizes = [2, 1, 1], strides = [1, 1, 1]} : vector<2x8x1xf32> to vector<2x1x1xf32>
    %480 = vector.shape_cast %479 : vector<2x1x1xf32> to vector<2x1xf32>
    %481 = vector.broadcast %12 : vector<1x1xf32> to vector<2x1xf32>
    %482 = arith.mulf %480, %481 : vector<2x1xf32>
    %483 = arith.addf %478, %482 : vector<2x1xf32>
    %484 = arith.addf %483, %29 : vector<2x1xf32>
    %485 = vector.broadcast %484 : vector<2x1xf32> to vector<2x128xf32>
    %486 = vector.broadcast %13 : vector<1x128xf32> to vector<2x128xf32>
    %487 = arith.mulf %485, %486 : vector<2x128xf32>
    %cst_141 = arith.constant dense<0.000000e+00> : vector<2x128xf32>
    %488 = tpu.matmul %453, %14, %cst_141 {dimension_numbers = #tpu.dot_dimension_numbers<[1], [0], [0], [1], [0, 0, 1, 1], [], []>} : vector<2x32xf32>, vector<32x128xf32>, vector<2x128xf32> -> vector<2x128xf32>
    %489 = arith.addf %487, %488 : vector<2x128xf32>
    %490 = arith.addf %489, %32 : vector<2x128xf32>
    %491 = arith.negf %490 : vector<2x128xf32>
    %492 = math.exp %491 : vector<2x128xf32>
    %cst_142 = arith.constant 1.000000e+00 : f32
    %493 = vector.broadcast %cst_142 : f32 to vector<2x128xf32>
    %494 = arith.addf %493, %492 : vector<2x128xf32>
    %495 = arith.divf %493, %494 : vector<2x128xf32>
    %496 = vector.extract_strided_slice %495 {offsets = [0, 0], sizes = [2, 32], strides = [1, 1]} : vector<2x128xf32> to vector<2x32xf32>
    %497 = vector.extract_strided_slice %495 {offsets = [0, 32], sizes = [2, 32], strides = [1, 1]} : vector<2x128xf32> to vector<2x32xf32>
    %498 = vector.extract_strided_slice %495 {offsets = [0, 96], sizes = [2, 32], strides = [1, 1]} : vector<2x128xf32> to vector<2x32xf32>
    %499 = vector.extract_strided_slice %490 {offsets = [0, 64], sizes = [2, 32], strides = [1, 1]} : vector<2x128xf32> to vector<2x32xf32>
    %500 = math.tanh %499 : vector<2x32xf32>
    %501 = arith.mulf %497, %451 : vector<2x32xf32>
    %502 = arith.mulf %496, %500 : vector<2x32xf32>
    %503 = arith.addf %501, %502 : vector<2x32xf32>
    %504 = math.tanh %503 : vector<2x32xf32>
    %505 = arith.mulf %498, %504 : vector<2x32xf32>
    %cst_143 = arith.constant dense<0.000000e+00> : vector<2x32xf32>
    %506 = tpu.matmul %505, %8, %cst_143 {dimension_numbers = #tpu.dot_dimension_numbers<[1], [0], [0], [1], [0, 0, 1, 1], [], []>} : vector<2x32xf32>, vector<32x32xf32>, vector<2x32xf32> -> vector<2x32xf32>
    %cst_144 = arith.constant dense<0.000000e+00> : vector<2x32xf32>
    %507 = tpu.matmul %503, %9, %cst_144 {dimension_numbers = #tpu.dot_dimension_numbers<[1], [0], [0], [1], [0, 0, 1, 1], [], []>} : vector<2x32xf32>, vector<32x32xf32>, vector<2x32xf32> -> vector<2x32xf32>
    %508 = arith.addf %506, %507 : vector<2x32xf32>
    %509 = arith.addf %508, %26 : vector<2x32xf32>
    %510 = vector.shape_cast %509 : vector<2x32xf32> to vector<2x1x32xf32>
    %511 = vector.broadcast %510 : vector<2x1x32xf32> to vector<2x8x32xf32>
    %512 = arith.addf %511, %399 : vector<2x8x32xf32>
    %513 = math.tanh %512 : vector<2x8x32xf32>
    %514 = arith.mulf %513, %46 : vector<2x8x32xf32>
    %cst_145 = arith.constant dense<0.000000e+00> : vector<2x8xf32>
    %515 = vector.multi_reduction <add>, %514, %cst_145 [2] : vector<2x8x32xf32> to vector<2x8xf32>
    %cst_146 = arith.constant dense<0xFF800000> : vector<2xf32>
    %516 = vector.multi_reduction <maximumf>, %515, %cst_146 [1] : vector<2x8xf32> to vector<2xf32>
    %517 = vector.shape_cast %516 : vector<2xf32> to vector<2x1xf32>
    %518 = vector.broadcast %517 : vector<2x1xf32> to vector<2x8xf32>
    %519 = arith.subf %515, %518 : vector<2x8xf32>
    %520 = math.exp %519 : vector<2x8xf32>
    %cst_147 = arith.constant dense<0.000000e+00> : vector<2xf32>
    %521 = vector.multi_reduction <add>, %520, %cst_147 [1] : vector<2x8xf32> to vector<2xf32>
    %522 = vector.shape_cast %521 : vector<2xf32> to vector<2x1xf32>
    %523 = tpu.reciprocal %522 {approx = true} : vector<2x1xf32> -> vector<2x1xf32>
    %524 = vector.broadcast %523 : vector<2x1xf32> to vector<2x8xf32>
    %525 = arith.mulf %520, %524 : vector<2x8xf32>
    %526 = vector.shape_cast %525 : vector<2x8xf32> to vector<2x8x1xf32>
    %527 = vector.broadcast %526 : vector<2x8x1xf32> to vector<2x8x32xf32>
    %528 = arith.mulf %527, %396 : vector<2x8x32xf32>
    %cst_148 = arith.constant dense<0.000000e+00> : vector<2x32xf32>
    %529 = vector.multi_reduction <add>, %528, %cst_148 [1] : vector<2x8x32xf32> to vector<2x32xf32>
    %cst_149 = arith.constant dense<0.000000e+00> : vector<2x1xf32>
    %530 = tpu.matmul %529, %11, %cst_149 {dimension_numbers = #tpu.dot_dimension_numbers<[1], [0], [0], [1], [0, 0, 1, 1], [], []>} : vector<2x32xf32>, vector<32x1xf32>, vector<2x1xf32> -> vector<2x1xf32>
    %531 = vector.extract_strided_slice %2 {offsets = [0, 2, 0], sizes = [2, 1, 1], strides = [1, 1, 1]} : vector<2x8x1xf32> to vector<2x1x1xf32>
    %532 = vector.shape_cast %531 : vector<2x1x1xf32> to vector<2x1xf32>
    %533 = vector.broadcast %12 : vector<1x1xf32> to vector<2x1xf32>
    %534 = arith.mulf %532, %533 : vector<2x1xf32>
    %535 = arith.addf %530, %534 : vector<2x1xf32>
    %536 = arith.addf %535, %29 : vector<2x1xf32>
    %537 = vector.broadcast %536 : vector<2x1xf32> to vector<2x128xf32>
    %538 = vector.broadcast %13 : vector<1x128xf32> to vector<2x128xf32>
    %539 = arith.mulf %537, %538 : vector<2x128xf32>
    %cst_150 = arith.constant dense<0.000000e+00> : vector<2x128xf32>
    %540 = tpu.matmul %505, %14, %cst_150 {dimension_numbers = #tpu.dot_dimension_numbers<[1], [0], [0], [1], [0, 0, 1, 1], [], []>} : vector<2x32xf32>, vector<32x128xf32>, vector<2x128xf32> -> vector<2x128xf32>
    %541 = arith.addf %539, %540 : vector<2x128xf32>
    %542 = arith.addf %541, %32 : vector<2x128xf32>
    %543 = arith.negf %542 : vector<2x128xf32>
    %544 = math.exp %543 : vector<2x128xf32>
    %cst_151 = arith.constant 1.000000e+00 : f32
    %545 = vector.broadcast %cst_151 : f32 to vector<2x128xf32>
    %546 = arith.addf %545, %544 : vector<2x128xf32>
    %547 = arith.divf %545, %546 : vector<2x128xf32>
    %548 = vector.extract_strided_slice %547 {offsets = [0, 0], sizes = [2, 32], strides = [1, 1]} : vector<2x128xf32> to vector<2x32xf32>
    %549 = vector.extract_strided_slice %547 {offsets = [0, 32], sizes = [2, 32], strides = [1, 1]} : vector<2x128xf32> to vector<2x32xf32>
    %550 = vector.extract_strided_slice %547 {offsets = [0, 96], sizes = [2, 32], strides = [1, 1]} : vector<2x128xf32> to vector<2x32xf32>
    %551 = vector.extract_strided_slice %542 {offsets = [0, 64], sizes = [2, 32], strides = [1, 1]} : vector<2x128xf32> to vector<2x32xf32>
    %552 = math.tanh %551 : vector<2x32xf32>
    %553 = arith.mulf %549, %503 : vector<2x32xf32>
    %554 = arith.mulf %548, %552 : vector<2x32xf32>
    %555 = arith.addf %553, %554 : vector<2x32xf32>
    %556 = math.tanh %555 : vector<2x32xf32>
    %557 = arith.mulf %550, %556 : vector<2x32xf32>
    %cst_152 = arith.constant dense<0.000000e+00> : vector<2x32xf32>
    %558 = tpu.matmul %557, %8, %cst_152 {dimension_numbers = #tpu.dot_dimension_numbers<[1], [0], [0], [1], [0, 0, 1, 1], [], []>} : vector<2x32xf32>, vector<32x32xf32>, vector<2x32xf32> -> vector<2x32xf32>
    %cst_153 = arith.constant dense<0.000000e+00> : vector<2x32xf32>
    %559 = tpu.matmul %555, %9, %cst_153 {dimension_numbers = #tpu.dot_dimension_numbers<[1], [0], [0], [1], [0, 0, 1, 1], [], []>} : vector<2x32xf32>, vector<32x32xf32>, vector<2x32xf32> -> vector<2x32xf32>
    %560 = arith.addf %558, %559 : vector<2x32xf32>
    %561 = arith.addf %560, %26 : vector<2x32xf32>
    %562 = vector.shape_cast %561 : vector<2x32xf32> to vector<2x1x32xf32>
    %563 = vector.broadcast %562 : vector<2x1x32xf32> to vector<2x8x32xf32>
    %564 = arith.addf %563, %399 : vector<2x8x32xf32>
    %565 = math.tanh %564 : vector<2x8x32xf32>
    %566 = arith.mulf %565, %46 : vector<2x8x32xf32>
    %cst_154 = arith.constant dense<0.000000e+00> : vector<2x8xf32>
    %567 = vector.multi_reduction <add>, %566, %cst_154 [2] : vector<2x8x32xf32> to vector<2x8xf32>
    %cst_155 = arith.constant dense<0xFF800000> : vector<2xf32>
    %568 = vector.multi_reduction <maximumf>, %567, %cst_155 [1] : vector<2x8xf32> to vector<2xf32>
    %569 = vector.shape_cast %568 : vector<2xf32> to vector<2x1xf32>
    %570 = vector.broadcast %569 : vector<2x1xf32> to vector<2x8xf32>
    %571 = arith.subf %567, %570 : vector<2x8xf32>
    %572 = math.exp %571 : vector<2x8xf32>
    %cst_156 = arith.constant dense<0.000000e+00> : vector<2xf32>
    %573 = vector.multi_reduction <add>, %572, %cst_156 [1] : vector<2x8xf32> to vector<2xf32>
    %574 = vector.shape_cast %573 : vector<2xf32> to vector<2x1xf32>
    %575 = tpu.reciprocal %574 {approx = true} : vector<2x1xf32> -> vector<2x1xf32>
    %576 = vector.broadcast %575 : vector<2x1xf32> to vector<2x8xf32>
    %577 = arith.mulf %572, %576 : vector<2x8xf32>
    %578 = vector.shape_cast %577 : vector<2x8xf32> to vector<2x8x1xf32>
    %579 = vector.broadcast %578 : vector<2x8x1xf32> to vector<2x8x32xf32>
    %580 = arith.mulf %579, %396 : vector<2x8x32xf32>
    %cst_157 = arith.constant dense<0.000000e+00> : vector<2x32xf32>
    %581 = vector.multi_reduction <add>, %580, %cst_157 [1] : vector<2x8x32xf32> to vector<2x32xf32>
    %cst_158 = arith.constant dense<0.000000e+00> : vector<2x1xf32>
    %582 = tpu.matmul %581, %11, %cst_158 {dimension_numbers = #tpu.dot_dimension_numbers<[1], [0], [0], [1], [0, 0, 1, 1], [], []>} : vector<2x32xf32>, vector<32x1xf32>, vector<2x1xf32> -> vector<2x1xf32>
    %583 = vector.extract_strided_slice %2 {offsets = [0, 3, 0], sizes = [2, 1, 1], strides = [1, 1, 1]} : vector<2x8x1xf32> to vector<2x1x1xf32>
    %584 = vector.shape_cast %583 : vector<2x1x1xf32> to vector<2x1xf32>
    %585 = vector.broadcast %12 : vector<1x1xf32> to vector<2x1xf32>
    %586 = arith.mulf %584, %585 : vector<2x1xf32>
    %587 = arith.addf %582, %586 : vector<2x1xf32>
    %588 = arith.addf %587, %29 : vector<2x1xf32>
    %589 = vector.broadcast %588 : vector<2x1xf32> to vector<2x128xf32>
    %590 = vector.broadcast %13 : vector<1x128xf32> to vector<2x128xf32>
    %591 = arith.mulf %589, %590 : vector<2x128xf32>
    %cst_159 = arith.constant dense<0.000000e+00> : vector<2x128xf32>
    %592 = tpu.matmul %557, %14, %cst_159 {dimension_numbers = #tpu.dot_dimension_numbers<[1], [0], [0], [1], [0, 0, 1, 1], [], []>} : vector<2x32xf32>, vector<32x128xf32>, vector<2x128xf32> -> vector<2x128xf32>
    %593 = arith.addf %591, %592 : vector<2x128xf32>
    %594 = arith.addf %593, %32 : vector<2x128xf32>
    %595 = arith.negf %594 : vector<2x128xf32>
    %596 = math.exp %595 : vector<2x128xf32>
    %cst_160 = arith.constant 1.000000e+00 : f32
    %597 = vector.broadcast %cst_160 : f32 to vector<2x128xf32>
    %598 = arith.addf %597, %596 : vector<2x128xf32>
    %599 = arith.divf %597, %598 : vector<2x128xf32>
    %600 = vector.extract_strided_slice %599 {offsets = [0, 0], sizes = [2, 32], strides = [1, 1]} : vector<2x128xf32> to vector<2x32xf32>
    %601 = vector.extract_strided_slice %599 {offsets = [0, 32], sizes = [2, 32], strides = [1, 1]} : vector<2x128xf32> to vector<2x32xf32>
    %602 = vector.extract_strided_slice %599 {offsets = [0, 96], sizes = [2, 32], strides = [1, 1]} : vector<2x128xf32> to vector<2x32xf32>
    %603 = vector.extract_strided_slice %594 {offsets = [0, 64], sizes = [2, 32], strides = [1, 1]} : vector<2x128xf32> to vector<2x32xf32>
    %604 = math.tanh %603 : vector<2x32xf32>
    %605 = arith.mulf %601, %555 : vector<2x32xf32>
    %606 = arith.mulf %600, %604 : vector<2x32xf32>
    %607 = arith.addf %605, %606 : vector<2x32xf32>
    %608 = math.tanh %607 : vector<2x32xf32>
    %609 = arith.mulf %602, %608 : vector<2x32xf32>
    %cst_161 = arith.constant dense<0.000000e+00> : vector<2x32xf32>
    %610 = tpu.matmul %609, %8, %cst_161 {dimension_numbers = #tpu.dot_dimension_numbers<[1], [0], [0], [1], [0, 0, 1, 1], [], []>} : vector<2x32xf32>, vector<32x32xf32>, vector<2x32xf32> -> vector<2x32xf32>
    %cst_162 = arith.constant dense<0.000000e+00> : vector<2x32xf32>
    %611 = tpu.matmul %607, %9, %cst_162 {dimension_numbers = #tpu.dot_dimension_numbers<[1], [0], [0], [1], [0, 0, 1, 1], [], []>} : vector<2x32xf32>, vector<32x32xf32>, vector<2x32xf32> -> vector<2x32xf32>
    %612 = arith.addf %610, %611 : vector<2x32xf32>
    %613 = arith.addf %612, %26 : vector<2x32xf32>
    %614 = vector.shape_cast %613 : vector<2x32xf32> to vector<2x1x32xf32>
    %615 = vector.broadcast %614 : vector<2x1x32xf32> to vector<2x8x32xf32>
    %616 = arith.addf %615, %399 : vector<2x8x32xf32>
    %617 = math.tanh %616 : vector<2x8x32xf32>
    %618 = arith.mulf %617, %46 : vector<2x8x32xf32>
    %cst_163 = arith.constant dense<0.000000e+00> : vector<2x8xf32>
    %619 = vector.multi_reduction <add>, %618, %cst_163 [2] : vector<2x8x32xf32> to vector<2x8xf32>
    %cst_164 = arith.constant dense<0xFF800000> : vector<2xf32>
    %620 = vector.multi_reduction <maximumf>, %619, %cst_164 [1] : vector<2x8xf32> to vector<2xf32>
    %621 = vector.shape_cast %620 : vector<2xf32> to vector<2x1xf32>
    %622 = vector.broadcast %621 : vector<2x1xf32> to vector<2x8xf32>
    %623 = arith.subf %619, %622 : vector<2x8xf32>
    %624 = math.exp %623 : vector<2x8xf32>
    %cst_165 = arith.constant dense<0.000000e+00> : vector<2xf32>
    %625 = vector.multi_reduction <add>, %624, %cst_165 [1] : vector<2x8xf32> to vector<2xf32>
    %626 = vector.shape_cast %625 : vector<2xf32> to vector<2x1xf32>
    %627 = tpu.reciprocal %626 {approx = true} : vector<2x1xf32> -> vector<2x1xf32>
    %628 = vector.broadcast %627 : vector<2x1xf32> to vector<2x8xf32>
    %629 = arith.mulf %624, %628 : vector<2x8xf32>
    %630 = vector.shape_cast %629 : vector<2x8xf32> to vector<2x8x1xf32>
    %631 = vector.broadcast %630 : vector<2x8x1xf32> to vector<2x8x32xf32>
    %632 = arith.mulf %631, %396 : vector<2x8x32xf32>
    %cst_166 = arith.constant dense<0.000000e+00> : vector<2x32xf32>
    %633 = vector.multi_reduction <add>, %632, %cst_166 [1] : vector<2x8x32xf32> to vector<2x32xf32>
    %cst_167 = arith.constant dense<0.000000e+00> : vector<2x1xf32>
    %634 = tpu.matmul %633, %11, %cst_167 {dimension_numbers = #tpu.dot_dimension_numbers<[1], [0], [0], [1], [0, 0, 1, 1], [], []>} : vector<2x32xf32>, vector<32x1xf32>, vector<2x1xf32> -> vector<2x1xf32>
    %635 = vector.extract_strided_slice %2 {offsets = [0, 4, 0], sizes = [2, 1, 1], strides = [1, 1, 1]} : vector<2x8x1xf32> to vector<2x1x1xf32>
    %636 = vector.shape_cast %635 : vector<2x1x1xf32> to vector<2x1xf32>
    %637 = vector.broadcast %12 : vector<1x1xf32> to vector<2x1xf32>
    %638 = arith.mulf %636, %637 : vector<2x1xf32>
    %639 = arith.addf %634, %638 : vector<2x1xf32>
    %640 = arith.addf %639, %29 : vector<2x1xf32>
    %641 = vector.broadcast %640 : vector<2x1xf32> to vector<2x128xf32>
    %642 = vector.broadcast %13 : vector<1x128xf32> to vector<2x128xf32>
    %643 = arith.mulf %641, %642 : vector<2x128xf32>
    %cst_168 = arith.constant dense<0.000000e+00> : vector<2x128xf32>
    %644 = tpu.matmul %609, %14, %cst_168 {dimension_numbers = #tpu.dot_dimension_numbers<[1], [0], [0], [1], [0, 0, 1, 1], [], []>} : vector<2x32xf32>, vector<32x128xf32>, vector<2x128xf32> -> vector<2x128xf32>
    %645 = arith.addf %643, %644 : vector<2x128xf32>
    %646 = arith.addf %645, %32 : vector<2x128xf32>
    %647 = arith.negf %646 : vector<2x128xf32>
    %648 = math.exp %647 : vector<2x128xf32>
    %cst_169 = arith.constant 1.000000e+00 : f32
    %649 = vector.broadcast %cst_169 : f32 to vector<2x128xf32>
    %650 = arith.addf %649, %648 : vector<2x128xf32>
    %651 = arith.divf %649, %650 : vector<2x128xf32>
    %652 = vector.extract_strided_slice %651 {offsets = [0, 0], sizes = [2, 32], strides = [1, 1]} : vector<2x128xf32> to vector<2x32xf32>
    %653 = vector.extract_strided_slice %651 {offsets = [0, 32], sizes = [2, 32], strides = [1, 1]} : vector<2x128xf32> to vector<2x32xf32>
    %654 = vector.extract_strided_slice %651 {offsets = [0, 96], sizes = [2, 32], strides = [1, 1]} : vector<2x128xf32> to vector<2x32xf32>
    %655 = vector.extract_strided_slice %646 {offsets = [0, 64], sizes = [2, 32], strides = [1, 1]} : vector<2x128xf32> to vector<2x32xf32>
    %656 = math.tanh %655 : vector<2x32xf32>
    %657 = arith.mulf %653, %607 : vector<2x32xf32>
    %658 = arith.mulf %652, %656 : vector<2x32xf32>
    %659 = arith.addf %657, %658 : vector<2x32xf32>
    %660 = math.tanh %659 : vector<2x32xf32>
    %661 = arith.mulf %654, %660 : vector<2x32xf32>
    %cst_170 = arith.constant dense<0.000000e+00> : vector<2x32xf32>
    %662 = tpu.matmul %661, %8, %cst_170 {dimension_numbers = #tpu.dot_dimension_numbers<[1], [0], [0], [1], [0, 0, 1, 1], [], []>} : vector<2x32xf32>, vector<32x32xf32>, vector<2x32xf32> -> vector<2x32xf32>
    %cst_171 = arith.constant dense<0.000000e+00> : vector<2x32xf32>
    %663 = tpu.matmul %659, %9, %cst_171 {dimension_numbers = #tpu.dot_dimension_numbers<[1], [0], [0], [1], [0, 0, 1, 1], [], []>} : vector<2x32xf32>, vector<32x32xf32>, vector<2x32xf32> -> vector<2x32xf32>
    %664 = arith.addf %662, %663 : vector<2x32xf32>
    %665 = arith.addf %664, %26 : vector<2x32xf32>
    %666 = vector.shape_cast %665 : vector<2x32xf32> to vector<2x1x32xf32>
    %667 = vector.broadcast %666 : vector<2x1x32xf32> to vector<2x8x32xf32>
    %668 = arith.addf %667, %399 : vector<2x8x32xf32>
    %669 = math.tanh %668 : vector<2x8x32xf32>
    %670 = arith.mulf %669, %46 : vector<2x8x32xf32>
    %cst_172 = arith.constant dense<0.000000e+00> : vector<2x8xf32>
    %671 = vector.multi_reduction <add>, %670, %cst_172 [2] : vector<2x8x32xf32> to vector<2x8xf32>
    %cst_173 = arith.constant dense<0xFF800000> : vector<2xf32>
    %672 = vector.multi_reduction <maximumf>, %671, %cst_173 [1] : vector<2x8xf32> to vector<2xf32>
    %673 = vector.shape_cast %672 : vector<2xf32> to vector<2x1xf32>
    %674 = vector.broadcast %673 : vector<2x1xf32> to vector<2x8xf32>
    %675 = arith.subf %671, %674 : vector<2x8xf32>
    %676 = math.exp %675 : vector<2x8xf32>
    %cst_174 = arith.constant dense<0.000000e+00> : vector<2xf32>
    %677 = vector.multi_reduction <add>, %676, %cst_174 [1] : vector<2x8xf32> to vector<2xf32>
    %678 = vector.shape_cast %677 : vector<2xf32> to vector<2x1xf32>
    %679 = tpu.reciprocal %678 {approx = true} : vector<2x1xf32> -> vector<2x1xf32>
    %680 = vector.broadcast %679 : vector<2x1xf32> to vector<2x8xf32>
    %681 = arith.mulf %676, %680 : vector<2x8xf32>
    %682 = vector.shape_cast %681 : vector<2x8xf32> to vector<2x8x1xf32>
    %683 = vector.broadcast %682 : vector<2x8x1xf32> to vector<2x8x32xf32>
    %684 = arith.mulf %683, %396 : vector<2x8x32xf32>
    %cst_175 = arith.constant dense<0.000000e+00> : vector<2x32xf32>
    %685 = vector.multi_reduction <add>, %684, %cst_175 [1] : vector<2x8x32xf32> to vector<2x32xf32>
    %cst_176 = arith.constant dense<0.000000e+00> : vector<2x1xf32>
    %686 = tpu.matmul %685, %11, %cst_176 {dimension_numbers = #tpu.dot_dimension_numbers<[1], [0], [0], [1], [0, 0, 1, 1], [], []>} : vector<2x32xf32>, vector<32x1xf32>, vector<2x1xf32> -> vector<2x1xf32>
    %687 = vector.extract_strided_slice %2 {offsets = [0, 5, 0], sizes = [2, 1, 1], strides = [1, 1, 1]} : vector<2x8x1xf32> to vector<2x1x1xf32>
    %688 = vector.shape_cast %687 : vector<2x1x1xf32> to vector<2x1xf32>
    %689 = vector.broadcast %12 : vector<1x1xf32> to vector<2x1xf32>
    %690 = arith.mulf %688, %689 : vector<2x1xf32>
    %691 = arith.addf %686, %690 : vector<2x1xf32>
    %692 = arith.addf %691, %29 : vector<2x1xf32>
    %693 = vector.broadcast %692 : vector<2x1xf32> to vector<2x128xf32>
    %694 = vector.broadcast %13 : vector<1x128xf32> to vector<2x128xf32>
    %695 = arith.mulf %693, %694 : vector<2x128xf32>
    %cst_177 = arith.constant dense<0.000000e+00> : vector<2x128xf32>
    %696 = tpu.matmul %661, %14, %cst_177 {dimension_numbers = #tpu.dot_dimension_numbers<[1], [0], [0], [1], [0, 0, 1, 1], [], []>} : vector<2x32xf32>, vector<32x128xf32>, vector<2x128xf32> -> vector<2x128xf32>
    %697 = arith.addf %695, %696 : vector<2x128xf32>
    %698 = arith.addf %697, %32 : vector<2x128xf32>
    %699 = arith.negf %698 : vector<2x128xf32>
    %700 = math.exp %699 : vector<2x128xf32>
    %cst_178 = arith.constant 1.000000e+00 : f32
    %701 = vector.broadcast %cst_178 : f32 to vector<2x128xf32>
    %702 = arith.addf %701, %700 : vector<2x128xf32>
    %703 = arith.divf %701, %702 : vector<2x128xf32>
    %704 = vector.extract_strided_slice %703 {offsets = [0, 0], sizes = [2, 32], strides = [1, 1]} : vector<2x128xf32> to vector<2x32xf32>
    %705 = vector.extract_strided_slice %703 {offsets = [0, 32], sizes = [2, 32], strides = [1, 1]} : vector<2x128xf32> to vector<2x32xf32>
    %706 = vector.extract_strided_slice %703 {offsets = [0, 96], sizes = [2, 32], strides = [1, 1]} : vector<2x128xf32> to vector<2x32xf32>
    %707 = vector.extract_strided_slice %698 {offsets = [0, 64], sizes = [2, 32], strides = [1, 1]} : vector<2x128xf32> to vector<2x32xf32>
    %708 = math.tanh %707 : vector<2x32xf32>
    %709 = arith.mulf %705, %659 : vector<2x32xf32>
    %710 = arith.mulf %704, %708 : vector<2x32xf32>
    %711 = arith.addf %709, %710 : vector<2x32xf32>
    %712 = math.tanh %711 : vector<2x32xf32>
    %713 = arith.mulf %706, %712 : vector<2x32xf32>
    %cst_179 = arith.constant dense<0.000000e+00> : vector<2x32xf32>
    %714 = tpu.matmul %713, %8, %cst_179 {dimension_numbers = #tpu.dot_dimension_numbers<[1], [0], [0], [1], [0, 0, 1, 1], [], []>} : vector<2x32xf32>, vector<32x32xf32>, vector<2x32xf32> -> vector<2x32xf32>
    %cst_180 = arith.constant dense<0.000000e+00> : vector<2x32xf32>
    %715 = tpu.matmul %711, %9, %cst_180 {dimension_numbers = #tpu.dot_dimension_numbers<[1], [0], [0], [1], [0, 0, 1, 1], [], []>} : vector<2x32xf32>, vector<32x32xf32>, vector<2x32xf32> -> vector<2x32xf32>
    %716 = arith.addf %714, %715 : vector<2x32xf32>
    %717 = arith.addf %716, %26 : vector<2x32xf32>
    %718 = vector.shape_cast %717 : vector<2x32xf32> to vector<2x1x32xf32>
    %719 = vector.broadcast %718 : vector<2x1x32xf32> to vector<2x8x32xf32>
    %720 = arith.addf %719, %399 : vector<2x8x32xf32>
    %721 = math.tanh %720 : vector<2x8x32xf32>
    %722 = arith.mulf %721, %46 : vector<2x8x32xf32>
    %cst_181 = arith.constant dense<0.000000e+00> : vector<2x8xf32>
    %723 = vector.multi_reduction <add>, %722, %cst_181 [2] : vector<2x8x32xf32> to vector<2x8xf32>
    %cst_182 = arith.constant dense<0xFF800000> : vector<2xf32>
    %724 = vector.multi_reduction <maximumf>, %723, %cst_182 [1] : vector<2x8xf32> to vector<2xf32>
    %725 = vector.shape_cast %724 : vector<2xf32> to vector<2x1xf32>
    %726 = vector.broadcast %725 : vector<2x1xf32> to vector<2x8xf32>
    %727 = arith.subf %723, %726 : vector<2x8xf32>
    %728 = math.exp %727 : vector<2x8xf32>
    %cst_183 = arith.constant dense<0.000000e+00> : vector<2xf32>
    %729 = vector.multi_reduction <add>, %728, %cst_183 [1] : vector<2x8xf32> to vector<2xf32>
    %730 = vector.shape_cast %729 : vector<2xf32> to vector<2x1xf32>
    %731 = tpu.reciprocal %730 {approx = true} : vector<2x1xf32> -> vector<2x1xf32>
    %732 = vector.broadcast %731 : vector<2x1xf32> to vector<2x8xf32>
    %733 = arith.mulf %728, %732 : vector<2x8xf32>
    %734 = vector.shape_cast %733 : vector<2x8xf32> to vector<2x8x1xf32>
    %735 = vector.broadcast %734 : vector<2x8x1xf32> to vector<2x8x32xf32>
    %736 = arith.mulf %735, %396 : vector<2x8x32xf32>
    %cst_184 = arith.constant dense<0.000000e+00> : vector<2x32xf32>
    %737 = vector.multi_reduction <add>, %736, %cst_184 [1] : vector<2x8x32xf32> to vector<2x32xf32>
    %cst_185 = arith.constant dense<0.000000e+00> : vector<2x1xf32>
    %738 = tpu.matmul %737, %11, %cst_185 {dimension_numbers = #tpu.dot_dimension_numbers<[1], [0], [0], [1], [0, 0, 1, 1], [], []>} : vector<2x32xf32>, vector<32x1xf32>, vector<2x1xf32> -> vector<2x1xf32>
    %739 = vector.extract_strided_slice %2 {offsets = [0, 6, 0], sizes = [2, 1, 1], strides = [1, 1, 1]} : vector<2x8x1xf32> to vector<2x1x1xf32>
    %740 = vector.shape_cast %739 : vector<2x1x1xf32> to vector<2x1xf32>
    %741 = vector.broadcast %12 : vector<1x1xf32> to vector<2x1xf32>
    %742 = arith.mulf %740, %741 : vector<2x1xf32>
    %743 = arith.addf %738, %742 : vector<2x1xf32>
    %744 = arith.addf %743, %29 : vector<2x1xf32>
    %745 = vector.broadcast %744 : vector<2x1xf32> to vector<2x128xf32>
    %746 = vector.broadcast %13 : vector<1x128xf32> to vector<2x128xf32>
    %747 = arith.mulf %745, %746 : vector<2x128xf32>
    %cst_186 = arith.constant dense<0.000000e+00> : vector<2x128xf32>
    %748 = tpu.matmul %713, %14, %cst_186 {dimension_numbers = #tpu.dot_dimension_numbers<[1], [0], [0], [1], [0, 0, 1, 1], [], []>} : vector<2x32xf32>, vector<32x128xf32>, vector<2x128xf32> -> vector<2x128xf32>
    %749 = arith.addf %747, %748 : vector<2x128xf32>
    %750 = arith.addf %749, %32 : vector<2x128xf32>
    %751 = arith.negf %750 : vector<2x128xf32>
    %752 = math.exp %751 : vector<2x128xf32>
    %cst_187 = arith.constant 1.000000e+00 : f32
    %753 = vector.broadcast %cst_187 : f32 to vector<2x128xf32>
    %754 = arith.addf %753, %752 : vector<2x128xf32>
    %755 = arith.divf %753, %754 : vector<2x128xf32>
    %756 = vector.extract_strided_slice %755 {offsets = [0, 0], sizes = [2, 32], strides = [1, 1]} : vector<2x128xf32> to vector<2x32xf32>
    %757 = vector.extract_strided_slice %755 {offsets = [0, 32], sizes = [2, 32], strides = [1, 1]} : vector<2x128xf32> to vector<2x32xf32>
    %758 = vector.extract_strided_slice %755 {offsets = [0, 96], sizes = [2, 32], strides = [1, 1]} : vector<2x128xf32> to vector<2x32xf32>
    %759 = vector.extract_strided_slice %750 {offsets = [0, 64], sizes = [2, 32], strides = [1, 1]} : vector<2x128xf32> to vector<2x32xf32>
    %760 = math.tanh %759 : vector<2x32xf32>
    %761 = arith.mulf %757, %711 : vector<2x32xf32>
    %762 = arith.mulf %756, %760 : vector<2x32xf32>
    %763 = arith.addf %761, %762 : vector<2x32xf32>
    %764 = math.tanh %763 : vector<2x32xf32>
    %765 = arith.mulf %758, %764 : vector<2x32xf32>
    %cst_188 = arith.constant dense<0.000000e+00> : vector<2x32xf32>
    %766 = tpu.matmul %765, %15, %cst_188 {dimension_numbers = #tpu.dot_dimension_numbers<[1], [0], [0], [1], [0, 0, 1, 1], [], []>} : vector<2x32xf32>, vector<32x32xf32>, vector<2x32xf32> -> vector<2x32xf32>
    %cst_189 = arith.constant dense<0.000000e+00> : vector<2x32xf32>
    %767 = tpu.matmul %737, %16, %cst_189 {dimension_numbers = #tpu.dot_dimension_numbers<[1], [0], [0], [1], [0, 0, 1, 1], [], []>} : vector<2x32xf32>, vector<32x32xf32>, vector<2x32xf32> -> vector<2x32xf32>
    %768 = arith.addf %766, %767 : vector<2x32xf32>
    %769 = arith.addf %768, %35 : vector<2x32xf32>
    %cst_190 = arith.constant dense<0.000000e+00> : vector<2x1xf32>
    %770 = tpu.matmul %769, %17, %cst_190 {dimension_numbers = #tpu.dot_dimension_numbers<[1], [0], [0], [1], [0, 0, 1, 1], [], []>} : vector<2x32xf32>, vector<32x1xf32>, vector<2x1xf32> -> vector<2x1xf32>
    %771 = arith.addf %770, %38 : vector<2x1xf32>
    %c0_191 = arith.constant 0 : index
    %c0_192 = arith.constant 0 : index
    %772 = vector.load %arg28[%c0_191, %c0_192] : memref<2x1xf32, #tpu.memory_space<vmem>>, vector<2x1xf32>
    tpu.vector_store %arg28[%c0_191, %c0_192], %771 {strides = array<i32>} : memref<2x1xf32, #tpu.memory_space<vmem>>, vector<2x1xf32>,
    return
  }
  func.func @transform_0(%arg0: i32) -> (i32, i32, i32) {
    %c0_i32 = arith.constant 0 : i32
    %c0_i32_0 = arith.constant 0 : i32
    %c0_i32_1 = arith.constant 0 : i32
    return %arg0, %c0_i32, %c0_i32_0 : i32, i32, i32
  }
  func.func @transform_1(%arg0: i32) -> (i32, i32, i32) {
    %c0_i32 = arith.constant 0 : i32
    %c0_i32_0 = arith.constant 0 : i32
    %c0_i32_1 = arith.constant 0 : i32
    return %arg0, %c0_i32, %c0_i32_0 : i32, i32, i32
  }
  func.func @transform_2(%arg0: i32) -> (i32, i32, i32) {
    %c0_i32 = arith.constant 0 : i32
    %c0_i32_0 = arith.constant 0 : i32
    %c0_i32_1 = arith.constant 0 : i32
    return %arg0, %c0_i32, %c0_i32_0 : i32, i32, i32
  }
  func.func @transform_3(%arg0: i32) -> (i32, i32) {
    %c0_i32 = arith.constant 0 : i32
    %c0_i32_0 = arith.constant 0 : i32
    %c0_i32_1 = arith.constant 0 : i32
    return %c0_i32, %c0_i32_0 : i32, i32
  }
  func.func @transform_4(%arg0: i32) -> (i32, i32) {
    %c0_i32 = arith.constant 0 : i32
    %c0_i32_0 = arith.constant 0 : i32
    %c0_i32_1 = arith.constant 0 : i32
    return %c0_i32, %c0_i32_0 : i32, i32
  }
  func.func @transform_5(%arg0: i32) -> (i32, i32) {
    %c0_i32 = arith.constant 0 : i32
    %c0_i32_0 = arith.constant 0 : i32
    %c0_i32_1 = arith.constant 0 : i32
    return %c0_i32, %c0_i32_0 : i32, i32
  }
  func.func @transform_6(%arg0: i32) -> (i32, i32) {
    %c0_i32 = arith.constant 0 : i32
    %c0_i32_0 = arith.constant 0 : i32
    %c0_i32_1 = arith.constant 0 : i32
    return %c0_i32, %c0_i32_0 : i32, i32
  }
  func.func @transform_7(%arg0: i32) -> (i32, i32) {
    %c0_i32 = arith.constant 0 : i32
    %c0_i32_0 = arith.constant 0 : i32
    %c0_i32_1 = arith.constant 0 : i32
    return %c0_i32, %c0_i32_0 : i32, i32
  }
  func.func @transform_8(%arg0: i32) -> (i32, i32) {
    %c0_i32 = arith.constant 0 : i32
    %c0_i32_0 = arith.constant 0 : i32
    %c0_i32_1 = arith.constant 0 : i32
    return %c0_i32, %c0_i32_0 : i32, i32
  }
  func.func @transform_9(%arg0: i32) -> (i32, i32) {
    %c0_i32 = arith.constant 0 : i32
    %c0_i32_0 = arith.constant 0 : i32
    %c0_i32_1 = arith.constant 0 : i32
    return %c0_i32, %c0_i32_0 : i32, i32
  }
  func.func @transform_10(%arg0: i32) -> (i32, i32) {
    %c0_i32 = arith.constant 0 : i32
    %c0_i32_0 = arith.constant 0 : i32
    %c0_i32_1 = arith.constant 0 : i32
    return %c0_i32, %c0_i32_0 : i32, i32
  }
  func.func @transform_11(%arg0: i32) -> (i32, i32) {
    %c0_i32 = arith.constant 0 : i32
    %c0_i32_0 = arith.constant 0 : i32
    %c0_i32_1 = arith.constant 0 : i32
    return %c0_i32, %c0_i32_0 : i32, i32
  }
  func.func @transform_12(%arg0: i32) -> (i32, i32) {
    %c0_i32 = arith.constant 0 : i32
    %c0_i32_0 = arith.constant 0 : i32
    %c0_i32_1 = arith.constant 0 : i32
    return %c0_i32, %c0_i32_0 : i32, i32
  }
  func.func @transform_13(%arg0: i32) -> (i32, i32) {
    %c0_i32 = arith.constant 0 : i32
    %c0_i32_0 = arith.constant 0 : i32
    %c0_i32_1 = arith.constant 0 : i32
    return %c0_i32, %c0_i32_0 : i32, i32
  }
  func.func @transform_14(%arg0: i32) -> (i32, i32) {
    %c0_i32 = arith.constant 0 : i32
    %c0_i32_0 = arith.constant 0 : i32
    %c0_i32_1 = arith.constant 0 : i32
    return %c0_i32, %c0_i32_0 : i32, i32
  }
  func.func @transform_15(%arg0: i32) -> (i32, i32) {
    %c0_i32 = arith.constant 0 : i32
    %c0_i32_0 = arith.constant 0 : i32
    %c0_i32_1 = arith.constant 0 : i32
    return %c0_i32, %c0_i32_0 : i32, i32
  }
  func.func @transform_16(%arg0: i32) -> (i32, i32) {
    %c0_i32 = arith.constant 0 : i32
    %c0_i32_0 = arith.constant 0 : i32
    %c0_i32_1 = arith.constant 0 : i32
    return %c0_i32, %c0_i32_0 : i32, i32
  }
  func.func @transform_17(%arg0: i32) -> (i32, i32) {
    %c0_i32 = arith.constant 0 : i32
    %c0_i32_0 = arith.constant 0 : i32
    %c0_i32_1 = arith.constant 0 : i32
    return %c0_i32, %c0_i32_0 : i32, i32
  }
  func.func @transform_18(%arg0: i32) -> (i32, i32) {
    %c0_i32 = arith.constant 0 : i32
    %c0_i32_0 = arith.constant 0 : i32
    %c0_i32_1 = arith.constant 0 : i32
    return %c0_i32, %c0_i32_0 : i32, i32
  }
  func.func @transform_19(%arg0: i32) -> (i32, i32) {
    %c0_i32 = arith.constant 0 : i32
    %c0_i32_0 = arith.constant 0 : i32
    %c0_i32_1 = arith.constant 0 : i32
    return %c0_i32, %c0_i32_0 : i32, i32
  }
  func.func @transform_20(%arg0: i32) -> (i32, i32) {
    %c0_i32 = arith.constant 0 : i32
    %c0_i32_0 = arith.constant 0 : i32
    %c0_i32_1 = arith.constant 0 : i32
    return %c0_i32, %c0_i32_0 : i32, i32
  }
  func.func @transform_21(%arg0: i32) -> (i32, i32) {
    %c0_i32 = arith.constant 0 : i32
    %c0_i32_0 = arith.constant 0 : i32
    %c0_i32_1 = arith.constant 0 : i32
    return %c0_i32, %c0_i32_0 : i32, i32
  }
  func.func @transform_22(%arg0: i32) -> (i32, i32) {
    %c0_i32 = arith.constant 0 : i32
    %c0_i32_0 = arith.constant 0 : i32
    %c0_i32_1 = arith.constant 0 : i32
    return %c0_i32, %c0_i32_0 : i32, i32
  }
  func.func @transform_23(%arg0: i32) -> (i32, i32) {
    %c0_i32 = arith.constant 0 : i32
    %c0_i32_0 = arith.constant 0 : i32
    %c0_i32_1 = arith.constant 0 : i32
    return %c0_i32, %c0_i32_0 : i32, i32
  }
  func.func @transform_24(%arg0: i32) -> (i32, i32) {
    %c0_i32 = arith.constant 0 : i32
    %c0_i32_0 = arith.constant 0 : i32
    %c0_i32_1 = arith.constant 0 : i32
    return %c0_i32, %c0_i32_0 : i32, i32
  }
  func.func @transform_25(%arg0: i32) -> (i32, i32) {
    %c0_i32 = arith.constant 0 : i32
    %c0_i32_0 = arith.constant 0 : i32
    %c0_i32_1 = arith.constant 0 : i32
    return %c0_i32, %c0_i32_0 : i32, i32
  }
  func.func @transform_26(%arg0: i32) -> (i32, i32) {
    %c0_i32 = arith.constant 0 : i32
    %c0_i32_0 = arith.constant 0 : i32
    %c0_i32_1 = arith.constant 0 : i32
    return %c0_i32, %c0_i32_0 : i32, i32
  }
  func.func @transform_27(%arg0: i32) -> (i32, i32) {
    %c0_i32 = arith.constant 0 : i32
    %c0_i32_0 = arith.constant 0 : i32
    return %arg0, %c0_i32 : i32, i32
  }
}

</mosaic_0001>

<llo_original>
// kernel: tpu_custom_call.1
$region0: #{tpu_custom_call.1}
  #allocation0 [shape = 'u32[]', space=smem, size = 0x4, offset = 0x4, fixed_abs, tag = 'smem constant byte address 0x4 - core index']
  #allocation1 [shape = 'u32[144,128]{1,0:T(1,128)}', space=vmem, size = 0x12000, scoped, tag = 'internal scratch']
  #allocation2 [shape = 'f32[1,1]{1,0:T(1,128)S(1)}', space=vmem, size = 0x200, scoped, tag = 'scoped memory for tpu_custom_call.1']
  #allocation3 [shape = 'f32[1,1]{1,0:T(1,128)S(1)}', space=vmem, size = 0x200, scoped, tag = 'scoped memory for tpu_custom_call.1']
  #allocation4 [shape = 'f32[1,1]{1,0:T(1,128)S(1)}', space=vmem, size = 0x200, scoped, tag = 'scoped memory for tpu_custom_call.1']
  %s0 = inlined_call_operand.vmem [shape: f32[2,8,4], index: 0, kind: input, shape index: {}]
  %s1 = inlined_call_operand.hbm [shape: f32[2,4,8], index: 1, kind: input, shape index: {}]
  %s2 = inlined_call_operand.vmem [shape: f32[2,8,1], index: 2, kind: input, shape index: {}]
  %s3 = inlined_call_operand.vmem [shape: f32[32,8], index: 3, kind: input, shape index: {}]
  %s4 = inlined_call_operand.vmem [shape: f32[32,8], index: 4, kind: input, shape index: {}]
  %s5 = inlined_call_operand.hbm [shape: f32[1,8], index: 5, kind: input, shape index: {}]
  %s6 = inlined_call_operand.hbm [shape: f32[8,8], index: 6, kind: input, shape index: {}]
  %s7 = inlined_call_operand.hbm [shape: f32[1,8], index: 7, kind: input, shape index: {}]
  %s8 = inlined_call_operand.hbm [shape: f32[4,128], index: 8, kind: input, shape index: {}]
  %s9 = inlined_call_operand.vmem [shape: f32[32,128], index: 9, kind: input, shape index: {}]
  %s10 = inlined_call_operand.hbm [shape: f32[1,128], index: 10, kind: input, shape index: {}]
  %s11 = inlined_call_operand.vmem [shape: f32[32,32], index: 11, kind: input, shape index: {}]
  %s12 = inlined_call_operand.vmem [shape: f32[32,32], index: 12, kind: input, shape index: {}]
  %s13 = inlined_call_operand.hbm [shape: f32[1,32], index: 13, kind: input, shape index: {}]
  %s14 = inlined_call_operand.vmem [shape: f32[32,32], index: 14, kind: input, shape index: {}]
  %s15 = inlined_call_operand.hbm [shape: f32[1,32], index: 15, kind: input, shape index: {}]
  %s16 = inlined_call_operand.vmem [shape: f32[32,1], index: 16, kind: input, shape index: {}]
  %s17 = inlined_call_operand.<no memory space> [shape: f32[1,1], index: 17, kind: input, shape index: {}]
  %s18 = inlined_call_operand.<no memory space> [shape: f32[1,1], index: 18, kind: input, shape index: {}]
  %s19 = inlined_call_operand.hbm [shape: f32[1,128], index: 19, kind: input, shape index: {}]
  %s20 = inlined_call_operand.vmem [shape: f32[32,128], index: 20, kind: input, shape index: {}]
  %s21 = inlined_call_operand.vmem [shape: f32[1,128], index: 21, kind: input, shape index: {}]
  %s22 = inlined_call_operand.vmem [shape: f32[32,32], index: 22, kind: input, shape index: {}]
  %s23 = inlined_call_operand.vmem [shape: f32[32,32], index: 23, kind: input, shape index: {}]
  %s24 = inlined_call_operand.vmem [shape: f32[1,32], index: 24, kind: input, shape index: {}]
  %s25 = inlined_call_operand.vmem [shape: f32[32,1], index: 25, kind: input, shape index: {}]
  %s26 = inlined_call_operand.<no memory space> [shape: f32[1,1], index: 26, kind: input, shape index: {}]
  %s27 = inlined_call_operand.vmem [shape: f32[2,1], index: 27, kind: output, shape index: {}]
  %s28 = sld [smem:[#allocation0]]
  $region154: #{tpu_custom_call.1} parent=0
    _
  %s30 = ssub.s32 1, %s28
  %s31 = scalar_select 0, %s30, %s28
  %v32 = vstv %s17
  %33 = vst [vmem:[#allocation2] sm:$0x1] %v32
  %v34 = vstv %s18
  %35 = vst [vmem:[#allocation3] sm:$0x1] %v34
  %v36 = vstv %s26
  %37 = vst [vmem:[#allocation4] sm:$0x1] %v36
  $region1: #{tpu_custom_call.1} parent=0
    #allocation5 [shape = 'u8[4096]{0}', space=vmem, size = 0x1000, scoped, tag = 'input window, operand 1, single buffered']
    #allocation6 [shape = 's32[1]{0}', space=sflag, size = 0x4, scoped, tag = 'scoped memory for tpu_custom_call.1']
    #allocation7 [shape = 'u8[512]{0}', space=vmem, size = 0x400, scoped, tag = 'input window, operand 5, single buffered']
    #allocation8 [shape = 's32[1]{0}', space=sflag, size = 0x4, scoped, tag = 'scoped memory for tpu_custom_call.1']
    #allocation9 [shape = 'u8[4096]{0}', space=vmem, size = 0x1000, scoped, tag = 'input window, operand 6, single buffered']
    #allocation10 [shape = 'u8[512]{0}', space=vmem, size = 0x400, scoped, tag = 'input window, operand 7, single buffered']
    #allocation11 [shape = 's32[1]{0}', space=sflag, size = 0x4, scoped, tag = 'scoped memory for tpu_custom_call.1']
    #allocation12 [shape = 'u8[2048]{0}', space=vmem, size = 0x800, scoped, tag = 'input window, operand 8, single buffered']
    #allocation13 [shape = 'u8[512]{0}', space=vmem, size = 0x400, scoped, tag = 'input window, operand 10, single buffered']
    #allocation14 [shape = 's32[1]{0}', space=sflag, size = 0x4, scoped, tag = 'scoped memory for tpu_custom_call.1']
    #allocation15 [shape = 'u8[512]{0}', space=vmem, size = 0x400, scoped, tag = 'input window, operand 13, single buffered']
    #allocation16 [shape = 'u8[512]{0}', space=vmem, size = 0x400, scoped, tag = 'input window, operand 15, single buffered']
    #allocation17 [shape = 's32[1]{0}', space=sflag, size = 0x4, scoped, tag = 'scoped memory for tpu_custom_call.1']
    #allocation18 [shape = 'u8[512]{0}', space=vmem, size = 0x400, scoped, tag = 'input window, operand 19, single buffered']
    %38 = vsyncpa [#allocation6], 0
    %39 = vsyncpa [#allocation8], 0
    %40 = vsyncpa [#allocation11], 0
    %41 = vsyncpa [#allocation14], 0
    %42 = vsyncpa [#allocation17], 0
    // Predicated region
    $region2: #{tpu_custom_call.1} parent=1 // pred_check
      _
    $region3: #{tpu_custom_call.1} parent=1 // pred_check_branch
      %44 = sbr.rel (0) target = $region5
    $region4: #{tpu_custom_call.1} parent=1 // pred_region
      _
    $region5: #{tpu_custom_call.1} parent=1 // pred_fallthru
      _
    // Predicated region
    $region6: #{tpu_custom_call.1} parent=1 // pred_check
      _
    $region7: #{tpu_custom_call.1} parent=1 // pred_check_branch
      %46 = sbr.rel (0) target = $region9
    $region8: #{tpu_custom_call.1} parent=1 // pred_region
      %s48 = ssub.s32 128, 128
      %49 = vsyncadd [#allocation6], %s48
      %s50 = sshll.u32 [#allocation5], 4
      %s51 = int_to_ptr.vmem [resolvable:$true] %s50
      %56 = dma.hbm_to_vmem [thread:$0]  %s1, 128, %s51, [#allocation6], 64, 64, 4
    $region9: #{tpu_custom_call.1} parent=1 // pred_fallthru
      _
    // Predicated region
    $region10: #{tpu_custom_call.1} parent=1 // pred_check
      _
    $region11: #{tpu_custom_call.1} parent=1 // pred_check_branch
      %58 = sbr.rel (0) target = $region13
    $region12: #{tpu_custom_call.1} parent=1 // pred_region
      _
    $region13: #{tpu_custom_call.1} parent=1 // pred_fallthru
      _
    // Predicated region
    $region14: #{tpu_custom_call.1} parent=1 // pred_check
      _
    $region15: #{tpu_custom_call.1} parent=1 // pred_check_branch
      %60 = sbr.rel (0) target = $region17
    $region16: #{tpu_custom_call.1} parent=1 // pred_region
      _
    $region17: #{tpu_custom_call.1} parent=1 // pred_fallthru
      _
    // Predicated region
    $region18: #{tpu_custom_call.1} parent=1 // pred_check
      _
    $region19: #{tpu_custom_call.1} parent=1 // pred_check_branch
      %62 = sbr.rel (0) target = $region21
    $region20: #{tpu_custom_call.1} parent=1 // pred_region
      _
    $region21: #{tpu_custom_call.1} parent=1 // pred_fallthru
      _
    // Predicated region
    $region22: #{tpu_custom_call.1} parent=1 // pred_check
      _
    $region23: #{tpu_custom_call.1} parent=1 // pred_check_branch
      %64 = sbr.rel (0) target = $region25
    $region24: #{tpu_custom_call.1} parent=1 // pred_region
      %s66 = ssub.s32 16, 16
      %67 = vsyncadd [#allocation8], %s66
      %s69 = sshll.u32 [#allocation7], 4
      %s70 = int_to_ptr.vmem [resolvable:$true] %s69
      %72 = dma.hbm_to_vmem [thread:$0]  %s5, 16, %s70, [#allocation8]
    $region25: #{tpu_custom_call.1} parent=1 // pred_fallthru
      _
    // Predicated region
    $region26: #{tpu_custom_call.1} parent=1 // pred_check
      _
    $region27: #{tpu_custom_call.1} parent=1 // pred_check_branch
      %74 = sbr.rel (0) target = $region29
    $region28: #{tpu_custom_call.1} parent=1 // pred_region
      %s76 = ssub.s32 128, 128
      %77 = vsyncadd [#allocation8], %s76
      %s79 = sshll.u32 [#allocation9], 4
      %s80 = int_to_ptr.vmem [resolvable:$true] %s79
      %82 = dma.hbm_to_vmem [thread:$0]  %s6, 128, %s80, [#allocation8]
    $region29: #{tpu_custom_call.1} parent=1 // pred_fallthru
      _
    // Predicated region
    $region30: #{tpu_custom_call.1} parent=1 // pred_check
      _
    $region31: #{tpu_custom_call.1} parent=1 // pred_check_branch
      %84 = sbr.rel (0) target = $region33
    $region32: #{tpu_custom_call.1} parent=1 // pred_region
      %s86 = ssub.s32 16, 16
      %87 = vsyncadd [#allocation11], %s86
      %s89 = sshll.u32 [#allocation10], 4
      %s90 = int_to_ptr.vmem [resolvable:$true] %s89
      %92 = dma.hbm_to_vmem [thread:$0]  %s7, 16, %s90, [#allocation11]
    $region33: #{tpu_custom_call.1} parent=1 // pred_fallthru
      _
    // Predicated region
    $region34: #{tpu_custom_call.1} parent=1 // pred_check
      _
    $region35: #{tpu_custom_call.1} parent=1 // pred_check_branch
      %94 = sbr.rel (0) target = $region37
    $region36: #{tpu_custom_call.1} parent=1 // pred_region
      %s96 = ssub.s32 64, 64
      %97 = vsyncadd [#allocation11], %s96
      %s99 = sshll.u32 [#allocation12], 4
      %s100 = int_to_ptr.vmem [resolvable:$true] %s99
      %102 = dma.hbm_to_vmem [thread:$0]  %s8, 64, %s100, [#allocation11]
    $region37: #{tpu_custom_call.1} parent=1 // pred_fallthru
      _
    // Predicated region
    $region38: #{tpu_custom_call.1} parent=1 // pred_check
      _
    $region39: #{tpu_custom_call.1} parent=1 // pred_check_branch
      %104 = sbr.rel (0) target = $region41
    $region40: #{tpu_custom_call.1} parent=1 // pred_region
      _
    $region41: #{tpu_custom_call.1} parent=1 // pred_fallthru
      _
    // Predicated region
    $region42: #{tpu_custom_call.1} parent=1 // pred_check
      _
    $region43: #{tpu_custom_call.1} parent=1 // pred_check_branch
      %106 = sbr.rel (0) target = $region45
    $region44: #{tpu_custom_call.1} parent=1 // pred_region
      %s108 = ssub.s32 16, 16
      %109 = vsyncadd [#allocation14], %s108
      %s111 = sshll.u32 [#allocation13], 4
      %s112 = int_to_ptr.vmem [resolvable:$true] %s111
      %114 = dma.hbm_to_vmem [thread:$0]  %s10, 16, %s112, [#allocation14]
    $region45: #{tpu_custom_call.1} parent=1 // pred_fallthru
      _
    // Predicated region
    $region46: #{tpu_custom_call.1} parent=1 // pred_check
      _
    $region47: #{tpu_custom_call.1} parent=1 // pred_check_branch
      %116 = sbr.rel (0) target = $region49
    $region48: #{tpu_custom_call.1} parent=1 // pred_region
      _
    $region49: #{tpu_custom_call.1} parent=1 // pred_fallthru
      _
    // Predicated region
    $region50: #{tpu_custom_call.1} parent=1 // pred_check
      _
    $region51: #{tpu_custom_call.1} parent=1 // pred_check_branch
      %118 = sbr.rel (0) target = $region53
    $region52: #{tpu_custom_call.1} parent=1 // pred_region
      _
    $region53: #{tpu_custom_call.1} parent=1 // pred_fallthru
      _
    // Predicated region
    $region54: #{tpu_custom_call.1} parent=1 // pred_check
      _
    $region55: #{tpu_custom_call.1} parent=1 // pred_check_branch
      %120 = sbr.rel (0) target = $region57
    $region56: #{tpu_custom_call.1} parent=1 // pred_region
      %s122 = ssub.s32 16, 16
      %123 = vsyncadd [#allocation14], %s122
      %s125 = sshll.u32 [#allocation15], 4
      %s126 = int_to_ptr.vmem [resolvable:$true] %s125
      %128 = dma.hbm_to_vmem [thread:$0]  %s13, 16, %s126, [#allocation14]
    $region57: #{tpu_custom_call.1} parent=1 // pred_fallthru
      _
    // Predicated region
    $region58: #{tpu_custom_call.1} parent=1 // pred_check
      _
    $region59: #{tpu_custom_call.1} parent=1 // pred_check_branch
      %130 = sbr.rel (0) target = $region61
    $region60: #{tpu_custom_call.1} parent=1 // pred_region
      _
    $region61: #{tpu_custom_call.1} parent=1 // pred_fallthru
      _
    // Predicated region
    $region62: #{tpu_custom_call.1} parent=1 // pred_check
      _
    $region63: #{tpu_custom_call.1} parent=1 // pred_check_branch
      %132 = sbr.rel (0) target = $region65
    $region64: #{tpu_custom_call.1} parent=1 // pred_region
      %s134 = ssub.s32 16, 16
      %135 = vsyncadd [#allocation17], %s134
      %s137 = sshll.u32 [#allocation16], 4
      %s138 = int_to_ptr.vmem [resolvable:$true] %s137
      %140 = dma.hbm_to_vmem [thread:$0]  %s15, 16, %s138, [#allocation17]
    $region65: #{tpu_custom_call.1} parent=1 // pred_fallthru
      _
    // Predicated region
    $region66: #{tpu_custom_call.1} parent=1 // pred_check
      _
    $region67: #{tpu_custom_call.1} parent=1 // pred_check_branch
      %142 = sbr.rel (0) target = $region69
    $region68: #{tpu_custom_call.1} parent=1 // pred_region
      _
    $region69: #{tpu_custom_call.1} parent=1 // pred_fallthru
      _
    // Predicated region
    $region70: #{tpu_custom_call.1} parent=1 // pred_check
      _
    $region71: #{tpu_custom_call.1} parent=1 // pred_check_branch
      %144 = sbr.rel (0) target = $region73
    $region72: #{tpu_custom_call.1} parent=1 // pred_region
      _
    $region73: #{tpu_custom_call.1} parent=1 // pred_fallthru
      _
    // Predicated region
    $region74: #{tpu_custom_call.1} parent=1 // pred_check
      _
    $region75: #{tpu_custom_call.1} parent=1 // pred_check_branch
      %146 = sbr.rel (0) target = $region77
    $region76: #{tpu_custom_call.1} parent=1 // pred_region
      _
    $region77: #{tpu_custom_call.1} parent=1 // pred_fallthru
      _
    // Predicated region
    $region78: #{tpu_custom_call.1} parent=1 // pred_check
      _
    $region79: #{tpu_custom_call.1} parent=1 // pred_check_branch
      %148 = sbr.rel (0) target = $region81
    $region80: #{tpu_custom_call.1} parent=1 // pred_region
      %s150 = ssub.s32 16, 16
      %151 = vsyncadd [#allocation17], %s150
      %s153 = sshll.u32 [#allocation18], 4
      %s154 = int_to_ptr.vmem [resolvable:$true] %s153
      %156 = dma.hbm_to_vmem [thread:$0]  %s19, 16, %s154, [#allocation17]
    $region81: #{tpu_custom_call.1} parent=1 // pred_fallthru
      _
    // Predicated region
    $region82: #{tpu_custom_call.1} parent=1 // pred_check
      _
    $region83: #{tpu_custom_call.1} parent=1 // pred_check_branch
      %158 = sbr.rel (0) target = $region85
    $region84: #{tpu_custom_call.1} parent=1 // pred_region
      _
    $region85: #{tpu_custom_call.1} parent=1 // pred_fallthru
      _
    // Predicated region
    $region86: #{tpu_custom_call.1} parent=1 // pred_check
      _
    $region87: #{tpu_custom_call.1} parent=1 // pred_check_branch
      %160 = sbr.rel (0) target = $region89
    $region88: #{tpu_custom_call.1} parent=1 // pred_region
      _
    $region89: #{tpu_custom_call.1} parent=1 // pred_fallthru
      _
    // Predicated region
    $region90: #{tpu_custom_call.1} parent=1 // pred_check
      _
    $region91: #{tpu_custom_call.1} parent=1 // pred_check_branch
      %162 = sbr.rel (0) target = $region93
    $region92: #{tpu_custom_call.1} parent=1 // pred_region
      _
    $region93: #{tpu_custom_call.1} parent=1 // pred_fallthru
      _
    // Predicated region
    $region94: #{tpu_custom_call.1} parent=1 // pred_check
      _
    $region95: #{tpu_custom_call.1} parent=1 // pred_check_branch
      %164 = sbr.rel (0) target = $region97
    $region96: #{tpu_custom_call.1} parent=1 // pred_region
      _
    $region97: #{tpu_custom_call.1} parent=1 // pred_fallthru
      _
    // Predicated region
    $region98: #{tpu_custom_call.1} parent=1 // pred_check
      _
    $region99: #{tpu_custom_call.1} parent=1 // pred_check_branch
      %166 = sbr.rel (0) target = $region101
    $region100: #{tpu_custom_call.1} parent=1 // pred_region
      _
    $region101: #{tpu_custom_call.1} parent=1 // pred_fallthru
      _
    // Predicated region
    $region102: #{tpu_custom_call.1} parent=1 // pred_check
      _
    $region103: #{tpu_custom_call.1} parent=1 // pred_check_branch
      %168 = sbr.rel (0) target = $region105
    $region104: #{tpu_custom_call.1} parent=1 // pred_region
      _
    $region105: #{tpu_custom_call.1} parent=1 // pred_fallthru
      _
    // Predicated region
    $region106: #{tpu_custom_call.1} parent=1 // pred_check
      _
    $region107: #{tpu_custom_call.1} parent=1 // pred_check_branch
      %170 = sbr.rel (0) target = $region109
    $region108: #{tpu_custom_call.1} parent=1 // pred_region
      _
    $region109: #{tpu_custom_call.1} parent=1 // pred_fallthru
      _
    // Predicated region
    $region110: #{tpu_custom_call.1} parent=1 // pred_check
      _
    $region111: #{tpu_custom_call.1} parent=1 // pred_check_branch
      %172 = sbr.rel (0) target = $region113
    $region112: #{tpu_custom_call.1} parent=1 // pred_region
      %173 = dma.done [#allocation6], 128
    $region113: #{tpu_custom_call.1} parent=1 // pred_fallthru
      _
    // Predicated region
    $region114: #{tpu_custom_call.1} parent=1 // pred_check
      _
    $region115: #{tpu_custom_call.1} parent=1 // pred_check_branch
      %175 = sbr.rel (0) target = $region117
    $region116: #{tpu_custom_call.1} parent=1 // pred_region
      %176 = dma.done [#allocation8], 16
    $region117: #{tpu_custom_call.1} parent=1 // pred_fallthru
      _
    // Predicated region
    $region118: #{tpu_custom_call.1} parent=1 // pred_check
      _
    $region119: #{tpu_custom_call.1} parent=1 // pred_check_branch
      %178 = sbr.rel (0) target = $region121
    $region120: #{tpu_custom_call.1} parent=1 // pred_region
      %179 = dma.done [#allocation8], 128
    $region121: #{tpu_custom_call.1} parent=1 // pred_fallthru
      _
    // Predicated region
    $region122: #{tpu_custom_call.1} parent=1 // pred_check
      _
    $region123: #{tpu_custom_call.1} parent=1 // pred_check_branch
      %181 = sbr.rel (0) target = $region125
    $region124: #{tpu_custom_call.1} parent=1 // pred_region
      %182 = dma.done [#allocation11], 16
    $region125: #{tpu_custom_call.1} parent=1 // pred_fallthru
      _
    // Predicated region
    $region126: #{tpu_custom_call.1} parent=1 // pred_check
      _
    $region127: #{tpu_custom_call.1} parent=1 // pred_check_branch
      %184 = sbr.rel (0) target = $region129
    $region128: #{tpu_custom_call.1} parent=1 // pred_region
      %185 = dma.done [#allocation11], 64
    $region129: #{tpu_custom_call.1} parent=1 // pred_fallthru
      _
    // Predicated region
    $region130: #{tpu_custom_call.1} parent=1 // pred_check
      _
    $region131: #{tpu_custom_call.1} parent=1 // pred_check_branch
      %187 = sbr.rel (0) target = $region133
    $region132: #{tpu_custom_call.1} parent=1 // pred_region
      %188 = dma.done [#allocation14], 16
    $region133: #{tpu_custom_call.1} parent=1 // pred_fallthru
      _
    // Predicated region
    $region134: #{tpu_custom_call.1} parent=1 // pred_check
      _
    $region135: #{tpu_custom_call.1} parent=1 // pred_check_branch
      %190 = sbr.rel (0) target = $region137
    $region136: #{tpu_custom_call.1} parent=1 // pred_region
      %191 = dma.done [#allocation14], 16
    $region137: #{tpu_custom_call.1} parent=1 // pred_fallthru
      _
    // Predicated region
    $region138: #{tpu_custom_call.1} parent=1 // pred_check
      _
    $region139: #{tpu_custom_call.1} parent=1 // pred_check_branch
      %193 = sbr.rel (0) target = $region141
    $region140: #{tpu_custom_call.1} parent=1 // pred_region
      %194 = dma.done [#allocation17], 16
    $region141: #{tpu_custom_call.1} parent=1 // pred_fallthru
      _
    // Predicated region
    $region142: #{tpu_custom_call.1} parent=1 // pred_check
      _
    $region143: #{tpu_custom_call.1} parent=1 // pred_check_branch
      %196 = sbr.rel (0) target = $region145
    $region144: #{tpu_custom_call.1} parent=1 // pred_region
      %197 = dma.done [#allocation17], 16
    $region145: #{tpu_custom_call.1} parent=1 // pred_fallthru
      _
    %v198 = vld [vmem:[%s0] sm:$0xff]
    %v199 = vld [vmem:[%s0 + $0x8] sm:$0xff]
    %v200 = vld [vmem:[#allocation5] sm:$0xf]
    %v201 = vld [vmem:[#allocation5 + $0x4] sm:$0xf]
    %v202 = vld [vmem:[%s2] sm:$0xff]
    %v203 = vld [vmem:[%s2 + $0x8] sm:$0xff]
    %v204 = vld [vmem:[%s3] sm:$0xff]
    %v205 = vld [vmem:[%s3 + $0x8] sm:$0xff]
    %v206 = vld [vmem:[%s3 + $0x10] sm:$0xff]
    %v207 = vld [vmem:[%s3 + $0x18] sm:$0xff]
    %v208 = vld [vmem:[%s4] sm:$0xff]
    %v209 = vld [vmem:[%s4 + $0x8] sm:$0xff]
    %v210 = vld [vmem:[%s4 + $0x10] sm:$0xff]
    %v211 = vld [vmem:[%s4 + $0x18] sm:$0xff]
    %v212 = vld [vmem:[#allocation9] sm:$0xff]
    %v213 = vld [vmem:[#allocation12] sm:$0xf]
    %v214 = vld [vmem:[%s9] sm:$0xff]
    %v215 = vld [vmem:[%s9 + $0x8] sm:$0xff]
    %v216 = vld [vmem:[%s9 + $0x10] sm:$0xff]
    %v217 = vld [vmem:[%s9 + $0x18] sm:$0xff]
    %v218 = vld [vmem:[%s11] sm:$0xff]
    %v219 = vld [vmem:[%s11 + $0x8] sm:$0xff]
    %v220 = vld [vmem:[%s11 + $0x10] sm:$0xff]
    %v221 = vld [vmem:[%s11 + $0x18] sm:$0xff]
    %v222 = vld [vmem:[%s12] sm:$0xff]
    %v223 = vld [vmem:[%s12 + $0x8] sm:$0xff]
    %v224 = vld [vmem:[%s12 + $0x10] sm:$0xff]
    %v225 = vld [vmem:[%s12 + $0x18] sm:$0xff]
    %v226 = vld [vmem:[%s14] sm:$0xff]
    %v227 = vld [vmem:[%s14 + $0x8] sm:$0xff]
    %v228 = vld [vmem:[%s14 + $0x10] sm:$0xff]
    %v229 = vld [vmem:[%s14 + $0x18] sm:$0xff]
    %v230 = vld [vmem:[%s16] sm:$0xff]
    %v231 = vld [vmem:[%s16 + $0x8] sm:$0xff]
    %v232 = vld [vmem:[%s16 + $0x10] sm:$0xff]
    %v233 = vld [vmem:[%s16 + $0x18] sm:$0xff]
    %v234 = vld [vmem:[#allocation2] sm:$0x1]
    %v235 = vld [vmem:[#allocation18] sm:$0x1]
    %v236 = vld [vmem:[%s20] sm:$0xff]
    %v237 = vld [vmem:[%s20 + $0x8] sm:$0xff]
    %v238 = vld [vmem:[%s20 + $0x10] sm:$0xff]
    %v239 = vld [vmem:[%s20 + $0x18] sm:$0xff]
    %v240 = vld [vmem:[%s22] sm:$0xff]
    %v241 = vld [vmem:[%s22 + $0x8] sm:$0xff]
    %v242 = vld [vmem:[%s22 + $0x10] sm:$0xff]
    %v243 = vld [vmem:[%s22 + $0x18] sm:$0xff]
    %v244 = vld [vmem:[%s23] sm:$0xff]
    %v245 = vld [vmem:[%s23 + $0x8] sm:$0xff]
    %v246 = vld [vmem:[%s23 + $0x10] sm:$0xff]
    %v247 = vld [vmem:[%s23 + $0x18] sm:$0xff]
    %v248 = vld [vmem:[%s25] sm:$0xff]
    %v249 = vld [vmem:[%s25 + $0x8] sm:$0xff]
    %v250 = vld [vmem:[%s25 + $0x10] sm:$0xff]
    %v251 = vld [vmem:[%s25 + $0x18] sm:$0xff]
    %v252 = vld [vmem:[#allocation7] sm:$0x1]
    %v254 = vlaneseq
    %v255 = vshrl.u32 %v254, 7
    %v256 = vsub.s32 0, %v255
    %v257 = vrot.slane %v252, %v256
    %v259 = vld [vmem:[#allocation13] sm:$0x1]
    %v261 = vlaneseq
    %v262 = vshrl.u32 %v261, 7
    %v263 = vsub.s32 0, %v262
    %v264 = vrot.slane %v259, %v263
    %v266 = vld [vmem:[#allocation15] sm:$0x1]
    %v268 = vlaneseq
    %v269 = vshrl.u32 %v268, 7
    %v270 = vsub.s32 0, %v269
    %v271 = vrot.slane %v266, %v270
    %v273 = vld [vmem:[#allocation3] sm:$0x1]
    %v275 = vlaneseq
    %v276 = vshrl.u32 %v275, 7
    %v277 = vsub.s32 0, %v276
    %v278 = vrot.slane %v273, %v277
    %v280 = vld [vmem:[%s21] sm:$0x1]
    %v282 = vlaneseq
    %v283 = vshrl.u32 %v282, 7
    %v284 = vsub.s32 0, %v283
    %v285 = vrot.slane %v280, %v284
    %v287 = vld [vmem:[%s24] sm:$0x1]
    %v289 = vlaneseq
    %v290 = vshrl.u32 %v289, 7
    %v291 = vsub.s32 0, %v290
    %v292 = vrot.slane %v287, %v291
    %v294 = vld [vmem:[#allocation4] sm:$0x1]
    %v296 = vlaneseq
    %v297 = vshrl.u32 %v296, 7
    %v298 = vsub.s32 0, %v297
    %v299 = vrot.slane %v294, %v298
    %v301 = vld [vmem:[#allocation10] sm:$0x1]
    %v303 = vlaneseq
    %v304 = vshrl.u32 %v303, 7
    %v305 = vsub.s32 0, %v304
    %v306 = vrot.slane %v301, %v305
    %v308 = vld [vmem:[#allocation16] sm:$0x1]
    %v310 = vlaneseq
    %v311 = vshrl.u32 %v310, 7
    %v312 = vsub.s32 0, %v311
    %v313 = vrot.slane %v308, %v312
    %v317 = vcombine.low %v200, %v201
    %vm318 = vcmask 64512
    %v319 = vsel %vm318, %v317, 0
    %321 = vmatprep.subr.mxu0 0.0
    %322 = vmatpush1.msra.mxu0 0.0
    %323 = vmatprep.subr.mxu0 0.0
    %324 = vmatpush1.msra.mxu0 0.0
    %325 = vmatprep.subr.mxu0 0.0
    %326 = vmatpush1.msra.mxu0 0.0
    %327 = vmatprep.subr.mxu0 0.0
    %328 = vmatpush1.msra.mxu0 0.0
    %329 = vmatprep.subr.mxu0 0.0
    %330 = vmatpush1.msra.mxu0 0.0
    %331 = vmatprep.subr.mxu0 0.0
    %332 = vmatpush1.msra.mxu0 0.0
    %333 = vmatprep.subr.mxu0 0.0
    %334 = vmatpush1.msra.mxu0 0.0
    %335 = vmatprep.subr.mxu0 0.0
    %336 = vmatpush1.msra.mxu0 0.0
    %337 = vmatprep.subr.mxu0 0.0
    %338 = vmatpush1.msra.mxu0 0.0
    %339 = vmatprep.subr.mxu0 0.0
    %340 = vmatpush1.msra.mxu0 0.0
    %341 = vmatprep.subr.mxu0 0.0
    %342 = vmatpush1.msra.mxu0 0.0
    %343 = vmatprep.subr.mxu0 0.0
    %344 = vmatpush1.msra.mxu0 0.0
    %345 = vmatprep.subr.mxu0 0.0
    %346 = vmatpush1.msra.mxu0 0.0
    %347 = vmatprep.subr.mxu0 0.0
    %348 = vmatpush1.msra.mxu0 0.0
    %349 = vmatprep.subr.mxu0 0.0
    %350 = vmatpush1.msra.mxu0 0.0
    %351 = vmatprep.subr.mxu0 0.0
    %352 = vmatpush1.msra.mxu0 %v212
    %353 = vmatprep.subr.mxu0 0.0
    %354 = vmatpush2.msra.mxu0 0.0
    %355 = vmatprep.subr.mxu0 0.0
    %356 = vmatpush2.msra.mxu0 0.0
    %357 = vmatprep.subr.mxu0 0.0
    %358 = vmatpush2.msra.mxu0 0.0
    %359 = vmatprep.subr.mxu0 0.0
    %360 = vmatpush2.msra.mxu0 0.0
    %361 = vmatprep.subr.mxu0 0.0
    %362 = vmatpush2.msra.mxu0 0.0
    %363 = vmatprep.subr.mxu0 0.0
    %364 = vmatpush2.msra.mxu0 0.0
    %365 = vmatprep.subr.mxu0 0.0
    %366 = vmatpush2.msra.mxu0 0.0
    %367 = vmatprep.subr.mxu0 0.0
    %368 = vmatpush2.msra.mxu0 0.0
    %369 = vmatprep.subr.mxu0 0.0
    %370 = vmatpush2.msra.mxu0 0.0
    %371 = vmatprep.subr.mxu0 0.0
    %372 = vmatpush2.msra.mxu0 0.0
    %373 = vmatprep.subr.mxu0 0.0
    %374 = vmatpush2.msra.mxu0 0.0
    %375 = vmatprep.subr.mxu0 0.0
    %376 = vmatpush2.msra.mxu0 0.0
    %377 = vmatprep.subr.mxu0 0.0
    %378 = vmatpush2.msra.mxu0 0.0
    %379 = vmatprep.subr.mxu0 0.0
    %380 = vmatpush2.msra.mxu0 0.0
    %381 = vmatprep.subr.mxu0 0.0
    %382 = vmatpush2.msra.mxu0 0.0
    %383 = vmatprep.subr.mxu0 0.0
    %384 = vmatpush2.msra.mxu0 0.0
    %385 = vmatprep.mubr.f32.mxu0 0.0
    %386 = vmatmul.mubr.f32.gmra.mxu0 %v319
    %v387 = vpop.f32.mrf.mxu0
    %v388 = vadd.f32 0.0, %v387
    %v389 = vpop.f32.mrf.mxu0
    %390 = vdwg.mxu0
    %v392 = vcombine.high %v388, %v388
    %vm394 = vcmask 261120
    %v396 = vsel %vm394, 0.0, 0
    %398 = vmatprep.subr.mxu0 0.0
    %399 = vmatpush1.msra.mxu0 0.0
    %400 = vmatprep.subr.mxu0 0.0
    %401 = vmatpush1.msra.mxu0 0.0
    %402 = vmatprep.subr.mxu0 0.0
    %403 = vmatpush1.msra.mxu0 0.0
    %404 = vmatprep.subr.mxu0 0.0
    %405 = vmatpush1.msra.mxu0 0.0
    %406 = vmatprep.subr.mxu0 0.0
    %407 = vmatpush1.msra.mxu0 0.0
    %408 = vmatprep.subr.mxu0 0.0
    %409 = vmatpush1.msra.mxu0 0.0
    %410 = vmatprep.subr.mxu0 0.0
    %411 = vmatpush1.msra.mxu0 0.0
    %412 = vmatprep.subr.mxu0 0.0
    %413 = vmatpush1.msra.mxu0 0.0
    %414 = vmatprep.subr.mxu0 0.0
    %415 = vmatpush1.msra.mxu0 0.0
    %416 = vmatprep.subr.mxu0 0.0
    %417 = vmatpush1.msra.mxu0 0.0
    %418 = vmatprep.subr.mxu0 0.0
    %419 = vmatpush1.msra.mxu0 0.0
    %420 = vmatprep.subr.mxu0 0.0
    %421 = vmatpush1.msra.mxu0 0.0
    %422 = vmatprep.subr.mxu0 0.0
    %423 = vmatpush1.msra.mxu0 %v211
    %424 = vmatprep.subr.mxu0 0.0
    %425 = vmatpush1.msra.mxu0 %v210
    %426 = vmatprep.subr.mxu0 0.0
    %427 = vmatpush1.msra.mxu0 %v209
    %428 = vmatprep.subr.mxu0 0.0
    %429 = vmatpush1.msra.mxu0 %v208
    %430 = vmatprep.subr.mxu0 0.0
    %431 = vmatpush2.msra.mxu0 0.0
    %432 = vmatprep.subr.mxu0 0.0
    %433 = vmatpush2.msra.mxu0 0.0
    %434 = vmatprep.subr.mxu0 0.0
    %435 = vmatpush2.msra.mxu0 0.0
    %436 = vmatprep.subr.mxu0 0.0
    %437 = vmatpush2.msra.mxu0 0.0
    %438 = vmatprep.subr.mxu0 0.0
    %439 = vmatpush2.msra.mxu0 0.0
    %440 = vmatprep.subr.mxu0 0.0
    %441 = vmatpush2.msra.mxu0 0.0
    %442 = vmatprep.subr.mxu0 0.0
    %443 = vmatpush2.msra.mxu0 0.0
    %444 = vmatprep.subr.mxu0 0.0
    %445 = vmatpush2.msra.mxu0 0.0
    %446 = vmatprep.subr.mxu0 0.0
    %447 = vmatpush2.msra.mxu0 0.0
    %448 = vmatprep.subr.mxu0 0.0
    %449 = vmatpush2.msra.mxu0 0.0
    %450 = vmatprep.subr.mxu0 0.0
    %451 = vmatpush2.msra.mxu0 0.0
    %452 = vmatprep.subr.mxu0 0.0
    %453 = vmatpush2.msra.mxu0 0.0
    %454 = vmatprep.subr.mxu0 0.0
    %455 = vmatpush2.msra.mxu0 0.0
    %456 = vmatprep.subr.mxu0 0.0
    %457 = vmatpush2.msra.mxu0 0.0
    %458 = vmatprep.subr.mxu0 0.0
    %459 = vmatpush2.msra.mxu0 0.0
    %460 = vmatprep.subr.mxu0 0.0
    %461 = vmatpush2.msra.mxu0 0.0
    %462 = vmatprep.mubr.f32.mxu0 0.0
    %463 = vmatmul.mubr.f32.gmra.mxu0 %v396
    %v464 = vpop.f32.mrf.mxu0
    %v465 = vadd.f32 0.0, %v464
    %v466 = vpop.f32.mrf.mxu0
    %467 = vdwg.mxu0
    %468 = vmatprep.subr.mxu0 0.0
    %469 = vmatpush1.msra.mxu0 0.0
    %470 = vmatprep.subr.mxu0 0.0
    %471 = vmatpush1.msra.mxu0 0.0
    %472 = vmatprep.subr.mxu0 0.0
    %473 = vmatpush1.msra.mxu0 0.0
    %474 = vmatprep.subr.mxu0 0.0
    %475 = vmatpush1.msra.mxu0 0.0
    %476 = vmatprep.subr.mxu0 0.0
    %477 = vmatpush1.msra.mxu0 0.0
    %478 = vmatprep.subr.mxu0 0.0
    %479 = vmatpush1.msra.mxu0 0.0
    %480 = vmatprep.subr.mxu0 0.0
    %481 = vmatpush1.msra.mxu0 0.0
    %482 = vmatprep.subr.mxu0 0.0
    %483 = vmatpush1.msra.mxu0 0.0
    %484 = vmatprep.subr.mxu0 0.0
    %485 = vmatpush1.msra.mxu0 0.0
    %486 = vmatprep.subr.mxu0 0.0
    %487 = vmatpush1.msra.mxu0 0.0
    %488 = vmatprep.subr.mxu0 0.0
    %489 = vmatpush1.msra.mxu0 0.0
    %490 = vmatprep.subr.mxu0 0.0
    %491 = vmatpush1.msra.mxu0 0.0
    %492 = vmatprep.subr.mxu0 0.0
    %493 = vmatpush1.msra.mxu0 %v207
    %494 = vmatprep.subr.mxu0 0.0
    %495 = vmatpush1.msra.mxu0 %v206
    %496 = vmatprep.subr.mxu0 0.0
    %497 = vmatpush1.msra.mxu0 %v205
    %498 = vmatprep.subr.mxu0 0.0
    %499 = vmatpush1.msra.mxu0 %v204
    %500 = vmatprep.subr.mxu0 0.0
    %501 = vmatpush2.msra.mxu0 0.0
    %502 = vmatprep.subr.mxu0 0.0
    %503 = vmatpush2.msra.mxu0 0.0
    %504 = vmatprep.subr.mxu0 0.0
    %505 = vmatpush2.msra.mxu0 0.0
    %506 = vmatprep.subr.mxu0 0.0
    %507 = vmatpush2.msra.mxu0 0.0
    %508 = vmatprep.subr.mxu0 0.0
    %509 = vmatpush2.msra.mxu0 0.0
    %510 = vmatprep.subr.mxu0 0.0
    %511 = vmatpush2.msra.mxu0 0.0
    %512 = vmatprep.subr.mxu0 0.0
    %513 = vmatpush2.msra.mxu0 0.0
    %514 = vmatprep.subr.mxu0 0.0
    %515 = vmatpush2.msra.mxu0 0.0
    %516 = vmatprep.subr.mxu0 0.0
    %517 = vmatpush2.msra.mxu0 0.0
    %518 = vmatprep.subr.mxu0 0.0
    %519 = vmatpush2.msra.mxu0 0.0
    %520 = vmatprep.subr.mxu0 0.0
    %521 = vmatpush2.msra.mxu0 0.0
    %522 = vmatprep.subr.mxu0 0.0
    %523 = vmatpush2.msra.mxu0 0.0
    %524 = vmatprep.subr.mxu0 0.0
    %525 = vmatpush2.msra.mxu0 0.0
    %526 = vmatprep.subr.mxu0 0.0
    %527 = vmatpush2.msra.mxu0 0.0
    %528 = vmatprep.subr.mxu0 0.0
    %529 = vmatpush2.msra.mxu0 0.0
    %530 = vmatprep.subr.mxu0 0.0
    %531 = vmatpush2.msra.mxu0 0.0
    %532 = vmatprep.mubr.f32.mxu0 0.0
    %533 = vmatmul.mubr.f32.gmra.mxu0 %v396
    %v534 = vpop.f32.mrf.mxu0
    %v535 = vadd.f32 %v465, %v534
    %v536 = vpop.f32.mrf.mxu0
    %537 = vdwg.mxu0
    %v538 = vadd.f32 %v535, %v257
    %v541 = vunpack.c.l.s4 1966171168
    %v542 = vunpack.c.0.s8 %v541
    %v543 = vlaneseq
    %v544 = vshrl.u32 %v543, 7
    %v545 = vsub.s32 %v542, %v544
    %v546 = vrot.slane %v538, %v545
    %v547 = vcombine.high %v546, %v546
    %v549 = vunpack.c.l.s4 1966171168
    %v550 = vunpack.c.0.s8 %v549
    %v551 = vlaneseq
    %v552 = vshrl.u32 %v551, 7
    %v553 = vsub.s32 %v550, %v552
    %v554 = vrot.slane %v546, %v553
    %v556 = vunpack.c.l.s4 1966171168
    %v557 = vunpack.c.0.s8 %v556
    %v558 = vlaneseq
    %v559 = vshrl.u32 %v558, 7
    %v560 = vsub.s32 %v557, %v559
    %v561 = vrot.slane %v547, %v560
    %v562 = vlaneseq
    %v563 = vshrl.u32 %v562, 7
    %v564 = vsub.s32 0, %v563
    %v565 = vrot.slane %v554, %v564
    %v566 = vlaneseq
    %v567 = vshrl.u32 %v566, 7
    %v568 = vsub.s32 0, %v567
    %v569 = vrot.slane %v561, %v568
    %v572 = vadd.f32 %v565, %v388
    %v573 = vadd.f32 %v569, %v392
    %v574 = vtanh.pop %v572
    %v575 = vtanh.pop %v573
    %v576 = vmul.f32 %v574, %v306
    %v577 = vmul.f32 %v575, %v306
    %vm578 = vcmask 60416
    %v579 = vsel %vm578, %v576, 0.0
    %580 = vadd.xlane.f32.xlu0 %v579
    %v581 = vpop.xlane.xlu0 %580
    %v582 = vsel %vm578, %v577, 0.0
    %583 = vadd.xlane.f32.xlu0 %v582
    %v584 = vpop.xlane.xlu0 %583
    %v587 = vlaneseq
    %v588 = vand.u32 %v587, 127
    %v589 = vlaneseq
    %v590 = vshrl.u32 %v589, 7
    %v591 = vsub.s32 %v588, %v590
    %v592 = vrot.slane %v581, %v591
    %v593 = vlaneseq
    %v594 = vshrl.u32 %v593, 7
    %v595 = vsub.s32 %v588, %v594
    %v596 = vrot.slane %v584, %v595
    %vm597 = vcmask 1041409
    %v598 = vsel %vm597, %v596, %v592
    %vm600 = vcmask 25600
    %v601 = vsel %vm600, %v598, -inf
    %602 = vmax.xlane.f32.xlu0 %v601
    %v603 = vpop.xlane.xlu0 %602
    %v605 = vlaneseq
    %v606 = vshrl.u32 %v605, 7
    %v607 = vsub.s32 0, %v606
    %v608 = vrot.slane %v603, %v607
    %v609 = vlaneseq
    %v610 = vshrl.u32 %v609, 7
    %v611 = vsub.s32 1, %v610
    %v612 = vrot.slane %v603, %v611
    %v615 = vsub.f32 %v581, %v608
    %v616 = vsub.f32 %v584, %v612
    %v617 = vmul.f32 %v615, 1.442695
    %v618 = vpow.pop %v617
    %v619 = vmul.f32 %v616, 1.442695
    %v620 = vpow.pop %v619
    %623 = vset.pattern.permute.xlu0 0
    %624 = vperm.xlu0 %623, %v618
    %v625 = vpop.permute.xlu0 %624
    %626 = vset.pattern.permute.xlu0 0
    %627 = vperm.xlu0 %626, %v620
    %v628 = vpop.permute.xlu0 %627
    %v629 = vlaneseq
    %v630 = vshrl.u32 %v629, 7
    %v631 = vsub.s32 %v588, %v630
    %v632 = vrot.slane %v625, %v631
    %v633 = vlaneseq
    %v634 = vshrl.u32 %v633, 7
    %v635 = vsub.s32 %v588, %v634
    %v636 = vrot.slane %v628, %v635
    %v637 = vsel %vm597, %v636, %v632
    %v639 = vsel %vm600, %v637, 0.0
    %640 = vadd.xlane.f32.xlu0 %v639
    %v641 = vpop.xlane.xlu0 %640
    %v642 = vrcp.pop %v641
    %v644 = vlaneseq
    %v645 = vshrl.u32 %v644, 7
    %v646 = vsub.s32 0, %v645
    %v647 = vrot.slane %v642, %v646
    %v648 = vlaneseq
    %v649 = vshrl.u32 %v648, 7
    %v650 = vsub.s32 1, %v649
    %v651 = vrot.slane %v642, %v650
    %v654 = vmul.f32 %v618, %v647
    %v655 = vmul.f32 %v620, %v651
    %v658 = vlaneseq
    %v659 = vshrl.u32 %v658, 7
    %v660 = vsub.s32 0, %v659
    %v661 = vrot.slane %v198, %v660
    %663 = vbcast.lane.b32.xlu0 %v661, 256
    %v664 = vpop.permute.xlu0 %663
    %v665 = vlaneseq
    %v666 = vshrl.u32 %v665, 7
    %v667 = vsub.s32 0, %v666
    %v668 = vrot.slane %v199, %v667
    %670 = vbcast.lane.b32.xlu0 %v668, 256
    %v671 = vpop.permute.xlu0 %670
    %v674 = vmul.f32 %v654, %v664
    %v675 = vmul.f32 %v655, %v671
    %676 = vmatprep.subr.mxu0 0.0
    %677 = vmatpush1.msra.mxu0 0.0
    %678 = vmatprep.subr.mxu0 0.0
    %679 = vmatpush1.msra.mxu0 0.0
    %680 = vmatprep.subr.mxu0 0.0
    %681 = vmatpush1.msra.mxu0 0.0
    %682 = vmatprep.subr.mxu0 0.0
    %683 = vmatpush1.msra.mxu0 0.0
    %684 = vmatprep.subr.mxu0 0.0
    %685 = vmatpush1.msra.mxu0 0.0
    %686 = vmatprep.subr.mxu0 0.0
    %687 = vmatpush1.msra.mxu0 0.0
    %688 = vmatprep.subr.mxu0 0.0
    %689 = vmatpush1.msra.mxu0 0.0
    %690 = vmatprep.subr.mxu0 0.0
    %691 = vmatpush1.msra.mxu0 0.0
    %692 = vmatprep.subr.mxu0 0.0
    %693 = vmatpush1.msra.mxu0 0.0
    %694 = vmatprep.subr.mxu0 0.0
    %695 = vmatpush1.msra.mxu0 0.0
    %696 = vmatprep.subr.mxu0 0.0
    %697 = vmatpush1.msra.mxu0 0.0
    %698 = vmatprep.subr.mxu0 0.0
    %699 = vmatpush1.msra.mxu0 0.0
    %700 = vmatprep.subr.mxu0 0.0
    %701 = vmatpush1.msra.mxu0 %v217
    %702 = vmatprep.subr.mxu0 0.0
    %703 = vmatpush1.msra.mxu0 %v216
    %704 = vmatprep.subr.mxu0 0.0
    %705 = vmatpush1.msra.mxu0 %v215
    %706 = vmatprep.subr.mxu0 0.0
    %707 = vmatpush1.msra.mxu0 %v214
    %708 = vmatprep.subr.mxu0 0.0
    %709 = vmatpush2.msra.mxu0 0.0
    %710 = vmatprep.subr.mxu0 0.0
    %711 = vmatpush2.msra.mxu0 0.0
    %712 = vmatprep.subr.mxu0 0.0
    %713 = vmatpush2.msra.mxu0 0.0
    %714 = vmatprep.subr.mxu0 0.0
    %715 = vmatpush2.msra.mxu0 0.0
    %716 = vmatprep.subr.mxu0 0.0
    %717 = vmatpush2.msra.mxu0 0.0
    %718 = vmatprep.subr.mxu0 0.0
    %719 = vmatpush2.msra.mxu0 0.0
    %720 = vmatprep.subr.mxu0 0.0
    %721 = vmatpush2.msra.mxu0 0.0
    %722 = vmatprep.subr.mxu0 0.0
    %723 = vmatpush2.msra.mxu0 0.0
    %724 = vmatprep.subr.mxu0 0.0
    %725 = vmatpush2.msra.mxu0 0.0
    %726 = vmatprep.subr.mxu0 0.0
    %727 = vmatpush2.msra.mxu0 0.0
    %728 = vmatprep.subr.mxu0 0.0
    %729 = vmatpush2.msra.mxu0 0.0
    %730 = vmatprep.subr.mxu0 0.0
    %731 = vmatpush2.msra.mxu0 0.0
    %732 = vmatprep.subr.mxu0 0.0
    %733 = vmatpush2.msra.mxu0 0.0
    %734 = vmatprep.subr.mxu0 0.0
    %735 = vmatpush2.msra.mxu0 0.0
    %736 = vmatprep.subr.mxu0 0.0
    %737 = vmatpush2.msra.mxu0 0.0
    %738 = vmatprep.subr.mxu0 0.0
    %739 = vmatpush2.msra.mxu0 0.0
    %740 = vmatprep.mubr.f32.mxu0 0.0
    %741 = vmatmul.mubr.f32.gmra.mxu0 %v396
    %v742 = vpop.f32.mrf.mxu0
    %v743 = vadd.f32 0.0, %v742
    %v744 = vpop.f32.mrf.mxu0
    %745 = vdwg.mxu0
    %748 = vset.pattern.permute.xlu0 0
    %749 = vperm.xlu0 %748, %v674
    %v750 = vpop.permute.xlu0 %749
    %751 = vset.pattern.permute.xlu0 0
    %752 = vperm.xlu0 %751, %v675
    %v753 = vpop.permute.xlu0 %752
    %v754 = vlaneseq
    %v755 = vshrl.u32 %v754, 7
    %v756 = vsub.s32 %v588, %v755
    %v757 = vrot.slane %v750, %v756
    %v758 = vlaneseq
    %v759 = vshrl.u32 %v758, 7
    %v760 = vsub.s32 %v588, %v759
    %v761 = vrot.slane %v753, %v760
    %v762 = vsel %vm597, %v761, %v757
    %vm763 = vcmask 31744
    %v764 = vsel %vm763, %v762, 0
    %vm766 = vcmask 1043456
    %v768 = vsel %vm766, %v213, 0
    %770 = vmatprep.subr.mxu0 0.0
    %771 = vmatpush1.msra.mxu0 0.0
    %772 = vmatprep.subr.mxu0 0.0
    %773 = vmatpush1.msra.mxu0 0.0
    %774 = vmatprep.subr.mxu0 0.0
    %775 = vmatpush1.msra.mxu0 0.0
    %776 = vmatprep.subr.mxu0 0.0
    %777 = vmatpush1.msra.mxu0 0.0
    %778 = vmatprep.subr.mxu0 0.0
    %779 = vmatpush1.msra.mxu0 0.0
    %780 = vmatprep.subr.mxu0 0.0
    %781 = vmatpush1.msra.mxu0 0.0
    %782 = vmatprep.subr.mxu0 0.0
    %783 = vmatpush1.msra.mxu0 0.0
    %784 = vmatprep.subr.mxu0 0.0
    %785 = vmatpush1.msra.mxu0 0.0
    %786 = vmatprep.subr.mxu0 0.0
    %787 = vmatpush1.msra.mxu0 0.0
    %788 = vmatprep.subr.mxu0 0.0
    %789 = vmatpush1.msra.mxu0 0.0
    %790 = vmatprep.subr.mxu0 0.0
    %791 = vmatpush1.msra.mxu0 0.0
    %792 = vmatprep.subr.mxu0 0.0
    %793 = vmatpush1.msra.mxu0 0.0
    %794 = vmatprep.subr.mxu0 0.0
    %795 = vmatpush1.msra.mxu0 0.0
    %796 = vmatprep.subr.mxu0 0.0
    %797 = vmatpush1.msra.mxu0 0.0
    %798 = vmatprep.subr.mxu0 0.0
    %799 = vmatpush1.msra.mxu0 0.0
    %800 = vmatprep.subr.mxu0 0.0
    %801 = vmatpush1.msra.mxu0 %v768
    %802 = vmatprep.subr.mxu0 0.0
    %803 = vmatpush2.msra.mxu0 0.0
    %804 = vmatprep.subr.mxu0 0.0
    %805 = vmatpush2.msra.mxu0 0.0
    %806 = vmatprep.subr.mxu0 0.0
    %807 = vmatpush2.msra.mxu0 0.0
    %808 = vmatprep.subr.mxu0 0.0
    %809 = vmatpush2.msra.mxu0 0.0
    %810 = vmatprep.subr.mxu0 0.0
    %811 = vmatpush2.msra.mxu0 0.0
    %812 = vmatprep.subr.mxu0 0.0
    %813 = vmatpush2.msra.mxu0 0.0
    %814 = vmatprep.subr.mxu0 0.0
    %815 = vmatpush2.msra.mxu0 0.0
    %816 = vmatprep.subr.mxu0 0.0
    %817 = vmatpush2.msra.mxu0 0.0
    %818 = vmatprep.subr.mxu0 0.0
    %819 = vmatpush2.msra.mxu0 0.0
    %820 = vmatprep.subr.mxu0 0.0
    %821 = vmatpush2.msra.mxu0 0.0
    %822 = vmatprep.subr.mxu0 0.0
    %823 = vmatpush2.msra.mxu0 0.0
    %824 = vmatprep.subr.mxu0 0.0
    %825 = vmatpush2.msra.mxu0 0.0
    %826 = vmatprep.subr.mxu0 0.0
    %827 = vmatpush2.msra.mxu0 0.0
    %828 = vmatprep.subr.mxu0 0.0
    %829 = vmatpush2.msra.mxu0 0.0
    %830 = vmatprep.subr.mxu0 0.0
    %831 = vmatpush2.msra.mxu0 0.0
    %832 = vmatprep.subr.mxu0 0.0
    %833 = vmatpush2.msra.mxu0 0.0
    %834 = vmatprep.mubr.f32.mxu0 0.0
    %835 = vmatmul.mubr.f32.gmra.mxu0 %v764
    %v836 = vpop.f32.mrf.mxu0
    %v837 = vadd.f32 %v743, %v836
    %v838 = vpop.f32.mrf.mxu0
    %839 = vdwg.mxu0
    %v840 = vadd.f32 %v837, %v264
    %v841 = vxor.u32 %v840, 2147483648
    %v842 = vmul.f32 %v841, 1.442695
    %v843 = vpow.pop %v842
    %v844 = vadd.f32 %v843, 1.0
    %v845 = vrcp.pop %v844
    %v846 = vmul.f32 1.0, %v845
    %v847 = vtanh.pop %v840
    %v848 = vmul.f32 %v846, 0.0
    %850 = vrot.lane.b32.xlu0 %v847, 64
    %v851 = vpop.permute.xlu0 %850
    %v853 = vmul.f32 %v846, %v851
    %855 = vrot.lane.b32.xlu0 %v853, 32
    %v856 = vpop.permute.xlu0 %855
    %v858 = vadd.f32 %v848, %v856
    %v859 = vtanh.pop %v858
    %861 = vrot.lane.b32.xlu0 %v859, 64
    %v862 = vpop.permute.xlu0 %861
    %v864 = vmul.f32 %v846, %v862
    %866 = vrot.lane.b32.xlu0 %v858, 96
    %v867 = vpop.permute.xlu0 %866
    %v868 = vsel %vm394, %v867, 0
    %870 = vmatprep.subr.mxu0 0.0
    %871 = vmatpush1.msra.mxu0 0.0
    %872 = vmatprep.subr.mxu0 0.0
    %873 = vmatpush1.msra.mxu0 0.0
    %874 = vmatprep.subr.mxu0 0.0
    %875 = vmatpush1.msra.mxu0 0.0
    %876 = vmatprep.subr.mxu0 0.0
    %877 = vmatpush1.msra.mxu0 0.0
    %878 = vmatprep.subr.mxu0 0.0
    %879 = vmatpush1.msra.mxu0 0.0
    %880 = vmatprep.subr.mxu0 0.0
    %881 = vmatpush1.msra.mxu0 0.0
    %882 = vmatprep.subr.mxu0 0.0
    %883 = vmatpush1.msra.mxu0 0.0
    %884 = vmatprep.subr.mxu0 0.0
    %885 = vmatpush1.msra.mxu0 0.0
    %886 = vmatprep.subr.mxu0 0.0
    %887 = vmatpush1.msra.mxu0 0.0
    %888 = vmatprep.subr.mxu0 0.0
    %889 = vmatpush1.msra.mxu0 0.0
    %890 = vmatprep.subr.mxu0 0.0
    %891 = vmatpush1.msra.mxu0 0.0
    %892 = vmatprep.subr.mxu0 0.0
    %893 = vmatpush1.msra.mxu0 0.0
    %894 = vmatprep.subr.mxu0 0.0
    %895 = vmatpush1.msra.mxu0 %v211
    %896 = vmatprep.subr.mxu0 0.0
    %897 = vmatpush1.msra.mxu0 %v210
    %898 = vmatprep.subr.mxu0 0.0
    %899 = vmatpush1.msra.mxu0 %v209
    %900 = vmatprep.subr.mxu0 0.0
    %901 = vmatpush1.msra.mxu0 %v208
    %902 = vmatprep.subr.mxu0 0.0
    %903 = vmatpush2.msra.mxu0 0.0
    %904 = vmatprep.subr.mxu0 0.0
    %905 = vmatpush2.msra.mxu0 0.0
    %906 = vmatprep.subr.mxu0 0.0
    %907 = vmatpush2.msra.mxu0 0.0
    %908 = vmatprep.subr.mxu0 0.0
    %909 = vmatpush2.msra.mxu0 0.0
    %910 = vmatprep.subr.mxu0 0.0
    %911 = vmatpush2.msra.mxu0 0.0
    %912 = vmatprep.subr.mxu0 0.0
    %913 = vmatpush2.msra.mxu0 0.0
    %914 = vmatprep.subr.mxu0 0.0
    %915 = vmatpush2.msra.mxu0 0.0
    %916 = vmatprep.subr.mxu0 0.0
    %917 = vmatpush2.msra.mxu0 0.0
    %918 = vmatprep.subr.mxu0 0.0
    %919 = vmatpush2.msra.mxu0 0.0
    %920 = vmatprep.subr.mxu0 0.0
    %921 = vmatpush2.msra.mxu0 0.0
    %922 = vmatprep.subr.mxu0 0.0
    %923 = vmatpush2.msra.mxu0 0.0
    %924 = vmatprep.subr.mxu0 0.0
    %925 = vmatpush2.msra.mxu0 0.0
    %926 = vmatprep.subr.mxu0 0.0
    %927 = vmatpush2.msra.mxu0 0.0
    %928 = vmatprep.subr.mxu0 0.0
    %929 = vmatpush2.msra.mxu0 0.0
    %930 = vmatprep.subr.mxu0 0.0
    %931 = vmatpush2.msra.mxu0 0.0
    %932 = vmatprep.subr.mxu0 0.0
    %933 = vmatpush2.msra.mxu0 0.0
    %934 = vmatprep.mubr.f32.mxu0 0.0
    %935 = vmatmul.mubr.f32.gmra.mxu0 %v868
    %v936 = vpop.f32.mrf.mxu0
    %v937 = vadd.f32 0.0, %v936
    %v938 = vpop.f32.mrf.mxu0
    %939 = vdwg.mxu0
    %941 = vrot.lane.b32.xlu0 %v864, 32
    %v942 = vpop.permute.xlu0 %941
    %v943 = vsel %vm394, %v942, 0
    %945 = vmatprep.subr.mxu0 0.0
    %946 = vmatpush1.msra.mxu0 0.0
    %947 = vmatprep.subr.mxu0 0.0
    %948 = vmatpush1.msra.mxu0 0.0
    %949 = vmatprep.subr.mxu0 0.0
    %950 = vmatpush1.msra.mxu0 0.0
    %951 = vmatprep.subr.mxu0 0.0
    %952 = vmatpush1.msra.mxu0 0.0
    %953 = vmatprep.subr.mxu0 0.0
    %954 = vmatpush1.msra.mxu0 0.0
    %955 = vmatprep.subr.mxu0 0.0
    %956 = vmatpush1.msra.mxu0 0.0
    %957 = vmatprep.subr.mxu0 0.0
    %958 = vmatpush1.msra.mxu0 0.0
    %959 = vmatprep.subr.mxu0 0.0
    %960 = vmatpush1.msra.mxu0 0.0
    %961 = vmatprep.subr.mxu0 0.0
    %962 = vmatpush1.msra.mxu0 0.0
    %963 = vmatprep.subr.mxu0 0.0
    %964 = vmatpush1.msra.mxu0 0.0
    %965 = vmatprep.subr.mxu0 0.0
    %966 = vmatpush1.msra.mxu0 0.0
    %967 = vmatprep.subr.mxu0 0.0
    %968 = vmatpush1.msra.mxu0 0.0
    %969 = vmatprep.subr.mxu0 0.0
    %970 = vmatpush1.msra.mxu0 %v207
    %971 = vmatprep.subr.mxu0 0.0
    %972 = vmatpush1.msra.mxu0 %v206
    %973 = vmatprep.subr.mxu0 0.0
    %974 = vmatpush1.msra.mxu0 %v205
    %975 = vmatprep.subr.mxu0 0.0
    %976 = vmatpush1.msra.mxu0 %v204
    %977 = vmatprep.subr.mxu0 0.0
    %978 = vmatpush2.msra.mxu0 0.0
    %979 = vmatprep.subr.mxu0 0.0
    %980 = vmatpush2.msra.mxu0 0.0
    %981 = vmatprep.subr.mxu0 0.0
    %982 = vmatpush2.msra.mxu0 0.0
    %983 = vmatprep.subr.mxu0 0.0
    %984 = vmatpush2.msra.mxu0 0.0
    %985 = vmatprep.subr.mxu0 0.0
    %986 = vmatpush2.msra.mxu0 0.0
    %987 = vmatprep.subr.mxu0 0.0
    %988 = vmatpush2.msra.mxu0 0.0
    %989 = vmatprep.subr.mxu0 0.0
    %990 = vmatpush2.msra.mxu0 0.0
    %991 = vmatprep.subr.mxu0 0.0
    %992 = vmatpush2.msra.mxu0 0.0
    %993 = vmatprep.subr.mxu0 0.0
    %994 = vmatpush2.msra.mxu0 0.0
    %995 = vmatprep.subr.mxu0 0.0
    %996 = vmatpush2.msra.mxu0 0.0
    %997 = vmatprep.subr.mxu0 0.0
    %998 = vmatpush2.msra.mxu0 0.0
    %999 = vmatprep.subr.mxu0 0.0
    %1000 = vmatpush2.msra.mxu0 0.0
    %1001 = vmatprep.subr.mxu0 0.0
    %1002 = vmatpush2.msra.mxu0 0.0
    %1003 = vmatprep.subr.mxu0 0.0
    %1004 = vmatpush2.msra.mxu0 0.0
    %1005 = vmatprep.subr.mxu0 0.0
    %1006 = vmatpush2.msra.mxu0 0.0
    %1007 = vmatprep.subr.mxu0 0.0
    %1008 = vmatpush2.msra.mxu0 0.0
    %1009 = vmatprep.mubr.f32.mxu0 0.0
    %1010 = vmatmul.mubr.f32.gmra.mxu0 %v943
    %v1011 = vpop.f32.mrf.mxu0
    %v1012 = vadd.f32 %v937, %v1011
    %v1013 = vpop.f32.mrf.mxu0
    %1014 = vdwg.mxu0
    %v1015 = vadd.f32 %v1012, %v257
    %v1018 = vunpack.c.l.s4 1966171168
    %v1019 = vunpack.c.0.s8 %v1018
    %v1020 = vlaneseq
    %v1021 = vshrl.u32 %v1020, 7
    %v1022 = vsub.s32 %v1019, %v1021
    %v1023 = vrot.slane %v1015, %v1022
    %v1024 = vcombine.high %v1023, %v1023
    %v1026 = vunpack.c.l.s4 1966171168
    %v1027 = vunpack.c.0.s8 %v1026
    %v1028 = vlaneseq
    %v1029 = vshrl.u32 %v1028, 7
    %v1030 = vsub.s32 %v1027, %v1029
    %v1031 = vrot.slane %v1023, %v1030
    %v1033 = vunpack.c.l.s4 1966171168
    %v1034 = vunpack.c.0.s8 %v1033
    %v1035 = vlaneseq
    %v1036 = vshrl.u32 %v1035, 7
    %v1037 = vsub.s32 %v1034, %v1036
    %v1038 = vrot.slane %v1024, %v1037
    %v1039 = vlaneseq
    %v1040 = vshrl.u32 %v1039, 7
    %v1041 = vsub.s32 0, %v1040
    %v1042 = vrot.slane %v1031, %v1041
    %v1043 = vlaneseq
    %v1044 = vshrl.u32 %v1043, 7
    %v1045 = vsub.s32 0, %v1044
    %v1046 = vrot.slane %v1038, %v1045
    %v1049 = vadd.f32 %v1042, %v388
    %v1050 = vadd.f32 %v1046, %v392
    %v1051 = vtanh.pop %v1049
    %v1052 = vtanh.pop %v1050
    %v1053 = vmul.f32 %v1051, %v306
    %v1054 = vmul.f32 %v1052, %v306
    %v1055 = vsel %vm578, %v1053, 0.0
    %1056 = vadd.xlane.f32.xlu0 %v1055
    %v1057 = vpop.xlane.xlu0 %1056
    %v1058 = vsel %vm578, %v1054, 0.0
    %1059 = vadd.xlane.f32.xlu0 %v1058
    %v1060 = vpop.xlane.xlu0 %1059
    %v1063 = vlaneseq
    %v1064 = vshrl.u32 %v1063, 7
    %v1065 = vsub.s32 %v588, %v1064
    %v1066 = vrot.slane %v1057, %v1065
    %v1067 = vlaneseq
    %v1068 = vshrl.u32 %v1067, 7
    %v1069 = vsub.s32 %v588, %v1068
    %v1070 = vrot.slane %v1060, %v1069
    %v1071 = vsel %vm597, %v1070, %v1066
    %v1073 = vsel %vm600, %v1071, -inf
    %1074 = vmax.xlane.f32.xlu0 %v1073
    %v1075 = vpop.xlane.xlu0 %1074
    %v1077 = vlaneseq
    %v1078 = vshrl.u32 %v1077, 7
    %v1079 = vsub.s32 0, %v1078
    %v1080 = vrot.slane %v1075, %v1079
    %v1081 = vlaneseq
    %v1082 = vshrl.u32 %v1081, 7
    %v1083 = vsub.s32 1, %v1082
    %v1084 = vrot.slane %v1075, %v1083
    %v1087 = vsub.f32 %v1057, %v1080
    %v1088 = vsub.f32 %v1060, %v1084
    %v1089 = vmul.f32 %v1087, 1.442695
    %v1090 = vpow.pop %v1089
    %v1091 = vmul.f32 %v1088, 1.442695
    %v1092 = vpow.pop %v1091
    %1095 = vset.pattern.permute.xlu0 0
    %1096 = vperm.xlu0 %1095, %v1090
    %v1097 = vpop.permute.xlu0 %1096
    %1098 = vset.pattern.permute.xlu0 0
    %1099 = vperm.xlu0 %1098, %v1092
    %v1100 = vpop.permute.xlu0 %1099
    %v1101 = vlaneseq
    %v1102 = vshrl.u32 %v1101, 7
    %v1103 = vsub.s32 %v588, %v1102
    %v1104 = vrot.slane %v1097, %v1103
    %v1105 = vlaneseq
    %v1106 = vshrl.u32 %v1105, 7
    %v1107 = vsub.s32 %v588, %v1106
    %v1108 = vrot.slane %v1100, %v1107
    %v1109 = vsel %vm597, %v1108, %v1104
    %v1111 = vsel %vm600, %v1109, 0.0
    %1112 = vadd.xlane.f32.xlu0 %v1111
    %v1113 = vpop.xlane.xlu0 %1112
    %v1114 = vrcp.pop %v1113
    %v1116 = vlaneseq
    %v1117 = vshrl.u32 %v1116, 7
    %v1118 = vsub.s32 0, %v1117
    %v1119 = vrot.slane %v1114, %v1118
    %v1120 = vlaneseq
    %v1121 = vshrl.u32 %v1120, 7
    %v1122 = vsub.s32 1, %v1121
    %v1123 = vrot.slane %v1114, %v1122
    %v1126 = vmul.f32 %v1090, %v1119
    %v1127 = vmul.f32 %v1092, %v1123
    %v1128 = vlaneseq
    %v1129 = vshrl.u32 %v1128, 7
    %v1130 = vsub.s32 1, %v1129
    %v1131 = vrot.slane %v198, %v1130
    %1133 = vbcast.lane.b32.xlu0 %v1131, 256
    %v1134 = vpop.permute.xlu0 %1133
    %v1135 = vlaneseq
    %v1136 = vshrl.u32 %v1135, 7
    %v1137 = vsub.s32 1, %v1136
    %v1138 = vrot.slane %v199, %v1137
    %1140 = vbcast.lane.b32.xlu0 %v1138, 256
    %v1141 = vpop.permute.xlu0 %1140
    %v1144 = vmul.f32 %v1126, %v1134
    %v1145 = vmul.f32 %v1127, %v1141
    %1146 = vmatprep.subr.mxu0 0.0
    %1147 = vmatpush1.msra.mxu0 0.0
    %1148 = vmatprep.subr.mxu0 0.0
    %1149 = vmatpush1.msra.mxu0 0.0
    %1150 = vmatprep.subr.mxu0 0.0
    %1151 = vmatpush1.msra.mxu0 0.0
    %1152 = vmatprep.subr.mxu0 0.0
    %1153 = vmatpush1.msra.mxu0 0.0
    %1154 = vmatprep.subr.mxu0 0.0
    %1155 = vmatpush1.msra.mxu0 0.0
    %1156 = vmatprep.subr.mxu0 0.0
    %1157 = vmatpush1.msra.mxu0 0.0
    %1158 = vmatprep.subr.mxu0 0.0
    %1159 = vmatpush1.msra.mxu0 0.0
    %1160 = vmatprep.subr.mxu0 0.0
    %1161 = vmatpush1.msra.mxu0 0.0
    %1162 = vmatprep.subr.mxu0 0.0
    %1163 = vmatpush1.msra.mxu0 0.0
    %1164 = vmatprep.subr.mxu0 0.0
    %1165 = vmatpush1.msra.mxu0 0.0
    %1166 = vmatprep.subr.mxu0 0.0
    %1167 = vmatpush1.msra.mxu0 0.0
    %1168 = vmatprep.subr.mxu0 0.0
    %1169 = vmatpush1.msra.mxu0 0.0
    %1170 = vmatprep.subr.mxu0 0.0
    %1171 = vmatpush1.msra.mxu0 %v217
    %1172 = vmatprep.subr.mxu0 0.0
    %1173 = vmatpush1.msra.mxu0 %v216
    %1174 = vmatprep.subr.mxu0 0.0
    %1175 = vmatpush1.msra.mxu0 %v215
    %1176 = vmatprep.subr.mxu0 0.0
    %1177 = vmatpush1.msra.mxu0 %v214
    %1178 = vmatprep.subr.mxu0 0.0
    %1179 = vmatpush2.msra.mxu0 0.0
    %1180 = vmatprep.subr.mxu0 0.0
    %1181 = vmatpush2.msra.mxu0 0.0
    %1182 = vmatprep.subr.mxu0 0.0
    %1183 = vmatpush2.msra.mxu0 0.0
    %1184 = vmatprep.subr.mxu0 0.0
    %1185 = vmatpush2.msra.mxu0 0.0
    %1186 = vmatprep.subr.mxu0 0.0
    %1187 = vmatpush2.msra.mxu0 0.0
    %1188 = vmatprep.subr.mxu0 0.0
    %1189 = vmatpush2.msra.mxu0 0.0
    %1190 = vmatprep.subr.mxu0 0.0
    %1191 = vmatpush2.msra.mxu0 0.0
    %1192 = vmatprep.subr.mxu0 0.0
    %1193 = vmatpush2.msra.mxu0 0.0
    %1194 = vmatprep.subr.mxu0 0.0
    %1195 = vmatpush2.msra.mxu0 0.0
    %1196 = vmatprep.subr.mxu0 0.0
    %1197 = vmatpush2.msra.mxu0 0.0
    %1198 = vmatprep.subr.mxu0 0.0
    %1199 = vmatpush2.msra.mxu0 0.0
    %1200 = vmatprep.subr.mxu0 0.0
    %1201 = vmatpush2.msra.mxu0 0.0
    %1202 = vmatprep.subr.mxu0 0.0
    %1203 = vmatpush2.msra.mxu0 0.0
    %1204 = vmatprep.subr.mxu0 0.0
    %1205 = vmatpush2.msra.mxu0 0.0
    %1206 = vmatprep.subr.mxu0 0.0
    %1207 = vmatpush2.msra.mxu0 0.0
    %1208 = vmatprep.subr.mxu0 0.0
    %1209 = vmatpush2.msra.mxu0 0.0
    %1210 = vmatprep.mubr.f32.mxu0 0.0
    %1211 = vmatmul.mubr.f32.gmra.mxu0 %v943
    %v1212 = vpop.f32.mrf.mxu0
    %v1213 = vadd.f32 0.0, %v1212
    %v1214 = vpop.f32.mrf.mxu0
    %1215 = vdwg.mxu0
    %1218 = vset.pattern.permute.xlu0 0
    %1219 = vperm.xlu0 %1218, %v1144
    %v1220 = vpop.permute.xlu0 %1219
    %1221 = vset.pattern.permute.xlu0 0
    %1222 = vperm.xlu0 %1221, %v1145
    %v1223 = vpop.permute.xlu0 %1222
    %v1224 = vlaneseq
    %v1225 = vshrl.u32 %v1224, 7
    %v1226 = vsub.s32 %v588, %v1225
    %v1227 = vrot.slane %v1220, %v1226
    %v1228 = vlaneseq
    %v1229 = vshrl.u32 %v1228, 7
    %v1230 = vsub.s32 %v588, %v1229
    %v1231 = vrot.slane %v1223, %v1230
    %v1232 = vsel %vm597, %v1231, %v1227
    %v1233 = vsel %vm763, %v1232, 0
    %1235 = vmatprep.subr.mxu0 0.0
    %1236 = vmatpush1.msra.mxu0 0.0
    %1237 = vmatprep.subr.mxu0 0.0
    %1238 = vmatpush1.msra.mxu0 0.0
    %1239 = vmatprep.subr.mxu0 0.0
    %1240 = vmatpush1.msra.mxu0 0.0
    %1241 = vmatprep.subr.mxu0 0.0
    %1242 = vmatpush1.msra.mxu0 0.0
    %1243 = vmatprep.subr.mxu0 0.0
    %1244 = vmatpush1.msra.mxu0 0.0
    %1245 = vmatprep.subr.mxu0 0.0
    %1246 = vmatpush1.msra.mxu0 0.0
    %1247 = vmatprep.subr.mxu0 0.0
    %1248 = vmatpush1.msra.mxu0 0.0
    %1249 = vmatprep.subr.mxu0 0.0
    %1250 = vmatpush1.msra.mxu0 0.0
    %1251 = vmatprep.subr.mxu0 0.0
    %1252 = vmatpush1.msra.mxu0 0.0
    %1253 = vmatprep.subr.mxu0 0.0
    %1254 = vmatpush1.msra.mxu0 0.0
    %1255 = vmatprep.subr.mxu0 0.0
    %1256 = vmatpush1.msra.mxu0 0.0
    %1257 = vmatprep.subr.mxu0 0.0
    %1258 = vmatpush1.msra.mxu0 0.0
    %1259 = vmatprep.subr.mxu0 0.0
    %1260 = vmatpush1.msra.mxu0 0.0
    %1261 = vmatprep.subr.mxu0 0.0
    %1262 = vmatpush1.msra.mxu0 0.0
    %1263 = vmatprep.subr.mxu0 0.0
    %1264 = vmatpush1.msra.mxu0 0.0
    %1265 = vmatprep.subr.mxu0 0.0
    %1266 = vmatpush1.msra.mxu0 %v768
    %1267 = vmatprep.subr.mxu0 0.0
    %1268 = vmatpush2.msra.mxu0 0.0
    %1269 = vmatprep.subr.mxu0 0.0
    %1270 = vmatpush2.msra.mxu0 0.0
    %1271 = vmatprep.subr.mxu0 0.0
    %1272 = vmatpush2.msra.mxu0 0.0
    %1273 = vmatprep.subr.mxu0 0.0
    %1274 = vmatpush2.msra.mxu0 0.0
    %1275 = vmatprep.subr.mxu0 0.0
    %1276 = vmatpush2.msra.mxu0 0.0
    %1277 = vmatprep.subr.mxu0 0.0
    %1278 = vmatpush2.msra.mxu0 0.0
    %1279 = vmatprep.subr.mxu0 0.0
    %1280 = vmatpush2.msra.mxu0 0.0
    %1281 = vmatprep.subr.mxu0 0.0
    %1282 = vmatpush2.msra.mxu0 0.0
    %1283 = vmatprep.subr.mxu0 0.0
    %1284 = vmatpush2.msra.mxu0 0.0
    %1285 = vmatprep.subr.mxu0 0.0
    %1286 = vmatpush2.msra.mxu0 0.0
    %1287 = vmatprep.subr.mxu0 0.0
    %1288 = vmatpush2.msra.mxu0 0.0
    %1289 = vmatprep.subr.mxu0 0.0
    %1290 = vmatpush2.msra.mxu0 0.0
    %1291 = vmatprep.subr.mxu0 0.0
    %1292 = vmatpush2.msra.mxu0 0.0
    %1293 = vmatprep.subr.mxu0 0.0
    %1294 = vmatpush2.msra.mxu0 0.0
    %1295 = vmatprep.subr.mxu0 0.0
    %1296 = vmatpush2.msra.mxu0 0.0
    %1297 = vmatprep.subr.mxu0 0.0
    %1298 = vmatpush2.msra.mxu0 0.0
    %1299 = vmatprep.mubr.f32.mxu0 0.0
    %1300 = vmatmul.mubr.f32.gmra.mxu0 %v1233
    %v1301 = vpop.f32.mrf.mxu0
    %v1302 = vadd.f32 %v1213, %v1301
    %v1303 = vpop.f32.mrf.mxu0
    %1304 = vdwg.mxu0
    %v1305 = vadd.f32 %v1302, %v264
    %v1306 = vxor.u32 %v1305, 2147483648
    %v1307 = vmul.f32 %v1306, 1.442695
    %v1308 = vpow.pop %v1307
    %v1309 = vadd.f32 %v1308, 1.0
    %v1310 = vrcp.pop %v1309
    %v1311 = vmul.f32 1.0, %v1310
    %v1312 = vtanh.pop %v1305
    %v1313 = vmul.f32 %v1311, %v858
    %1315 = vrot.lane.b32.xlu0 %v1312, 64
    %v1316 = vpop.permute.xlu0 %1315
    %v1318 = vmul.f32 %v1311, %v1316
    %1320 = vrot.lane.b32.xlu0 %v1318, 32
    %v1321 = vpop.permute.xlu0 %1320
    %v1323 = vadd.f32 %v1313, %v1321
    %v1324 = vtanh.pop %v1323
    %1326 = vrot.lane.b32.xlu0 %v1324, 64
    %v1327 = vpop.permute.xlu0 %1326
    %v1329 = vmul.f32 %v1311, %v1327
    %1331 = vrot.lane.b32.xlu0 %v1323, 96
    %v1332 = vpop.permute.xlu0 %1331
    %v1333 = vsel %vm394, %v1332, 0
    %1335 = vmatprep.subr.mxu0 0.0
    %1336 = vmatpush1.msra.mxu0 0.0
    %1337 = vmatprep.subr.mxu0 0.0
    %1338 = vmatpush1.msra.mxu0 0.0
    %1339 = vmatprep.subr.mxu0 0.0
    %1340 = vmatpush1.msra.mxu0 0.0
    %1341 = vmatprep.subr.mxu0 0.0
    %1342 = vmatpush1.msra.mxu0 0.0
    %1343 = vmatprep.subr.mxu0 0.0
    %1344 = vmatpush1.msra.mxu0 0.0
    %1345 = vmatprep.subr.mxu0 0.0
    %1346 = vmatpush1.msra.mxu0 0.0
    %1347 = vmatprep.subr.mxu0 0.0
    %1348 = vmatpush1.msra.mxu0 0.0
    %1349 = vmatprep.subr.mxu0 0.0
    %1350 = vmatpush1.msra.mxu0 0.0
    %1351 = vmatprep.subr.mxu0 0.0
    %1352 = vmatpush1.msra.mxu0 0.0
    %1353 = vmatprep.subr.mxu0 0.0
    %1354 = vmatpush1.msra.mxu0 0.0
    %1355 = vmatprep.subr.mxu0 0.0
    %1356 = vmatpush1.msra.mxu0 0.0
    %1357 = vmatprep.subr.mxu0 0.0
    %1358 = vmatpush1.msra.mxu0 0.0
    %1359 = vmatprep.subr.mxu0 0.0
    %1360 = vmatpush1.msra.mxu0 %v211
    %1361 = vmatprep.subr.mxu0 0.0
    %1362 = vmatpush1.msra.mxu0 %v210
    %1363 = vmatprep.subr.mxu0 0.0
    %1364 = vmatpush1.msra.mxu0 %v209
    %1365 = vmatprep.subr.mxu0 0.0
    %1366 = vmatpush1.msra.mxu0 %v208
    %1367 = vmatprep.subr.mxu0 0.0
    %1368 = vmatpush2.msra.mxu0 0.0
    %1369 = vmatprep.subr.mxu0 0.0
    %1370 = vmatpush2.msra.mxu0 0.0
    %1371 = vmatprep.subr.mxu0 0.0
    %1372 = vmatpush2.msra.mxu0 0.0
    %1373 = vmatprep.subr.mxu0 0.0
    %1374 = vmatpush2.msra.mxu0 0.0
    %1375 = vmatprep.subr.mxu0 0.0
    %1376 = vmatpush2.msra.mxu0 0.0
    %1377 = vmatprep.subr.mxu0 0.0
    %1378 = vmatpush2.msra.mxu0 0.0
    %1379 = vmatprep.subr.mxu0 0.0
    %1380 = vmatpush2.msra.mxu0 0.0
    %1381 = vmatprep.subr.mxu0 0.0
    %1382 = vmatpush2.msra.mxu0 0.0
    %1383 = vmatprep.subr.mxu0 0.0
    %1384 = vmatpush2.msra.mxu0 0.0
    %1385 = vmatprep.subr.mxu0 0.0
    %1386 = vmatpush2.msra.mxu0 0.0
    %1387 = vmatprep.subr.mxu0 0.0
    %1388 = vmatpush2.msra.mxu0 0.0
    %1389 = vmatprep.subr.mxu0 0.0
    %1390 = vmatpush2.msra.mxu0 0.0
    %1391 = vmatprep.subr.mxu0 0.0
    %1392 = vmatpush2.msra.mxu0 0.0
    %1393 = vmatprep.subr.mxu0 0.0
    %1394 = vmatpush2.msra.mxu0 0.0
    %1395 = vmatprep.subr.mxu0 0.0
    %1396 = vmatpush2.msra.mxu0 0.0
    %1397 = vmatprep.subr.mxu0 0.0
    %1398 = vmatpush2.msra.mxu0 0.0
    %1399 = vmatprep.mubr.f32.mxu0 0.0
    %1400 = vmatmul.mubr.f32.gmra.mxu0 %v1333
    %v1401 = vpop.f32.mrf.mxu0
    %v1402 = vadd.f32 0.0, %v1401
    %v1403 = vpop.f32.mrf.mxu0
    %1404 = vdwg.mxu0
    %1406 = vrot.lane.b32.xlu0 %v1329, 32
    %v1407 = vpop.permute.xlu0 %1406
    %v1408 = vsel %vm394, %v1407, 0
    %1410 = vmatprep.subr.mxu0 0.0
    %1411 = vmatpush1.msra.mxu0 0.0
    %1412 = vmatprep.subr.mxu0 0.0
    %1413 = vmatpush1.msra.mxu0 0.0
    %1414 = vmatprep.subr.mxu0 0.0
    %1415 = vmatpush1.msra.mxu0 0.0
    %1416 = vmatprep.subr.mxu0 0.0
    %1417 = vmatpush1.msra.mxu0 0.0
    %1418 = vmatprep.subr.mxu0 0.0
    %1419 = vmatpush1.msra.mxu0 0.0
    %1420 = vmatprep.subr.mxu0 0.0
    %1421 = vmatpush1.msra.mxu0 0.0
    %1422 = vmatprep.subr.mxu0 0.0
    %1423 = vmatpush1.msra.mxu0 0.0
    %1424 = vmatprep.subr.mxu0 0.0
    %1425 = vmatpush1.msra.mxu0 0.0
    %1426 = vmatprep.subr.mxu0 0.0
    %1427 = vmatpush1.msra.mxu0 0.0
    %1428 = vmatprep.subr.mxu0 0.0
    %1429 = vmatpush1.msra.mxu0 0.0
    %1430 = vmatprep.subr.mxu0 0.0
    %1431 = vmatpush1.msra.mxu0 0.0
    %1432 = vmatprep.subr.mxu0 0.0
    %1433 = vmatpush1.msra.mxu0 0.0
    %1434 = vmatprep.subr.mxu0 0.0
    %1435 = vmatpush1.msra.mxu0 %v207
    %1436 = vmatprep.subr.mxu0 0.0
    %1437 = vmatpush1.msra.mxu0 %v206
    %1438 = vmatprep.subr.mxu0 0.0
    %1439 = vmatpush1.msra.mxu0 %v205
    %1440 = vmatprep.subr.mxu0 0.0
    %1441 = vmatpush1.msra.mxu0 %v204
    %1442 = vmatprep.subr.mxu0 0.0
    %1443 = vmatpush2.msra.mxu0 0.0
    %1444 = vmatprep.subr.mxu0 0.0
    %1445 = vmatpush2.msra.mxu0 0.0
    %1446 = vmatprep.subr.mxu0 0.0
    %1447 = vmatpush2.msra.mxu0 0.0
    %1448 = vmatprep.subr.mxu0 0.0
    %1449 = vmatpush2.msra.mxu0 0.0
    %1450 = vmatprep.subr.mxu0 0.0
    %1451 = vmatpush2.msra.mxu0 0.0
    %1452 = vmatprep.subr.mxu0 0.0
    %1453 = vmatpush2.msra.mxu0 0.0
    %1454 = vmatprep.subr.mxu0 0.0
    %1455 = vmatpush2.msra.mxu0 0.0
    %1456 = vmatprep.subr.mxu0 0.0
    %1457 = vmatpush2.msra.mxu0 0.0
    %1458 = vmatprep.subr.mxu0 0.0
    %1459 = vmatpush2.msra.mxu0 0.0
    %1460 = vmatprep.subr.mxu0 0.0
    %1461 = vmatpush2.msra.mxu0 0.0
    %1462 = vmatprep.subr.mxu0 0.0
    %1463 = vmatpush2.msra.mxu0 0.0
    %1464 = vmatprep.subr.mxu0 0.0
    %1465 = vmatpush2.msra.mxu0 0.0
    %1466 = vmatprep.subr.mxu0 0.0
    %1467 = vmatpush2.msra.mxu0 0.0
    %1468 = vmatprep.subr.mxu0 0.0
    %1469 = vmatpush2.msra.mxu0 0.0
    %1470 = vmatprep.subr.mxu0 0.0
    %1471 = vmatpush2.msra.mxu0 0.0
    %1472 = vmatprep.subr.mxu0 0.0
    %1473 = vmatpush2.msra.mxu0 0.0
    %1474 = vmatprep.mubr.f32.mxu0 0.0
    %1475 = vmatmul.mubr.f32.gmra.mxu0 %v1408
    %v1476 = vpop.f32.mrf.mxu0
    %v1477 = vadd.f32 %v1402, %v1476
    %v1478 = vpop.f32.mrf.mxu0
    %1479 = vdwg.mxu0
    %v1480 = vadd.f32 %v1477, %v257
    %v1483 = vunpack.c.l.s4 1966171168
    %v1484 = vunpack.c.0.s8 %v1483
    %v1485 = vlaneseq
    %v1486 = vshrl.u32 %v1485, 7
    %v1487 = vsub.s32 %v1484, %v1486
    %v1488 = vrot.slane %v1480, %v1487
    %v1489 = vcombine.high %v1488, %v1488
    %v1491 = vunpack.c.l.s4 1966171168
    %v1492 = vunpack.c.0.s8 %v1491
    %v1493 = vlaneseq
    %v1494 = vshrl.u32 %v1493, 7
    %v1495 = vsub.s32 %v1492, %v1494
    %v1496 = vrot.slane %v1488, %v1495
    %v1498 = vunpack.c.l.s4 1966171168
    %v1499 = vunpack.c.0.s8 %v1498
    %v1500 = vlaneseq
    %v1501 = vshrl.u32 %v1500, 7
    %v1502 = vsub.s32 %v1499, %v1501
    %v1503 = vrot.slane %v1489, %v1502
    %v1504 = vlaneseq
    %v1505 = vshrl.u32 %v1504, 7
    %v1506 = vsub.s32 0, %v1505
    %v1507 = vrot.slane %v1496, %v1506
    %v1508 = vlaneseq
    %v1509 = vshrl.u32 %v1508, 7
    %v1510 = vsub.s32 0, %v1509
    %v1511 = vrot.slane %v1503, %v1510
    %v1514 = vadd.f32 %v1507, %v388
    %v1515 = vadd.f32 %v1511, %v392
    %v1516 = vtanh.pop %v1514
    %v1517 = vtanh.pop %v1515
    %v1518 = vmul.f32 %v1516, %v306
    %v1519 = vmul.f32 %v1517, %v306
    %v1520 = vsel %vm578, %v1518, 0.0
    %1521 = vadd.xlane.f32.xlu0 %v1520
    %v1522 = vpop.xlane.xlu0 %1521
    %v1523 = vsel %vm578, %v1519, 0.0
    %1524 = vadd.xlane.f32.xlu0 %v1523
    %v1525 = vpop.xlane.xlu0 %1524
    %v1528 = vlaneseq
    %v1529 = vshrl.u32 %v1528, 7
    %v1530 = vsub.s32 %v588, %v1529
    %v1531 = vrot.slane %v1522, %v1530
    %v1532 = vlaneseq
    %v1533 = vshrl.u32 %v1532, 7
    %v1534 = vsub.s32 %v588, %v1533
    %v1535 = vrot.slane %v1525, %v1534
    %v1536 = vsel %vm597, %v1535, %v1531
    %v1538 = vsel %vm600, %v1536, -inf
    %1539 = vmax.xlane.f32.xlu0 %v1538
    %v1540 = vpop.xlane.xlu0 %1539
    %v1542 = vlaneseq
    %v1543 = vshrl.u32 %v1542, 7
    %v1544 = vsub.s32 0, %v1543
    %v1545 = vrot.slane %v1540, %v1544
    %v1546 = vlaneseq
    %v1547 = vshrl.u32 %v1546, 7
    %v1548 = vsub.s32 1, %v1547
    %v1549 = vrot.slane %v1540, %v1548
    %v1552 = vsub.f32 %v1522, %v1545
    %v1553 = vsub.f32 %v1525, %v1549
    %v1554 = vmul.f32 %v1552, 1.442695
    %v1555 = vpow.pop %v1554
    %v1556 = vmul.f32 %v1553, 1.442695
    %v1557 = vpow.pop %v1556
    %1560 = vset.pattern.permute.xlu0 0
    %1561 = vperm.xlu0 %1560, %v1555
    %v1562 = vpop.permute.xlu0 %1561
    %1563 = vset.pattern.permute.xlu0 0
    %1564 = vperm.xlu0 %1563, %v1557
    %v1565 = vpop.permute.xlu0 %1564
    %v1566 = vlaneseq
    %v1567 = vshrl.u32 %v1566, 7
    %v1568 = vsub.s32 %v588, %v1567
    %v1569 = vrot.slane %v1562, %v1568
    %v1570 = vlaneseq
    %v1571 = vshrl.u32 %v1570, 7
    %v1572 = vsub.s32 %v588, %v1571
    %v1573 = vrot.slane %v1565, %v1572
    %v1574 = vsel %vm597, %v1573, %v1569
    %v1576 = vsel %vm600, %v1574, 0.0
    %1577 = vadd.xlane.f32.xlu0 %v1576
    %v1578 = vpop.xlane.xlu0 %1577
    %v1579 = vrcp.pop %v1578
    %v1581 = vlaneseq
    %v1582 = vshrl.u32 %v1581, 7
    %v1583 = vsub.s32 0, %v1582
    %v1584 = vrot.slane %v1579, %v1583
    %v1585 = vlaneseq
    %v1586 = vshrl.u32 %v1585, 7
    %v1587 = vsub.s32 1, %v1586
    %v1588 = vrot.slane %v1579, %v1587
    %v1591 = vmul.f32 %v1555, %v1584
    %v1592 = vmul.f32 %v1557, %v1588
    %v1593 = vlaneseq
    %v1594 = vshrl.u32 %v1593, 7
    %v1595 = vsub.s32 2, %v1594
    %v1596 = vrot.slane %v198, %v1595
    %1598 = vbcast.lane.b32.xlu0 %v1596, 256
    %v1599 = vpop.permute.xlu0 %1598
    %v1600 = vlaneseq
    %v1601 = vshrl.u32 %v1600, 7
    %v1602 = vsub.s32 2, %v1601
    %v1603 = vrot.slane %v199, %v1602
    %1605 = vbcast.lane.b32.xlu0 %v1603, 256
    %v1606 = vpop.permute.xlu0 %1605
    %v1609 = vmul.f32 %v1591, %v1599
    %v1610 = vmul.f32 %v1592, %v1606
    %1611 = vmatprep.subr.mxu0 0.0
    %1612 = vmatpush1.msra.mxu0 0.0
    %1613 = vmatprep.subr.mxu0 0.0
    %1614 = vmatpush1.msra.mxu0 0.0
    %1615 = vmatprep.subr.mxu0 0.0
    %1616 = vmatpush1.msra.mxu0 0.0
    %1617 = vmatprep.subr.mxu0 0.0
    %1618 = vmatpush1.msra.mxu0 0.0
    %1619 = vmatprep.subr.mxu0 0.0
    %1620 = vmatpush1.msra.mxu0 0.0
    %1621 = vmatprep.subr.mxu0 0.0
    %1622 = vmatpush1.msra.mxu0 0.0
    %1623 = vmatprep.subr.mxu0 0.0
    %1624 = vmatpush1.msra.mxu0 0.0
    %1625 = vmatprep.subr.mxu0 0.0
    %1626 = vmatpush1.msra.mxu0 0.0
    %1627 = vmatprep.subr.mxu0 0.0
    %1628 = vmatpush1.msra.mxu0 0.0
    %1629 = vmatprep.subr.mxu0 0.0
    %1630 = vmatpush1.msra.mxu0 0.0
    %1631 = vmatprep.subr.mxu0 0.0
    %1632 = vmatpush1.msra.mxu0 0.0
    %1633 = vmatprep.subr.mxu0 0.0
    %1634 = vmatpush1.msra.mxu0 0.0
    %1635 = vmatprep.subr.mxu0 0.0
    %1636 = vmatpush1.msra.mxu0 %v217
    %1637 = vmatprep.subr.mxu0 0.0
    %1638 = vmatpush1.msra.mxu0 %v216
    %1639 = vmatprep.subr.mxu0 0.0
    %1640 = vmatpush1.msra.mxu0 %v215
    %1641 = vmatprep.subr.mxu0 0.0
    %1642 = vmatpush1.msra.mxu0 %v214
    %1643 = vmatprep.subr.mxu0 0.0
    %1644 = vmatpush2.msra.mxu0 0.0
    %1645 = vmatprep.subr.mxu0 0.0
    %1646 = vmatpush2.msra.mxu0 0.0
    %1647 = vmatprep.subr.mxu0 0.0
    %1648 = vmatpush2.msra.mxu0 0.0
    %1649 = vmatprep.subr.mxu0 0.0
    %1650 = vmatpush2.msra.mxu0 0.0
    %1651 = vmatprep.subr.mxu0 0.0
    %1652 = vmatpush2.msra.mxu0 0.0
    %1653 = vmatprep.subr.mxu0 0.0
    %1654 = vmatpush2.msra.mxu0 0.0
    %1655 = vmatprep.subr.mxu0 0.0
    %1656 = vmatpush2.msra.mxu0 0.0
    %1657 = vmatprep.subr.mxu0 0.0
    %1658 = vmatpush2.msra.mxu0 0.0
    %1659 = vmatprep.subr.mxu0 0.0
    %1660 = vmatpush2.msra.mxu0 0.0
    %1661 = vmatprep.subr.mxu0 0.0
    %1662 = vmatpush2.msra.mxu0 0.0
    %1663 = vmatprep.subr.mxu0 0.0
    %1664 = vmatpush2.msra.mxu0 0.0
    %1665 = vmatprep.subr.mxu0 0.0
    %1666 = vmatpush2.msra.mxu0 0.0
    %1667 = vmatprep.subr.mxu0 0.0
    %1668 = vmatpush2.msra.mxu0 0.0
    %1669 = vmatprep.subr.mxu0 0.0
    %1670 = vmatpush2.msra.mxu0 0.0
    %1671 = vmatprep.subr.mxu0 0.0
    %1672 = vmatpush2.msra.mxu0 0.0
    %1673 = vmatprep.subr.mxu0 0.0
    %1674 = vmatpush2.msra.mxu0 0.0
    %1675 = vmatprep.mubr.f32.mxu0 0.0
    %1676 = vmatmul.mubr.f32.gmra.mxu0 %v1408
    %v1677 = vpop.f32.mrf.mxu0
    %v1678 = vadd.f32 0.0, %v1677
    %v1679 = vpop.f32.mrf.mxu0
    %1680 = vdwg.mxu0
    %1683 = vset.pattern.permute.xlu0 0
    %1684 = vperm.xlu0 %1683, %v1609
    %v1685 = vpop.permute.xlu0 %1684
    %1686 = vset.pattern.permute.xlu0 0
    %1687 = vperm.xlu0 %1686, %v1610
    %v1688 = vpop.permute.xlu0 %1687
    %v1689 = vlaneseq
    %v1690 = vshrl.u32 %v1689, 7
    %v1691 = vsub.s32 %v588, %v1690
    %v1692 = vrot.slane %v1685, %v1691
    %v1693 = vlaneseq
    %v1694 = vshrl.u32 %v1693, 7
    %v1695 = vsub.s32 %v588, %v1694
    %v1696 = vrot.slane %v1688, %v1695
    %v1697 = vsel %vm597, %v1696, %v1692
    %v1698 = vsel %vm763, %v1697, 0
    %1700 = vmatprep.subr.mxu0 0.0
    %1701 = vmatpush1.msra.mxu0 0.0
    %1702 = vmatprep.subr.mxu0 0.0
    %1703 = vmatpush1.msra.mxu0 0.0
    %1704 = vmatprep.subr.mxu0 0.0
    %1705 = vmatpush1.msra.mxu0 0.0
    %1706 = vmatprep.subr.mxu0 0.0
    %1707 = vmatpush1.msra.mxu0 0.0
    %1708 = vmatprep.subr.mxu0 0.0
    %1709 = vmatpush1.msra.mxu0 0.0
    %1710 = vmatprep.subr.mxu0 0.0
    %1711 = vmatpush1.msra.mxu0 0.0
    %1712 = vmatprep.subr.mxu0 0.0
    %1713 = vmatpush1.msra.mxu0 0.0
    %1714 = vmatprep.subr.mxu0 0.0
    %1715 = vmatpush1.msra.mxu0 0.0
    %1716 = vmatprep.subr.mxu0 0.0
    %1717 = vmatpush1.msra.mxu0 0.0
    %1718 = vmatprep.subr.mxu0 0.0
    %1719 = vmatpush1.msra.mxu0 0.0
    %1720 = vmatprep.subr.mxu0 0.0
    %1721 = vmatpush1.msra.mxu0 0.0
    %1722 = vmatprep.subr.mxu0 0.0
    %1723 = vmatpush1.msra.mxu0 0.0
    %1724 = vmatprep.subr.mxu0 0.0
    %1725 = vmatpush1.msra.mxu0 0.0
    %1726 = vmatprep.subr.mxu0 0.0
    %1727 = vmatpush1.msra.mxu0 0.0
    %1728 = vmatprep.subr.mxu0 0.0
    %1729 = vmatpush1.msra.mxu0 0.0
    %1730 = vmatprep.subr.mxu0 0.0
    %1731 = vmatpush1.msra.mxu0 %v768
    %1732 = vmatprep.subr.mxu0 0.0
    %1733 = vmatpush2.msra.mxu0 0.0
    %1734 = vmatprep.subr.mxu0 0.0
    %1735 = vmatpush2.msra.mxu0 0.0
    %1736 = vmatprep.subr.mxu0 0.0
    %1737 = vmatpush2.msra.mxu0 0.0
    %1738 = vmatprep.subr.mxu0 0.0
    %1739 = vmatpush2.msra.mxu0 0.0
    %1740 = vmatprep.subr.mxu0 0.0
    %1741 = vmatpush2.msra.mxu0 0.0
    %1742 = vmatprep.subr.mxu0 0.0
    %1743 = vmatpush2.msra.mxu0 0.0
    %1744 = vmatprep.subr.mxu0 0.0
    %1745 = vmatpush2.msra.mxu0 0.0
    %1746 = vmatprep.subr.mxu0 0.0
    %1747 = vmatpush2.msra.mxu0 0.0
    %1748 = vmatprep.subr.mxu0 0.0
    %1749 = vmatpush2.msra.mxu0 0.0
    %1750 = vmatprep.subr.mxu0 0.0
    %1751 = vmatpush2.msra.mxu0 0.0
    %1752 = vmatprep.subr.mxu0 0.0
    %1753 = vmatpush2.msra.mxu0 0.0
    %1754 = vmatprep.subr.mxu0 0.0
    %1755 = vmatpush2.msra.mxu0 0.0
    %1756 = vmatprep.subr.mxu0 0.0
    %1757 = vmatpush2.msra.mxu0 0.0
    %1758 = vmatprep.subr.mxu0 0.0
    %1759 = vmatpush2.msra.mxu0 0.0
    %1760 = vmatprep.subr.mxu0 0.0
    %1761 = vmatpush2.msra.mxu0 0.0
    %1762 = vmatprep.subr.mxu0 0.0
    %1763 = vmatpush2.msra.mxu0 0.0
    %1764 = vmatprep.mubr.f32.mxu0 0.0
    %1765 = vmatmul.mubr.f32.gmra.mxu0 %v1698
    %v1766 = vpop.f32.mrf.mxu0
    %v1767 = vadd.f32 %v1678, %v1766
    %v1768 = vpop.f32.mrf.mxu0
    %1769 = vdwg.mxu0
    %v1770 = vadd.f32 %v1767, %v264
    %v1771 = vxor.u32 %v1770, 2147483648
    %v1772 = vmul.f32 %v1771, 1.442695
    %v1773 = vpow.pop %v1772
    %v1774 = vadd.f32 %v1773, 1.0
    %v1775 = vrcp.pop %v1774
    %v1776 = vmul.f32 1.0, %v1775
    %v1777 = vtanh.pop %v1770
    %v1778 = vmul.f32 %v1776, %v1323
    %1780 = vrot.lane.b32.xlu0 %v1777, 64
    %v1781 = vpop.permute.xlu0 %1780
    %v1783 = vmul.f32 %v1776, %v1781
    %1785 = vrot.lane.b32.xlu0 %v1783, 32
    %v1786 = vpop.permute.xlu0 %1785
    %v1788 = vadd.f32 %v1778, %v1786
    %v1789 = vtanh.pop %v1788
    %1791 = vrot.lane.b32.xlu0 %v1789, 64
    %v1792 = vpop.permute.xlu0 %1791
    %v1794 = vmul.f32 %v1776, %v1792
    %1796 = vrot.lane.b32.xlu0 %v1788, 96
    %v1797 = vpop.permute.xlu0 %1796
    %v1798 = vsel %vm394, %v1797, 0
    %1800 = vmatprep.subr.mxu0 0.0
    %1801 = vmatpush1.msra.mxu0 0.0
    %1802 = vmatprep.subr.mxu0 0.0
    %1803 = vmatpush1.msra.mxu0 0.0
    %1804 = vmatprep.subr.mxu0 0.0
    %1805 = vmatpush1.msra.mxu0 0.0
    %1806 = vmatprep.subr.mxu0 0.0
    %1807 = vmatpush1.msra.mxu0 0.0
    %1808 = vmatprep.subr.mxu0 0.0
    %1809 = vmatpush1.msra.mxu0 0.0
    %1810 = vmatprep.subr.mxu0 0.0
    %1811 = vmatpush1.msra.mxu0 0.0
    %1812 = vmatprep.subr.mxu0 0.0
    %1813 = vmatpush1.msra.mxu0 0.0
    %1814 = vmatprep.subr.mxu0 0.0
    %1815 = vmatpush1.msra.mxu0 0.0
    %1816 = vmatprep.subr.mxu0 0.0
    %1817 = vmatpush1.msra.mxu0 0.0
    %1818 = vmatprep.subr.mxu0 0.0
    %1819 = vmatpush1.msra.mxu0 0.0
    %1820 = vmatprep.subr.mxu0 0.0
    %1821 = vmatpush1.msra.mxu0 0.0
    %1822 = vmatprep.subr.mxu0 0.0
    %1823 = vmatpush1.msra.mxu0 0.0
    %1824 = vmatprep.subr.mxu0 0.0
    %1825 = vmatpush1.msra.mxu0 %v211
    %1826 = vmatprep.subr.mxu0 0.0
    %1827 = vmatpush1.msra.mxu0 %v210
    %1828 = vmatprep.subr.mxu0 0.0
    %1829 = vmatpush1.msra.mxu0 %v209
    %1830 = vmatprep.subr.mxu0 0.0
    %1831 = vmatpush1.msra.mxu0 %v208
    %1832 = vmatprep.subr.mxu0 0.0
    %1833 = vmatpush2.msra.mxu0 0.0
    %1834 = vmatprep.subr.mxu0 0.0
    %1835 = vmatpush2.msra.mxu0 0.0
    %1836 = vmatprep.subr.mxu0 0.0
    %1837 = vmatpush2.msra.mxu0 0.0
    %1838 = vmatprep.subr.mxu0 0.0
    %1839 = vmatpush2.msra.mxu0 0.0
    %1840 = vmatprep.subr.mxu0 0.0
    %1841 = vmatpush2.msra.mxu0 0.0
    %1842 = vmatprep.subr.mxu0 0.0
    %1843 = vmatpush2.msra.mxu0 0.0
    %1844 = vmatprep.subr.mxu0 0.0
    %1845 = vmatpush2.msra.mxu0 0.0
    %1846 = vmatprep.subr.mxu0 0.0
    %1847 = vmatpush2.msra.mxu0 0.0
    %1848 = vmatprep.subr.mxu0 0.0
    %1849 = vmatpush2.msra.mxu0 0.0
    %1850 = vmatprep.subr.mxu0 0.0
    %1851 = vmatpush2.msra.mxu0 0.0
    %1852 = vmatprep.subr.mxu0 0.0
    %1853 = vmatpush2.msra.mxu0 0.0
    %1854 = vmatprep.subr.mxu0 0.0
    %1855 = vmatpush2.msra.mxu0 0.0
    %1856 = vmatprep.subr.mxu0 0.0
    %1857 = vmatpush2.msra.mxu0 0.0
    %1858 = vmatprep.subr.mxu0 0.0
    %1859 = vmatpush2.msra.mxu0 0.0
    %1860 = vmatprep.subr.mxu0 0.0
    %1861 = vmatpush2.msra.mxu0 0.0
    %1862 = vmatprep.subr.mxu0 0.0
    %1863 = vmatpush2.msra.mxu0 0.0
    %1864 = vmatprep.mubr.f32.mxu0 0.0
    %1865 = vmatmul.mubr.f32.gmra.mxu0 %v1798
    %v1866 = vpop.f32.mrf.mxu0
    %v1867 = vadd.f32 0.0, %v1866
    %v1868 = vpop.f32.mrf.mxu0
    %1869 = vdwg.mxu0
    %1871 = vrot.lane.b32.xlu0 %v1794, 32
    %v1872 = vpop.permute.xlu0 %1871
    %v1873 = vsel %vm394, %v1872, 0
    %1875 = vmatprep.subr.mxu0 0.0
    %1876 = vmatpush1.msra.mxu0 0.0
    %1877 = vmatprep.subr.mxu0 0.0
    %1878 = vmatpush1.msra.mxu0 0.0
    %1879 = vmatprep.subr.mxu0 0.0
    %1880 = vmatpush1.msra.mxu0 0.0
    %1881 = vmatprep.subr.mxu0 0.0
    %1882 = vmatpush1.msra.mxu0 0.0
    %1883 = vmatprep.subr.mxu0 0.0
    %1884 = vmatpush1.msra.mxu0 0.0
    %1885 = vmatprep.subr.mxu0 0.0
    %1886 = vmatpush1.msra.mxu0 0.0
    %1887 = vmatprep.subr.mxu0 0.0
    %1888 = vmatpush1.msra.mxu0 0.0
    %1889 = vmatprep.subr.mxu0 0.0
    %1890 = vmatpush1.msra.mxu0 0.0
    %1891 = vmatprep.subr.mxu0 0.0
    %1892 = vmatpush1.msra.mxu0 0.0
    %1893 = vmatprep.subr.mxu0 0.0
    %1894 = vmatpush1.msra.mxu0 0.0
    %1895 = vmatprep.subr.mxu0 0.0
    %1896 = vmatpush1.msra.mxu0 0.0
    %1897 = vmatprep.subr.mxu0 0.0
    %1898 = vmatpush1.msra.mxu0 0.0
    %1899 = vmatprep.subr.mxu0 0.0
    %1900 = vmatpush1.msra.mxu0 %v207
    %1901 = vmatprep.subr.mxu0 0.0
    %1902 = vmatpush1.msra.mxu0 %v206
    %1903 = vmatprep.subr.mxu0 0.0
    %1904 = vmatpush1.msra.mxu0 %v205
    %1905 = vmatprep.subr.mxu0 0.0
    %1906 = vmatpush1.msra.mxu0 %v204
    %1907 = vmatprep.subr.mxu0 0.0
    %1908 = vmatpush2.msra.mxu0 0.0
    %1909 = vmatprep.subr.mxu0 0.0
    %1910 = vmatpush2.msra.mxu0 0.0
    %1911 = vmatprep.subr.mxu0 0.0
    %1912 = vmatpush2.msra.mxu0 0.0
    %1913 = vmatprep.subr.mxu0 0.0
    %1914 = vmatpush2.msra.mxu0 0.0
    %1915 = vmatprep.subr.mxu0 0.0
    %1916 = vmatpush2.msra.mxu0 0.0
    %1917 = vmatprep.subr.mxu0 0.0
    %1918 = vmatpush2.msra.mxu0 0.0
    %1919 = vmatprep.subr.mxu0 0.0
    %1920 = vmatpush2.msra.mxu0 0.0
    %1921 = vmatprep.subr.mxu0 0.0
    %1922 = vmatpush2.msra.mxu0 0.0
    %1923 = vmatprep.subr.mxu0 0.0
    %1924 = vmatpush2.msra.mxu0 0.0
    %1925 = vmatprep.subr.mxu0 0.0
    %1926 = vmatpush2.msra.mxu0 0.0
    %1927 = vmatprep.subr.mxu0 0.0
    %1928 = vmatpush2.msra.mxu0 0.0
    %1929 = vmatprep.subr.mxu0 0.0
    %1930 = vmatpush2.msra.mxu0 0.0
    %1931 = vmatprep.subr.mxu0 0.0
    %1932 = vmatpush2.msra.mxu0 0.0
    %1933 = vmatprep.subr.mxu0 0.0
    %1934 = vmatpush2.msra.mxu0 0.0
    %1935 = vmatprep.subr.mxu0 0.0
    %1936 = vmatpush2.msra.mxu0 0.0
    %1937 = vmatprep.subr.mxu0 0.0
    %1938 = vmatpush2.msra.mxu0 0.0
    %1939 = vmatprep.mubr.f32.mxu0 0.0
    %1940 = vmatmul.mubr.f32.gmra.mxu0 %v1873
    %v1941 = vpop.f32.mrf.mxu0
    %v1942 = vadd.f32 %v1867, %v1941
    %v1943 = vpop.f32.mrf.mxu0
    %1944 = vdwg.mxu0
    %v1945 = vadd.f32 %v1942, %v257
    %v1948 = vunpack.c.l.s4 1966171168
    %v1949 = vunpack.c.0.s8 %v1948
    %v1950 = vlaneseq
    %v1951 = vshrl.u32 %v1950, 7
    %v1952 = vsub.s32 %v1949, %v1951
    %v1953 = vrot.slane %v1945, %v1952
    %v1954 = vcombine.high %v1953, %v1953
    %v1956 = vunpack.c.l.s4 1966171168
    %v1957 = vunpack.c.0.s8 %v1956
    %v1958 = vlaneseq
    %v1959 = vshrl.u32 %v1958, 7
    %v1960 = vsub.s32 %v1957, %v1959
    %v1961 = vrot.slane %v1953, %v1960
    %v1963 = vunpack.c.l.s4 1966171168
    %v1964 = vunpack.c.0.s8 %v1963
    %v1965 = vlaneseq
    %v1966 = vshrl.u32 %v1965, 7
    %v1967 = vsub.s32 %v1964, %v1966
    %v1968 = vrot.slane %v1954, %v1967
    %v1969 = vlaneseq
    %v1970 = vshrl.u32 %v1969, 7
    %v1971 = vsub.s32 0, %v1970
    %v1972 = vrot.slane %v1961, %v1971
    %v1973 = vlaneseq
    %v1974 = vshrl.u32 %v1973, 7
    %v1975 = vsub.s32 0, %v1974
    %v1976 = vrot.slane %v1968, %v1975
    %v1979 = vadd.f32 %v1972, %v388
    %v1980 = vadd.f32 %v1976, %v392
    %v1981 = vtanh.pop %v1979
    %v1982 = vtanh.pop %v1980
    %v1983 = vmul.f32 %v1981, %v306
    %v1984 = vmul.f32 %v1982, %v306
    %v1985 = vsel %vm578, %v1983, 0.0
    %1986 = vadd.xlane.f32.xlu0 %v1985
    %v1987 = vpop.xlane.xlu0 %1986
    %v1988 = vsel %vm578, %v1984, 0.0
    %1989 = vadd.xlane.f32.xlu0 %v1988
    %v1990 = vpop.xlane.xlu0 %1989
    %v1993 = vlaneseq
    %v1994 = vshrl.u32 %v1993, 7
    %v1995 = vsub.s32 %v588, %v1994
    %v1996 = vrot.slane %v1987, %v1995
    %v1997 = vlaneseq
    %v1998 = vshrl.u32 %v1997, 7
    %v1999 = vsub.s32 %v588, %v1998
    %v2000 = vrot.slane %v1990, %v1999
    %v2001 = vsel %vm597, %v2000, %v1996
    %v2003 = vsel %vm600, %v2001, -inf
    %2004 = vmax.xlane.f32.xlu0 %v2003
    %v2005 = vpop.xlane.xlu0 %2004
    %v2007 = vlaneseq
    %v2008 = vshrl.u32 %v2007, 7
    %v2009 = vsub.s32 0, %v2008
    %v2010 = vrot.slane %v2005, %v2009
    %v2011 = vlaneseq
    %v2012 = vshrl.u32 %v2011, 7
    %v2013 = vsub.s32 1, %v2012
    %v2014 = vrot.slane %v2005, %v2013
    %v2017 = vsub.f32 %v1987, %v2010
    %v2018 = vsub.f32 %v1990, %v2014
    %v2019 = vmul.f32 %v2017, 1.442695
    %v2020 = vpow.pop %v2019
    %v2021 = vmul.f32 %v2018, 1.442695
    %v2022 = vpow.pop %v2021
    %2025 = vset.pattern.permute.xlu0 0
    %2026 = vperm.xlu0 %2025, %v2020
    %v2027 = vpop.permute.xlu0 %2026
    %2028 = vset.pattern.permute.xlu0 0
    %2029 = vperm.xlu0 %2028, %v2022
    %v2030 = vpop.permute.xlu0 %2029
    %v2031 = vlaneseq
    %v2032 = vshrl.u32 %v2031, 7
    %v2033 = vsub.s32 %v588, %v2032
    %v2034 = vrot.slane %v2027, %v2033
    %v2035 = vlaneseq
    %v2036 = vshrl.u32 %v2035, 7
    %v2037 = vsub.s32 %v588, %v2036
    %v2038 = vrot.slane %v2030, %v2037
    %v2039 = vsel %vm597, %v2038, %v2034
    %v2041 = vsel %vm600, %v2039, 0.0
    %2042 = vadd.xlane.f32.xlu0 %v2041
    %v2043 = vpop.xlane.xlu0 %2042
    %v2044 = vrcp.pop %v2043
    %v2046 = vlaneseq
    %v2047 = vshrl.u32 %v2046, 7
    %v2048 = vsub.s32 0, %v2047
    %v2049 = vrot.slane %v2044, %v2048
    %v2050 = vlaneseq
    %v2051 = vshrl.u32 %v2050, 7
    %v2052 = vsub.s32 1, %v2051
    %v2053 = vrot.slane %v2044, %v2052
    %v2056 = vmul.f32 %v2020, %v2049
    %v2057 = vmul.f32 %v2022, %v2053
    %v2058 = vlaneseq
    %v2059 = vshrl.u32 %v2058, 7
    %v2060 = vsub.s32 3, %v2059
    %v2061 = vrot.slane %v198, %v2060
    %2063 = vbcast.lane.b32.xlu0 %v2061, 256
    %v2064 = vpop.permute.xlu0 %2063
    %v2065 = vlaneseq
    %v2066 = vshrl.u32 %v2065, 7
    %v2067 = vsub.s32 3, %v2066
    %v2068 = vrot.slane %v199, %v2067
    %2070 = vbcast.lane.b32.xlu0 %v2068, 256
    %v2071 = vpop.permute.xlu0 %2070
    %v2074 = vmul.f32 %v2056, %v2064
    %v2075 = vmul.f32 %v2057, %v2071
    %2076 = vmatprep.subr.mxu0 0.0
    %2077 = vmatpush1.msra.mxu0 0.0
    %2078 = vmatprep.subr.mxu0 0.0
    %2079 = vmatpush1.msra.mxu0 0.0
    %2080 = vmatprep.subr.mxu0 0.0
    %2081 = vmatpush1.msra.mxu0 0.0
    %2082 = vmatprep.subr.mxu0 0.0
    %2083 = vmatpush1.msra.mxu0 0.0
    %2084 = vmatprep.subr.mxu0 0.0
    %2085 = vmatpush1.msra.mxu0 0.0
    %2086 = vmatprep.subr.mxu0 0.0
    %2087 = vmatpush1.msra.mxu0 0.0
    %2088 = vmatprep.subr.mxu0 0.0
    %2089 = vmatpush1.msra.mxu0 0.0
    %2090 = vmatprep.subr.mxu0 0.0
    %2091 = vmatpush1.msra.mxu0 0.0
    %2092 = vmatprep.subr.mxu0 0.0
    %2093 = vmatpush1.msra.mxu0 0.0
    %2094 = vmatprep.subr.mxu0 0.0
    %2095 = vmatpush1.msra.mxu0 0.0
    %2096 = vmatprep.subr.mxu0 0.0
    %2097 = vmatpush1.msra.mxu0 0.0
    %2098 = vmatprep.subr.mxu0 0.0
    %2099 = vmatpush1.msra.mxu0 0.0
    %2100 = vmatprep.subr.mxu0 0.0
    %2101 = vmatpush1.msra.mxu0 %v217
    %2102 = vmatprep.subr.mxu0 0.0
    %2103 = vmatpush1.msra.mxu0 %v216
    %2104 = vmatprep.subr.mxu0 0.0
    %2105 = vmatpush1.msra.mxu0 %v215
    %2106 = vmatprep.subr.mxu0 0.0
    %2107 = vmatpush1.msra.mxu0 %v214
    %2108 = vmatprep.subr.mxu0 0.0
    %2109 = vmatpush2.msra.mxu0 0.0
    %2110 = vmatprep.subr.mxu0 0.0
    %2111 = vmatpush2.msra.mxu0 0.0
    %2112 = vmatprep.subr.mxu0 0.0
    %2113 = vmatpush2.msra.mxu0 0.0
    %2114 = vmatprep.subr.mxu0 0.0
    %2115 = vmatpush2.msra.mxu0 0.0
    %2116 = vmatprep.subr.mxu0 0.0
    %2117 = vmatpush2.msra.mxu0 0.0
    %2118 = vmatprep.subr.mxu0 0.0
    %2119 = vmatpush2.msra.mxu0 0.0
    %2120 = vmatprep.subr.mxu0 0.0
    %2121 = vmatpush2.msra.mxu0 0.0
    %2122 = vmatprep.subr.mxu0 0.0
    %2123 = vmatpush2.msra.mxu0 0.0
    %2124 = vmatprep.subr.mxu0 0.0
    %2125 = vmatpush2.msra.mxu0 0.0
    %2126 = vmatprep.subr.mxu0 0.0
    %2127 = vmatpush2.msra.mxu0 0.0
    %2128 = vmatprep.subr.mxu0 0.0
    %2129 = vmatpush2.msra.mxu0 0.0
    %2130 = vmatprep.subr.mxu0 0.0
    %2131 = vmatpush2.msra.mxu0 0.0
    %2132 = vmatprep.subr.mxu0 0.0
    %2133 = vmatpush2.msra.mxu0 0.0
    %2134 = vmatprep.subr.mxu0 0.0
    %2135 = vmatpush2.msra.mxu0 0.0
    %2136 = vmatprep.subr.mxu0 0.0
    %2137 = vmatpush2.msra.mxu0 0.0
    %2138 = vmatprep.subr.mxu0 0.0
    %2139 = vmatpush2.msra.mxu0 0.0
    %2140 = vmatprep.mubr.f32.mxu0 0.0
    %2141 = vmatmul.mubr.f32.gmra.mxu0 %v1873
    %v2142 = vpop.f32.mrf.mxu0
    %v2143 = vadd.f32 0.0, %v2142
    %v2144 = vpop.f32.mrf.mxu0
    %2145 = vdwg.mxu0
    %2148 = vset.pattern.permute.xlu0 0
    %2149 = vperm.xlu0 %2148, %v2074
    %v2150 = vpop.permute.xlu0 %2149
    %2151 = vset.pattern.permute.xlu0 0
    %2152 = vperm.xlu0 %2151, %v2075
    %v2153 = vpop.permute.xlu0 %2152
    %v2154 = vlaneseq
    %v2155 = vshrl.u32 %v2154, 7
    %v2156 = vsub.s32 %v588, %v2155
    %v2157 = vrot.slane %v2150, %v2156
    %v2158 = vlaneseq
    %v2159 = vshrl.u32 %v2158, 7
    %v2160 = vsub.s32 %v588, %v2159
    %v2161 = vrot.slane %v2153, %v2160
    %v2162 = vsel %vm597, %v2161, %v2157
    %v2163 = vsel %vm763, %v2162, 0
    %2165 = vmatprep.subr.mxu0 0.0
    %2166 = vmatpush1.msra.mxu0 0.0
    %2167 = vmatprep.subr.mxu0 0.0
    %2168 = vmatpush1.msra.mxu0 0.0
    %2169 = vmatprep.subr.mxu0 0.0
    %2170 = vmatpush1.msra.mxu0 0.0
    %2171 = vmatprep.subr.mxu0 0.0
    %2172 = vmatpush1.msra.mxu0 0.0
    %2173 = vmatprep.subr.mxu0 0.0
    %2174 = vmatpush1.msra.mxu0 0.0
    %2175 = vmatprep.subr.mxu0 0.0
    %2176 = vmatpush1.msra.mxu0 0.0
    %2177 = vmatprep.subr.mxu0 0.0
    %2178 = vmatpush1.msra.mxu0 0.0
    %2179 = vmatprep.subr.mxu0 0.0
    %2180 = vmatpush1.msra.mxu0 0.0
    %2181 = vmatprep.subr.mxu0 0.0
    %2182 = vmatpush1.msra.mxu0 0.0
    %2183 = vmatprep.subr.mxu0 0.0
    %2184 = vmatpush1.msra.mxu0 0.0
    %2185 = vmatprep.subr.mxu0 0.0
    %2186 = vmatpush1.msra.mxu0 0.0
    %2187 = vmatprep.subr.mxu0 0.0
    %2188 = vmatpush1.msra.mxu0 0.0
    %2189 = vmatprep.subr.mxu0 0.0
    %2190 = vmatpush1.msra.mxu0 0.0
    %2191 = vmatprep.subr.mxu0 0.0
    %2192 = vmatpush1.msra.mxu0 0.0
    %2193 = vmatprep.subr.mxu0 0.0
    %2194 = vmatpush1.msra.mxu0 0.0
    %2195 = vmatprep.subr.mxu0 0.0
    %2196 = vmatpush1.msra.mxu0 %v768
    %2197 = vmatprep.subr.mxu0 0.0
    %2198 = vmatpush2.msra.mxu0 0.0
    %2199 = vmatprep.subr.mxu0 0.0
    %2200 = vmatpush2.msra.mxu0 0.0
    %2201 = vmatprep.subr.mxu0 0.0
    %2202 = vmatpush2.msra.mxu0 0.0
    %2203 = vmatprep.subr.mxu0 0.0
    %2204 = vmatpush2.msra.mxu0 0.0
    %2205 = vmatprep.subr.mxu0 0.0
    %2206 = vmatpush2.msra.mxu0 0.0
    %2207 = vmatprep.subr.mxu0 0.0
    %2208 = vmatpush2.msra.mxu0 0.0
    %2209 = vmatprep.subr.mxu0 0.0
    %2210 = vmatpush2.msra.mxu0 0.0
    %2211 = vmatprep.subr.mxu0 0.0
    %2212 = vmatpush2.msra.mxu0 0.0
    %2213 = vmatprep.subr.mxu0 0.0
    %2214 = vmatpush2.msra.mxu0 0.0
    %2215 = vmatprep.subr.mxu0 0.0
    %2216 = vmatpush2.msra.mxu0 0.0
    %2217 = vmatprep.subr.mxu0 0.0
    %2218 = vmatpush2.msra.mxu0 0.0
    %2219 = vmatprep.subr.mxu0 0.0
    %2220 = vmatpush2.msra.mxu0 0.0
    %2221 = vmatprep.subr.mxu0 0.0
    %2222 = vmatpush2.msra.mxu0 0.0
    %2223 = vmatprep.subr.mxu0 0.0
    %2224 = vmatpush2.msra.mxu0 0.0
    %2225 = vmatprep.subr.mxu0 0.0
    %2226 = vmatpush2.msra.mxu0 0.0
    %2227 = vmatprep.subr.mxu0 0.0
    %2228 = vmatpush2.msra.mxu0 0.0
    %2229 = vmatprep.mubr.f32.mxu0 0.0
    %2230 = vmatmul.mubr.f32.gmra.mxu0 %v2163
    %v2231 = vpop.f32.mrf.mxu0
    %v2232 = vadd.f32 %v2143, %v2231
    %v2233 = vpop.f32.mrf.mxu0
    %2234 = vdwg.mxu0
    %v2235 = vadd.f32 %v2232, %v264
    %v2236 = vxor.u32 %v2235, 2147483648
    %v2237 = vmul.f32 %v2236, 1.442695
    %v2238 = vpow.pop %v2237
    %v2239 = vadd.f32 %v2238, 1.0
    %v2240 = vrcp.pop %v2239
    %v2241 = vmul.f32 1.0, %v2240
    %v2242 = vtanh.pop %v2235
    %v2243 = vmul.f32 %v2241, %v1788
    %2245 = vrot.lane.b32.xlu0 %v2242, 64
    %v2246 = vpop.permute.xlu0 %2245
    %v2248 = vmul.f32 %v2241, %v2246
    %2250 = vrot.lane.b32.xlu0 %v2248, 32
    %v2251 = vpop.permute.xlu0 %2250
    %v2253 = vadd.f32 %v2243, %v2251
    %v2254 = vtanh.pop %v2253
    %2256 = vrot.lane.b32.xlu0 %v2254, 64
    %v2257 = vpop.permute.xlu0 %2256
    %v2259 = vmul.f32 %v2241, %v2257
    %2261 = vrot.lane.b32.xlu0 %v2253, 96
    %v2262 = vpop.permute.xlu0 %2261
    %v2263 = vsel %vm394, %v2262, 0
    %2265 = vmatprep.subr.mxu0 0.0
    %2266 = vmatpush1.msra.mxu0 0.0
    %2267 = vmatprep.subr.mxu0 0.0
    %2268 = vmatpush1.msra.mxu0 0.0
    %2269 = vmatprep.subr.mxu0 0.0
    %2270 = vmatpush1.msra.mxu0 0.0
    %2271 = vmatprep.subr.mxu0 0.0
    %2272 = vmatpush1.msra.mxu0 0.0
    %2273 = vmatprep.subr.mxu0 0.0
    %2274 = vmatpush1.msra.mxu0 0.0
    %2275 = vmatprep.subr.mxu0 0.0
    %2276 = vmatpush1.msra.mxu0 0.0
    %2277 = vmatprep.subr.mxu0 0.0
    %2278 = vmatpush1.msra.mxu0 0.0
    %2279 = vmatprep.subr.mxu0 0.0
    %2280 = vmatpush1.msra.mxu0 0.0
    %2281 = vmatprep.subr.mxu0 0.0
    %2282 = vmatpush1.msra.mxu0 0.0
    %2283 = vmatprep.subr.mxu0 0.0
    %2284 = vmatpush1.msra.mxu0 0.0
    %2285 = vmatprep.subr.mxu0 0.0
    %2286 = vmatpush1.msra.mxu0 0.0
    %2287 = vmatprep.subr.mxu0 0.0
    %2288 = vmatpush1.msra.mxu0 0.0
    %2289 = vmatprep.subr.mxu0 0.0
    %2290 = vmatpush1.msra.mxu0 %v211
    %2291 = vmatprep.subr.mxu0 0.0
    %2292 = vmatpush1.msra.mxu0 %v210
    %2293 = vmatprep.subr.mxu0 0.0
    %2294 = vmatpush1.msra.mxu0 %v209
    %2295 = vmatprep.subr.mxu0 0.0
    %2296 = vmatpush1.msra.mxu0 %v208
    %2297 = vmatprep.subr.mxu0 0.0
    %2298 = vmatpush2.msra.mxu0 0.0
    %2299 = vmatprep.subr.mxu0 0.0
    %2300 = vmatpush2.msra.mxu0 0.0
    %2301 = vmatprep.subr.mxu0 0.0
    %2302 = vmatpush2.msra.mxu0 0.0
    %2303 = vmatprep.subr.mxu0 0.0
    %2304 = vmatpush2.msra.mxu0 0.0
    %2305 = vmatprep.subr.mxu0 0.0
    %2306 = vmatpush2.msra.mxu0 0.0
    %2307 = vmatprep.subr.mxu0 0.0
    %2308 = vmatpush2.msra.mxu0 0.0
    %2309 = vmatprep.subr.mxu0 0.0
    %2310 = vmatpush2.msra.mxu0 0.0
    %2311 = vmatprep.subr.mxu0 0.0
    %2312 = vmatpush2.msra.mxu0 0.0
    %2313 = vmatprep.subr.mxu0 0.0
    %2314 = vmatpush2.msra.mxu0 0.0
    %2315 = vmatprep.subr.mxu0 0.0
    %2316 = vmatpush2.msra.mxu0 0.0
    %2317 = vmatprep.subr.mxu0 0.0
    %2318 = vmatpush2.msra.mxu0 0.0
    %2319 = vmatprep.subr.mxu0 0.0
    %2320 = vmatpush2.msra.mxu0 0.0
    %2321 = vmatprep.subr.mxu0 0.0
    %2322 = vmatpush2.msra.mxu0 0.0
    %2323 = vmatprep.subr.mxu0 0.0
    %2324 = vmatpush2.msra.mxu0 0.0
    %2325 = vmatprep.subr.mxu0 0.0
    %2326 = vmatpush2.msra.mxu0 0.0
    %2327 = vmatprep.subr.mxu0 0.0
    %2328 = vmatpush2.msra.mxu0 0.0
    %2329 = vmatprep.mubr.f32.mxu0 0.0
    %2330 = vmatmul.mubr.f32.gmra.mxu0 %v2263
    %v2331 = vpop.f32.mrf.mxu0
    %v2332 = vadd.f32 0.0, %v2331
    %v2333 = vpop.f32.mrf.mxu0
    %2334 = vdwg.mxu0
    %2336 = vrot.lane.b32.xlu0 %v2259, 32
    %v2337 = vpop.permute.xlu0 %2336
    %v2338 = vsel %vm394, %v2337, 0
    %2340 = vmatprep.subr.mxu0 0.0
    %2341 = vmatpush1.msra.mxu0 0.0
    %2342 = vmatprep.subr.mxu0 0.0
    %2343 = vmatpush1.msra.mxu0 0.0
    %2344 = vmatprep.subr.mxu0 0.0
    %2345 = vmatpush1.msra.mxu0 0.0
    %2346 = vmatprep.subr.mxu0 0.0
    %2347 = vmatpush1.msra.mxu0 0.0
    %2348 = vmatprep.subr.mxu0 0.0
    %2349 = vmatpush1.msra.mxu0 0.0
    %2350 = vmatprep.subr.mxu0 0.0
    %2351 = vmatpush1.msra.mxu0 0.0
    %2352 = vmatprep.subr.mxu0 0.0
    %2353 = vmatpush1.msra.mxu0 0.0
    %2354 = vmatprep.subr.mxu0 0.0
    %2355 = vmatpush1.msra.mxu0 0.0
    %2356 = vmatprep.subr.mxu0 0.0
    %2357 = vmatpush1.msra.mxu0 0.0
    %2358 = vmatprep.subr.mxu0 0.0
    %2359 = vmatpush1.msra.mxu0 0.0
    %2360 = vmatprep.subr.mxu0 0.0
    %2361 = vmatpush1.msra.mxu0 0.0
    %2362 = vmatprep.subr.mxu0 0.0
    %2363 = vmatpush1.msra.mxu0 0.0
    %2364 = vmatprep.subr.mxu0 0.0
    %2365 = vmatpush1.msra.mxu0 %v207
    %2366 = vmatprep.subr.mxu0 0.0
    %2367 = vmatpush1.msra.mxu0 %v206
    %2368 = vmatprep.subr.mxu0 0.0
    %2369 = vmatpush1.msra.mxu0 %v205
    %2370 = vmatprep.subr.mxu0 0.0
    %2371 = vmatpush1.msra.mxu0 %v204
    %2372 = vmatprep.subr.mxu0 0.0
    %2373 = vmatpush2.msra.mxu0 0.0
    %2374 = vmatprep.subr.mxu0 0.0
    %2375 = vmatpush2.msra.mxu0 0.0
    %2376 = vmatprep.subr.mxu0 0.0
    %2377 = vmatpush2.msra.mxu0 0.0
    %2378 = vmatprep.subr.mxu0 0.0
    %2379 = vmatpush2.msra.mxu0 0.0
    %2380 = vmatprep.subr.mxu0 0.0
    %2381 = vmatpush2.msra.mxu0 0.0
    %2382 = vmatprep.subr.mxu0 0.0
    %2383 = vmatpush2.msra.mxu0 0.0
    %2384 = vmatprep.subr.mxu0 0.0
    %2385 = vmatpush2.msra.mxu0 0.0
    %2386 = vmatprep.subr.mxu0 0.0
    %2387 = vmatpush2.msra.mxu0 0.0
    %2388 = vmatprep.subr.mxu0 0.0
    %2389 = vmatpush2.msra.mxu0 0.0
    %2390 = vmatprep.subr.mxu0 0.0
    %2391 = vmatpush2.msra.mxu0 0.0
    %2392 = vmatprep.subr.mxu0 0.0
    %2393 = vmatpush2.msra.mxu0 0.0
    %2394 = vmatprep.subr.mxu0 0.0
    %2395 = vmatpush2.msra.mxu0 0.0
    %2396 = vmatprep.subr.mxu0 0.0
    %2397 = vmatpush2.msra.mxu0 0.0
    %2398 = vmatprep.subr.mxu0 0.0
    %2399 = vmatpush2.msra.mxu0 0.0
    %2400 = vmatprep.subr.mxu0 0.0
    %2401 = vmatpush2.msra.mxu0 0.0
    %2402 = vmatprep.subr.mxu0 0.0
    %2403 = vmatpush2.msra.mxu0 0.0
    %2404 = vmatprep.mubr.f32.mxu0 0.0
    %2405 = vmatmul.mubr.f32.gmra.mxu0 %v2338
    %v2406 = vpop.f32.mrf.mxu0
    %v2407 = vadd.f32 %v2332, %v2406
    %v2408 = vpop.f32.mrf.mxu0
    %2409 = vdwg.mxu0
    %v2410 = vadd.f32 %v2407, %v257
    %v2413 = vunpack.c.l.s4 1966171168
    %v2414 = vunpack.c.0.s8 %v2413
    %v2415 = vlaneseq
    %v2416 = vshrl.u32 %v2415, 7
    %v2417 = vsub.s32 %v2414, %v2416
    %v2418 = vrot.slane %v2410, %v2417
    %v2419 = vcombine.high %v2418, %v2418
    %v2421 = vunpack.c.l.s4 1966171168
    %v2422 = vunpack.c.0.s8 %v2421
    %v2423 = vlaneseq
    %v2424 = vshrl.u32 %v2423, 7
    %v2425 = vsub.s32 %v2422, %v2424
    %v2426 = vrot.slane %v2418, %v2425
    %v2428 = vunpack.c.l.s4 1966171168
    %v2429 = vunpack.c.0.s8 %v2428
    %v2430 = vlaneseq
    %v2431 = vshrl.u32 %v2430, 7
    %v2432 = vsub.s32 %v2429, %v2431
    %v2433 = vrot.slane %v2419, %v2432
    %v2434 = vlaneseq
    %v2435 = vshrl.u32 %v2434, 7
    %v2436 = vsub.s32 0, %v2435
    %v2437 = vrot.slane %v2426, %v2436
    %v2438 = vlaneseq
    %v2439 = vshrl.u32 %v2438, 7
    %v2440 = vsub.s32 0, %v2439
    %v2441 = vrot.slane %v2433, %v2440
    %v2444 = vadd.f32 %v2437, %v388
    %v2445 = vadd.f32 %v2441, %v392
    %v2446 = vtanh.pop %v2444
    %v2447 = vtanh.pop %v2445
    %v2448 = vmul.f32 %v2446, %v306
    %v2449 = vmul.f32 %v2447, %v306
    %v2450 = vsel %vm578, %v2448, 0.0
    %2451 = vadd.xlane.f32.xlu0 %v2450
    %v2452 = vpop.xlane.xlu0 %2451
    %v2453 = vsel %vm578, %v2449, 0.0
    %2454 = vadd.xlane.f32.xlu0 %v2453
    %v2455 = vpop.xlane.xlu0 %2454
    %v2458 = vlaneseq
    %v2459 = vshrl.u32 %v2458, 7
    %v2460 = vsub.s32 %v588, %v2459
    %v2461 = vrot.slane %v2452, %v2460
    %v2462 = vlaneseq
    %v2463 = vshrl.u32 %v2462, 7
    %v2464 = vsub.s32 %v588, %v2463
    %v2465 = vrot.slane %v2455, %v2464
    %v2466 = vsel %vm597, %v2465, %v2461
    %v2468 = vsel %vm600, %v2466, -inf
    %2469 = vmax.xlane.f32.xlu0 %v2468
    %v2470 = vpop.xlane.xlu0 %2469
    %v2472 = vlaneseq
    %v2473 = vshrl.u32 %v2472, 7
    %v2474 = vsub.s32 0, %v2473
    %v2475 = vrot.slane %v2470, %v2474
    %v2476 = vlaneseq
    %v2477 = vshrl.u32 %v2476, 7
    %v2478 = vsub.s32 1, %v2477
    %v2479 = vrot.slane %v2470, %v2478
    %v2482 = vsub.f32 %v2452, %v2475
    %v2483 = vsub.f32 %v2455, %v2479
    %v2484 = vmul.f32 %v2482, 1.442695
    %v2485 = vpow.pop %v2484
    %v2486 = vmul.f32 %v2483, 1.442695
    %v2487 = vpow.pop %v2486
    %2490 = vset.pattern.permute.xlu0 0
    %2491 = vperm.xlu0 %2490, %v2485
    %v2492 = vpop.permute.xlu0 %2491
    %2493 = vset.pattern.permute.xlu0 0
    %2494 = vperm.xlu0 %2493, %v2487
    %v2495 = vpop.permute.xlu0 %2494
    %v2496 = vlaneseq
    %v2497 = vshrl.u32 %v2496, 7
    %v2498 = vsub.s32 %v588, %v2497
    %v2499 = vrot.slane %v2492, %v2498
    %v2500 = vlaneseq
    %v2501 = vshrl.u32 %v2500, 7
    %v2502 = vsub.s32 %v588, %v2501
    %v2503 = vrot.slane %v2495, %v2502
    %v2504 = vsel %vm597, %v2503, %v2499
    %v2506 = vsel %vm600, %v2504, 0.0
    %2507 = vadd.xlane.f32.xlu0 %v2506
    %v2508 = vpop.xlane.xlu0 %2507
    %v2509 = vrcp.pop %v2508
    %v2511 = vlaneseq
    %v2512 = vshrl.u32 %v2511, 7
    %v2513 = vsub.s32 0, %v2512
    %v2514 = vrot.slane %v2509, %v2513
    %v2515 = vlaneseq
    %v2516 = vshrl.u32 %v2515, 7
    %v2517 = vsub.s32 1, %v2516
    %v2518 = vrot.slane %v2509, %v2517
    %v2521 = vmul.f32 %v2485, %v2514
    %v2522 = vmul.f32 %v2487, %v2518
    %v2523 = vlaneseq
    %v2524 = vshrl.u32 %v2523, 7
    %v2525 = vsub.s32 4, %v2524
    %v2526 = vrot.slane %v198, %v2525
    %2528 = vbcast.lane.b32.xlu0 %v2526, 256
    %v2529 = vpop.permute.xlu0 %2528
    %v2530 = vlaneseq
    %v2531 = vshrl.u32 %v2530, 7
    %v2532 = vsub.s32 4, %v2531
    %v2533 = vrot.slane %v199, %v2532
    %2535 = vbcast.lane.b32.xlu0 %v2533, 256
    %v2536 = vpop.permute.xlu0 %2535
    %v2539 = vmul.f32 %v2521, %v2529
    %v2540 = vmul.f32 %v2522, %v2536
    %2541 = vmatprep.subr.mxu0 0.0
    %2542 = vmatpush1.msra.mxu0 0.0
    %2543 = vmatprep.subr.mxu0 0.0
    %2544 = vmatpush1.msra.mxu0 0.0
    %2545 = vmatprep.subr.mxu0 0.0
    %2546 = vmatpush1.msra.mxu0 0.0
    %2547 = vmatprep.subr.mxu0 0.0
    %2548 = vmatpush1.msra.mxu0 0.0
    %2549 = vmatprep.subr.mxu0 0.0
    %2550 = vmatpush1.msra.mxu0 0.0
    %2551 = vmatprep.subr.mxu0 0.0
    %2552 = vmatpush1.msra.mxu0 0.0
    %2553 = vmatprep.subr.mxu0 0.0
    %2554 = vmatpush1.msra.mxu0 0.0
    %2555 = vmatprep.subr.mxu0 0.0
    %2556 = vmatpush1.msra.mxu0 0.0
    %2557 = vmatprep.subr.mxu0 0.0
    %2558 = vmatpush1.msra.mxu0 0.0
    %2559 = vmatprep.subr.mxu0 0.0
    %2560 = vmatpush1.msra.mxu0 0.0
    %2561 = vmatprep.subr.mxu0 0.0
    %2562 = vmatpush1.msra.mxu0 0.0
    %2563 = vmatprep.subr.mxu0 0.0
    %2564 = vmatpush1.msra.mxu0 0.0
    %2565 = vmatprep.subr.mxu0 0.0
    %2566 = vmatpush1.msra.mxu0 %v217
    %2567 = vmatprep.subr.mxu0 0.0
    %2568 = vmatpush1.msra.mxu0 %v216
    %2569 = vmatprep.subr.mxu0 0.0
    %2570 = vmatpush1.msra.mxu0 %v215
    %2571 = vmatprep.subr.mxu0 0.0
    %2572 = vmatpush1.msra.mxu0 %v214
    %2573 = vmatprep.subr.mxu0 0.0
    %2574 = vmatpush2.msra.mxu0 0.0
    %2575 = vmatprep.subr.mxu0 0.0
    %2576 = vmatpush2.msra.mxu0 0.0
    %2577 = vmatprep.subr.mxu0 0.0
    %2578 = vmatpush2.msra.mxu0 0.0
    %2579 = vmatprep.subr.mxu0 0.0
    %2580 = vmatpush2.msra.mxu0 0.0
    %2581 = vmatprep.subr.mxu0 0.0
    %2582 = vmatpush2.msra.mxu0 0.0
    %2583 = vmatprep.subr.mxu0 0.0
    %2584 = vmatpush2.msra.mxu0 0.0
    %2585 = vmatprep.subr.mxu0 0.0
    %2586 = vmatpush2.msra.mxu0 0.0
    %2587 = vmatprep.subr.mxu0 0.0
    %2588 = vmatpush2.msra.mxu0 0.0
    %2589 = vmatprep.subr.mxu0 0.0
    %2590 = vmatpush2.msra.mxu0 0.0
    %2591 = vmatprep.subr.mxu0 0.0
    %2592 = vmatpush2.msra.mxu0 0.0
    %2593 = vmatprep.subr.mxu0 0.0
    %2594 = vmatpush2.msra.mxu0 0.0
    %2595 = vmatprep.subr.mxu0 0.0
    %2596 = vmatpush2.msra.mxu0 0.0
    %2597 = vmatprep.subr.mxu0 0.0
    %2598 = vmatpush2.msra.mxu0 0.0
    %2599 = vmatprep.subr.mxu0 0.0
    %2600 = vmatpush2.msra.mxu0 0.0
    %2601 = vmatprep.subr.mxu0 0.0
    %2602 = vmatpush2.msra.mxu0 0.0
    %2603 = vmatprep.subr.mxu0 0.0
    %2604 = vmatpush2.msra.mxu0 0.0
    %2605 = vmatprep.mubr.f32.mxu0 0.0
    %2606 = vmatmul.mubr.f32.gmra.mxu0 %v2338
    %v2607 = vpop.f32.mrf.mxu0
    %v2608 = vadd.f32 0.0, %v2607
    %v2609 = vpop.f32.mrf.mxu0
    %2610 = vdwg.mxu0
    %2613 = vset.pattern.permute.xlu0 0
    %2614 = vperm.xlu0 %2613, %v2539
    %v2615 = vpop.permute.xlu0 %2614
    %2616 = vset.pattern.permute.xlu0 0
    %2617 = vperm.xlu0 %2616, %v2540
    %v2618 = vpop.permute.xlu0 %2617
    %v2619 = vlaneseq
    %v2620 = vshrl.u32 %v2619, 7
    %v2621 = vsub.s32 %v588, %v2620
    %v2622 = vrot.slane %v2615, %v2621
    %v2623 = vlaneseq
    %v2624 = vshrl.u32 %v2623, 7
    %v2625 = vsub.s32 %v588, %v2624
    %v2626 = vrot.slane %v2618, %v2625
    %v2627 = vsel %vm597, %v2626, %v2622
    %v2628 = vsel %vm763, %v2627, 0
    %2630 = vmatprep.subr.mxu0 0.0
    %2631 = vmatpush1.msra.mxu0 0.0
    %2632 = vmatprep.subr.mxu0 0.0
    %2633 = vmatpush1.msra.mxu0 0.0
    %2634 = vmatprep.subr.mxu0 0.0
    %2635 = vmatpush1.msra.mxu0 0.0
    %2636 = vmatprep.subr.mxu0 0.0
    %2637 = vmatpush1.msra.mxu0 0.0
    %2638 = vmatprep.subr.mxu0 0.0
    %2639 = vmatpush1.msra.mxu0 0.0
    %2640 = vmatprep.subr.mxu0 0.0
    %2641 = vmatpush1.msra.mxu0 0.0
    %2642 = vmatprep.subr.mxu0 0.0
    %2643 = vmatpush1.msra.mxu0 0.0
    %2644 = vmatprep.subr.mxu0 0.0
    %2645 = vmatpush1.msra.mxu0 0.0
    %2646 = vmatprep.subr.mxu0 0.0
    %2647 = vmatpush1.msra.mxu0 0.0
    %2648 = vmatprep.subr.mxu0 0.0
    %2649 = vmatpush1.msra.mxu0 0.0
    %2650 = vmatprep.subr.mxu0 0.0
    %2651 = vmatpush1.msra.mxu0 0.0
    %2652 = vmatprep.subr.mxu0 0.0
    %2653 = vmatpush1.msra.mxu0 0.0
    %2654 = vmatprep.subr.mxu0 0.0
    %2655 = vmatpush1.msra.mxu0 0.0
    %2656 = vmatprep.subr.mxu0 0.0
    %2657 = vmatpush1.msra.mxu0 0.0
    %2658 = vmatprep.subr.mxu0 0.0
    %2659 = vmatpush1.msra.mxu0 0.0
    %2660 = vmatprep.subr.mxu0 0.0
    %2661 = vmatpush1.msra.mxu0 %v768
    %2662 = vmatprep.subr.mxu0 0.0
    %2663 = vmatpush2.msra.mxu0 0.0
    %2664 = vmatprep.subr.mxu0 0.0
    %2665 = vmatpush2.msra.mxu0 0.0
    %2666 = vmatprep.subr.mxu0 0.0
    %2667 = vmatpush2.msra.mxu0 0.0
    %2668 = vmatprep.subr.mxu0 0.0
    %2669 = vmatpush2.msra.mxu0 0.0
    %2670 = vmatprep.subr.mxu0 0.0
    %2671 = vmatpush2.msra.mxu0 0.0
    %2672 = vmatprep.subr.mxu0 0.0
    %2673 = vmatpush2.msra.mxu0 0.0
    %2674 = vmatprep.subr.mxu0 0.0
    %2675 = vmatpush2.msra.mxu0 0.0
    %2676 = vmatprep.subr.mxu0 0.0
    %2677 = vmatpush2.msra.mxu0 0.0
    %2678 = vmatprep.subr.mxu0 0.0
    %2679 = vmatpush2.msra.mxu0 0.0
    %2680 = vmatprep.subr.mxu0 0.0
    %2681 = vmatpush2.msra.mxu0 0.0
    %2682 = vmatprep.subr.mxu0 0.0
    %2683 = vmatpush2.msra.mxu0 0.0
    %2684 = vmatprep.subr.mxu0 0.0
    %2685 = vmatpush2.msra.mxu0 0.0
    %2686 = vmatprep.subr.mxu0 0.0
    %2687 = vmatpush2.msra.mxu0 0.0
    %2688 = vmatprep.subr.mxu0 0.0
    %2689 = vmatpush2.msra.mxu0 0.0
    %2690 = vmatprep.subr.mxu0 0.0
    %2691 = vmatpush2.msra.mxu0 0.0
    %2692 = vmatprep.subr.mxu0 0.0
    %2693 = vmatpush2.msra.mxu0 0.0
    %2694 = vmatprep.mubr.f32.mxu0 0.0
    %2695 = vmatmul.mubr.f32.gmra.mxu0 %v2628
    %v2696 = vpop.f32.mrf.mxu0
    %v2697 = vadd.f32 %v2608, %v2696
    %v2698 = vpop.f32.mrf.mxu0
    %2699 = vdwg.mxu0
    %v2700 = vadd.f32 %v2697, %v264
    %v2701 = vxor.u32 %v2700, 2147483648
    %v2702 = vmul.f32 %v2701, 1.442695
    %v2703 = vpow.pop %v2702
    %v2704 = vadd.f32 %v2703, 1.0
    %v2705 = vrcp.pop %v2704
    %v2706 = vmul.f32 1.0, %v2705
    %v2707 = vtanh.pop %v2700
    %v2708 = vmul.f32 %v2706, %v2253
    %2710 = vrot.lane.b32.xlu0 %v2707, 64
    %v2711 = vpop.permute.xlu0 %2710
    %v2713 = vmul.f32 %v2706, %v2711
    %2715 = vrot.lane.b32.xlu0 %v2713, 32
    %v2716 = vpop.permute.xlu0 %2715
    %v2718 = vadd.f32 %v2708, %v2716
    %v2719 = vtanh.pop %v2718
    %2721 = vrot.lane.b32.xlu0 %v2719, 64
    %v2722 = vpop.permute.xlu0 %2721
    %v2724 = vmul.f32 %v2706, %v2722
    %2726 = vrot.lane.b32.xlu0 %v2718, 96
    %v2727 = vpop.permute.xlu0 %2726
    %v2728 = vsel %vm394, %v2727, 0
    %2730 = vmatprep.subr.mxu0 0.0
    %2731 = vmatpush1.msra.mxu0 0.0
    %2732 = vmatprep.subr.mxu0 0.0
    %2733 = vmatpush1.msra.mxu0 0.0
    %2734 = vmatprep.subr.mxu0 0.0
    %2735 = vmatpush1.msra.mxu0 0.0
    %2736 = vmatprep.subr.mxu0 0.0
    %2737 = vmatpush1.msra.mxu0 0.0
    %2738 = vmatprep.subr.mxu0 0.0
    %2739 = vmatpush1.msra.mxu0 0.0
    %2740 = vmatprep.subr.mxu0 0.0
    %2741 = vmatpush1.msra.mxu0 0.0
    %2742 = vmatprep.subr.mxu0 0.0
    %2743 = vmatpush1.msra.mxu0 0.0
    %2744 = vmatprep.subr.mxu0 0.0
    %2745 = vmatpush1.msra.mxu0 0.0
    %2746 = vmatprep.subr.mxu0 0.0
    %2747 = vmatpush1.msra.mxu0 0.0
    %2748 = vmatprep.subr.mxu0 0.0
    %2749 = vmatpush1.msra.mxu0 0.0
    %2750 = vmatprep.subr.mxu0 0.0
    %2751 = vmatpush1.msra.mxu0 0.0
    %2752 = vmatprep.subr.mxu0 0.0
    %2753 = vmatpush1.msra.mxu0 0.0
    %2754 = vmatprep.subr.mxu0 0.0
    %2755 = vmatpush1.msra.mxu0 %v211
    %2756 = vmatprep.subr.mxu0 0.0
    %2757 = vmatpush1.msra.mxu0 %v210
    %2758 = vmatprep.subr.mxu0 0.0
    %2759 = vmatpush1.msra.mxu0 %v209
    %2760 = vmatprep.subr.mxu0 0.0
    %2761 = vmatpush1.msra.mxu0 %v208
    %2762 = vmatprep.subr.mxu0 0.0
    %2763 = vmatpush2.msra.mxu0 0.0
    %2764 = vmatprep.subr.mxu0 0.0
    %2765 = vmatpush2.msra.mxu0 0.0
    %2766 = vmatprep.subr.mxu0 0.0
    %2767 = vmatpush2.msra.mxu0 0.0
    %2768 = vmatprep.subr.mxu0 0.0
    %2769 = vmatpush2.msra.mxu0 0.0
    %2770 = vmatprep.subr.mxu0 0.0
    %2771 = vmatpush2.msra.mxu0 0.0
    %2772 = vmatprep.subr.mxu0 0.0
    %2773 = vmatpush2.msra.mxu0 0.0
    %2774 = vmatprep.subr.mxu0 0.0
    %2775 = vmatpush2.msra.mxu0 0.0
    %2776 = vmatprep.subr.mxu0 0.0
    %2777 = vmatpush2.msra.mxu0 0.0
    %2778 = vmatprep.subr.mxu0 0.0
    %2779 = vmatpush2.msra.mxu0 0.0
    %2780 = vmatprep.subr.mxu0 0.0
    %2781 = vmatpush2.msra.mxu0 0.0
    %2782 = vmatprep.subr.mxu0 0.0
    %2783 = vmatpush2.msra.mxu0 0.0
    %2784 = vmatprep.subr.mxu0 0.0
    %2785 = vmatpush2.msra.mxu0 0.0
    %2786 = vmatprep.subr.mxu0 0.0
    %2787 = vmatpush2.msra.mxu0 0.0
    %2788 = vmatprep.subr.mxu0 0.0
    %2789 = vmatpush2.msra.mxu0 0.0
    %2790 = vmatprep.subr.mxu0 0.0
    %2791 = vmatpush2.msra.mxu0 0.0
    %2792 = vmatprep.subr.mxu0 0.0
    %2793 = vmatpush2.msra.mxu0 0.0
    %2794 = vmatprep.mubr.f32.mxu0 0.0
    %2795 = vmatmul.mubr.f32.gmra.mxu0 %v2728
    %v2796 = vpop.f32.mrf.mxu0
    %v2797 = vadd.f32 0.0, %v2796
    %v2798 = vpop.f32.mrf.mxu0
    %2799 = vdwg.mxu0
    %2801 = vrot.lane.b32.xlu0 %v2724, 32
    %v2802 = vpop.permute.xlu0 %2801
    %v2803 = vsel %vm394, %v2802, 0
    %2805 = vmatprep.subr.mxu0 0.0
    %2806 = vmatpush1.msra.mxu0 0.0
    %2807 = vmatprep.subr.mxu0 0.0
    %2808 = vmatpush1.msra.mxu0 0.0
    %2809 = vmatprep.subr.mxu0 0.0
    %2810 = vmatpush1.msra.mxu0 0.0
    %2811 = vmatprep.subr.mxu0 0.0
    %2812 = vmatpush1.msra.mxu0 0.0
    %2813 = vmatprep.subr.mxu0 0.0
    %2814 = vmatpush1.msra.mxu0 0.0
    %2815 = vmatprep.subr.mxu0 0.0
    %2816 = vmatpush1.msra.mxu0 0.0
    %2817 = vmatprep.subr.mxu0 0.0
    %2818 = vmatpush1.msra.mxu0 0.0
    %2819 = vmatprep.subr.mxu0 0.0
    %2820 = vmatpush1.msra.mxu0 0.0
    %2821 = vmatprep.subr.mxu0 0.0
    %2822 = vmatpush1.msra.mxu0 0.0
    %2823 = vmatprep.subr.mxu0 0.0
    %2824 = vmatpush1.msra.mxu0 0.0
    %2825 = vmatprep.subr.mxu0 0.0
    %2826 = vmatpush1.msra.mxu0 0.0
    %2827 = vmatprep.subr.mxu0 0.0
    %2828 = vmatpush1.msra.mxu0 0.0
    %2829 = vmatprep.subr.mxu0 0.0
    %2830 = vmatpush1.msra.mxu0 %v207
    %2831 = vmatprep.subr.mxu0 0.0
    %2832 = vmatpush1.msra.mxu0 %v206
    %2833 = vmatprep.subr.mxu0 0.0
    %2834 = vmatpush1.msra.mxu0 %v205
    %2835 = vmatprep.subr.mxu0 0.0
    %2836 = vmatpush1.msra.mxu0 %v204
    %2837 = vmatprep.subr.mxu0 0.0
    %2838 = vmatpush2.msra.mxu0 0.0
    %2839 = vmatprep.subr.mxu0 0.0
    %2840 = vmatpush2.msra.mxu0 0.0
    %2841 = vmatprep.subr.mxu0 0.0
    %2842 = vmatpush2.msra.mxu0 0.0
    %2843 = vmatprep.subr.mxu0 0.0
    %2844 = vmatpush2.msra.mxu0 0.0
    %2845 = vmatprep.subr.mxu0 0.0
    %2846 = vmatpush2.msra.mxu0 0.0
    %2847 = vmatprep.subr.mxu0 0.0
    %2848 = vmatpush2.msra.mxu0 0.0
    %2849 = vmatprep.subr.mxu0 0.0
    %2850 = vmatpush2.msra.mxu0 0.0
    %2851 = vmatprep.subr.mxu0 0.0
    %2852 = vmatpush2.msra.mxu0 0.0
    %2853 = vmatprep.subr.mxu0 0.0
    %2854 = vmatpush2.msra.mxu0 0.0
    %2855 = vmatprep.subr.mxu0 0.0
    %2856 = vmatpush2.msra.mxu0 0.0
    %2857 = vmatprep.subr.mxu0 0.0
    %2858 = vmatpush2.msra.mxu0 0.0
    %2859 = vmatprep.subr.mxu0 0.0
    %2860 = vmatpush2.msra.mxu0 0.0
    %2861 = vmatprep.subr.mxu0 0.0
    %2862 = vmatpush2.msra.mxu0 0.0
    %2863 = vmatprep.subr.mxu0 0.0
    %2864 = vmatpush2.msra.mxu0 0.0
    %2865 = vmatprep.subr.mxu0 0.0
    %2866 = vmatpush2.msra.mxu0 0.0
    %2867 = vmatprep.subr.mxu0 0.0
    %2868 = vmatpush2.msra.mxu0 0.0
    %2869 = vmatprep.mubr.f32.mxu0 0.0
    %2870 = vmatmul.mubr.f32.gmra.mxu0 %v2803
    %v2871 = vpop.f32.mrf.mxu0
    %v2872 = vadd.f32 %v2797, %v2871
    %v2873 = vpop.f32.mrf.mxu0
    %2874 = vdwg.mxu0
    %v2875 = vadd.f32 %v2872, %v257
    %v2878 = vunpack.c.l.s4 1966171168
    %v2879 = vunpack.c.0.s8 %v2878
    %v2880 = vlaneseq
    %v2881 = vshrl.u32 %v2880, 7
    %v2882 = vsub.s32 %v2879, %v2881
    %v2883 = vrot.slane %v2875, %v2882
    %v2884 = vcombine.high %v2883, %v2883
    %v2886 = vunpack.c.l.s4 1966171168
    %v2887 = vunpack.c.0.s8 %v2886
    %v2888 = vlaneseq
    %v2889 = vshrl.u32 %v2888, 7
    %v2890 = vsub.s32 %v2887, %v2889
    %v2891 = vrot.slane %v2883, %v2890
    %v2893 = vunpack.c.l.s4 1966171168
    %v2894 = vunpack.c.0.s8 %v2893
    %v2895 = vlaneseq
    %v2896 = vshrl.u32 %v2895, 7
    %v2897 = vsub.s32 %v2894, %v2896
    %v2898 = vrot.slane %v2884, %v2897
    %v2899 = vlaneseq
    %v2900 = vshrl.u32 %v2899, 7
    %v2901 = vsub.s32 0, %v2900
    %v2902 = vrot.slane %v2891, %v2901
    %v2903 = vlaneseq
    %v2904 = vshrl.u32 %v2903, 7
    %v2905 = vsub.s32 0, %v2904
    %v2906 = vrot.slane %v2898, %v2905
    %v2909 = vadd.f32 %v2902, %v388
    %v2910 = vadd.f32 %v2906, %v392
    %v2911 = vtanh.pop %v2909
    %v2912 = vtanh.pop %v2910
    %v2913 = vmul.f32 %v2911, %v306
    %v2914 = vmul.f32 %v2912, %v306
    %v2915 = vsel %vm578, %v2913, 0.0
    %2916 = vadd.xlane.f32.xlu0 %v2915
    %v2917 = vpop.xlane.xlu0 %2916
    %v2918 = vsel %vm578, %v2914, 0.0
    %2919 = vadd.xlane.f32.xlu0 %v2918
    %v2920 = vpop.xlane.xlu0 %2919
    %v2923 = vlaneseq
    %v2924 = vshrl.u32 %v2923, 7
    %v2925 = vsub.s32 %v588, %v2924
    %v2926 = vrot.slane %v2917, %v2925
    %v2927 = vlaneseq
    %v2928 = vshrl.u32 %v2927, 7
    %v2929 = vsub.s32 %v588, %v2928
    %v2930 = vrot.slane %v2920, %v2929
    %v2931 = vsel %vm597, %v2930, %v2926
    %v2933 = vsel %vm600, %v2931, -inf
    %2934 = vmax.xlane.f32.xlu0 %v2933
    %v2935 = vpop.xlane.xlu0 %2934
    %v2937 = vlaneseq
    %v2938 = vshrl.u32 %v2937, 7
    %v2939 = vsub.s32 0, %v2938
    %v2940 = vrot.slane %v2935, %v2939
    %v2941 = vlaneseq
    %v2942 = vshrl.u32 %v2941, 7
    %v2943 = vsub.s32 1, %v2942
    %v2944 = vrot.slane %v2935, %v2943
    %v2947 = vsub.f32 %v2917, %v2940
    %v2948 = vsub.f32 %v2920, %v2944
    %v2949 = vmul.f32 %v2947, 1.442695
    %v2950 = vpow.pop %v2949
    %v2951 = vmul.f32 %v2948, 1.442695
    %v2952 = vpow.pop %v2951
    %2955 = vset.pattern.permute.xlu0 0
    %2956 = vperm.xlu0 %2955, %v2950
    %v2957 = vpop.permute.xlu0 %2956
    %2958 = vset.pattern.permute.xlu0 0
    %2959 = vperm.xlu0 %2958, %v2952
    %v2960 = vpop.permute.xlu0 %2959
    %v2961 = vlaneseq
    %v2962 = vshrl.u32 %v2961, 7
    %v2963 = vsub.s32 %v588, %v2962
    %v2964 = vrot.slane %v2957, %v2963
    %v2965 = vlaneseq
    %v2966 = vshrl.u32 %v2965, 7
    %v2967 = vsub.s32 %v588, %v2966
    %v2968 = vrot.slane %v2960, %v2967
    %v2969 = vsel %vm597, %v2968, %v2964
    %v2971 = vsel %vm600, %v2969, 0.0
    %2972 = vadd.xlane.f32.xlu0 %v2971
    %v2973 = vpop.xlane.xlu0 %2972
    %v2974 = vrcp.pop %v2973
    %v2976 = vlaneseq
    %v2977 = vshrl.u32 %v2976, 7
    %v2978 = vsub.s32 0, %v2977
    %v2979 = vrot.slane %v2974, %v2978
    %v2980 = vlaneseq
    %v2981 = vshrl.u32 %v2980, 7
    %v2982 = vsub.s32 1, %v2981
    %v2983 = vrot.slane %v2974, %v2982
    %v2986 = vmul.f32 %v2950, %v2979
    %v2987 = vmul.f32 %v2952, %v2983
    %v2988 = vlaneseq
    %v2989 = vshrl.u32 %v2988, 7
    %v2990 = vsub.s32 5, %v2989
    %v2991 = vrot.slane %v198, %v2990
    %2993 = vbcast.lane.b32.xlu0 %v2991, 256
    %v2994 = vpop.permute.xlu0 %2993
    %v2995 = vlaneseq
    %v2996 = vshrl.u32 %v2995, 7
    %v2997 = vsub.s32 5, %v2996
    %v2998 = vrot.slane %v199, %v2997
    %3000 = vbcast.lane.b32.xlu0 %v2998, 256
    %v3001 = vpop.permute.xlu0 %3000
    %v3004 = vmul.f32 %v2986, %v2994
    %v3005 = vmul.f32 %v2987, %v3001
    %3006 = vmatprep.subr.mxu0 0.0
    %3007 = vmatpush1.msra.mxu0 0.0
    %3008 = vmatprep.subr.mxu0 0.0
    %3009 = vmatpush1.msra.mxu0 0.0
    %3010 = vmatprep.subr.mxu0 0.0
    %3011 = vmatpush1.msra.mxu0 0.0
    %3012 = vmatprep.subr.mxu0 0.0
    %3013 = vmatpush1.msra.mxu0 0.0
    %3014 = vmatprep.subr.mxu0 0.0
    %3015 = vmatpush1.msra.mxu0 0.0
    %3016 = vmatprep.subr.mxu0 0.0
    %3017 = vmatpush1.msra.mxu0 0.0
    %3018 = vmatprep.subr.mxu0 0.0
    %3019 = vmatpush1.msra.mxu0 0.0
    %3020 = vmatprep.subr.mxu0 0.0
    %3021 = vmatpush1.msra.mxu0 0.0
    %3022 = vmatprep.subr.mxu0 0.0
    %3023 = vmatpush1.msra.mxu0 0.0
    %3024 = vmatprep.subr.mxu0 0.0
    %3025 = vmatpush1.msra.mxu0 0.0
    %3026 = vmatprep.subr.mxu0 0.0
    %3027 = vmatpush1.msra.mxu0 0.0
    %3028 = vmatprep.subr.mxu0 0.0
    %3029 = vmatpush1.msra.mxu0 0.0
    %3030 = vmatprep.subr.mxu0 0.0
    %3031 = vmatpush1.msra.mxu0 %v217
    %3032 = vmatprep.subr.mxu0 0.0
    %3033 = vmatpush1.msra.mxu0 %v216
    %3034 = vmatprep.subr.mxu0 0.0
    %3035 = vmatpush1.msra.mxu0 %v215
    %3036 = vmatprep.subr.mxu0 0.0
    %3037 = vmatpush1.msra.mxu0 %v214
    %3038 = vmatprep.subr.mxu0 0.0
    %3039 = vmatpush2.msra.mxu0 0.0
    %3040 = vmatprep.subr.mxu0 0.0
    %3041 = vmatpush2.msra.mxu0 0.0
    %3042 = vmatprep.subr.mxu0 0.0
    %3043 = vmatpush2.msra.mxu0 0.0
    %3044 = vmatprep.subr.mxu0 0.0
    %3045 = vmatpush2.msra.mxu0 0.0
    %3046 = vmatprep.subr.mxu0 0.0
    %3047 = vmatpush2.msra.mxu0 0.0
    %3048 = vmatprep.subr.mxu0 0.0
    %3049 = vmatpush2.msra.mxu0 0.0
    %3050 = vmatprep.subr.mxu0 0.0
    %3051 = vmatpush2.msra.mxu0 0.0
    %3052 = vmatprep.subr.mxu0 0.0
    %3053 = vmatpush2.msra.mxu0 0.0
    %3054 = vmatprep.subr.mxu0 0.0
    %3055 = vmatpush2.msra.mxu0 0.0
    %3056 = vmatprep.subr.mxu0 0.0
    %3057 = vmatpush2.msra.mxu0 0.0
    %3058 = vmatprep.subr.mxu0 0.0
    %3059 = vmatpush2.msra.mxu0 0.0
    %3060 = vmatprep.subr.mxu0 0.0
    %3061 = vmatpush2.msra.mxu0 0.0
    %3062 = vmatprep.subr.mxu0 0.0
    %3063 = vmatpush2.msra.mxu0 0.0
    %3064 = vmatprep.subr.mxu0 0.0
    %3065 = vmatpush2.msra.mxu0 0.0
    %3066 = vmatprep.subr.mxu0 0.0
    %3067 = vmatpush2.msra.mxu0 0.0
    %3068 = vmatprep.subr.mxu0 0.0
    %3069 = vmatpush2.msra.mxu0 0.0
    %3070 = vmatprep.mubr.f32.mxu0 0.0
    %3071 = vmatmul.mubr.f32.gmra.mxu0 %v2803
    %v3072 = vpop.f32.mrf.mxu0
    %v3073 = vadd.f32 0.0, %v3072
    %v3074 = vpop.f32.mrf.mxu0
    %3075 = vdwg.mxu0
    %3078 = vset.pattern.permute.xlu0 0
    %3079 = vperm.xlu0 %3078, %v3004
    %v3080 = vpop.permute.xlu0 %3079
    %3081 = vset.pattern.permute.xlu0 0
    %3082 = vperm.xlu0 %3081, %v3005
    %v3083 = vpop.permute.xlu0 %3082
    %v3084 = vlaneseq
    %v3085 = vshrl.u32 %v3084, 7
    %v3086 = vsub.s32 %v588, %v3085
    %v3087 = vrot.slane %v3080, %v3086
    %v3088 = vlaneseq
    %v3089 = vshrl.u32 %v3088, 7
    %v3090 = vsub.s32 %v588, %v3089
    %v3091 = vrot.slane %v3083, %v3090
    %v3092 = vsel %vm597, %v3091, %v3087
    %v3093 = vsel %vm763, %v3092, 0
    %3095 = vmatprep.subr.mxu0 0.0
    %3096 = vmatpush1.msra.mxu0 0.0
    %3097 = vmatprep.subr.mxu0 0.0
    %3098 = vmatpush1.msra.mxu0 0.0
    %3099 = vmatprep.subr.mxu0 0.0
    %3100 = vmatpush1.msra.mxu0 0.0
    %3101 = vmatprep.subr.mxu0 0.0
    %3102 = vmatpush1.msra.mxu0 0.0
    %3103 = vmatprep.subr.mxu0 0.0
    %3104 = vmatpush1.msra.mxu0 0.0
    %3105 = vmatprep.subr.mxu0 0.0
    %3106 = vmatpush1.msra.mxu0 0.0
    %3107 = vmatprep.subr.mxu0 0.0
    %3108 = vmatpush1.msra.mxu0 0.0
    %3109 = vmatprep.subr.mxu0 0.0
    %3110 = vmatpush1.msra.mxu0 0.0
    %3111 = vmatprep.subr.mxu0 0.0
    %3112 = vmatpush1.msra.mxu0 0.0
    %3113 = vmatprep.subr.mxu0 0.0
    %3114 = vmatpush1.msra.mxu0 0.0
    %3115 = vmatprep.subr.mxu0 0.0
    %3116 = vmatpush1.msra.mxu0 0.0
    %3117 = vmatprep.subr.mxu0 0.0
    %3118 = vmatpush1.msra.mxu0 0.0
    %3119 = vmatprep.subr.mxu0 0.0
    %3120 = vmatpush1.msra.mxu0 0.0
    %3121 = vmatprep.subr.mxu0 0.0
    %3122 = vmatpush1.msra.mxu0 0.0
    %3123 = vmatprep.subr.mxu0 0.0
    %3124 = vmatpush1.msra.mxu0 0.0
    %3125 = vmatprep.subr.mxu0 0.0
    %3126 = vmatpush1.msra.mxu0 %v768
    %3127 = vmatprep.subr.mxu0 0.0
    %3128 = vmatpush2.msra.mxu0 0.0
    %3129 = vmatprep.subr.mxu0 0.0
    %3130 = vmatpush2.msra.mxu0 0.0
    %3131 = vmatprep.subr.mxu0 0.0
    %3132 = vmatpush2.msra.mxu0 0.0
    %3133 = vmatprep.subr.mxu0 0.0
    %3134 = vmatpush2.msra.mxu0 0.0
    %3135 = vmatprep.subr.mxu0 0.0
    %3136 = vmatpush2.msra.mxu0 0.0
    %3137 = vmatprep.subr.mxu0 0.0
    %3138 = vmatpush2.msra.mxu0 0.0
    %3139 = vmatprep.subr.mxu0 0.0
    %3140 = vmatpush2.msra.mxu0 0.0
    %3141 = vmatprep.subr.mxu0 0.0
    %3142 = vmatpush2.msra.mxu0 0.0
    %3143 = vmatprep.subr.mxu0 0.0
    %3144 = vmatpush2.msra.mxu0 0.0
    %3145 = vmatprep.subr.mxu0 0.0
    %3146 = vmatpush2.msra.mxu0 0.0
    %3147 = vmatprep.subr.mxu0 0.0
    %3148 = vmatpush2.msra.mxu0 0.0
    %3149 = vmatprep.subr.mxu0 0.0
    %3150 = vmatpush2.msra.mxu0 0.0
    %3151 = vmatprep.subr.mxu0 0.0
    %3152 = vmatpush2.msra.mxu0 0.0
    %3153 = vmatprep.subr.mxu0 0.0
    %3154 = vmatpush2.msra.mxu0 0.0
    %3155 = vmatprep.subr.mxu0 0.0
    %3156 = vmatpush2.msra.mxu0 0.0
    %3157 = vmatprep.subr.mxu0 0.0
    %3158 = vmatpush2.msra.mxu0 0.0
    %3159 = vmatprep.mubr.f32.mxu0 0.0
    %3160 = vmatmul.mubr.f32.gmra.mxu0 %v3093
    %v3161 = vpop.f32.mrf.mxu0
    %v3162 = vadd.f32 %v3073, %v3161
    %v3163 = vpop.f32.mrf.mxu0
    %3164 = vdwg.mxu0
    %v3165 = vadd.f32 %v3162, %v264
    %v3166 = vxor.u32 %v3165, 2147483648
    %v3167 = vmul.f32 %v3166, 1.442695
    %v3168 = vpow.pop %v3167
    %v3169 = vadd.f32 %v3168, 1.0
    %v3170 = vrcp.pop %v3169
    %v3171 = vmul.f32 1.0, %v3170
    %v3172 = vtanh.pop %v3165
    %v3173 = vmul.f32 %v3171, %v2718
    %3175 = vrot.lane.b32.xlu0 %v3172, 64
    %v3176 = vpop.permute.xlu0 %3175
    %v3178 = vmul.f32 %v3171, %v3176
    %3180 = vrot.lane.b32.xlu0 %v3178, 32
    %v3181 = vpop.permute.xlu0 %3180
    %v3183 = vadd.f32 %v3173, %v3181
    %v3184 = vtanh.pop %v3183
    %3186 = vrot.lane.b32.xlu0 %v3184, 64
    %v3187 = vpop.permute.xlu0 %3186
    %v3189 = vmul.f32 %v3171, %v3187
    %3191 = vrot.lane.b32.xlu0 %v3183, 96
    %v3192 = vpop.permute.xlu0 %3191
    %v3193 = vsel %vm394, %v3192, 0
    %3195 = vmatprep.subr.mxu0 0.0
    %3196 = vmatpush1.msra.mxu0 0.0
    %3197 = vmatprep.subr.mxu0 0.0
    %3198 = vmatpush1.msra.mxu0 0.0
    %3199 = vmatprep.subr.mxu0 0.0
    %3200 = vmatpush1.msra.mxu0 0.0
    %3201 = vmatprep.subr.mxu0 0.0
    %3202 = vmatpush1.msra.mxu0 0.0
    %3203 = vmatprep.subr.mxu0 0.0
    %3204 = vmatpush1.msra.mxu0 0.0
    %3205 = vmatprep.subr.mxu0 0.0
    %3206 = vmatpush1.msra.mxu0 0.0
    %3207 = vmatprep.subr.mxu0 0.0
    %3208 = vmatpush1.msra.mxu0 0.0
    %3209 = vmatprep.subr.mxu0 0.0
    %3210 = vmatpush1.msra.mxu0 0.0
    %3211 = vmatprep.subr.mxu0 0.0
    %3212 = vmatpush1.msra.mxu0 0.0
    %3213 = vmatprep.subr.mxu0 0.0
    %3214 = vmatpush1.msra.mxu0 0.0
    %3215 = vmatprep.subr.mxu0 0.0
    %3216 = vmatpush1.msra.mxu0 0.0
    %3217 = vmatprep.subr.mxu0 0.0
    %3218 = vmatpush1.msra.mxu0 0.0
    %3219 = vmatprep.subr.mxu0 0.0
    %3220 = vmatpush1.msra.mxu0 %v211
    %3221 = vmatprep.subr.mxu0 0.0
    %3222 = vmatpush1.msra.mxu0 %v210
    %3223 = vmatprep.subr.mxu0 0.0
    %3224 = vmatpush1.msra.mxu0 %v209
    %3225 = vmatprep.subr.mxu0 0.0
    %3226 = vmatpush1.msra.mxu0 %v208
    %3227 = vmatprep.subr.mxu0 0.0
    %3228 = vmatpush2.msra.mxu0 0.0
    %3229 = vmatprep.subr.mxu0 0.0
    %3230 = vmatpush2.msra.mxu0 0.0
    %3231 = vmatprep.subr.mxu0 0.0
    %3232 = vmatpush2.msra.mxu0 0.0
    %3233 = vmatprep.subr.mxu0 0.0
    %3234 = vmatpush2.msra.mxu0 0.0
    %3235 = vmatprep.subr.mxu0 0.0
    %3236 = vmatpush2.msra.mxu0 0.0
    %3237 = vmatprep.subr.mxu0 0.0
    %3238 = vmatpush2.msra.mxu0 0.0
    %3239 = vmatprep.subr.mxu0 0.0
    %3240 = vmatpush2.msra.mxu0 0.0
    %3241 = vmatprep.subr.mxu0 0.0
    %3242 = vmatpush2.msra.mxu0 0.0
    %3243 = vmatprep.subr.mxu0 0.0
    %3244 = vmatpush2.msra.mxu0 0.0
    %3245 = vmatprep.subr.mxu0 0.0
    %3246 = vmatpush2.msra.mxu0 0.0
    %3247 = vmatprep.subr.mxu0 0.0
    %3248 = vmatpush2.msra.mxu0 0.0
    %3249 = vmatprep.subr.mxu0 0.0
    %3250 = vmatpush2.msra.mxu0 0.0
    %3251 = vmatprep.subr.mxu0 0.0
    %3252 = vmatpush2.msra.mxu0 0.0
    %3253 = vmatprep.subr.mxu0 0.0
    %3254 = vmatpush2.msra.mxu0 0.0
    %3255 = vmatprep.subr.mxu0 0.0
    %3256 = vmatpush2.msra.mxu0 0.0
    %3257 = vmatprep.subr.mxu0 0.0
    %3258 = vmatpush2.msra.mxu0 0.0
    %3259 = vmatprep.mubr.f32.mxu0 0.0
    %3260 = vmatmul.mubr.f32.gmra.mxu0 %v3193
    %v3261 = vpop.f32.mrf.mxu0
    %v3262 = vadd.f32 0.0, %v3261
    %v3263 = vpop.f32.mrf.mxu0
    %3264 = vdwg.mxu0
    %3266 = vrot.lane.b32.xlu0 %v3189, 32
    %v3267 = vpop.permute.xlu0 %3266
    %v3268 = vsel %vm394, %v3267, 0
    %3270 = vmatprep.subr.mxu0 0.0
    %3271 = vmatpush1.msra.mxu0 0.0
    %3272 = vmatprep.subr.mxu0 0.0
    %3273 = vmatpush1.msra.mxu0 0.0
    %3274 = vmatprep.subr.mxu0 0.0
    %3275 = vmatpush1.msra.mxu0 0.0
    %3276 = vmatprep.subr.mxu0 0.0
    %3277 = vmatpush1.msra.mxu0 0.0
    %3278 = vmatprep.subr.mxu0 0.0
    %3279 = vmatpush1.msra.mxu0 0.0
    %3280 = vmatprep.subr.mxu0 0.0
    %3281 = vmatpush1.msra.mxu0 0.0
    %3282 = vmatprep.subr.mxu0 0.0
    %3283 = vmatpush1.msra.mxu0 0.0
    %3284 = vmatprep.subr.mxu0 0.0
    %3285 = vmatpush1.msra.mxu0 0.0
    %3286 = vmatprep.subr.mxu0 0.0
    %3287 = vmatpush1.msra.mxu0 0.0
    %3288 = vmatprep.subr.mxu0 0.0
    %3289 = vmatpush1.msra.mxu0 0.0
    %3290 = vmatprep.subr.mxu0 0.0
    %3291 = vmatpush1.msra.mxu0 0.0
    %3292 = vmatprep.subr.mxu0 0.0
    %3293 = vmatpush1.msra.mxu0 0.0
    %3294 = vmatprep.subr.mxu0 0.0
    %3295 = vmatpush1.msra.mxu0 %v207
    %3296 = vmatprep.subr.mxu0 0.0
    %3297 = vmatpush1.msra.mxu0 %v206
    %3298 = vmatprep.subr.mxu0 0.0
    %3299 = vmatpush1.msra.mxu0 %v205
    %3300 = vmatprep.subr.mxu0 0.0
    %3301 = vmatpush1.msra.mxu0 %v204
    %3302 = vmatprep.subr.mxu0 0.0
    %3303 = vmatpush2.msra.mxu0 0.0
    %3304 = vmatprep.subr.mxu0 0.0
    %3305 = vmatpush2.msra.mxu0 0.0
    %3306 = vmatprep.subr.mxu0 0.0
    %3307 = vmatpush2.msra.mxu0 0.0
    %3308 = vmatprep.subr.mxu0 0.0
    %3309 = vmatpush2.msra.mxu0 0.0
    %3310 = vmatprep.subr.mxu0 0.0
    %3311 = vmatpush2.msra.mxu0 0.0
    %3312 = vmatprep.subr.mxu0 0.0
    %3313 = vmatpush2.msra.mxu0 0.0
    %3314 = vmatprep.subr.mxu0 0.0
    %3315 = vmatpush2.msra.mxu0 0.0
    %3316 = vmatprep.subr.mxu0 0.0
    %3317 = vmatpush2.msra.mxu0 0.0
    %3318 = vmatprep.subr.mxu0 0.0
    %3319 = vmatpush2.msra.mxu0 0.0
    %3320 = vmatprep.subr.mxu0 0.0
    %3321 = vmatpush2.msra.mxu0 0.0
    %3322 = vmatprep.subr.mxu0 0.0
    %3323 = vmatpush2.msra.mxu0 0.0
    %3324 = vmatprep.subr.mxu0 0.0
    %3325 = vmatpush2.msra.mxu0 0.0
    %3326 = vmatprep.subr.mxu0 0.0
    %3327 = vmatpush2.msra.mxu0 0.0
    %3328 = vmatprep.subr.mxu0 0.0
    %3329 = vmatpush2.msra.mxu0 0.0
    %3330 = vmatprep.subr.mxu0 0.0
    %3331 = vmatpush2.msra.mxu0 0.0
    %3332 = vmatprep.subr.mxu0 0.0
    %3333 = vmatpush2.msra.mxu0 0.0
    %3334 = vmatprep.mubr.f32.mxu0 0.0
    %3335 = vmatmul.mubr.f32.gmra.mxu0 %v3268
    %v3336 = vpop.f32.mrf.mxu0
    %v3337 = vadd.f32 %v3262, %v3336
    %v3338 = vpop.f32.mrf.mxu0
    %3339 = vdwg.mxu0
    %v3340 = vadd.f32 %v3337, %v257
    %v3343 = vunpack.c.l.s4 1966171168
    %v3344 = vunpack.c.0.s8 %v3343
    %v3345 = vlaneseq
    %v3346 = vshrl.u32 %v3345, 7
    %v3347 = vsub.s32 %v3344, %v3346
    %v3348 = vrot.slane %v3340, %v3347
    %v3349 = vcombine.high %v3348, %v3348
    %v3351 = vunpack.c.l.s4 1966171168
    %v3352 = vunpack.c.0.s8 %v3351
    %v3353 = vlaneseq
    %v3354 = vshrl.u32 %v3353, 7
    %v3355 = vsub.s32 %v3352, %v3354
    %v3356 = vrot.slane %v3348, %v3355
    %v3358 = vunpack.c.l.s4 1966171168
    %v3359 = vunpack.c.0.s8 %v3358
    %v3360 = vlaneseq
    %v3361 = vshrl.u32 %v3360, 7
    %v3362 = vsub.s32 %v3359, %v3361
    %v3363 = vrot.slane %v3349, %v3362
    %v3364 = vlaneseq
    %v3365 = vshrl.u32 %v3364, 7
    %v3366 = vsub.s32 0, %v3365
    %v3367 = vrot.slane %v3356, %v3366
    %v3368 = vlaneseq
    %v3369 = vshrl.u32 %v3368, 7
    %v3370 = vsub.s32 0, %v3369
    %v3371 = vrot.slane %v3363, %v3370
    %v3374 = vadd.f32 %v3367, %v388
    %v3375 = vadd.f32 %v3371, %v392
    %v3376 = vtanh.pop %v3374
    %v3377 = vtanh.pop %v3375
    %v3378 = vmul.f32 %v3376, %v306
    %v3379 = vmul.f32 %v3377, %v306
    %v3380 = vsel %vm578, %v3378, 0.0
    %3381 = vadd.xlane.f32.xlu0 %v3380
    %v3382 = vpop.xlane.xlu0 %3381
    %v3383 = vsel %vm578, %v3379, 0.0
    %3384 = vadd.xlane.f32.xlu0 %v3383
    %v3385 = vpop.xlane.xlu0 %3384
    %v3388 = vlaneseq
    %v3389 = vshrl.u32 %v3388, 7
    %v3390 = vsub.s32 %v588, %v3389
    %v3391 = vrot.slane %v3382, %v3390
    %v3392 = vlaneseq
    %v3393 = vshrl.u32 %v3392, 7
    %v3394 = vsub.s32 %v588, %v3393
    %v3395 = vrot.slane %v3385, %v3394
    %v3396 = vsel %vm597, %v3395, %v3391
    %v3398 = vsel %vm600, %v3396, -inf
    %3399 = vmax.xlane.f32.xlu0 %v3398
    %v3400 = vpop.xlane.xlu0 %3399
    %v3402 = vlaneseq
    %v3403 = vshrl.u32 %v3402, 7
    %v3404 = vsub.s32 0, %v3403
    %v3405 = vrot.slane %v3400, %v3404
    %v3406 = vlaneseq
    %v3407 = vshrl.u32 %v3406, 7
    %v3408 = vsub.s32 1, %v3407
    %v3409 = vrot.slane %v3400, %v3408
    %v3412 = vsub.f32 %v3382, %v3405
    %v3413 = vsub.f32 %v3385, %v3409
    %v3414 = vmul.f32 %v3412, 1.442695
    %v3415 = vpow.pop %v3414
    %v3416 = vmul.f32 %v3413, 1.442695
    %v3417 = vpow.pop %v3416
    %3420 = vset.pattern.permute.xlu0 0
    %3421 = vperm.xlu0 %3420, %v3415
    %v3422 = vpop.permute.xlu0 %3421
    %3423 = vset.pattern.permute.xlu0 0
    %3424 = vperm.xlu0 %3423, %v3417
    %v3425 = vpop.permute.xlu0 %3424
    %v3426 = vlaneseq
    %v3427 = vshrl.u32 %v3426, 7
    %v3428 = vsub.s32 %v588, %v3427
    %v3429 = vrot.slane %v3422, %v3428
    %v3430 = vlaneseq
    %v3431 = vshrl.u32 %v3430, 7
    %v3432 = vsub.s32 %v588, %v3431
    %v3433 = vrot.slane %v3425, %v3432
    %v3434 = vsel %vm597, %v3433, %v3429
    %v3436 = vsel %vm600, %v3434, 0.0
    %3437 = vadd.xlane.f32.xlu0 %v3436
    %v3438 = vpop.xlane.xlu0 %3437
    %v3439 = vrcp.pop %v3438
    %v3441 = vlaneseq
    %v3442 = vshrl.u32 %v3441, 7
    %v3443 = vsub.s32 0, %v3442
    %v3444 = vrot.slane %v3439, %v3443
    %v3445 = vlaneseq
    %v3446 = vshrl.u32 %v3445, 7
    %v3447 = vsub.s32 1, %v3446
    %v3448 = vrot.slane %v3439, %v3447
    %v3451 = vmul.f32 %v3415, %v3444
    %v3452 = vmul.f32 %v3417, %v3448
    %v3453 = vlaneseq
    %v3454 = vshrl.u32 %v3453, 7
    %v3455 = vsub.s32 6, %v3454
    %v3456 = vrot.slane %v198, %v3455
    %3458 = vbcast.lane.b32.xlu0 %v3456, 256
    %v3459 = vpop.permute.xlu0 %3458
    %v3460 = vlaneseq
    %v3461 = vshrl.u32 %v3460, 7
    %v3462 = vsub.s32 6, %v3461
    %v3463 = vrot.slane %v199, %v3462
    %3465 = vbcast.lane.b32.xlu0 %v3463, 256
    %v3466 = vpop.permute.xlu0 %3465
    %v3469 = vmul.f32 %v3451, %v3459
    %v3470 = vmul.f32 %v3452, %v3466
    %3471 = vmatprep.subr.mxu0 0.0
    %3472 = vmatpush1.msra.mxu0 0.0
    %3473 = vmatprep.subr.mxu0 0.0
    %3474 = vmatpush1.msra.mxu0 0.0
    %3475 = vmatprep.subr.mxu0 0.0
    %3476 = vmatpush1.msra.mxu0 0.0
    %3477 = vmatprep.subr.mxu0 0.0
    %3478 = vmatpush1.msra.mxu0 0.0
    %3479 = vmatprep.subr.mxu0 0.0
    %3480 = vmatpush1.msra.mxu0 0.0
    %3481 = vmatprep.subr.mxu0 0.0
    %3482 = vmatpush1.msra.mxu0 0.0
    %3483 = vmatprep.subr.mxu0 0.0
    %3484 = vmatpush1.msra.mxu0 0.0
    %3485 = vmatprep.subr.mxu0 0.0
    %3486 = vmatpush1.msra.mxu0 0.0
    %3487 = vmatprep.subr.mxu0 0.0
    %3488 = vmatpush1.msra.mxu0 0.0
    %3489 = vmatprep.subr.mxu0 0.0
    %3490 = vmatpush1.msra.mxu0 0.0
    %3491 = vmatprep.subr.mxu0 0.0
    %3492 = vmatpush1.msra.mxu0 0.0
    %3493 = vmatprep.subr.mxu0 0.0
    %3494 = vmatpush1.msra.mxu0 0.0
    %3495 = vmatprep.subr.mxu0 0.0
    %3496 = vmatpush1.msra.mxu0 %v217
    %3497 = vmatprep.subr.mxu0 0.0
    %3498 = vmatpush1.msra.mxu0 %v216
    %3499 = vmatprep.subr.mxu0 0.0
    %3500 = vmatpush1.msra.mxu0 %v215
    %3501 = vmatprep.subr.mxu0 0.0
    %3502 = vmatpush1.msra.mxu0 %v214
    %3503 = vmatprep.subr.mxu0 0.0
    %3504 = vmatpush2.msra.mxu0 0.0
    %3505 = vmatprep.subr.mxu0 0.0
    %3506 = vmatpush2.msra.mxu0 0.0
    %3507 = vmatprep.subr.mxu0 0.0
    %3508 = vmatpush2.msra.mxu0 0.0
    %3509 = vmatprep.subr.mxu0 0.0
    %3510 = vmatpush2.msra.mxu0 0.0
    %3511 = vmatprep.subr.mxu0 0.0
    %3512 = vmatpush2.msra.mxu0 0.0
    %3513 = vmatprep.subr.mxu0 0.0
    %3514 = vmatpush2.msra.mxu0 0.0
    %3515 = vmatprep.subr.mxu0 0.0
    %3516 = vmatpush2.msra.mxu0 0.0
    %3517 = vmatprep.subr.mxu0 0.0
    %3518 = vmatpush2.msra.mxu0 0.0
    %3519 = vmatprep.subr.mxu0 0.0
    %3520 = vmatpush2.msra.mxu0 0.0
    %3521 = vmatprep.subr.mxu0 0.0
    %3522 = vmatpush2.msra.mxu0 0.0
    %3523 = vmatprep.subr.mxu0 0.0
    %3524 = vmatpush2.msra.mxu0 0.0
    %3525 = vmatprep.subr.mxu0 0.0
    %3526 = vmatpush2.msra.mxu0 0.0
    %3527 = vmatprep.subr.mxu0 0.0
    %3528 = vmatpush2.msra.mxu0 0.0
    %3529 = vmatprep.subr.mxu0 0.0
    %3530 = vmatpush2.msra.mxu0 0.0
    %3531 = vmatprep.subr.mxu0 0.0
    %3532 = vmatpush2.msra.mxu0 0.0
    %3533 = vmatprep.subr.mxu0 0.0
    %3534 = vmatpush2.msra.mxu0 0.0
    %3535 = vmatprep.mubr.f32.mxu0 0.0
    %3536 = vmatmul.mubr.f32.gmra.mxu0 %v3268
    %v3537 = vpop.f32.mrf.mxu0
    %v3538 = vadd.f32 0.0, %v3537
    %v3539 = vpop.f32.mrf.mxu0
    %3540 = vdwg.mxu0
    %3543 = vset.pattern.permute.xlu0 0
    %3544 = vperm.xlu0 %3543, %v3469
    %v3545 = vpop.permute.xlu0 %3544
    %3546 = vset.pattern.permute.xlu0 0
    %3547 = vperm.xlu0 %3546, %v3470
    %v3548 = vpop.permute.xlu0 %3547
    %v3549 = vlaneseq
    %v3550 = vshrl.u32 %v3549, 7
    %v3551 = vsub.s32 %v588, %v3550
    %v3552 = vrot.slane %v3545, %v3551
    %v3553 = vlaneseq
    %v3554 = vshrl.u32 %v3553, 7
    %v3555 = vsub.s32 %v588, %v3554
    %v3556 = vrot.slane %v3548, %v3555
    %v3557 = vsel %vm597, %v3556, %v3552
    %v3558 = vsel %vm763, %v3557, 0
    %3560 = vmatprep.subr.mxu0 0.0
    %3561 = vmatpush1.msra.mxu0 0.0
    %3562 = vmatprep.subr.mxu0 0.0
    %3563 = vmatpush1.msra.mxu0 0.0
    %3564 = vmatprep.subr.mxu0 0.0
    %3565 = vmatpush1.msra.mxu0 0.0
    %3566 = vmatprep.subr.mxu0 0.0
    %3567 = vmatpush1.msra.mxu0 0.0
    %3568 = vmatprep.subr.mxu0 0.0
    %3569 = vmatpush1.msra.mxu0 0.0
    %3570 = vmatprep.subr.mxu0 0.0
    %3571 = vmatpush1.msra.mxu0 0.0
    %3572 = vmatprep.subr.mxu0 0.0
    %3573 = vmatpush1.msra.mxu0 0.0
    %3574 = vmatprep.subr.mxu0 0.0
    %3575 = vmatpush1.msra.mxu0 0.0
    %3576 = vmatprep.subr.mxu0 0.0
    %3577 = vmatpush1.msra.mxu0 0.0
    %3578 = vmatprep.subr.mxu0 0.0
    %3579 = vmatpush1.msra.mxu0 0.0
    %3580 = vmatprep.subr.mxu0 0.0
    %3581 = vmatpush1.msra.mxu0 0.0
    %3582 = vmatprep.subr.mxu0 0.0
    %3583 = vmatpush1.msra.mxu0 0.0
    %3584 = vmatprep.subr.mxu0 0.0
    %3585 = vmatpush1.msra.mxu0 0.0
    %3586 = vmatprep.subr.mxu0 0.0
    %3587 = vmatpush1.msra.mxu0 0.0
    %3588 = vmatprep.subr.mxu0 0.0
    %3589 = vmatpush1.msra.mxu0 0.0
    %3590 = vmatprep.subr.mxu0 0.0
    %3591 = vmatpush1.msra.mxu0 %v768
    %3592 = vmatprep.subr.mxu0 0.0
    %3593 = vmatpush2.msra.mxu0 0.0
    %3594 = vmatprep.subr.mxu0 0.0
    %3595 = vmatpush2.msra.mxu0 0.0
    %3596 = vmatprep.subr.mxu0 0.0
    %3597 = vmatpush2.msra.mxu0 0.0
    %3598 = vmatprep.subr.mxu0 0.0
    %3599 = vmatpush2.msra.mxu0 0.0
    %3600 = vmatprep.subr.mxu0 0.0
    %3601 = vmatpush2.msra.mxu0 0.0
    %3602 = vmatprep.subr.mxu0 0.0
    %3603 = vmatpush2.msra.mxu0 0.0
    %3604 = vmatprep.subr.mxu0 0.0
    %3605 = vmatpush2.msra.mxu0 0.0
    %3606 = vmatprep.subr.mxu0 0.0
    %3607 = vmatpush2.msra.mxu0 0.0
    %3608 = vmatprep.subr.mxu0 0.0
    %3609 = vmatpush2.msra.mxu0 0.0
    %3610 = vmatprep.subr.mxu0 0.0
    %3611 = vmatpush2.msra.mxu0 0.0
    %3612 = vmatprep.subr.mxu0 0.0
    %3613 = vmatpush2.msra.mxu0 0.0
    %3614 = vmatprep.subr.mxu0 0.0
    %3615 = vmatpush2.msra.mxu0 0.0
    %3616 = vmatprep.subr.mxu0 0.0
    %3617 = vmatpush2.msra.mxu0 0.0
    %3618 = vmatprep.subr.mxu0 0.0
    %3619 = vmatpush2.msra.mxu0 0.0
    %3620 = vmatprep.subr.mxu0 0.0
    %3621 = vmatpush2.msra.mxu0 0.0
    %3622 = vmatprep.subr.mxu0 0.0
    %3623 = vmatpush2.msra.mxu0 0.0
    %3624 = vmatprep.mubr.f32.mxu0 0.0
    %3625 = vmatmul.mubr.f32.gmra.mxu0 %v3558
    %v3626 = vpop.f32.mrf.mxu0
    %v3627 = vadd.f32 %v3538, %v3626
    %v3628 = vpop.f32.mrf.mxu0
    %3629 = vdwg.mxu0
    %v3630 = vadd.f32 %v3627, %v264
    %v3631 = vxor.u32 %v3630, 2147483648
    %v3632 = vmul.f32 %v3631, 1.442695
    %v3633 = vpow.pop %v3632
    %v3634 = vadd.f32 %v3633, 1.0
    %v3635 = vrcp.pop %v3634
    %v3636 = vmul.f32 1.0, %v3635
    %v3637 = vtanh.pop %v3630
    %v3638 = vmul.f32 %v3636, %v3183
    %3640 = vrot.lane.b32.xlu0 %v3637, 64
    %v3641 = vpop.permute.xlu0 %3640
    %v3643 = vmul.f32 %v3636, %v3641
    %3645 = vrot.lane.b32.xlu0 %v3643, 32
    %v3646 = vpop.permute.xlu0 %3645
    %v3648 = vadd.f32 %v3638, %v3646
    %v3649 = vtanh.pop %v3648
    %3651 = vrot.lane.b32.xlu0 %v3649, 64
    %v3652 = vpop.permute.xlu0 %3651
    %v3654 = vmul.f32 %v3636, %v3652
    %3656 = vrot.lane.b32.xlu0 %v3648, 96
    %v3657 = vpop.permute.xlu0 %3656
    %v3658 = vsel %vm394, %v3657, 0
    %3660 = vmatprep.subr.mxu0 0.0
    %3661 = vmatpush1.msra.mxu0 0.0
    %3662 = vmatprep.subr.mxu0 0.0
    %3663 = vmatpush1.msra.mxu0 0.0
    %3664 = vmatprep.subr.mxu0 0.0
    %3665 = vmatpush1.msra.mxu0 0.0
    %3666 = vmatprep.subr.mxu0 0.0
    %3667 = vmatpush1.msra.mxu0 0.0
    %3668 = vmatprep.subr.mxu0 0.0
    %3669 = vmatpush1.msra.mxu0 0.0
    %3670 = vmatprep.subr.mxu0 0.0
    %3671 = vmatpush1.msra.mxu0 0.0
    %3672 = vmatprep.subr.mxu0 0.0
    %3673 = vmatpush1.msra.mxu0 0.0
    %3674 = vmatprep.subr.mxu0 0.0
    %3675 = vmatpush1.msra.mxu0 0.0
    %3676 = vmatprep.subr.mxu0 0.0
    %3677 = vmatpush1.msra.mxu0 0.0
    %3678 = vmatprep.subr.mxu0 0.0
    %3679 = vmatpush1.msra.mxu0 0.0
    %3680 = vmatprep.subr.mxu0 0.0
    %3681 = vmatpush1.msra.mxu0 0.0
    %3682 = vmatprep.subr.mxu0 0.0
    %3683 = vmatpush1.msra.mxu0 0.0
    %3684 = vmatprep.subr.mxu0 0.0
    %3685 = vmatpush1.msra.mxu0 %v211
    %3686 = vmatprep.subr.mxu0 0.0
    %3687 = vmatpush1.msra.mxu0 %v210
    %3688 = vmatprep.subr.mxu0 0.0
    %3689 = vmatpush1.msra.mxu0 %v209
    %3690 = vmatprep.subr.mxu0 0.0
    %3691 = vmatpush1.msra.mxu0 %v208
    %3692 = vmatprep.subr.mxu0 0.0
    %3693 = vmatpush2.msra.mxu0 0.0
    %3694 = vmatprep.subr.mxu0 0.0
    %3695 = vmatpush2.msra.mxu0 0.0
    %3696 = vmatprep.subr.mxu0 0.0
    %3697 = vmatpush2.msra.mxu0 0.0
    %3698 = vmatprep.subr.mxu0 0.0
    %3699 = vmatpush2.msra.mxu0 0.0
    %3700 = vmatprep.subr.mxu0 0.0
    %3701 = vmatpush2.msra.mxu0 0.0
    %3702 = vmatprep.subr.mxu0 0.0
    %3703 = vmatpush2.msra.mxu0 0.0
    %3704 = vmatprep.subr.mxu0 0.0
    %3705 = vmatpush2.msra.mxu0 0.0
    %3706 = vmatprep.subr.mxu0 0.0
    %3707 = vmatpush2.msra.mxu0 0.0
    %3708 = vmatprep.subr.mxu0 0.0
    %3709 = vmatpush2.msra.mxu0 0.0
    %3710 = vmatprep.subr.mxu0 0.0
    %3711 = vmatpush2.msra.mxu0 0.0
    %3712 = vmatprep.subr.mxu0 0.0
    %3713 = vmatpush2.msra.mxu0 0.0
    %3714 = vmatprep.subr.mxu0 0.0
    %3715 = vmatpush2.msra.mxu0 0.0
    %3716 = vmatprep.subr.mxu0 0.0
    %3717 = vmatpush2.msra.mxu0 0.0
    %3718 = vmatprep.subr.mxu0 0.0
    %3719 = vmatpush2.msra.mxu0 0.0
    %3720 = vmatprep.subr.mxu0 0.0
    %3721 = vmatpush2.msra.mxu0 0.0
    %3722 = vmatprep.subr.mxu0 0.0
    %3723 = vmatpush2.msra.mxu0 0.0
    %3724 = vmatprep.mubr.f32.mxu0 0.0
    %3725 = vmatmul.mubr.f32.gmra.mxu0 %v3658
    %v3726 = vpop.f32.mrf.mxu0
    %v3727 = vadd.f32 0.0, %v3726
    %v3728 = vpop.f32.mrf.mxu0
    %3729 = vdwg.mxu0
    %3731 = vrot.lane.b32.xlu0 %v3654, 32
    %v3732 = vpop.permute.xlu0 %3731
    %v3733 = vsel %vm394, %v3732, 0
    %3735 = vmatprep.subr.mxu0 0.0
    %3736 = vmatpush1.msra.mxu0 0.0
    %3737 = vmatprep.subr.mxu0 0.0
    %3738 = vmatpush1.msra.mxu0 0.0
    %3739 = vmatprep.subr.mxu0 0.0
    %3740 = vmatpush1.msra.mxu0 0.0
    %3741 = vmatprep.subr.mxu0 0.0
    %3742 = vmatpush1.msra.mxu0 0.0
    %3743 = vmatprep.subr.mxu0 0.0
    %3744 = vmatpush1.msra.mxu0 0.0
    %3745 = vmatprep.subr.mxu0 0.0
    %3746 = vmatpush1.msra.mxu0 0.0
    %3747 = vmatprep.subr.mxu0 0.0
    %3748 = vmatpush1.msra.mxu0 0.0
    %3749 = vmatprep.subr.mxu0 0.0
    %3750 = vmatpush1.msra.mxu0 0.0
    %3751 = vmatprep.subr.mxu0 0.0
    %3752 = vmatpush1.msra.mxu0 0.0
    %3753 = vmatprep.subr.mxu0 0.0
    %3754 = vmatpush1.msra.mxu0 0.0
    %3755 = vmatprep.subr.mxu0 0.0
    %3756 = vmatpush1.msra.mxu0 0.0
    %3757 = vmatprep.subr.mxu0 0.0
    %3758 = vmatpush1.msra.mxu0 0.0
    %3759 = vmatprep.subr.mxu0 0.0
    %3760 = vmatpush1.msra.mxu0 %v207
    %3761 = vmatprep.subr.mxu0 0.0
    %3762 = vmatpush1.msra.mxu0 %v206
    %3763 = vmatprep.subr.mxu0 0.0
    %3764 = vmatpush1.msra.mxu0 %v205
    %3765 = vmatprep.subr.mxu0 0.0
    %3766 = vmatpush1.msra.mxu0 %v204
    %3767 = vmatprep.subr.mxu0 0.0
    %3768 = vmatpush2.msra.mxu0 0.0
    %3769 = vmatprep.subr.mxu0 0.0
    %3770 = vmatpush2.msra.mxu0 0.0
    %3771 = vmatprep.subr.mxu0 0.0
    %3772 = vmatpush2.msra.mxu0 0.0
    %3773 = vmatprep.subr.mxu0 0.0
    %3774 = vmatpush2.msra.mxu0 0.0
    %3775 = vmatprep.subr.mxu0 0.0
    %3776 = vmatpush2.msra.mxu0 0.0
    %3777 = vmatprep.subr.mxu0 0.0
    %3778 = vmatpush2.msra.mxu0 0.0
    %3779 = vmatprep.subr.mxu0 0.0
    %3780 = vmatpush2.msra.mxu0 0.0
    %3781 = vmatprep.subr.mxu0 0.0
    %3782 = vmatpush2.msra.mxu0 0.0
    %3783 = vmatprep.subr.mxu0 0.0
    %3784 = vmatpush2.msra.mxu0 0.0
    %3785 = vmatprep.subr.mxu0 0.0
    %3786 = vmatpush2.msra.mxu0 0.0
    %3787 = vmatprep.subr.mxu0 0.0
    %3788 = vmatpush2.msra.mxu0 0.0
    %3789 = vmatprep.subr.mxu0 0.0
    %3790 = vmatpush2.msra.mxu0 0.0
    %3791 = vmatprep.subr.mxu0 0.0
    %3792 = vmatpush2.msra.mxu0 0.0
    %3793 = vmatprep.subr.mxu0 0.0
    %3794 = vmatpush2.msra.mxu0 0.0
    %3795 = vmatprep.subr.mxu0 0.0
    %3796 = vmatpush2.msra.mxu0 0.0
    %3797 = vmatprep.subr.mxu0 0.0
    %3798 = vmatpush2.msra.mxu0 0.0
    %3799 = vmatprep.mubr.f32.mxu0 0.0
    %3800 = vmatmul.mubr.f32.gmra.mxu0 %v3733
    %v3801 = vpop.f32.mrf.mxu0
    %v3802 = vadd.f32 %v3727, %v3801
    %v3803 = vpop.f32.mrf.mxu0
    %3804 = vdwg.mxu0
    %v3805 = vadd.f32 %v3802, %v257
    %v3808 = vunpack.c.l.s4 1966171168
    %v3809 = vunpack.c.0.s8 %v3808
    %v3810 = vlaneseq
    %v3811 = vshrl.u32 %v3810, 7
    %v3812 = vsub.s32 %v3809, %v3811
    %v3813 = vrot.slane %v3805, %v3812
    %v3814 = vcombine.high %v3813, %v3813
    %v3816 = vunpack.c.l.s4 1966171168
    %v3817 = vunpack.c.0.s8 %v3816
    %v3818 = vlaneseq
    %v3819 = vshrl.u32 %v3818, 7
    %v3820 = vsub.s32 %v3817, %v3819
    %v3821 = vrot.slane %v3813, %v3820
    %v3823 = vunpack.c.l.s4 1966171168
    %v3824 = vunpack.c.0.s8 %v3823
    %v3825 = vlaneseq
    %v3826 = vshrl.u32 %v3825, 7
    %v3827 = vsub.s32 %v3824, %v3826
    %v3828 = vrot.slane %v3814, %v3827
    %v3829 = vlaneseq
    %v3830 = vshrl.u32 %v3829, 7
    %v3831 = vsub.s32 0, %v3830
    %v3832 = vrot.slane %v3821, %v3831
    %v3833 = vlaneseq
    %v3834 = vshrl.u32 %v3833, 7
    %v3835 = vsub.s32 0, %v3834
    %v3836 = vrot.slane %v3828, %v3835
    %v3839 = vadd.f32 %v3832, %v388
    %v3840 = vadd.f32 %v3836, %v392
    %v3841 = vtanh.pop %v3839
    %v3842 = vtanh.pop %v3840
    %v3843 = vmul.f32 %v3841, %v306
    %v3844 = vmul.f32 %v3842, %v306
    %v3845 = vsel %vm578, %v3843, 0.0
    %3846 = vadd.xlane.f32.xlu0 %v3845
    %v3847 = vpop.xlane.xlu0 %3846
    %v3848 = vsel %vm578, %v3844, 0.0
    %3849 = vadd.xlane.f32.xlu0 %v3848
    %v3850 = vpop.xlane.xlu0 %3849
    %v3853 = vlaneseq
    %v3854 = vshrl.u32 %v3853, 7
    %v3855 = vsub.s32 %v588, %v3854
    %v3856 = vrot.slane %v3847, %v3855
    %v3857 = vlaneseq
    %v3858 = vshrl.u32 %v3857, 7
    %v3859 = vsub.s32 %v588, %v3858
    %v3860 = vrot.slane %v3850, %v3859
    %v3861 = vsel %vm597, %v3860, %v3856
    %v3863 = vsel %vm600, %v3861, -inf
    %3864 = vmax.xlane.f32.xlu0 %v3863
    %v3865 = vpop.xlane.xlu0 %3864
    %v3867 = vlaneseq
    %v3868 = vshrl.u32 %v3867, 7
    %v3869 = vsub.s32 0, %v3868
    %v3870 = vrot.slane %v3865, %v3869
    %v3871 = vlaneseq
    %v3872 = vshrl.u32 %v3871, 7
    %v3873 = vsub.s32 1, %v3872
    %v3874 = vrot.slane %v3865, %v3873
    %v3877 = vsub.f32 %v3847, %v3870
    %v3878 = vsub.f32 %v3850, %v3874
    %v3879 = vmul.f32 %v3877, 1.442695
    %v3880 = vpow.pop %v3879
    %v3881 = vmul.f32 %v3878, 1.442695
    %v3882 = vpow.pop %v3881
    %3885 = vset.pattern.permute.xlu0 0
    %3886 = vperm.xlu0 %3885, %v3880
    %v3887 = vpop.permute.xlu0 %3886
    %3888 = vset.pattern.permute.xlu0 0
    %3889 = vperm.xlu0 %3888, %v3882
    %v3890 = vpop.permute.xlu0 %3889
    %v3891 = vlaneseq
    %v3892 = vshrl.u32 %v3891, 7
    %v3893 = vsub.s32 %v588, %v3892
    %v3894 = vrot.slane %v3887, %v3893
    %v3895 = vlaneseq
    %v3896 = vshrl.u32 %v3895, 7
    %v3897 = vsub.s32 %v588, %v3896
    %v3898 = vrot.slane %v3890, %v3897
    %v3899 = vsel %vm597, %v3898, %v3894
    %v3901 = vsel %vm600, %v3899, 0.0
    %3902 = vadd.xlane.f32.xlu0 %v3901
    %v3903 = vpop.xlane.xlu0 %3902
    %v3904 = vrcp.pop %v3903
    %v3906 = vlaneseq
    %v3907 = vshrl.u32 %v3906, 7
    %v3908 = vsub.s32 0, %v3907
    %v3909 = vrot.slane %v3904, %v3908
    %v3910 = vlaneseq
    %v3911 = vshrl.u32 %v3910, 7
    %v3912 = vsub.s32 1, %v3911
    %v3913 = vrot.slane %v3904, %v3912
    %v3916 = vmul.f32 %v3880, %v3909
    %v3917 = vmul.f32 %v3882, %v3913
    %v3918 = vlaneseq
    %v3919 = vshrl.u32 %v3918, 7
    %v3920 = vsub.s32 7, %v3919
    %v3921 = vrot.slane %v198, %v3920
    %3923 = vbcast.lane.b32.xlu0 %v3921, 256
    %v3924 = vpop.permute.xlu0 %3923
    %v3925 = vlaneseq
    %v3926 = vshrl.u32 %v3925, 7
    %v3927 = vsub.s32 7, %v3926
    %v3928 = vrot.slane %v199, %v3927
    %3930 = vbcast.lane.b32.xlu0 %v3928, 256
    %v3931 = vpop.permute.xlu0 %3930
    %v3934 = vmul.f32 %v3916, %v3924
    %v3935 = vmul.f32 %v3917, %v3931
    %3936 = vmatprep.subr.mxu0 0.0
    %3937 = vmatpush1.msra.mxu0 0.0
    %3938 = vmatprep.subr.mxu0 0.0
    %3939 = vmatpush1.msra.mxu0 0.0
    %3940 = vmatprep.subr.mxu0 0.0
    %3941 = vmatpush1.msra.mxu0 0.0
    %3942 = vmatprep.subr.mxu0 0.0
    %3943 = vmatpush1.msra.mxu0 0.0
    %3944 = vmatprep.subr.mxu0 0.0
    %3945 = vmatpush1.msra.mxu0 0.0
    %3946 = vmatprep.subr.mxu0 0.0
    %3947 = vmatpush1.msra.mxu0 0.0
    %3948 = vmatprep.subr.mxu0 0.0
    %3949 = vmatpush1.msra.mxu0 0.0
    %3950 = vmatprep.subr.mxu0 0.0
    %3951 = vmatpush1.msra.mxu0 0.0
    %3952 = vmatprep.subr.mxu0 0.0
    %3953 = vmatpush1.msra.mxu0 0.0
    %3954 = vmatprep.subr.mxu0 0.0
    %3955 = vmatpush1.msra.mxu0 0.0
    %3956 = vmatprep.subr.mxu0 0.0
    %3957 = vmatpush1.msra.mxu0 0.0
    %3958 = vmatprep.subr.mxu0 0.0
    %3959 = vmatpush1.msra.mxu0 0.0
    %3960 = vmatprep.subr.mxu0 0.0
    %3961 = vmatpush1.msra.mxu0 %v217
    %3962 = vmatprep.subr.mxu0 0.0
    %3963 = vmatpush1.msra.mxu0 %v216
    %3964 = vmatprep.subr.mxu0 0.0
    %3965 = vmatpush1.msra.mxu0 %v215
    %3966 = vmatprep.subr.mxu0 0.0
    %3967 = vmatpush1.msra.mxu0 %v214
    %3968 = vmatprep.subr.mxu0 0.0
    %3969 = vmatpush2.msra.mxu0 0.0
    %3970 = vmatprep.subr.mxu0 0.0
    %3971 = vmatpush2.msra.mxu0 0.0
    %3972 = vmatprep.subr.mxu0 0.0
    %3973 = vmatpush2.msra.mxu0 0.0
    %3974 = vmatprep.subr.mxu0 0.0
    %3975 = vmatpush2.msra.mxu0 0.0
    %3976 = vmatprep.subr.mxu0 0.0
    %3977 = vmatpush2.msra.mxu0 0.0
    %3978 = vmatprep.subr.mxu0 0.0
    %3979 = vmatpush2.msra.mxu0 0.0
    %3980 = vmatprep.subr.mxu0 0.0
    %3981 = vmatpush2.msra.mxu0 0.0
    %3982 = vmatprep.subr.mxu0 0.0
    %3983 = vmatpush2.msra.mxu0 0.0
    %3984 = vmatprep.subr.mxu0 0.0
    %3985 = vmatpush2.msra.mxu0 0.0
    %3986 = vmatprep.subr.mxu0 0.0
    %3987 = vmatpush2.msra.mxu0 0.0
    %3988 = vmatprep.subr.mxu0 0.0
    %3989 = vmatpush2.msra.mxu0 0.0
    %3990 = vmatprep.subr.mxu0 0.0
    %3991 = vmatpush2.msra.mxu0 0.0
    %3992 = vmatprep.subr.mxu0 0.0
    %3993 = vmatpush2.msra.mxu0 0.0
    %3994 = vmatprep.subr.mxu0 0.0
    %3995 = vmatpush2.msra.mxu0 0.0
    %3996 = vmatprep.subr.mxu0 0.0
    %3997 = vmatpush2.msra.mxu0 0.0
    %3998 = vmatprep.subr.mxu0 0.0
    %3999 = vmatpush2.msra.mxu0 0.0
    %4000 = vmatprep.mubr.f32.mxu0 0.0
    %4001 = vmatmul.mubr.f32.gmra.mxu0 %v3733
    %v4002 = vpop.f32.mrf.mxu0
    %v4003 = vadd.f32 0.0, %v4002
    %v4004 = vpop.f32.mrf.mxu0
    %4005 = vdwg.mxu0
    %4008 = vset.pattern.permute.xlu0 0
    %4009 = vperm.xlu0 %4008, %v3934
    %v4010 = vpop.permute.xlu0 %4009
    %4011 = vset.pattern.permute.xlu0 0
    %4012 = vperm.xlu0 %4011, %v3935
    %v4013 = vpop.permute.xlu0 %4012
    %v4014 = vlaneseq
    %v4015 = vshrl.u32 %v4014, 7
    %v4016 = vsub.s32 %v588, %v4015
    %v4017 = vrot.slane %v4010, %v4016
    %v4018 = vlaneseq
    %v4019 = vshrl.u32 %v4018, 7
    %v4020 = vsub.s32 %v588, %v4019
    %v4021 = vrot.slane %v4013, %v4020
    %v4022 = vsel %vm597, %v4021, %v4017
    %v4023 = vsel %vm763, %v4022, 0
    %4025 = vmatprep.subr.mxu0 0.0
    %4026 = vmatpush1.msra.mxu0 0.0
    %4027 = vmatprep.subr.mxu0 0.0
    %4028 = vmatpush1.msra.mxu0 0.0
    %4029 = vmatprep.subr.mxu0 0.0
    %4030 = vmatpush1.msra.mxu0 0.0
    %4031 = vmatprep.subr.mxu0 0.0
    %4032 = vmatpush1.msra.mxu0 0.0
    %4033 = vmatprep.subr.mxu0 0.0
    %4034 = vmatpush1.msra.mxu0 0.0
    %4035 = vmatprep.subr.mxu0 0.0
    %4036 = vmatpush1.msra.mxu0 0.0
    %4037 = vmatprep.subr.mxu0 0.0
    %4038 = vmatpush1.msra.mxu0 0.0
    %4039 = vmatprep.subr.mxu0 0.0
    %4040 = vmatpush1.msra.mxu0 0.0
    %4041 = vmatprep.subr.mxu0 0.0
    %4042 = vmatpush1.msra.mxu0 0.0
    %4043 = vmatprep.subr.mxu0 0.0
    %4044 = vmatpush1.msra.mxu0 0.0
    %4045 = vmatprep.subr.mxu0 0.0
    %4046 = vmatpush1.msra.mxu0 0.0
    %4047 = vmatprep.subr.mxu0 0.0
    %4048 = vmatpush1.msra.mxu0 0.0
    %4049 = vmatprep.subr.mxu0 0.0
    %4050 = vmatpush1.msra.mxu0 0.0
    %4051 = vmatprep.subr.mxu0 0.0
    %4052 = vmatpush1.msra.mxu0 0.0
    %4053 = vmatprep.subr.mxu0 0.0
    %4054 = vmatpush1.msra.mxu0 0.0
    %4055 = vmatprep.subr.mxu0 0.0
    %4056 = vmatpush1.msra.mxu0 %v768
    %4057 = vmatprep.subr.mxu0 0.0
    %4058 = vmatpush2.msra.mxu0 0.0
    %4059 = vmatprep.subr.mxu0 0.0
    %4060 = vmatpush2.msra.mxu0 0.0
    %4061 = vmatprep.subr.mxu0 0.0
    %4062 = vmatpush2.msra.mxu0 0.0
    %4063 = vmatprep.subr.mxu0 0.0
    %4064 = vmatpush2.msra.mxu0 0.0
    %4065 = vmatprep.subr.mxu0 0.0
    %4066 = vmatpush2.msra.mxu0 0.0
    %4067 = vmatprep.subr.mxu0 0.0
    %4068 = vmatpush2.msra.mxu0 0.0
    %4069 = vmatprep.subr.mxu0 0.0
    %4070 = vmatpush2.msra.mxu0 0.0
    %4071 = vmatprep.subr.mxu0 0.0
    %4072 = vmatpush2.msra.mxu0 0.0
    %4073 = vmatprep.subr.mxu0 0.0
    %4074 = vmatpush2.msra.mxu0 0.0
    %4075 = vmatprep.subr.mxu0 0.0
    %4076 = vmatpush2.msra.mxu0 0.0
    %4077 = vmatprep.subr.mxu0 0.0
    %4078 = vmatpush2.msra.mxu0 0.0
    %4079 = vmatprep.subr.mxu0 0.0
    %4080 = vmatpush2.msra.mxu0 0.0
    %4081 = vmatprep.subr.mxu0 0.0
    %4082 = vmatpush2.msra.mxu0 0.0
    %4083 = vmatprep.subr.mxu0 0.0
    %4084 = vmatpush2.msra.mxu0 0.0
    %4085 = vmatprep.subr.mxu0 0.0
    %4086 = vmatpush2.msra.mxu0 0.0
    %4087 = vmatprep.subr.mxu0 0.0
    %4088 = vmatpush2.msra.mxu0 0.0
    %4089 = vmatprep.mubr.f32.mxu0 0.0
    %4090 = vmatmul.mubr.f32.gmra.mxu0 %v4023
    %v4091 = vpop.f32.mrf.mxu0
    %v4092 = vadd.f32 %v4003, %v4091
    %v4093 = vpop.f32.mrf.mxu0
    %4094 = vdwg.mxu0
    %v4095 = vadd.f32 %v4092, %v264
    %v4096 = vxor.u32 %v4095, 2147483648
    %v4097 = vmul.f32 %v4096, 1.442695
    %v4098 = vpow.pop %v4097
    %v4099 = vadd.f32 %v4098, 1.0
    %v4100 = vrcp.pop %v4099
    %v4101 = vmul.f32 1.0, %v4100
    %v4102 = vtanh.pop %v4095
    %v4103 = vmul.f32 %v4101, %v3648
    %4105 = vrot.lane.b32.xlu0 %v4102, 64
    %v4106 = vpop.permute.xlu0 %4105
    %v4108 = vmul.f32 %v4101, %v4106
    %4110 = vrot.lane.b32.xlu0 %v4108, 32
    %v4111 = vpop.permute.xlu0 %4110
    %v4113 = vadd.f32 %v4103, %v4111
    %v4114 = vtanh.pop %v4113
    %4116 = vrot.lane.b32.xlu0 %v4114, 64
    %v4117 = vpop.permute.xlu0 %4116
    %v4119 = vmul.f32 %v4101, %v4117
    %v4121 = vunpack.c.l.s4 1966171168
    %v4122 = vunpack.c.0.s8 %v4121
    %v4123 = vlaneseq
    %v4124 = vshrl.u32 %v4123, 7
    %v4125 = vsub.s32 %v4122, %v4124
    %v4126 = vrot.slane %v864, %v4125
    %v4127 = vcombine.high %v4126, %v4126
    %v4129 = vunpack.c.l.s4 1966171168
    %v4130 = vunpack.c.0.s8 %v4129
    %v4131 = vlaneseq
    %v4132 = vshrl.u32 %v4131, 7
    %v4133 = vsub.s32 %v4130, %v4132
    %v4134 = vrot.slane %v4126, %v4133
    %v4136 = vunpack.c.l.s4 1966171168
    %v4137 = vunpack.c.0.s8 %v4136
    %v4138 = vlaneseq
    %v4139 = vshrl.u32 %v4138, 7
    %v4140 = vsub.s32 %v4137, %v4139
    %v4141 = vrot.slane %v4127, %v4140
    %v4145 = vunpack.c.l.s4 1966171168
    %v4146 = vunpack.c.0.s8 %v4145
    %v4147 = vlaneseq
    %v4148 = vshrl.u32 %v4147, 7
    %v4149 = vsub.s32 %v4146, %v4148
    %v4150 = vrot.slane %v1329, %v4149
    %v4151 = vcombine.high %v4150, %v4150
    %v4153 = vunpack.c.l.s4 1966171168
    %v4154 = vunpack.c.0.s8 %v4153
    %v4155 = vlaneseq
    %v4156 = vshrl.u32 %v4155, 7
    %v4157 = vsub.s32 %v4154, %v4156
    %v4158 = vrot.slane %v4150, %v4157
    %v4160 = vunpack.c.l.s4 1966171168
    %v4161 = vunpack.c.0.s8 %v4160
    %v4162 = vlaneseq
    %v4163 = vshrl.u32 %v4162, 7
    %v4164 = vsub.s32 %v4161, %v4163
    %v4165 = vrot.slane %v4151, %v4164
    %v4167 = vunpack.c.l.s4 1966171168
    %v4168 = vunpack.c.0.s8 %v4167
    %v4169 = vlaneseq
    %v4170 = vshrl.u32 %v4169, 7
    %v4171 = vsub.s32 %v4168, %v4170
    %v4172 = vrot.slane %v1794, %v4171
    %v4173 = vcombine.high %v4172, %v4172
    %v4175 = vunpack.c.l.s4 1966171168
    %v4176 = vunpack.c.0.s8 %v4175
    %v4177 = vlaneseq
    %v4178 = vshrl.u32 %v4177, 7
    %v4179 = vsub.s32 %v4176, %v4178
    %v4180 = vrot.slane %v4172, %v4179
    %v4182 = vunpack.c.l.s4 1966171168
    %v4183 = vunpack.c.0.s8 %v4182
    %v4184 = vlaneseq
    %v4185 = vshrl.u32 %v4184, 7
    %v4186 = vsub.s32 %v4183, %v4185
    %v4187 = vrot.slane %v4173, %v4186
    %v4189 = vunpack.c.l.s4 1966171168
    %v4190 = vunpack.c.0.s8 %v4189
    %v4191 = vlaneseq
    %v4192 = vshrl.u32 %v4191, 7
    %v4193 = vsub.s32 %v4190, %v4192
    %v4194 = vrot.slane %v2259, %v4193
    %v4195 = vcombine.high %v4194, %v4194
    %v4197 = vunpack.c.l.s4 1966171168
    %v4198 = vunpack.c.0.s8 %v4197
    %v4199 = vlaneseq
    %v4200 = vshrl.u32 %v4199, 7
    %v4201 = vsub.s32 %v4198, %v4200
    %v4202 = vrot.slane %v4194, %v4201
    %v4204 = vunpack.c.l.s4 1966171168
    %v4205 = vunpack.c.0.s8 %v4204
    %v4206 = vlaneseq
    %v4207 = vshrl.u32 %v4206, 7
    %v4208 = vsub.s32 %v4205, %v4207
    %v4209 = vrot.slane %v4195, %v4208
    %v4211 = vunpack.c.l.s4 1966171168
    %v4212 = vunpack.c.0.s8 %v4211
    %v4213 = vlaneseq
    %v4214 = vshrl.u32 %v4213, 7
    %v4215 = vsub.s32 %v4212, %v4214
    %v4216 = vrot.slane %v2724, %v4215
    %v4217 = vcombine.high %v4216, %v4216
    %v4219 = vunpack.c.l.s4 1966171168
    %v4220 = vunpack.c.0.s8 %v4219
    %v4221 = vlaneseq
    %v4222 = vshrl.u32 %v4221, 7
    %v4223 = vsub.s32 %v4220, %v4222
    %v4224 = vrot.slane %v4216, %v4223
    %v4226 = vunpack.c.l.s4 1966171168
    %v4227 = vunpack.c.0.s8 %v4226
    %v4228 = vlaneseq
    %v4229 = vshrl.u32 %v4228, 7
    %v4230 = vsub.s32 %v4227, %v4229
    %v4231 = vrot.slane %v4217, %v4230
    %v4233 = vunpack.c.l.s4 1966171168
    %v4234 = vunpack.c.0.s8 %v4233
    %v4235 = vlaneseq
    %v4236 = vshrl.u32 %v4235, 7
    %v4237 = vsub.s32 %v4234, %v4236
    %v4238 = vrot.slane %v3189, %v4237
    %v4239 = vcombine.high %v4238, %v4238
    %v4241 = vunpack.c.l.s4 1966171168
    %v4242 = vunpack.c.0.s8 %v4241
    %v4243 = vlaneseq
    %v4244 = vshrl.u32 %v4243, 7
    %v4245 = vsub.s32 %v4242, %v4244
    %v4246 = vrot.slane %v4238, %v4245
    %v4248 = vunpack.c.l.s4 1966171168
    %v4249 = vunpack.c.0.s8 %v4248
    %v4250 = vlaneseq
    %v4251 = vshrl.u32 %v4250, 7
    %v4252 = vsub.s32 %v4249, %v4251
    %v4253 = vrot.slane %v4239, %v4252
    %v4255 = vunpack.c.l.s4 1966171168
    %v4256 = vunpack.c.0.s8 %v4255
    %v4257 = vlaneseq
    %v4258 = vshrl.u32 %v4257, 7
    %v4259 = vsub.s32 %v4256, %v4258
    %v4260 = vrot.slane %v3654, %v4259
    %v4261 = vcombine.high %v4260, %v4260
    %v4263 = vunpack.c.l.s4 1966171168
    %v4264 = vunpack.c.0.s8 %v4263
    %v4265 = vlaneseq
    %v4266 = vshrl.u32 %v4265, 7
    %v4267 = vsub.s32 %v4264, %v4266
    %v4268 = vrot.slane %v4260, %v4267
    %v4270 = vunpack.c.l.s4 1966171168
    %v4271 = vunpack.c.0.s8 %v4270
    %v4272 = vlaneseq
    %v4273 = vshrl.u32 %v4272, 7
    %v4274 = vsub.s32 %v4271, %v4273
    %v4275 = vrot.slane %v4261, %v4274
    %v4278 = vunpack.c.l.s4 1966171168
    %v4279 = vunpack.c.0.s8 %v4278
    %v4280 = vlaneseq
    %v4281 = vshrl.u32 %v4280, 7
    %v4282 = vsub.s32 %v4279, %v4281
    %v4283 = vrot.slane %v4119, %v4282
    %v4284 = vcombine.high %v4283, %v4283
    %v4286 = vunpack.c.l.s4 1966171168
    %v4287 = vunpack.c.0.s8 %v4286
    %v4288 = vlaneseq
    %v4289 = vshrl.u32 %v4288, 7
    %v4290 = vsub.s32 %v4287, %v4289
    %v4291 = vrot.slane %v4283, %v4290
    %v4293 = vunpack.c.l.s4 1966171168
    %v4294 = vunpack.c.0.s8 %v4293
    %v4295 = vlaneseq
    %v4296 = vshrl.u32 %v4295, 7
    %v4297 = vsub.s32 %v4294, %v4296
    %v4298 = vrot.slane %v4284, %v4297
    %v4299 = vlaneseq
    %v4300 = vshrl.u32 %v4299, 7
    %v4301 = vsub.s32 0, %v4300
    %v4302 = vrot.slane %v4158, %v4301
    %v4303 = vlaneseq
    %v4304 = vshrl.u32 %v4303, 7
    %v4305 = vsub.s32 0, %v4304
    %v4306 = vrot.slane %v4165, %v4305
    %v4309 = vlaneseq
    %v4310 = vshrl.u32 %v4309, 7
    %v4311 = vsub.s32 0, %v4310
    %v4312 = vrot.slane %v4180, %v4311
    %v4313 = vlaneseq
    %v4314 = vshrl.u32 %v4313, 7
    %v4315 = vsub.s32 0, %v4314
    %v4316 = vrot.slane %v4187, %v4315
    %v4319 = vlaneseq
    %v4320 = vshrl.u32 %v4319, 7
    %v4321 = vsub.s32 0, %v4320
    %v4322 = vrot.slane %v4202, %v4321
    %v4323 = vlaneseq
    %v4324 = vshrl.u32 %v4323, 7
    %v4325 = vsub.s32 0, %v4324
    %v4326 = vrot.slane %v4209, %v4325
    %v4329 = vlaneseq
    %v4330 = vshrl.u32 %v4329, 7
    %v4331 = vsub.s32 0, %v4330
    %v4332 = vrot.slane %v4224, %v4331
    %v4333 = vlaneseq
    %v4334 = vshrl.u32 %v4333, 7
    %v4335 = vsub.s32 0, %v4334
    %v4336 = vrot.slane %v4231, %v4335
    %v4339 = vlaneseq
    %v4340 = vshrl.u32 %v4339, 7
    %v4341 = vsub.s32 0, %v4340
    %v4342 = vrot.slane %v4246, %v4341
    %v4343 = vlaneseq
    %v4344 = vshrl.u32 %v4343, 7
    %v4345 = vsub.s32 0, %v4344
    %v4346 = vrot.slane %v4253, %v4345
    %v4349 = vlaneseq
    %v4350 = vshrl.u32 %v4349, 7
    %v4351 = vsub.s32 0, %v4350
    %v4352 = vrot.slane %v4268, %v4351
    %v4353 = vlaneseq
    %v4354 = vshrl.u32 %v4353, 7
    %v4355 = vsub.s32 0, %v4354
    %v4356 = vrot.slane %v4275, %v4355
    %v4359 = vlaneseq
    %v4360 = vshrl.u32 %v4359, 7
    %v4361 = vsub.s32 0, %v4360
    %v4362 = vrot.slane %v4291, %v4361
    %v4363 = vlaneseq
    %v4364 = vshrl.u32 %v4363, 7
    %v4365 = vsub.s32 0, %v4364
    %v4366 = vrot.slane %v4298, %v4365
    %vm4369 = vcmask 1040384
    %v4370 = vsel %vm4369, %v4134, %v4302
    %v4371 = vsel %vm4369, %v4141, %v4306
    %vm4372 = vcmask 1041408
    %v4373 = vsel %vm4372, %v4370, %v4312
    %v4374 = vsel %vm4372, %v4371, %v4316
    %vm4375 = vcmask 1042432
    %v4376 = vsel %vm4375, %v4373, %v4322
    %v4377 = vsel %vm4375, %v4374, %v4326
    %v4378 = vsel %vm766, %v4376, %v4332
    %v4379 = vsel %vm766, %v4377, %v4336
    %vm4380 = vcmask 1044480
    %v4381 = vsel %vm4380, %v4378, %v4342
    %v4382 = vsel %vm4380, %v4379, %v4346
    %vm4383 = vcmask 1045504
    %v4384 = vsel %vm4383, %v4381, %v4352
    %v4385 = vsel %vm4383, %v4382, %v4356
    %vm4386 = vcmask 1046528
    %v4387 = vsel %vm4386, %v4384, %v4362
    %v4388 = vsel %vm4386, %v4385, %v4366
    %4391 = vrot.lane.b32.xlu0 %v4387, 32
    %v4392 = vpop.permute.xlu0 %4391
    %4393 = vrot.lane.b32.xlu0 %v4388, 32
    %v4394 = vpop.permute.xlu0 %4393
    %v4395 = vsel %vm394, %v4392, 0
    %v4397 = vsel %vm394, %v4394, 0
    %4399 = vmatprep.subr.mxu0 0.0
    %4400 = vmatpush1.msra.mxu0 0.0
    %4401 = vmatprep.subr.mxu0 0.0
    %4402 = vmatpush1.msra.mxu0 0.0
    %4403 = vmatprep.subr.mxu0 0.0
    %4404 = vmatpush1.msra.mxu0 0.0
    %4405 = vmatprep.subr.mxu0 0.0
    %4406 = vmatpush1.msra.mxu0 0.0
    %4407 = vmatprep.subr.mxu0 0.0
    %4408 = vmatpush1.msra.mxu0 0.0
    %4409 = vmatprep.subr.mxu0 0.0
    %4410 = vmatpush1.msra.mxu0 0.0
    %4411 = vmatprep.subr.mxu0 0.0
    %4412 = vmatpush1.msra.mxu0 0.0
    %4413 = vmatprep.subr.mxu0 0.0
    %4414 = vmatpush1.msra.mxu0 0.0
    %4415 = vmatprep.subr.mxu0 0.0
    %4416 = vmatpush1.msra.mxu0 0.0
    %4417 = vmatprep.subr.mxu0 0.0
    %4418 = vmatpush1.msra.mxu0 0.0
    %4419 = vmatprep.subr.mxu0 0.0
    %4420 = vmatpush1.msra.mxu0 0.0
    %4421 = vmatprep.subr.mxu0 0.0
    %4422 = vmatpush1.msra.mxu0 0.0
    %4423 = vmatprep.subr.mxu0 0.0
    %4424 = vmatpush1.msra.mxu0 %v229
    %4425 = vmatprep.subr.mxu0 0.0
    %4426 = vmatpush1.msra.mxu0 %v228
    %4427 = vmatprep.subr.mxu0 0.0
    %4428 = vmatpush1.msra.mxu0 %v227
    %4429 = vmatprep.subr.mxu0 0.0
    %4430 = vmatpush1.msra.mxu0 %v226
    %4431 = vmatprep.subr.mxu0 0.0
    %4432 = vmatpush2.msra.mxu0 0.0
    %4433 = vmatprep.subr.mxu0 0.0
    %4434 = vmatpush2.msra.mxu0 0.0
    %4435 = vmatprep.subr.mxu0 0.0
    %4436 = vmatpush2.msra.mxu0 0.0
    %4437 = vmatprep.subr.mxu0 0.0
    %4438 = vmatpush2.msra.mxu0 0.0
    %4439 = vmatprep.subr.mxu0 0.0
    %4440 = vmatpush2.msra.mxu0 0.0
    %4441 = vmatprep.subr.mxu0 0.0
    %4442 = vmatpush2.msra.mxu0 0.0
    %4443 = vmatprep.subr.mxu0 0.0
    %4444 = vmatpush2.msra.mxu0 0.0
    %4445 = vmatprep.subr.mxu0 0.0
    %4446 = vmatpush2.msra.mxu0 0.0
    %4447 = vmatprep.subr.mxu0 0.0
    %4448 = vmatpush2.msra.mxu0 0.0
    %4449 = vmatprep.subr.mxu0 0.0
    %4450 = vmatpush2.msra.mxu0 0.0
    %4451 = vmatprep.subr.mxu0 0.0
    %4452 = vmatpush2.msra.mxu0 0.0
    %4453 = vmatprep.subr.mxu0 0.0
    %4454 = vmatpush2.msra.mxu0 0.0
    %4455 = vmatprep.subr.mxu0 0.0
    %4456 = vmatpush2.msra.mxu0 0.0
    %4457 = vmatprep.subr.mxu0 0.0
    %4458 = vmatpush2.msra.mxu0 0.0
    %4459 = vmatprep.subr.mxu0 0.0
    %4460 = vmatpush2.msra.mxu0 0.0
    %4461 = vmatprep.subr.mxu0 0.0
    %4462 = vmatpush2.msra.mxu0 0.0
    %4463 = vmatprep.mubr.f32.mxu0 0.0
    %4464 = vmatmul.mubr.f32.gmra.mxu0 %v4395
    %v4465 = vpop.f32.mrf.mxu0
    %v4466 = vadd.f32 0.0, %v4465
    %v4467 = vpop.f32.mrf.mxu0
    %4468 = vmatprep.mubr.f32.mxu0 0.0
    %4469 = vmatmul.mubr.f32.gmra.mxu0 %v4397
    %v4470 = vpop.f32.mrf.mxu0
    %v4471 = vadd.f32 0.0, %v4470
    %v4472 = vpop.f32.mrf.mxu0
    %4473 = vdwg.mxu0
    %4474 = vmatprep.subr.mxu0 0.0
    %4475 = vmatpush1.msra.mxu0 0.0
    %4476 = vmatprep.subr.mxu0 0.0
    %4477 = vmatpush1.msra.mxu0 0.0
    %4478 = vmatprep.subr.mxu0 0.0
    %4479 = vmatpush1.msra.mxu0 0.0
    %4480 = vmatprep.subr.mxu0 0.0
    %4481 = vmatpush1.msra.mxu0 0.0
    %4482 = vmatprep.subr.mxu0 0.0
    %4483 = vmatpush1.msra.mxu0 0.0
    %4484 = vmatprep.subr.mxu0 0.0
    %4485 = vmatpush1.msra.mxu0 0.0
    %4486 = vmatprep.subr.mxu0 0.0
    %4487 = vmatpush1.msra.mxu0 0.0
    %4488 = vmatprep.subr.mxu0 0.0
    %4489 = vmatpush1.msra.mxu0 0.0
    %4490 = vmatprep.subr.mxu0 0.0
    %4491 = vmatpush1.msra.mxu0 0.0
    %4492 = vmatprep.subr.mxu0 0.0
    %4493 = vmatpush1.msra.mxu0 0.0
    %4494 = vmatprep.subr.mxu0 0.0
    %4495 = vmatpush1.msra.mxu0 0.0
    %4496 = vmatprep.subr.mxu0 0.0
    %4497 = vmatpush1.msra.mxu0 0.0
    %4498 = vmatprep.subr.mxu0 0.0
    %4499 = vmatpush1.msra.mxu0 %v225
    %4500 = vmatprep.subr.mxu0 0.0
    %4501 = vmatpush1.msra.mxu0 %v224
    %4502 = vmatprep.subr.mxu0 0.0
    %4503 = vmatpush1.msra.mxu0 %v223
    %4504 = vmatprep.subr.mxu0 0.0
    %4505 = vmatpush1.msra.mxu0 %v222
    %4506 = vmatprep.subr.mxu0 0.0
    %4507 = vmatpush2.msra.mxu0 0.0
    %4508 = vmatprep.subr.mxu0 0.0
    %4509 = vmatpush2.msra.mxu0 0.0
    %4510 = vmatprep.subr.mxu0 0.0
    %4511 = vmatpush2.msra.mxu0 0.0
    %4512 = vmatprep.subr.mxu0 0.0
    %4513 = vmatpush2.msra.mxu0 0.0
    %4514 = vmatprep.subr.mxu0 0.0
    %4515 = vmatpush2.msra.mxu0 0.0
    %4516 = vmatprep.subr.mxu0 0.0
    %4517 = vmatpush2.msra.mxu0 0.0
    %4518 = vmatprep.subr.mxu0 0.0
    %4519 = vmatpush2.msra.mxu0 0.0
    %4520 = vmatprep.subr.mxu0 0.0
    %4521 = vmatpush2.msra.mxu0 0.0
    %4522 = vmatprep.subr.mxu0 0.0
    %4523 = vmatpush2.msra.mxu0 0.0
    %4524 = vmatprep.subr.mxu0 0.0
    %4525 = vmatpush2.msra.mxu0 0.0
    %4526 = vmatprep.subr.mxu0 0.0
    %4527 = vmatpush2.msra.mxu0 0.0
    %4528 = vmatprep.subr.mxu0 0.0
    %4529 = vmatpush2.msra.mxu0 0.0
    %4530 = vmatprep.subr.mxu0 0.0
    %4531 = vmatpush2.msra.mxu0 0.0
    %4532 = vmatprep.subr.mxu0 0.0
    %4533 = vmatpush2.msra.mxu0 0.0
    %4534 = vmatprep.subr.mxu0 0.0
    %4535 = vmatpush2.msra.mxu0 0.0
    %4536 = vmatprep.subr.mxu0 0.0
    %4537 = vmatpush2.msra.mxu0 0.0
    %4538 = vmatprep.mubr.f32.mxu0 0.0
    %4539 = vmatmul.mubr.f32.gmra.mxu0 %v396
    %v4540 = vpop.f32.mrf.mxu0
    %v4541 = vadd.f32 0.0, %v4540
    %v4542 = vpop.f32.mrf.mxu0
    %4543 = vdwg.mxu0
    %4544 = vmatprep.subr.mxu0 0.0
    %4545 = vmatpush1.msra.mxu0 0.0
    %4546 = vmatprep.subr.mxu0 0.0
    %4547 = vmatpush1.msra.mxu0 0.0
    %4548 = vmatprep.subr.mxu0 0.0
    %4549 = vmatpush1.msra.mxu0 0.0
    %4550 = vmatprep.subr.mxu0 0.0
    %4551 = vmatpush1.msra.mxu0 0.0
    %4552 = vmatprep.subr.mxu0 0.0
    %4553 = vmatpush1.msra.mxu0 0.0
    %4554 = vmatprep.subr.mxu0 0.0
    %4555 = vmatpush1.msra.mxu0 0.0
    %4556 = vmatprep.subr.mxu0 0.0
    %4557 = vmatpush1.msra.mxu0 0.0
    %4558 = vmatprep.subr.mxu0 0.0
    %4559 = vmatpush1.msra.mxu0 0.0
    %4560 = vmatprep.subr.mxu0 0.0
    %4561 = vmatpush1.msra.mxu0 0.0
    %4562 = vmatprep.subr.mxu0 0.0
    %4563 = vmatpush1.msra.mxu0 0.0
    %4564 = vmatprep.subr.mxu0 0.0
    %4565 = vmatpush1.msra.mxu0 0.0
    %4566 = vmatprep.subr.mxu0 0.0
    %4567 = vmatpush1.msra.mxu0 0.0
    %4568 = vmatprep.subr.mxu0 0.0
    %4569 = vmatpush1.msra.mxu0 %v221
    %4570 = vmatprep.subr.mxu0 0.0
    %4571 = vmatpush1.msra.mxu0 %v220
    %4572 = vmatprep.subr.mxu0 0.0
    %4573 = vmatpush1.msra.mxu0 %v219
    %4574 = vmatprep.subr.mxu0 0.0
    %4575 = vmatpush1.msra.mxu0 %v218
    %4576 = vmatprep.subr.mxu0 0.0
    %4577 = vmatpush2.msra.mxu0 0.0
    %4578 = vmatprep.subr.mxu0 0.0
    %4579 = vmatpush2.msra.mxu0 0.0
    %4580 = vmatprep.subr.mxu0 0.0
    %4581 = vmatpush2.msra.mxu0 0.0
    %4582 = vmatprep.subr.mxu0 0.0
    %4583 = vmatpush2.msra.mxu0 0.0
    %4584 = vmatprep.subr.mxu0 0.0
    %4585 = vmatpush2.msra.mxu0 0.0
    %4586 = vmatprep.subr.mxu0 0.0
    %4587 = vmatpush2.msra.mxu0 0.0
    %4588 = vmatprep.subr.mxu0 0.0
    %4589 = vmatpush2.msra.mxu0 0.0
    %4590 = vmatprep.subr.mxu0 0.0
    %4591 = vmatpush2.msra.mxu0 0.0
    %4592 = vmatprep.subr.mxu0 0.0
    %4593 = vmatpush2.msra.mxu0 0.0
    %4594 = vmatprep.subr.mxu0 0.0
    %4595 = vmatpush2.msra.mxu0 0.0
    %4596 = vmatprep.subr.mxu0 0.0
    %4597 = vmatpush2.msra.mxu0 0.0
    %4598 = vmatprep.subr.mxu0 0.0
    %4599 = vmatpush2.msra.mxu0 0.0
    %4600 = vmatprep.subr.mxu0 0.0
    %4601 = vmatpush2.msra.mxu0 0.0
    %4602 = vmatprep.subr.mxu0 0.0
    %4603 = vmatpush2.msra.mxu0 0.0
    %4604 = vmatprep.subr.mxu0 0.0
    %4605 = vmatpush2.msra.mxu0 0.0
    %4606 = vmatprep.subr.mxu0 0.0
    %4607 = vmatpush2.msra.mxu0 0.0
    %4608 = vmatprep.mubr.f32.mxu0 0.0
    %4609 = vmatmul.mubr.f32.gmra.mxu0 %v396
    %v4610 = vpop.f32.mrf.mxu0
    %v4611 = vadd.f32 %v4541, %v4610
    %v4612 = vpop.f32.mrf.mxu0
    %4613 = vdwg.mxu0
    %v4614 = vadd.f32 %v4611, %v271
    %v4617 = vunpack.c.l.s4 1966171168
    %v4618 = vunpack.c.0.s8 %v4617
    %v4619 = vlaneseq
    %v4620 = vshrl.u32 %v4619, 7
    %v4621 = vsub.s32 %v4618, %v4620
    %v4622 = vrot.slane %v4614, %v4621
    %v4623 = vcombine.high %v4622, %v4622
    %v4625 = vunpack.c.l.s4 1966171168
    %v4626 = vunpack.c.0.s8 %v4625
    %v4627 = vlaneseq
    %v4628 = vshrl.u32 %v4627, 7
    %v4629 = vsub.s32 %v4626, %v4628
    %v4630 = vrot.slane %v4622, %v4629
    %v4632 = vunpack.c.l.s4 1966171168
    %v4633 = vunpack.c.0.s8 %v4632
    %v4634 = vlaneseq
    %v4635 = vshrl.u32 %v4634, 7
    %v4636 = vsub.s32 %v4633, %v4635
    %v4637 = vrot.slane %v4623, %v4636
    %v4638 = vlaneseq
    %v4639 = vshrl.u32 %v4638, 7
    %v4640 = vsub.s32 0, %v4639
    %v4641 = vrot.slane %v4630, %v4640
    %v4642 = vlaneseq
    %v4643 = vshrl.u32 %v4642, 7
    %v4644 = vsub.s32 0, %v4643
    %v4645 = vrot.slane %v4637, %v4644
    %v4648 = vadd.f32 %v4641, %v4466
    %v4649 = vadd.f32 %v4645, %v4471
    %v4650 = vtanh.pop %v4648
    %v4651 = vtanh.pop %v4649
    %v4652 = vmul.f32 %v4650, %v313
    %v4653 = vmul.f32 %v4651, %v313
    %v4654 = vsel %vm394, %v4652, 0.0
    %4655 = vadd.xlane.f32.xlu0 %v4654
    %v4656 = vpop.xlane.xlu0 %4655
    %v4657 = vsel %vm394, %v4653, 0.0
    %4658 = vadd.xlane.f32.xlu0 %v4657
    %v4659 = vpop.xlane.xlu0 %4658
    %v4662 = vlaneseq
    %v4663 = vshrl.u32 %v4662, 7
    %v4664 = vsub.s32 %v588, %v4663
    %v4665 = vrot.slane %v4656, %v4664
    %v4666 = vlaneseq
    %v4667 = vshrl.u32 %v4666, 7
    %v4668 = vsub.s32 %v588, %v4667
    %v4669 = vrot.slane %v4659, %v4668
    %v4670 = vsel %vm597, %v4669, %v4665
    %vm4672 = vcmask 58368
    %v4673 = vsel %vm4672, %v4670, -inf
    %4674 = vmax.xlane.f32.xlu0 %v4673
    %v4675 = vpop.xlane.xlu0 %4674
    %v4677 = vlaneseq
    %v4678 = vshrl.u32 %v4677, 7
    %v4679 = vsub.s32 0, %v4678
    %v4680 = vrot.slane %v4675, %v4679
    %v4681 = vlaneseq
    %v4682 = vshrl.u32 %v4681, 7
    %v4683 = vsub.s32 1, %v4682
    %v4684 = vrot.slane %v4675, %v4683
    %v4687 = vsub.f32 %v4656, %v4680
    %v4688 = vsub.f32 %v4659, %v4684
    %v4689 = vmul.f32 %v4687, 1.442695
    %v4690 = vpow.pop %v4689
    %v4691 = vmul.f32 %v4688, 1.442695
    %v4692 = vpow.pop %v4691
    %4695 = vset.pattern.permute.xlu0 0
    %4696 = vperm.xlu0 %4695, %v4690
    %v4697 = vpop.permute.xlu0 %4696
    %4698 = vset.pattern.permute.xlu0 0
    %4699 = vperm.xlu0 %4698, %v4692
    %v4700 = vpop.permute.xlu0 %4699
    %v4701 = vlaneseq
    %v4702 = vshrl.u32 %v4701, 7
    %v4703 = vsub.s32 %v588, %v4702
    %v4704 = vrot.slane %v4697, %v4703
    %v4705 = vlaneseq
    %v4706 = vshrl.u32 %v4705, 7
    %v4707 = vsub.s32 %v588, %v4706
    %v4708 = vrot.slane %v4700, %v4707
    %v4709 = vsel %vm597, %v4708, %v4704
    %v4711 = vsel %vm4672, %v4709, 0.0
    %4712 = vadd.xlane.f32.xlu0 %v4711
    %v4713 = vpop.xlane.xlu0 %4712
    %v4714 = vrcp.pop %v4713
    %v4716 = vlaneseq
    %v4717 = vshrl.u32 %v4716, 7
    %v4718 = vsub.s32 0, %v4717
    %v4719 = vrot.slane %v4714, %v4718
    %v4720 = vlaneseq
    %v4721 = vshrl.u32 %v4720, 7
    %v4722 = vsub.s32 1, %v4721
    %v4723 = vrot.slane %v4714, %v4722
    %v4726 = vmul.f32 %v4690, %v4719
    %v4727 = vmul.f32 %v4692, %v4723
    %4729 = vset.pattern.permute.xlu0 0
    %4730 = vperm.xlu0 %4729, %v4726
    %v4731 = vpop.permute.xlu0 %4730
    %4734 = vset.pattern.permute.xlu0 0
    %4735 = vperm.xlu0 %4734, %v4727
    %v4736 = vpop.permute.xlu0 %4735
    %v4738 = vmul.f32 %v4731, %v4387
    %v4739 = vmul.f32 %v4736, %v4388
    %vm4740 = vcmask 1048320
    %v4741 = vsel %vm4740, %v4738, 0.0
    %v4742 = vrot.slane %v4741, 4
    %v4743 = vadd.f32 %v4741, %v4742
    %v4744 = vrot.slane %v4743, 2
    %v4745 = vadd.f32 %v4743, %v4744
    %v4746 = vrot.slane %v4745, 1
    %v4747 = vadd.f32 %v4745, %v4746
    %v4748 = vsel %vm4740, %v4739, 0.0
    %v4749 = vrot.slane %v4748, 4
    %v4750 = vadd.f32 %v4748, %v4749
    %v4751 = vrot.slane %v4750, 2
    %v4752 = vadd.f32 %v4750, %v4751
    %v4753 = vrot.slane %v4752, 1
    %v4754 = vadd.f32 %v4752, %v4753
    %v4756 = vlaneseq
    %v4757 = vshrl.u32 %v4756, 7
    %v4758 = vsub.s32 0, %v4757
    %v4759 = vrot.slane %v234, %v4758
    %v4761 = vmul.f32 %v202, %v4759
    %v4762 = vmul.f32 %v203, %v4759
    %v4765 = vsel %vm597, %v4754, %v4747
    %4766 = vrot.lane.b32.xlu0 %v4765, 32
    %v4767 = vpop.permute.xlu0 %4766
    %v4770 = vrot.slane %v4762, 7
    %v4771 = vsel %vm597, %v4770, %v4761
    %v4773 = vsel %vm394, %v4767, 0
    %4775 = vmatprep.subr.mxu0 0.0
    %4776 = vmatpush1.msra.mxu0 0.0
    %4777 = vmatprep.subr.mxu0 0.0
    %4778 = vmatpush1.msra.mxu0 0.0
    %4779 = vmatprep.subr.mxu0 0.0
    %4780 = vmatpush1.msra.mxu0 0.0
    %4781 = vmatprep.subr.mxu0 0.0
    %4782 = vmatpush1.msra.mxu0 0.0
    %4783 = vmatprep.subr.mxu0 0.0
    %4784 = vmatpush1.msra.mxu0 0.0
    %4785 = vmatprep.subr.mxu0 0.0
    %4786 = vmatpush1.msra.mxu0 0.0
    %4787 = vmatprep.subr.mxu0 0.0
    %4788 = vmatpush1.msra.mxu0 0.0
    %4789 = vmatprep.subr.mxu0 0.0
    %4790 = vmatpush1.msra.mxu0 0.0
    %4791 = vmatprep.subr.mxu0 0.0
    %4792 = vmatpush1.msra.mxu0 0.0
    %4793 = vmatprep.subr.mxu0 0.0
    %4794 = vmatpush1.msra.mxu0 0.0
    %4795 = vmatprep.subr.mxu0 0.0
    %4796 = vmatpush1.msra.mxu0 0.0
    %4797 = vmatprep.subr.mxu0 0.0
    %4798 = vmatpush1.msra.mxu0 0.0
    %4799 = vmatprep.subr.mxu0 0.0
    %4800 = vmatpush1.msra.mxu0 %v233
    %4801 = vmatprep.subr.mxu0 0.0
    %4802 = vmatpush1.msra.mxu0 %v232
    %4803 = vmatprep.subr.mxu0 0.0
    %4804 = vmatpush1.msra.mxu0 %v231
    %4805 = vmatprep.subr.mxu0 0.0
    %4806 = vmatpush1.msra.mxu0 %v230
    %4807 = vmatprep.subr.mxu0 0.0
    %4808 = vmatpush2.msra.mxu0 0.0
    %4809 = vmatprep.subr.mxu0 0.0
    %4810 = vmatpush2.msra.mxu0 0.0
    %4811 = vmatprep.subr.mxu0 0.0
    %4812 = vmatpush2.msra.mxu0 0.0
    %4813 = vmatprep.subr.mxu0 0.0
    %4814 = vmatpush2.msra.mxu0 0.0
    %4815 = vmatprep.subr.mxu0 0.0
    %4816 = vmatpush2.msra.mxu0 0.0
    %4817 = vmatprep.subr.mxu0 0.0
    %4818 = vmatpush2.msra.mxu0 0.0
    %4819 = vmatprep.subr.mxu0 0.0
    %4820 = vmatpush2.msra.mxu0 0.0
    %4821 = vmatprep.subr.mxu0 0.0
    %4822 = vmatpush2.msra.mxu0 0.0
    %4823 = vmatprep.subr.mxu0 0.0
    %4824 = vmatpush2.msra.mxu0 0.0
    %4825 = vmatprep.subr.mxu0 0.0
    %4826 = vmatpush2.msra.mxu0 0.0
    %4827 = vmatprep.subr.mxu0 0.0
    %4828 = vmatpush2.msra.mxu0 0.0
    %4829 = vmatprep.subr.mxu0 0.0
    %4830 = vmatpush2.msra.mxu0 0.0
    %4831 = vmatprep.subr.mxu0 0.0
    %4832 = vmatpush2.msra.mxu0 0.0
    %4833 = vmatprep.subr.mxu0 0.0
    %4834 = vmatpush2.msra.mxu0 0.0
    %4835 = vmatprep.subr.mxu0 0.0
    %4836 = vmatpush2.msra.mxu0 0.0
    %4837 = vmatprep.subr.mxu0 0.0
    %4838 = vmatpush2.msra.mxu0 0.0
    %4839 = vmatprep.mubr.f32.mxu0 0.0
    %4840 = vmatmul.mubr.f32.gmra.mxu0 %v4773
    %v4841 = vpop.f32.mrf.mxu0
    %v4842 = vadd.f32 %v4771, %v4841
    %v4843 = vpop.f32.mrf.mxu0
    %4844 = vdwg.mxu0
    %v4845 = vadd.f32 %v4842, %v278
    %4847 = vset.pattern.permute.xlu0 0
    %4848 = vperm.xlu0 %4847, %v4845
    %v4849 = vpop.permute.xlu0 %4848
    %v4852 = vlaneseq
    %v4853 = vshrl.u32 %v4852, 7
    %v4854 = vsub.s32 0, %v4853
    %v4855 = vrot.slane %v235, %v4854
    %v4857 = vmul.f32 %v4849, %v4855
    %4858 = vmatprep.subr.mxu0 0.0
    %4859 = vmatpush1.msra.mxu0 0.0
    %4860 = vmatprep.subr.mxu0 0.0
    %4861 = vmatpush1.msra.mxu0 0.0
    %4862 = vmatprep.subr.mxu0 0.0
    %4863 = vmatpush1.msra.mxu0 0.0
    %4864 = vmatprep.subr.mxu0 0.0
    %4865 = vmatpush1.msra.mxu0 0.0
    %4866 = vmatprep.subr.mxu0 0.0
    %4867 = vmatpush1.msra.mxu0 0.0
    %4868 = vmatprep.subr.mxu0 0.0
    %4869 = vmatpush1.msra.mxu0 0.0
    %4870 = vmatprep.subr.mxu0 0.0
    %4871 = vmatpush1.msra.mxu0 0.0
    %4872 = vmatprep.subr.mxu0 0.0
    %4873 = vmatpush1.msra.mxu0 0.0
    %4874 = vmatprep.subr.mxu0 0.0
    %4875 = vmatpush1.msra.mxu0 0.0
    %4876 = vmatprep.subr.mxu0 0.0
    %4877 = vmatpush1.msra.mxu0 0.0
    %4878 = vmatprep.subr.mxu0 0.0
    %4879 = vmatpush1.msra.mxu0 0.0
    %4880 = vmatprep.subr.mxu0 0.0
    %4881 = vmatpush1.msra.mxu0 0.0
    %4882 = vmatprep.subr.mxu0 0.0
    %4883 = vmatpush1.msra.mxu0 %v239
    %4884 = vmatprep.subr.mxu0 0.0
    %4885 = vmatpush1.msra.mxu0 %v238
    %4886 = vmatprep.subr.mxu0 0.0
    %4887 = vmatpush1.msra.mxu0 %v237
    %4888 = vmatprep.subr.mxu0 0.0
    %4889 = vmatpush1.msra.mxu0 %v236
    %4890 = vmatprep.subr.mxu0 0.0
    %4891 = vmatpush2.msra.mxu0 0.0
    %4892 = vmatprep.subr.mxu0 0.0
    %4893 = vmatpush2.msra.mxu0 0.0
    %4894 = vmatprep.subr.mxu0 0.0
    %4895 = vmatpush2.msra.mxu0 0.0
    %4896 = vmatprep.subr.mxu0 0.0
    %4897 = vmatpush2.msra.mxu0 0.0
    %4898 = vmatprep.subr.mxu0 0.0
    %4899 = vmatpush2.msra.mxu0 0.0
    %4900 = vmatprep.subr.mxu0 0.0
    %4901 = vmatpush2.msra.mxu0 0.0
    %4902 = vmatprep.subr.mxu0 0.0
    %4903 = vmatpush2.msra.mxu0 0.0
    %4904 = vmatprep.subr.mxu0 0.0
    %4905 = vmatpush2.msra.mxu0 0.0
    %4906 = vmatprep.subr.mxu0 0.0
    %4907 = vmatpush2.msra.mxu0 0.0
    %4908 = vmatprep.subr.mxu0 0.0
    %4909 = vmatpush2.msra.mxu0 0.0
    %4910 = vmatprep.subr.mxu0 0.0
    %4911 = vmatpush2.msra.mxu0 0.0
    %4912 = vmatprep.subr.mxu0 0.0
    %4913 = vmatpush2.msra.mxu0 0.0
    %4914 = vmatprep.subr.mxu0 0.0
    %4915 = vmatpush2.msra.mxu0 0.0
    %4916 = vmatprep.subr.mxu0 0.0
    %4917 = vmatpush2.msra.mxu0 0.0
    %4918 = vmatprep.subr.mxu0 0.0
    %4919 = vmatpush2.msra.mxu0 0.0
    %4920 = vmatprep.subr.mxu0 0.0
    %4921 = vmatpush2.msra.mxu0 0.0
    %4922 = vmatprep.mubr.f32.mxu0 0.0
    %4923 = vmatmul.mubr.f32.gmra.mxu0 %v396
    %v4924 = vpop.f32.mrf.mxu0
    %v4925 = vadd.f32 0.0, %v4924
    %v4926 = vpop.f32.mrf.mxu0
    %4927 = vdwg.mxu0
    %v4928 = vadd.f32 %v4857, %v4925
    %v4929 = vadd.f32 %v4928, %v285
    %v4930 = vxor.u32 %v4929, 2147483648
    %v4931 = vmul.f32 %v4930, 1.442695
    %v4932 = vpow.pop %v4931
    %v4933 = vadd.f32 %v4932, 1.0
    %v4934 = vrcp.pop %v4933
    %v4935 = vmul.f32 1.0, %v4934
    %v4936 = vtanh.pop %v4929
    %v4937 = vmul.f32 %v4935, 0.0
    %4939 = vrot.lane.b32.xlu0 %v4936, 64
    %v4940 = vpop.permute.xlu0 %4939
    %v4942 = vmul.f32 %v4935, %v4940
    %4944 = vrot.lane.b32.xlu0 %v4942, 32
    %v4945 = vpop.permute.xlu0 %4944
    %v4947 = vadd.f32 %v4937, %v4945
    %v4948 = vtanh.pop %v4947
    %4950 = vrot.lane.b32.xlu0 %v4948, 64
    %v4951 = vpop.permute.xlu0 %4950
    %v4953 = vmul.f32 %v4935, %v4951
    %4955 = vrot.lane.b32.xlu0 %v4947, 96
    %v4956 = vpop.permute.xlu0 %4955
    %v4957 = vsel %vm394, %v4956, 0
    %4959 = vmatprep.subr.mxu0 0.0
    %4960 = vmatpush1.msra.mxu0 0.0
    %4961 = vmatprep.subr.mxu0 0.0
    %4962 = vmatpush1.msra.mxu0 0.0
    %4963 = vmatprep.subr.mxu0 0.0
    %4964 = vmatpush1.msra.mxu0 0.0
    %4965 = vmatprep.subr.mxu0 0.0
    %4966 = vmatpush1.msra.mxu0 0.0
    %4967 = vmatprep.subr.mxu0 0.0
    %4968 = vmatpush1.msra.mxu0 0.0
    %4969 = vmatprep.subr.mxu0 0.0
    %4970 = vmatpush1.msra.mxu0 0.0
    %4971 = vmatprep.subr.mxu0 0.0
    %4972 = vmatpush1.msra.mxu0 0.0
    %4973 = vmatprep.subr.mxu0 0.0
    %4974 = vmatpush1.msra.mxu0 0.0
    %4975 = vmatprep.subr.mxu0 0.0
    %4976 = vmatpush1.msra.mxu0 0.0
    %4977 = vmatprep.subr.mxu0 0.0
    %4978 = vmatpush1.msra.mxu0 0.0
    %4979 = vmatprep.subr.mxu0 0.0
    %4980 = vmatpush1.msra.mxu0 0.0
    %4981 = vmatprep.subr.mxu0 0.0
    %4982 = vmatpush1.msra.mxu0 0.0
    %4983 = vmatprep.subr.mxu0 0.0
    %4984 = vmatpush1.msra.mxu0 %v225
    %4985 = vmatprep.subr.mxu0 0.0
    %4986 = vmatpush1.msra.mxu0 %v224
    %4987 = vmatprep.subr.mxu0 0.0
    %4988 = vmatpush1.msra.mxu0 %v223
    %4989 = vmatprep.subr.mxu0 0.0
    %4990 = vmatpush1.msra.mxu0 %v222
    %4991 = vmatprep.subr.mxu0 0.0
    %4992 = vmatpush2.msra.mxu0 0.0
    %4993 = vmatprep.subr.mxu0 0.0
    %4994 = vmatpush2.msra.mxu0 0.0
    %4995 = vmatprep.subr.mxu0 0.0
    %4996 = vmatpush2.msra.mxu0 0.0
    %4997 = vmatprep.subr.mxu0 0.0
    %4998 = vmatpush2.msra.mxu0 0.0
    %4999 = vmatprep.subr.mxu0 0.0
    %5000 = vmatpush2.msra.mxu0 0.0
    %5001 = vmatprep.subr.mxu0 0.0
    %5002 = vmatpush2.msra.mxu0 0.0
    %5003 = vmatprep.subr.mxu0 0.0
    %5004 = vmatpush2.msra.mxu0 0.0
    %5005 = vmatprep.subr.mxu0 0.0
    %5006 = vmatpush2.msra.mxu0 0.0
    %5007 = vmatprep.subr.mxu0 0.0
    %5008 = vmatpush2.msra.mxu0 0.0
    %5009 = vmatprep.subr.mxu0 0.0
    %5010 = vmatpush2.msra.mxu0 0.0
    %5011 = vmatprep.subr.mxu0 0.0
    %5012 = vmatpush2.msra.mxu0 0.0
    %5013 = vmatprep.subr.mxu0 0.0
    %5014 = vmatpush2.msra.mxu0 0.0
    %5015 = vmatprep.subr.mxu0 0.0
    %5016 = vmatpush2.msra.mxu0 0.0
    %5017 = vmatprep.subr.mxu0 0.0
    %5018 = vmatpush2.msra.mxu0 0.0
    %5019 = vmatprep.subr.mxu0 0.0
    %5020 = vmatpush2.msra.mxu0 0.0
    %5021 = vmatprep.subr.mxu0 0.0
    %5022 = vmatpush2.msra.mxu0 0.0
    %5023 = vmatprep.mubr.f32.mxu0 0.0
    %5024 = vmatmul.mubr.f32.gmra.mxu0 %v4957
    %v5025 = vpop.f32.mrf.mxu0
    %v5026 = vadd.f32 0.0, %v5025
    %v5027 = vpop.f32.mrf.mxu0
    %5028 = vdwg.mxu0
    %5030 = vrot.lane.b32.xlu0 %v4953, 32
    %v5031 = vpop.permute.xlu0 %5030
    %v5032 = vsel %vm394, %v5031, 0
    %5034 = vmatprep.subr.mxu0 0.0
    %5035 = vmatpush1.msra.mxu0 0.0
    %5036 = vmatprep.subr.mxu0 0.0
    %5037 = vmatpush1.msra.mxu0 0.0
    %5038 = vmatprep.subr.mxu0 0.0
    %5039 = vmatpush1.msra.mxu0 0.0
    %5040 = vmatprep.subr.mxu0 0.0
    %5041 = vmatpush1.msra.mxu0 0.0
    %5042 = vmatprep.subr.mxu0 0.0
    %5043 = vmatpush1.msra.mxu0 0.0
    %5044 = vmatprep.subr.mxu0 0.0
    %5045 = vmatpush1.msra.mxu0 0.0
    %5046 = vmatprep.subr.mxu0 0.0
    %5047 = vmatpush1.msra.mxu0 0.0
    %5048 = vmatprep.subr.mxu0 0.0
    %5049 = vmatpush1.msra.mxu0 0.0
    %5050 = vmatprep.subr.mxu0 0.0
    %5051 = vmatpush1.msra.mxu0 0.0
    %5052 = vmatprep.subr.mxu0 0.0
    %5053 = vmatpush1.msra.mxu0 0.0
    %5054 = vmatprep.subr.mxu0 0.0
    %5055 = vmatpush1.msra.mxu0 0.0
    %5056 = vmatprep.subr.mxu0 0.0
    %5057 = vmatpush1.msra.mxu0 0.0
    %5058 = vmatprep.subr.mxu0 0.0
    %5059 = vmatpush1.msra.mxu0 %v221
    %5060 = vmatprep.subr.mxu0 0.0
    %5061 = vmatpush1.msra.mxu0 %v220
    %5062 = vmatprep.subr.mxu0 0.0
    %5063 = vmatpush1.msra.mxu0 %v219
    %5064 = vmatprep.subr.mxu0 0.0
    %5065 = vmatpush1.msra.mxu0 %v218
    %5066 = vmatprep.subr.mxu0 0.0
    %5067 = vmatpush2.msra.mxu0 0.0
    %5068 = vmatprep.subr.mxu0 0.0
    %5069 = vmatpush2.msra.mxu0 0.0
    %5070 = vmatprep.subr.mxu0 0.0
    %5071 = vmatpush2.msra.mxu0 0.0
    %5072 = vmatprep.subr.mxu0 0.0
    %5073 = vmatpush2.msra.mxu0 0.0
    %5074 = vmatprep.subr.mxu0 0.0
    %5075 = vmatpush2.msra.mxu0 0.0
    %5076 = vmatprep.subr.mxu0 0.0
    %5077 = vmatpush2.msra.mxu0 0.0
    %5078 = vmatprep.subr.mxu0 0.0
    %5079 = vmatpush2.msra.mxu0 0.0
    %5080 = vmatprep.subr.mxu0 0.0
    %5081 = vmatpush2.msra.mxu0 0.0
    %5082 = vmatprep.subr.mxu0 0.0
    %5083 = vmatpush2.msra.mxu0 0.0
    %5084 = vmatprep.subr.mxu0 0.0
    %5085 = vmatpush2.msra.mxu0 0.0
    %5086 = vmatprep.subr.mxu0 0.0
    %5087 = vmatpush2.msra.mxu0 0.0
    %5088 = vmatprep.subr.mxu0 0.0
    %5089 = vmatpush2.msra.mxu0 0.0
    %5090 = vmatprep.subr.mxu0 0.0
    %5091 = vmatpush2.msra.mxu0 0.0
    %5092 = vmatprep.subr.mxu0 0.0
    %5093 = vmatpush2.msra.mxu0 0.0
    %5094 = vmatprep.subr.mxu0 0.0
    %5095 = vmatpush2.msra.mxu0 0.0
    %5096 = vmatprep.subr.mxu0 0.0
    %5097 = vmatpush2.msra.mxu0 0.0
    %5098 = vmatprep.mubr.f32.mxu0 0.0
    %5099 = vmatmul.mubr.f32.gmra.mxu0 %v5032
    %v5100 = vpop.f32.mrf.mxu0
    %v5101 = vadd.f32 %v5026, %v5100
    %v5102 = vpop.f32.mrf.mxu0
    %5103 = vdwg.mxu0
    %v5104 = vadd.f32 %v5101, %v271
    %v5107 = vunpack.c.l.s4 1966171168
    %v5108 = vunpack.c.0.s8 %v5107
    %v5109 = vlaneseq
    %v5110 = vshrl.u32 %v5109, 7
    %v5111 = vsub.s32 %v5108, %v5110
    %v5112 = vrot.slane %v5104, %v5111
    %v5113 = vcombine.high %v5112, %v5112
    %v5115 = vunpack.c.l.s4 1966171168
    %v5116 = vunpack.c.0.s8 %v5115
    %v5117 = vlaneseq
    %v5118 = vshrl.u32 %v5117, 7
    %v5119 = vsub.s32 %v5116, %v5118
    %v5120 = vrot.slane %v5112, %v5119
    %v5122 = vunpack.c.l.s4 1966171168
    %v5123 = vunpack.c.0.s8 %v5122
    %v5124 = vlaneseq
    %v5125 = vshrl.u32 %v5124, 7
    %v5126 = vsub.s32 %v5123, %v5125
    %v5127 = vrot.slane %v5113, %v5126
    %v5128 = vlaneseq
    %v5129 = vshrl.u32 %v5128, 7
    %v5130 = vsub.s32 0, %v5129
    %v5131 = vrot.slane %v5120, %v5130
    %v5132 = vlaneseq
    %v5133 = vshrl.u32 %v5132, 7
    %v5134 = vsub.s32 0, %v5133
    %v5135 = vrot.slane %v5127, %v5134
    %v5138 = vadd.f32 %v5131, %v4466
    %v5139 = vadd.f32 %v5135, %v4471
    %v5140 = vtanh.pop %v5138
    %v5141 = vtanh.pop %v5139
    %v5142 = vmul.f32 %v5140, %v313
    %v5143 = vmul.f32 %v5141, %v313
    %v5144 = vsel %vm394, %v5142, 0.0
    %5145 = vadd.xlane.f32.xlu0 %v5144
    %v5146 = vpop.xlane.xlu0 %5145
    %v5147 = vsel %vm394, %v5143, 0.0
    %5148 = vadd.xlane.f32.xlu0 %v5147
    %v5149 = vpop.xlane.xlu0 %5148
    %v5152 = vlaneseq
    %v5153 = vshrl.u32 %v5152, 7
    %v5154 = vsub.s32 %v588, %v5153
    %v5155 = vrot.slane %v5146, %v5154
    %v5156 = vlaneseq
    %v5157 = vshrl.u32 %v5156, 7
    %v5158 = vsub.s32 %v588, %v5157
    %v5159 = vrot.slane %v5149, %v5158
    %v5160 = vsel %vm597, %v5159, %v5155
    %v5162 = vsel %vm4672, %v5160, -inf
    %5163 = vmax.xlane.f32.xlu0 %v5162
    %v5164 = vpop.xlane.xlu0 %5163
    %v5166 = vlaneseq
    %v5167 = vshrl.u32 %v5166, 7
    %v5168 = vsub.s32 0, %v5167
    %v5169 = vrot.slane %v5164, %v5168
    %v5170 = vlaneseq
    %v5171 = vshrl.u32 %v5170, 7
    %v5172 = vsub.s32 1, %v5171
    %v5173 = vrot.slane %v5164, %v5172
    %v5176 = vsub.f32 %v5146, %v5169
    %v5177 = vsub.f32 %v5149, %v5173
    %v5178 = vmul.f32 %v5176, 1.442695
    %v5179 = vpow.pop %v5178
    %v5180 = vmul.f32 %v5177, 1.442695
    %v5181 = vpow.pop %v5180
    %5184 = vset.pattern.permute.xlu0 0
    %5185 = vperm.xlu0 %5184, %v5179
    %v5186 = vpop.permute.xlu0 %5185
    %5187 = vset.pattern.permute.xlu0 0
    %5188 = vperm.xlu0 %5187, %v5181
    %v5189 = vpop.permute.xlu0 %5188
    %v5190 = vlaneseq
    %v5191 = vshrl.u32 %v5190, 7
    %v5192 = vsub.s32 %v588, %v5191
    %v5193 = vrot.slane %v5186, %v5192
    %v5194 = vlaneseq
    %v5195 = vshrl.u32 %v5194, 7
    %v5196 = vsub.s32 %v588, %v5195
    %v5197 = vrot.slane %v5189, %v5196
    %v5198 = vsel %vm597, %v5197, %v5193
    %v5200 = vsel %vm4672, %v5198, 0.0
    %5201 = vadd.xlane.f32.xlu0 %v5200
    %v5202 = vpop.xlane.xlu0 %5201
    %v5203 = vrcp.pop %v5202
    %v5205 = vlaneseq
    %v5206 = vshrl.u32 %v5205, 7
    %v5207 = vsub.s32 0, %v5206
    %v5208 = vrot.slane %v5203, %v5207
    %v5209 = vlaneseq
    %v5210 = vshrl.u32 %v5209, 7
    %v5211 = vsub.s32 1, %v5210
    %v5212 = vrot.slane %v5203, %v5211
    %v5215 = vmul.f32 %v5179, %v5208
    %v5216 = vmul.f32 %v5181, %v5212
    %5218 = vset.pattern.permute.xlu0 0
    %5219 = vperm.xlu0 %5218, %v5215
    %v5220 = vpop.permute.xlu0 %5219
    %5223 = vset.pattern.permute.xlu0 0
    %5224 = vperm.xlu0 %5223, %v5216
    %v5225 = vpop.permute.xlu0 %5224
    %v5227 = vmul.f32 %v5220, %v4387
    %v5228 = vmul.f32 %v5225, %v4388
    %v5229 = vsel %vm4740, %v5227, 0.0
    %v5230 = vrot.slane %v5229, 4
    %v5231 = vadd.f32 %v5229, %v5230
    %v5232 = vrot.slane %v5231, 2
    %v5233 = vadd.f32 %v5231, %v5232
    %v5234 = vrot.slane %v5233, 1
    %v5235 = vadd.f32 %v5233, %v5234
    %v5236 = vsel %vm4740, %v5228, 0.0
    %v5237 = vrot.slane %v5236, 4
    %v5238 = vadd.f32 %v5236, %v5237
    %v5239 = vrot.slane %v5238, 2
    %v5240 = vadd.f32 %v5238, %v5239
    %v5241 = vrot.slane %v5240, 1
    %v5242 = vadd.f32 %v5240, %v5241
    %v5245 = vsel %vm597, %v5242, %v5235
    %5246 = vrot.lane.b32.xlu0 %v5245, 32
    %v5247 = vpop.permute.xlu0 %5246
    %v5248 = vrot.slane %v4761, 1
    %v5249 = vsel %vm597, %v4762, %v5248
    %v5251 = vsel %vm394, %v5247, 0
    %5253 = vmatprep.subr.mxu0 0.0
    %5254 = vmatpush1.msra.mxu0 0.0
    %5255 = vmatprep.subr.mxu0 0.0
    %5256 = vmatpush1.msra.mxu0 0.0
    %5257 = vmatprep.subr.mxu0 0.0
    %5258 = vmatpush1.msra.mxu0 0.0
    %5259 = vmatprep.subr.mxu0 0.0
    %5260 = vmatpush1.msra.mxu0 0.0
    %5261 = vmatprep.subr.mxu0 0.0
    %5262 = vmatpush1.msra.mxu0 0.0
    %5263 = vmatprep.subr.mxu0 0.0
    %5264 = vmatpush1.msra.mxu0 0.0
    %5265 = vmatprep.subr.mxu0 0.0
    %5266 = vmatpush1.msra.mxu0 0.0
    %5267 = vmatprep.subr.mxu0 0.0
    %5268 = vmatpush1.msra.mxu0 0.0
    %5269 = vmatprep.subr.mxu0 0.0
    %5270 = vmatpush1.msra.mxu0 0.0
    %5271 = vmatprep.subr.mxu0 0.0
    %5272 = vmatpush1.msra.mxu0 0.0
    %5273 = vmatprep.subr.mxu0 0.0
    %5274 = vmatpush1.msra.mxu0 0.0
    %5275 = vmatprep.subr.mxu0 0.0
    %5276 = vmatpush1.msra.mxu0 0.0
    %5277 = vmatprep.subr.mxu0 0.0
    %5278 = vmatpush1.msra.mxu0 %v233
    %5279 = vmatprep.subr.mxu0 0.0
    %5280 = vmatpush1.msra.mxu0 %v232
    %5281 = vmatprep.subr.mxu0 0.0
    %5282 = vmatpush1.msra.mxu0 %v231
    %5283 = vmatprep.subr.mxu0 0.0
    %5284 = vmatpush1.msra.mxu0 %v230
    %5285 = vmatprep.subr.mxu0 0.0
    %5286 = vmatpush2.msra.mxu0 0.0
    %5287 = vmatprep.subr.mxu0 0.0
    %5288 = vmatpush2.msra.mxu0 0.0
    %5289 = vmatprep.subr.mxu0 0.0
    %5290 = vmatpush2.msra.mxu0 0.0
    %5291 = vmatprep.subr.mxu0 0.0
    %5292 = vmatpush2.msra.mxu0 0.0
    %5293 = vmatprep.subr.mxu0 0.0
    %5294 = vmatpush2.msra.mxu0 0.0
    %5295 = vmatprep.subr.mxu0 0.0
    %5296 = vmatpush2.msra.mxu0 0.0
    %5297 = vmatprep.subr.mxu0 0.0
    %5298 = vmatpush2.msra.mxu0 0.0
    %5299 = vmatprep.subr.mxu0 0.0
    %5300 = vmatpush2.msra.mxu0 0.0
    %5301 = vmatprep.subr.mxu0 0.0
    %5302 = vmatpush2.msra.mxu0 0.0
    %5303 = vmatprep.subr.mxu0 0.0
    %5304 = vmatpush2.msra.mxu0 0.0
    %5305 = vmatprep.subr.mxu0 0.0
    %5306 = vmatpush2.msra.mxu0 0.0
    %5307 = vmatprep.subr.mxu0 0.0
    %5308 = vmatpush2.msra.mxu0 0.0
    %5309 = vmatprep.subr.mxu0 0.0
    %5310 = vmatpush2.msra.mxu0 0.0
    %5311 = vmatprep.subr.mxu0 0.0
    %5312 = vmatpush2.msra.mxu0 0.0
    %5313 = vmatprep.subr.mxu0 0.0
    %5314 = vmatpush2.msra.mxu0 0.0
    %5315 = vmatprep.subr.mxu0 0.0
    %5316 = vmatpush2.msra.mxu0 0.0
    %5317 = vmatprep.mubr.f32.mxu0 0.0
    %5318 = vmatmul.mubr.f32.gmra.mxu0 %v5251
    %v5319 = vpop.f32.mrf.mxu0
    %v5320 = vadd.f32 %v5249, %v5319
    %v5321 = vpop.f32.mrf.mxu0
    %5322 = vdwg.mxu0
    %v5323 = vadd.f32 %v5320, %v278
    %5325 = vset.pattern.permute.xlu0 0
    %5326 = vperm.xlu0 %5325, %v5323
    %v5327 = vpop.permute.xlu0 %5326
    %v5329 = vmul.f32 %v5327, %v4855
    %5330 = vmatprep.subr.mxu0 0.0
    %5331 = vmatpush1.msra.mxu0 0.0
    %5332 = vmatprep.subr.mxu0 0.0
    %5333 = vmatpush1.msra.mxu0 0.0
    %5334 = vmatprep.subr.mxu0 0.0
    %5335 = vmatpush1.msra.mxu0 0.0
    %5336 = vmatprep.subr.mxu0 0.0
    %5337 = vmatpush1.msra.mxu0 0.0
    %5338 = vmatprep.subr.mxu0 0.0
    %5339 = vmatpush1.msra.mxu0 0.0
    %5340 = vmatprep.subr.mxu0 0.0
    %5341 = vmatpush1.msra.mxu0 0.0
    %5342 = vmatprep.subr.mxu0 0.0
    %5343 = vmatpush1.msra.mxu0 0.0
    %5344 = vmatprep.subr.mxu0 0.0
    %5345 = vmatpush1.msra.mxu0 0.0
    %5346 = vmatprep.subr.mxu0 0.0
    %5347 = vmatpush1.msra.mxu0 0.0
    %5348 = vmatprep.subr.mxu0 0.0
    %5349 = vmatpush1.msra.mxu0 0.0
    %5350 = vmatprep.subr.mxu0 0.0
    %5351 = vmatpush1.msra.mxu0 0.0
    %5352 = vmatprep.subr.mxu0 0.0
    %5353 = vmatpush1.msra.mxu0 0.0
    %5354 = vmatprep.subr.mxu0 0.0
    %5355 = vmatpush1.msra.mxu0 %v239
    %5356 = vmatprep.subr.mxu0 0.0
    %5357 = vmatpush1.msra.mxu0 %v238
    %5358 = vmatprep.subr.mxu0 0.0
    %5359 = vmatpush1.msra.mxu0 %v237
    %5360 = vmatprep.subr.mxu0 0.0
    %5361 = vmatpush1.msra.mxu0 %v236
    %5362 = vmatprep.subr.mxu0 0.0
    %5363 = vmatpush2.msra.mxu0 0.0
    %5364 = vmatprep.subr.mxu0 0.0
    %5365 = vmatpush2.msra.mxu0 0.0
    %5366 = vmatprep.subr.mxu0 0.0
    %5367 = vmatpush2.msra.mxu0 0.0
    %5368 = vmatprep.subr.mxu0 0.0
    %5369 = vmatpush2.msra.mxu0 0.0
    %5370 = vmatprep.subr.mxu0 0.0
    %5371 = vmatpush2.msra.mxu0 0.0
    %5372 = vmatprep.subr.mxu0 0.0
    %5373 = vmatpush2.msra.mxu0 0.0
    %5374 = vmatprep.subr.mxu0 0.0
    %5375 = vmatpush2.msra.mxu0 0.0
    %5376 = vmatprep.subr.mxu0 0.0
    %5377 = vmatpush2.msra.mxu0 0.0
    %5378 = vmatprep.subr.mxu0 0.0
    %5379 = vmatpush2.msra.mxu0 0.0
    %5380 = vmatprep.subr.mxu0 0.0
    %5381 = vmatpush2.msra.mxu0 0.0
    %5382 = vmatprep.subr.mxu0 0.0
    %5383 = vmatpush2.msra.mxu0 0.0
    %5384 = vmatprep.subr.mxu0 0.0
    %5385 = vmatpush2.msra.mxu0 0.0
    %5386 = vmatprep.subr.mxu0 0.0
    %5387 = vmatpush2.msra.mxu0 0.0
    %5388 = vmatprep.subr.mxu0 0.0
    %5389 = vmatpush2.msra.mxu0 0.0
    %5390 = vmatprep.subr.mxu0 0.0
    %5391 = vmatpush2.msra.mxu0 0.0
    %5392 = vmatprep.subr.mxu0 0.0
    %5393 = vmatpush2.msra.mxu0 0.0
    %5394 = vmatprep.mubr.f32.mxu0 0.0
    %5395 = vmatmul.mubr.f32.gmra.mxu0 %v5032
    %v5396 = vpop.f32.mrf.mxu0
    %v5397 = vadd.f32 0.0, %v5396
    %v5398 = vpop.f32.mrf.mxu0
    %5399 = vdwg.mxu0
    %v5400 = vadd.f32 %v5329, %v5397
    %v5401 = vadd.f32 %v5400, %v285
    %v5402 = vxor.u32 %v5401, 2147483648
    %v5403 = vmul.f32 %v5402, 1.442695
    %v5404 = vpow.pop %v5403
    %v5405 = vadd.f32 %v5404, 1.0
    %v5406 = vrcp.pop %v5405
    %v5407 = vmul.f32 1.0, %v5406
    %v5408 = vtanh.pop %v5401
    %v5409 = vmul.f32 %v5407, %v4947
    %5411 = vrot.lane.b32.xlu0 %v5408, 64
    %v5412 = vpop.permute.xlu0 %5411
    %v5414 = vmul.f32 %v5407, %v5412
    %5416 = vrot.lane.b32.xlu0 %v5414, 32
    %v5417 = vpop.permute.xlu0 %5416
    %v5419 = vadd.f32 %v5409, %v5417
    %v5420 = vtanh.pop %v5419
    %5422 = vrot.lane.b32.xlu0 %v5420, 64
    %v5423 = vpop.permute.xlu0 %5422
    %v5425 = vmul.f32 %v5407, %v5423
    %5427 = vrot.lane.b32.xlu0 %v5419, 96
    %v5428 = vpop.permute.xlu0 %5427
    %v5429 = vsel %vm394, %v5428, 0
    %5431 = vmatprep.subr.mxu0 0.0
    %5432 = vmatpush1.msra.mxu0 0.0
    %5433 = vmatprep.subr.mxu0 0.0
    %5434 = vmatpush1.msra.mxu0 0.0
    %5435 = vmatprep.subr.mxu0 0.0
    %5436 = vmatpush1.msra.mxu0 0.0
    %5437 = vmatprep.subr.mxu0 0.0
    %5438 = vmatpush1.msra.mxu0 0.0
    %5439 = vmatprep.subr.mxu0 0.0
    %5440 = vmatpush1.msra.mxu0 0.0
    %5441 = vmatprep.subr.mxu0 0.0
    %5442 = vmatpush1.msra.mxu0 0.0
    %5443 = vmatprep.subr.mxu0 0.0
    %5444 = vmatpush1.msra.mxu0 0.0
    %5445 = vmatprep.subr.mxu0 0.0
    %5446 = vmatpush1.msra.mxu0 0.0
    %5447 = vmatprep.subr.mxu0 0.0
    %5448 = vmatpush1.msra.mxu0 0.0
    %5449 = vmatprep.subr.mxu0 0.0
    %5450 = vmatpush1.msra.mxu0 0.0
    %5451 = vmatprep.subr.mxu0 0.0
    %5452 = vmatpush1.msra.mxu0 0.0
    %5453 = vmatprep.subr.mxu0 0.0
    %5454 = vmatpush1.msra.mxu0 0.0
    %5455 = vmatprep.subr.mxu0 0.0
    %5456 = vmatpush1.msra.mxu0 %v225
    %5457 = vmatprep.subr.mxu0 0.0
    %5458 = vmatpush1.msra.mxu0 %v224
    %5459 = vmatprep.subr.mxu0 0.0
    %5460 = vmatpush1.msra.mxu0 %v223
    %5461 = vmatprep.subr.mxu0 0.0
    %5462 = vmatpush1.msra.mxu0 %v222
    %5463 = vmatprep.subr.mxu0 0.0
    %5464 = vmatpush2.msra.mxu0 0.0
    %5465 = vmatprep.subr.mxu0 0.0
    %5466 = vmatpush2.msra.mxu0 0.0
    %5467 = vmatprep.subr.mxu0 0.0
    %5468 = vmatpush2.msra.mxu0 0.0
    %5469 = vmatprep.subr.mxu0 0.0
    %5470 = vmatpush2.msra.mxu0 0.0
    %5471 = vmatprep.subr.mxu0 0.0
    %5472 = vmatpush2.msra.mxu0 0.0
    %5473 = vmatprep.subr.mxu0 0.0
    %5474 = vmatpush2.msra.mxu0 0.0
    %5475 = vmatprep.subr.mxu0 0.0
    %5476 = vmatpush2.msra.mxu0 0.0
    %5477 = vmatprep.subr.mxu0 0.0
    %5478 = vmatpush2.msra.mxu0 0.0
    %5479 = vmatprep.subr.mxu0 0.0
    %5480 = vmatpush2.msra.mxu0 0.0
    %5481 = vmatprep.subr.mxu0 0.0
    %5482 = vmatpush2.msra.mxu0 0.0
    %5483 = vmatprep.subr.mxu0 0.0
    %5484 = vmatpush2.msra.mxu0 0.0
    %5485 = vmatprep.subr.mxu0 0.0
    %5486 = vmatpush2.msra.mxu0 0.0
    %5487 = vmatprep.subr.mxu0 0.0
    %5488 = vmatpush2.msra.mxu0 0.0
    %5489 = vmatprep.subr.mxu0 0.0
    %5490 = vmatpush2.msra.mxu0 0.0
    %5491 = vmatprep.subr.mxu0 0.0
    %5492 = vmatpush2.msra.mxu0 0.0
    %5493 = vmatprep.subr.mxu0 0.0
    %5494 = vmatpush2.msra.mxu0 0.0
    %5495 = vmatprep.mubr.f32.mxu0 0.0
    %5496 = vmatmul.mubr.f32.gmra.mxu0 %v5429
    %v5497 = vpop.f32.mrf.mxu0
    %v5498 = vadd.f32 0.0, %v5497
    %v5499 = vpop.f32.mrf.mxu0
    %5500 = vdwg.mxu0
    %5502 = vrot.lane.b32.xlu0 %v5425, 32
    %v5503 = vpop.permute.xlu0 %5502
    %v5504 = vsel %vm394, %v5503, 0
    %5506 = vmatprep.subr.mxu0 0.0
    %5507 = vmatpush1.msra.mxu0 0.0
    %5508 = vmatprep.subr.mxu0 0.0
    %5509 = vmatpush1.msra.mxu0 0.0
    %5510 = vmatprep.subr.mxu0 0.0
    %5511 = vmatpush1.msra.mxu0 0.0
    %5512 = vmatprep.subr.mxu0 0.0
    %5513 = vmatpush1.msra.mxu0 0.0
    %5514 = vmatprep.subr.mxu0 0.0
    %5515 = vmatpush1.msra.mxu0 0.0
    %5516 = vmatprep.subr.mxu0 0.0
    %5517 = vmatpush1.msra.mxu0 0.0
    %5518 = vmatprep.subr.mxu0 0.0
    %5519 = vmatpush1.msra.mxu0 0.0
    %5520 = vmatprep.subr.mxu0 0.0
    %5521 = vmatpush1.msra.mxu0 0.0
    %5522 = vmatprep.subr.mxu0 0.0
    %5523 = vmatpush1.msra.mxu0 0.0
    %5524 = vmatprep.subr.mxu0 0.0
    %5525 = vmatpush1.msra.mxu0 0.0
    %5526 = vmatprep.subr.mxu0 0.0
    %5527 = vmatpush1.msra.mxu0 0.0
    %5528 = vmatprep.subr.mxu0 0.0
    %5529 = vmatpush1.msra.mxu0 0.0
    %5530 = vmatprep.subr.mxu0 0.0
    %5531 = vmatpush1.msra.mxu0 %v221
    %5532 = vmatprep.subr.mxu0 0.0
    %5533 = vmatpush1.msra.mxu0 %v220
    %5534 = vmatprep.subr.mxu0 0.0
    %5535 = vmatpush1.msra.mxu0 %v219
    %5536 = vmatprep.subr.mxu0 0.0
    %5537 = vmatpush1.msra.mxu0 %v218
    %5538 = vmatprep.subr.mxu0 0.0
    %5539 = vmatpush2.msra.mxu0 0.0
    %5540 = vmatprep.subr.mxu0 0.0
    %5541 = vmatpush2.msra.mxu0 0.0
    %5542 = vmatprep.subr.mxu0 0.0
    %5543 = vmatpush2.msra.mxu0 0.0
    %5544 = vmatprep.subr.mxu0 0.0
    %5545 = vmatpush2.msra.mxu0 0.0
    %5546 = vmatprep.subr.mxu0 0.0
    %5547 = vmatpush2.msra.mxu0 0.0
    %5548 = vmatprep.subr.mxu0 0.0
    %5549 = vmatpush2.msra.mxu0 0.0
    %5550 = vmatprep.subr.mxu0 0.0
    %5551 = vmatpush2.msra.mxu0 0.0
    %5552 = vmatprep.subr.mxu0 0.0
    %5553 = vmatpush2.msra.mxu0 0.0
    %5554 = vmatprep.subr.mxu0 0.0
    %5555 = vmatpush2.msra.mxu0 0.0
    %5556 = vmatprep.subr.mxu0 0.0
    %5557 = vmatpush2.msra.mxu0 0.0
    %5558 = vmatprep.subr.mxu0 0.0
    %5559 = vmatpush2.msra.mxu0 0.0
    %5560 = vmatprep.subr.mxu0 0.0
    %5561 = vmatpush2.msra.mxu0 0.0
    %5562 = vmatprep.subr.mxu0 0.0
    %5563 = vmatpush2.msra.mxu0 0.0
    %5564 = vmatprep.subr.mxu0 0.0
    %5565 = vmatpush2.msra.mxu0 0.0
    %5566 = vmatprep.subr.mxu0 0.0
    %5567 = vmatpush2.msra.mxu0 0.0
    %5568 = vmatprep.subr.mxu0 0.0
    %5569 = vmatpush2.msra.mxu0 0.0
    %5570 = vmatprep.mubr.f32.mxu0 0.0
    %5571 = vmatmul.mubr.f32.gmra.mxu0 %v5504
    %v5572 = vpop.f32.mrf.mxu0
    %v5573 = vadd.f32 %v5498, %v5572
    %v5574 = vpop.f32.mrf.mxu0
    %5575 = vdwg.mxu0
    %v5576 = vadd.f32 %v5573, %v271
    %v5579 = vunpack.c.l.s4 1966171168
    %v5580 = vunpack.c.0.s8 %v5579
    %v5581 = vlaneseq
    %v5582 = vshrl.u32 %v5581, 7
    %v5583 = vsub.s32 %v5580, %v5582
    %v5584 = vrot.slane %v5576, %v5583
    %v5585 = vcombine.high %v5584, %v5584
    %v5587 = vunpack.c.l.s4 1966171168
    %v5588 = vunpack.c.0.s8 %v5587
    %v5589 = vlaneseq
    %v5590 = vshrl.u32 %v5589, 7
    %v5591 = vsub.s32 %v5588, %v5590
    %v5592 = vrot.slane %v5584, %v5591
    %v5594 = vunpack.c.l.s4 1966171168
    %v5595 = vunpack.c.0.s8 %v5594
    %v5596 = vlaneseq
    %v5597 = vshrl.u32 %v5596, 7
    %v5598 = vsub.s32 %v5595, %v5597
    %v5599 = vrot.slane %v5585, %v5598
    %v5600 = vlaneseq
    %v5601 = vshrl.u32 %v5600, 7
    %v5602 = vsub.s32 0, %v5601
    %v5603 = vrot.slane %v5592, %v5602
    %v5604 = vlaneseq
    %v5605 = vshrl.u32 %v5604, 7
    %v5606 = vsub.s32 0, %v5605
    %v5607 = vrot.slane %v5599, %v5606
    %v5610 = vadd.f32 %v5603, %v4466
    %v5611 = vadd.f32 %v5607, %v4471
    %v5612 = vtanh.pop %v5610
    %v5613 = vtanh.pop %v5611
    %v5614 = vmul.f32 %v5612, %v313
    %v5615 = vmul.f32 %v5613, %v313
    %v5616 = vsel %vm394, %v5614, 0.0
    %5617 = vadd.xlane.f32.xlu0 %v5616
    %v5618 = vpop.xlane.xlu0 %5617
    %v5619 = vsel %vm394, %v5615, 0.0
    %5620 = vadd.xlane.f32.xlu0 %v5619
    %v5621 = vpop.xlane.xlu0 %5620
    %v5624 = vlaneseq
    %v5625 = vshrl.u32 %v5624, 7
    %v5626 = vsub.s32 %v588, %v5625
    %v5627 = vrot.slane %v5618, %v5626
    %v5628 = vlaneseq
    %v5629 = vshrl.u32 %v5628, 7
    %v5630 = vsub.s32 %v588, %v5629
    %v5631 = vrot.slane %v5621, %v5630
    %v5632 = vsel %vm597, %v5631, %v5627
    %v5634 = vsel %vm4672, %v5632, -inf
    %5635 = vmax.xlane.f32.xlu0 %v5634
    %v5636 = vpop.xlane.xlu0 %5635
    %v5638 = vlaneseq
    %v5639 = vshrl.u32 %v5638, 7
    %v5640 = vsub.s32 0, %v5639
    %v5641 = vrot.slane %v5636, %v5640
    %v5642 = vlaneseq
    %v5643 = vshrl.u32 %v5642, 7
    %v5644 = vsub.s32 1, %v5643
    %v5645 = vrot.slane %v5636, %v5644
    %v5648 = vsub.f32 %v5618, %v5641
    %v5649 = vsub.f32 %v5621, %v5645
    %v5650 = vmul.f32 %v5648, 1.442695
    %v5651 = vpow.pop %v5650
    %v5652 = vmul.f32 %v5649, 1.442695
    %v5653 = vpow.pop %v5652
    %5656 = vset.pattern.permute.xlu0 0
    %5657 = vperm.xlu0 %5656, %v5651
    %v5658 = vpop.permute.xlu0 %5657
    %5659 = vset.pattern.permute.xlu0 0
    %5660 = vperm.xlu0 %5659, %v5653
    %v5661 = vpop.permute.xlu0 %5660
    %v5662 = vlaneseq
    %v5663 = vshrl.u32 %v5662, 7
    %v5664 = vsub.s32 %v588, %v5663
    %v5665 = vrot.slane %v5658, %v5664
    %v5666 = vlaneseq
    %v5667 = vshrl.u32 %v5666, 7
    %v5668 = vsub.s32 %v588, %v5667
    %v5669 = vrot.slane %v5661, %v5668
    %v5670 = vsel %vm597, %v5669, %v5665
    %v5672 = vsel %vm4672, %v5670, 0.0
    %5673 = vadd.xlane.f32.xlu0 %v5672
    %v5674 = vpop.xlane.xlu0 %5673
    %v5675 = vrcp.pop %v5674
    %v5677 = vlaneseq
    %v5678 = vshrl.u32 %v5677, 7
    %v5679 = vsub.s32 0, %v5678
    %v5680 = vrot.slane %v5675, %v5679
    %v5681 = vlaneseq
    %v5682 = vshrl.u32 %v5681, 7
    %v5683 = vsub.s32 1, %v5682
    %v5684 = vrot.slane %v5675, %v5683
    %v5687 = vmul.f32 %v5651, %v5680
    %v5688 = vmul.f32 %v5653, %v5684
    %5690 = vset.pattern.permute.xlu0 0
    %5691 = vperm.xlu0 %5690, %v5687
    %v5692 = vpop.permute.xlu0 %5691
    %5695 = vset.pattern.permute.xlu0 0
    %5696 = vperm.xlu0 %5695, %v5688
    %v5697 = vpop.permute.xlu0 %5696
    %v5699 = vmul.f32 %v5692, %v4387
    %v5700 = vmul.f32 %v5697, %v4388
    %v5701 = vsel %vm4740, %v5699, 0.0
    %v5702 = vrot.slane %v5701, 4
    %v5703 = vadd.f32 %v5701, %v5702
    %v5704 = vrot.slane %v5703, 2
    %v5705 = vadd.f32 %v5703, %v5704
    %v5706 = vrot.slane %v5705, 1
    %v5707 = vadd.f32 %v5705, %v5706
    %v5708 = vsel %vm4740, %v5700, 0.0
    %v5709 = vrot.slane %v5708, 4
    %v5710 = vadd.f32 %v5708, %v5709
    %v5711 = vrot.slane %v5710, 2
    %v5712 = vadd.f32 %v5710, %v5711
    %v5713 = vrot.slane %v5712, 1
    %v5714 = vadd.f32 %v5712, %v5713
    %v5717 = vsel %vm597, %v5714, %v5707
    %5718 = vrot.lane.b32.xlu0 %v5717, 32
    %v5719 = vpop.permute.xlu0 %5718
    %v5720 = vrot.slane %v4761, 2
    %v5721 = vrot.slane %v4762, 1
    %v5722 = vsel %vm597, %v5721, %v5720
    %v5724 = vsel %vm394, %v5719, 0
    %5726 = vmatprep.subr.mxu0 0.0
    %5727 = vmatpush1.msra.mxu0 0.0
    %5728 = vmatprep.subr.mxu0 0.0
    %5729 = vmatpush1.msra.mxu0 0.0
    %5730 = vmatprep.subr.mxu0 0.0
    %5731 = vmatpush1.msra.mxu0 0.0
    %5732 = vmatprep.subr.mxu0 0.0
    %5733 = vmatpush1.msra.mxu0 0.0
    %5734 = vmatprep.subr.mxu0 0.0
    %5735 = vmatpush1.msra.mxu0 0.0
    %5736 = vmatprep.subr.mxu0 0.0
    %5737 = vmatpush1.msra.mxu0 0.0
    %5738 = vmatprep.subr.mxu0 0.0
    %5739 = vmatpush1.msra.mxu0 0.0
    %5740 = vmatprep.subr.mxu0 0.0
    %5741 = vmatpush1.msra.mxu0 0.0
    %5742 = vmatprep.subr.mxu0 0.0
    %5743 = vmatpush1.msra.mxu0 0.0
    %5744 = vmatprep.subr.mxu0 0.0
    %5745 = vmatpush1.msra.mxu0 0.0
    %5746 = vmatprep.subr.mxu0 0.0
    %5747 = vmatpush1.msra.mxu0 0.0
    %5748 = vmatprep.subr.mxu0 0.0
    %5749 = vmatpush1.msra.mxu0 0.0
    %5750 = vmatprep.subr.mxu0 0.0
    %5751 = vmatpush1.msra.mxu0 %v233
    %5752 = vmatprep.subr.mxu0 0.0
    %5753 = vmatpush1.msra.mxu0 %v232
    %5754 = vmatprep.subr.mxu0 0.0
    %5755 = vmatpush1.msra.mxu0 %v231
    %5756 = vmatprep.subr.mxu0 0.0
    %5757 = vmatpush1.msra.mxu0 %v230
    %5758 = vmatprep.subr.mxu0 0.0
    %5759 = vmatpush2.msra.mxu0 0.0
    %5760 = vmatprep.subr.mxu0 0.0
    %5761 = vmatpush2.msra.mxu0 0.0
    %5762 = vmatprep.subr.mxu0 0.0
    %5763 = vmatpush2.msra.mxu0 0.0
    %5764 = vmatprep.subr.mxu0 0.0
    %5765 = vmatpush2.msra.mxu0 0.0
    %5766 = vmatprep.subr.mxu0 0.0
    %5767 = vmatpush2.msra.mxu0 0.0
    %5768 = vmatprep.subr.mxu0 0.0
    %5769 = vmatpush2.msra.mxu0 0.0
    %5770 = vmatprep.subr.mxu0 0.0
    %5771 = vmatpush2.msra.mxu0 0.0
    %5772 = vmatprep.subr.mxu0 0.0
    %5773 = vmatpush2.msra.mxu0 0.0
    %5774 = vmatprep.subr.mxu0 0.0
    %5775 = vmatpush2.msra.mxu0 0.0
    %5776 = vmatprep.subr.mxu0 0.0
    %5777 = vmatpush2.msra.mxu0 0.0
    %5778 = vmatprep.subr.mxu0 0.0
    %5779 = vmatpush2.msra.mxu0 0.0
    %5780 = vmatprep.subr.mxu0 0.0
    %5781 = vmatpush2.msra.mxu0 0.0
    %5782 = vmatprep.subr.mxu0 0.0
    %5783 = vmatpush2.msra.mxu0 0.0
    %5784 = vmatprep.subr.mxu0 0.0
    %5785 = vmatpush2.msra.mxu0 0.0
    %5786 = vmatprep.subr.mxu0 0.0
    %5787 = vmatpush2.msra.mxu0 0.0
    %5788 = vmatprep.subr.mxu0 0.0
    %5789 = vmatpush2.msra.mxu0 0.0
    %5790 = vmatprep.mubr.f32.mxu0 0.0
    %5791 = vmatmul.mubr.f32.gmra.mxu0 %v5724
    %v5792 = vpop.f32.mrf.mxu0
    %v5793 = vadd.f32 %v5722, %v5792
    %v5794 = vpop.f32.mrf.mxu0
    %5795 = vdwg.mxu0
    %v5796 = vadd.f32 %v5793, %v278
    %5798 = vset.pattern.permute.xlu0 0
    %5799 = vperm.xlu0 %5798, %v5796
    %v5800 = vpop.permute.xlu0 %5799
    %v5802 = vmul.f32 %v5800, %v4855
    %5803 = vmatprep.subr.mxu0 0.0
    %5804 = vmatpush1.msra.mxu0 0.0
    %5805 = vmatprep.subr.mxu0 0.0
    %5806 = vmatpush1.msra.mxu0 0.0
    %5807 = vmatprep.subr.mxu0 0.0
    %5808 = vmatpush1.msra.mxu0 0.0
    %5809 = vmatprep.subr.mxu0 0.0
    %5810 = vmatpush1.msra.mxu0 0.0
    %5811 = vmatprep.subr.mxu0 0.0
    %5812 = vmatpush1.msra.mxu0 0.0
    %5813 = vmatprep.subr.mxu0 0.0
    %5814 = vmatpush1.msra.mxu0 0.0
    %5815 = vmatprep.subr.mxu0 0.0
    %5816 = vmatpush1.msra.mxu0 0.0
    %5817 = vmatprep.subr.mxu0 0.0
    %5818 = vmatpush1.msra.mxu0 0.0
    %5819 = vmatprep.subr.mxu0 0.0
    %5820 = vmatpush1.msra.mxu0 0.0
    %5821 = vmatprep.subr.mxu0 0.0
    %5822 = vmatpush1.msra.mxu0 0.0
    %5823 = vmatprep.subr.mxu0 0.0
    %5824 = vmatpush1.msra.mxu0 0.0
    %5825 = vmatprep.subr.mxu0 0.0
    %5826 = vmatpush1.msra.mxu0 0.0
    %5827 = vmatprep.subr.mxu0 0.0
    %5828 = vmatpush1.msra.mxu0 %v239
    %5829 = vmatprep.subr.mxu0 0.0
    %5830 = vmatpush1.msra.mxu0 %v238
    %5831 = vmatprep.subr.mxu0 0.0
    %5832 = vmatpush1.msra.mxu0 %v237
    %5833 = vmatprep.subr.mxu0 0.0
    %5834 = vmatpush1.msra.mxu0 %v236
    %5835 = vmatprep.subr.mxu0 0.0
    %5836 = vmatpush2.msra.mxu0 0.0
    %5837 = vmatprep.subr.mxu0 0.0
    %5838 = vmatpush2.msra.mxu0 0.0
    %5839 = vmatprep.subr.mxu0 0.0
    %5840 = vmatpush2.msra.mxu0 0.0
    %5841 = vmatprep.subr.mxu0 0.0
    %5842 = vmatpush2.msra.mxu0 0.0
    %5843 = vmatprep.subr.mxu0 0.0
    %5844 = vmatpush2.msra.mxu0 0.0
    %5845 = vmatprep.subr.mxu0 0.0
    %5846 = vmatpush2.msra.mxu0 0.0
    %5847 = vmatprep.subr.mxu0 0.0
    %5848 = vmatpush2.msra.mxu0 0.0
    %5849 = vmatprep.subr.mxu0 0.0
    %5850 = vmatpush2.msra.mxu0 0.0
    %5851 = vmatprep.subr.mxu0 0.0
    %5852 = vmatpush2.msra.mxu0 0.0
    %5853 = vmatprep.subr.mxu0 0.0
    %5854 = vmatpush2.msra.mxu0 0.0
    %5855 = vmatprep.subr.mxu0 0.0
    %5856 = vmatpush2.msra.mxu0 0.0
    %5857 = vmatprep.subr.mxu0 0.0
    %5858 = vmatpush2.msra.mxu0 0.0
    %5859 = vmatprep.subr.mxu0 0.0
    %5860 = vmatpush2.msra.mxu0 0.0
    %5861 = vmatprep.subr.mxu0 0.0
    %5862 = vmatpush2.msra.mxu0 0.0
    %5863 = vmatprep.subr.mxu0 0.0
    %5864 = vmatpush2.msra.mxu0 0.0
    %5865 = vmatprep.subr.mxu0 0.0
    %5866 = vmatpush2.msra.mxu0 0.0
    %5867 = vmatprep.mubr.f32.mxu0 0.0
    %5868 = vmatmul.mubr.f32.gmra.mxu0 %v5504
    %v5869 = vpop.f32.mrf.mxu0
    %v5870 = vadd.f32 0.0, %v5869
    %v5871 = vpop.f32.mrf.mxu0
    %5872 = vdwg.mxu0
    %v5873 = vadd.f32 %v5802, %v5870
    %v5874 = vadd.f32 %v5873, %v285
    %v5875 = vxor.u32 %v5874, 2147483648
    %v5876 = vmul.f32 %v5875, 1.442695
    %v5877 = vpow.pop %v5876
    %v5878 = vadd.f32 %v5877, 1.0
    %v5879 = vrcp.pop %v5878
    %v5880 = vmul.f32 1.0, %v5879
    %v5881 = vtanh.pop %v5874
    %v5882 = vmul.f32 %v5880, %v5419
    %5884 = vrot.lane.b32.xlu0 %v5881, 64
    %v5885 = vpop.permute.xlu0 %5884
    %v5887 = vmul.f32 %v5880, %v5885
    %5889 = vrot.lane.b32.xlu0 %v5887, 32
    %v5890 = vpop.permute.xlu0 %5889
    %v5892 = vadd.f32 %v5882, %v5890
    %v5893 = vtanh.pop %v5892
    %5895 = vrot.lane.b32.xlu0 %v5893, 64
    %v5896 = vpop.permute.xlu0 %5895
    %v5898 = vmul.f32 %v5880, %v5896
    %5900 = vrot.lane.b32.xlu0 %v5892, 96
    %v5901 = vpop.permute.xlu0 %5900
    %v5902 = vsel %vm394, %v5901, 0
    %5904 = vmatprep.subr.mxu0 0.0
    %5905 = vmatpush1.msra.mxu0 0.0
    %5906 = vmatprep.subr.mxu0 0.0
    %5907 = vmatpush1.msra.mxu0 0.0
    %5908 = vmatprep.subr.mxu0 0.0
    %5909 = vmatpush1.msra.mxu0 0.0
    %5910 = vmatprep.subr.mxu0 0.0
    %5911 = vmatpush1.msra.mxu0 0.0
    %5912 = vmatprep.subr.mxu0 0.0
    %5913 = vmatpush1.msra.mxu0 0.0
    %5914 = vmatprep.subr.mxu0 0.0
    %5915 = vmatpush1.msra.mxu0 0.0
    %5916 = vmatprep.subr.mxu0 0.0
    %5917 = vmatpush1.msra.mxu0 0.0
    %5918 = vmatprep.subr.mxu0 0.0
    %5919 = vmatpush1.msra.mxu0 0.0
    %5920 = vmatprep.subr.mxu0 0.0
    %5921 = vmatpush1.msra.mxu0 0.0
    %5922 = vmatprep.subr.mxu0 0.0
    %5923 = vmatpush1.msra.mxu0 0.0
    %5924 = vmatprep.subr.mxu0 0.0
    %5925 = vmatpush1.msra.mxu0 0.0
    %5926 = vmatprep.subr.mxu0 0.0
    %5927 = vmatpush1.msra.mxu0 0.0
    %5928 = vmatprep.subr.mxu0 0.0
    %5929 = vmatpush1.msra.mxu0 %v225
    %5930 = vmatprep.subr.mxu0 0.0
    %5931 = vmatpush1.msra.mxu0 %v224
    %5932 = vmatprep.subr.mxu0 0.0
    %5933 = vmatpush1.msra.mxu0 %v223
    %5934 = vmatprep.subr.mxu0 0.0
    %5935 = vmatpush1.msra.mxu0 %v222
    %5936 = vmatprep.subr.mxu0 0.0
    %5937 = vmatpush2.msra.mxu0 0.0
    %5938 = vmatprep.subr.mxu0 0.0
    %5939 = vmatpush2.msra.mxu0 0.0
    %5940 = vmatprep.subr.mxu0 0.0
    %5941 = vmatpush2.msra.mxu0 0.0
    %5942 = vmatprep.subr.mxu0 0.0
    %5943 = vmatpush2.msra.mxu0 0.0
    %5944 = vmatprep.subr.mxu0 0.0
    %5945 = vmatpush2.msra.mxu0 0.0
    %5946 = vmatprep.subr.mxu0 0.0
    %5947 = vmatpush2.msra.mxu0 0.0
    %5948 = vmatprep.subr.mxu0 0.0
    %5949 = vmatpush2.msra.mxu0 0.0
    %5950 = vmatprep.subr.mxu0 0.0
    %5951 = vmatpush2.msra.mxu0 0.0
    %5952 = vmatprep.subr.mxu0 0.0
    %5953 = vmatpush2.msra.mxu0 0.0
    %5954 = vmatprep.subr.mxu0 0.0
    %5955 = vmatpush2.msra.mxu0 0.0
    %5956 = vmatprep.subr.mxu0 0.0
    %5957 = vmatpush2.msra.mxu0 0.0
    %5958 = vmatprep.subr.mxu0 0.0
    %5959 = vmatpush2.msra.mxu0 0.0
    %5960 = vmatprep.subr.mxu0 0.0
    %5961 = vmatpush2.msra.mxu0 0.0
    %5962 = vmatprep.subr.mxu0 0.0
    %5963 = vmatpush2.msra.mxu0 0.0
    %5964 = vmatprep.subr.mxu0 0.0
    %5965 = vmatpush2.msra.mxu0 0.0
    %5966 = vmatprep.subr.mxu0 0.0
    %5967 = vmatpush2.msra.mxu0 0.0
    %5968 = vmatprep.mubr.f32.mxu0 0.0
    %5969 = vmatmul.mubr.f32.gmra.mxu0 %v5902
    %v5970 = vpop.f32.mrf.mxu0
    %v5971 = vadd.f32 0.0, %v5970
    %v5972 = vpop.f32.mrf.mxu0
    %5973 = vdwg.mxu0
    %5975 = vrot.lane.b32.xlu0 %v5898, 32
    %v5976 = vpop.permute.xlu0 %5975
    %v5977 = vsel %vm394, %v5976, 0
    %5979 = vmatprep.subr.mxu0 0.0
    %5980 = vmatpush1.msra.mxu0 0.0
    %5981 = vmatprep.subr.mxu0 0.0
    %5982 = vmatpush1.msra.mxu0 0.0
    %5983 = vmatprep.subr.mxu0 0.0
    %5984 = vmatpush1.msra.mxu0 0.0
    %5985 = vmatprep.subr.mxu0 0.0
    %5986 = vmatpush1.msra.mxu0 0.0
    %5987 = vmatprep.subr.mxu0 0.0
    %5988 = vmatpush1.msra.mxu0 0.0
    %5989 = vmatprep.subr.mxu0 0.0
    %5990 = vmatpush1.msra.mxu0 0.0
    %5991 = vmatprep.subr.mxu0 0.0
    %5992 = vmatpush1.msra.mxu0 0.0
    %5993 = vmatprep.subr.mxu0 0.0
    %5994 = vmatpush1.msra.mxu0 0.0
    %5995 = vmatprep.subr.mxu0 0.0
    %5996 = vmatpush1.msra.mxu0 0.0
    %5997 = vmatprep.subr.mxu0 0.0
    %5998 = vmatpush1.msra.mxu0 0.0
    %5999 = vmatprep.subr.mxu0 0.0
    %6000 = vmatpush1.msra.mxu0 0.0
    %6001 = vmatprep.subr.mxu0 0.0
    %6002 = vmatpush1.msra.mxu0 0.0
    %6003 = vmatprep.subr.mxu0 0.0
    %6004 = vmatpush1.msra.mxu0 %v221
    %6005 = vmatprep.subr.mxu0 0.0
    %6006 = vmatpush1.msra.mxu0 %v220
    %6007 = vmatprep.subr.mxu0 0.0
    %6008 = vmatpush1.msra.mxu0 %v219
    %6009 = vmatprep.subr.mxu0 0.0
    %6010 = vmatpush1.msra.mxu0 %v218
    %6011 = vmatprep.subr.mxu0 0.0
    %6012 = vmatpush2.msra.mxu0 0.0
    %6013 = vmatprep.subr.mxu0 0.0
    %6014 = vmatpush2.msra.mxu0 0.0
    %6015 = vmatprep.subr.mxu0 0.0
    %6016 = vmatpush2.msra.mxu0 0.0
    %6017 = vmatprep.subr.mxu0 0.0
    %6018 = vmatpush2.msra.mxu0 0.0
    %6019 = vmatprep.subr.mxu0 0.0
    %6020 = vmatpush2.msra.mxu0 0.0
    %6021 = vmatprep.subr.mxu0 0.0
    %6022 = vmatpush2.msra.mxu0 0.0
    %6023 = vmatprep.subr.mxu0 0.0
    %6024 = vmatpush2.msra.mxu0 0.0
    %6025 = vmatprep.subr.mxu0 0.0
    %6026 = vmatpush2.msra.mxu0 0.0
    %6027 = vmatprep.subr.mxu0 0.0
    %6028 = vmatpush2.msra.mxu0 0.0
    %6029 = vmatprep.subr.mxu0 0.0
    %6030 = vmatpush2.msra.mxu0 0.0
    %6031 = vmatprep.subr.mxu0 0.0
    %6032 = vmatpush2.msra.mxu0 0.0
    %6033 = vmatprep.subr.mxu0 0.0
    %6034 = vmatpush2.msra.mxu0 0.0
    %6035 = vmatprep.subr.mxu0 0.0
    %6036 = vmatpush2.msra.mxu0 0.0
    %6037 = vmatprep.subr.mxu0 0.0
    %6038 = vmatpush2.msra.mxu0 0.0
    %6039 = vmatprep.subr.mxu0 0.0
    %6040 = vmatpush2.msra.mxu0 0.0
    %6041 = vmatprep.subr.mxu0 0.0
    %6042 = vmatpush2.msra.mxu0 0.0
    %6043 = vmatprep.mubr.f32.mxu0 0.0
    %6044 = vmatmul.mubr.f32.gmra.mxu0 %v5977
    %v6045 = vpop.f32.mrf.mxu0
    %v6046 = vadd.f32 %v5971, %v6045
    %v6047 = vpop.f32.mrf.mxu0
    %6048 = vdwg.mxu0
    %v6049 = vadd.f32 %v6046, %v271
    %v6052 = vunpack.c.l.s4 1966171168
    %v6053 = vunpack.c.0.s8 %v6052
    %v6054 = vlaneseq
    %v6055 = vshrl.u32 %v6054, 7
    %v6056 = vsub.s32 %v6053, %v6055
    %v6057 = vrot.slane %v6049, %v6056
    %v6058 = vcombine.high %v6057, %v6057
    %v6060 = vunpack.c.l.s4 1966171168
    %v6061 = vunpack.c.0.s8 %v6060
    %v6062 = vlaneseq
    %v6063 = vshrl.u32 %v6062, 7
    %v6064 = vsub.s32 %v6061, %v6063
    %v6065 = vrot.slane %v6057, %v6064
    %v6067 = vunpack.c.l.s4 1966171168
    %v6068 = vunpack.c.0.s8 %v6067
    %v6069 = vlaneseq
    %v6070 = vshrl.u32 %v6069, 7
    %v6071 = vsub.s32 %v6068, %v6070
    %v6072 = vrot.slane %v6058, %v6071
    %v6073 = vlaneseq
    %v6074 = vshrl.u32 %v6073, 7
    %v6075 = vsub.s32 0, %v6074
    %v6076 = vrot.slane %v6065, %v6075
    %v6077 = vlaneseq
    %v6078 = vshrl.u32 %v6077, 7
    %v6079 = vsub.s32 0, %v6078
    %v6080 = vrot.slane %v6072, %v6079
    %v6083 = vadd.f32 %v6076, %v4466
    %v6084 = vadd.f32 %v6080, %v4471
    %v6085 = vtanh.pop %v6083
    %v6086 = vtanh.pop %v6084
    %v6087 = vmul.f32 %v6085, %v313
    %v6088 = vmul.f32 %v6086, %v313
    %v6089 = vsel %vm394, %v6087, 0.0
    %6090 = vadd.xlane.f32.xlu0 %v6089
    %v6091 = vpop.xlane.xlu0 %6090
    %v6092 = vsel %vm394, %v6088, 0.0
    %6093 = vadd.xlane.f32.xlu0 %v6092
    %v6094 = vpop.xlane.xlu0 %6093
    %v6097 = vlaneseq
    %v6098 = vshrl.u32 %v6097, 7
    %v6099 = vsub.s32 %v588, %v6098
    %v6100 = vrot.slane %v6091, %v6099
    %v6101 = vlaneseq
    %v6102 = vshrl.u32 %v6101, 7
    %v6103 = vsub.s32 %v588, %v6102
    %v6104 = vrot.slane %v6094, %v6103
    %v6105 = vsel %vm597, %v6104, %v6100
    %v6107 = vsel %vm4672, %v6105, -inf
    %6108 = vmax.xlane.f32.xlu0 %v6107
    %v6109 = vpop.xlane.xlu0 %6108
    %v6111 = vlaneseq
    %v6112 = vshrl.u32 %v6111, 7
    %v6113 = vsub.s32 0, %v6112
    %v6114 = vrot.slane %v6109, %v6113
    %v6115 = vlaneseq
    %v6116 = vshrl.u32 %v6115, 7
    %v6117 = vsub.s32 1, %v6116
    %v6118 = vrot.slane %v6109, %v6117
    %v6121 = vsub.f32 %v6091, %v6114
    %v6122 = vsub.f32 %v6094, %v6118
    %v6123 = vmul.f32 %v6121, 1.442695
    %v6124 = vpow.pop %v6123
    %v6125 = vmul.f32 %v6122, 1.442695
    %v6126 = vpow.pop %v6125
    %6129 = vset.pattern.permute.xlu0 0
    %6130 = vperm.xlu0 %6129, %v6124
    %v6131 = vpop.permute.xlu0 %6130
    %6132 = vset.pattern.permute.xlu0 0
    %6133 = vperm.xlu0 %6132, %v6126
    %v6134 = vpop.permute.xlu0 %6133
    %v6135 = vlaneseq
    %v6136 = vshrl.u32 %v6135, 7
    %v6137 = vsub.s32 %v588, %v6136
    %v6138 = vrot.slane %v6131, %v6137
    %v6139 = vlaneseq
    %v6140 = vshrl.u32 %v6139, 7
    %v6141 = vsub.s32 %v588, %v6140
    %v6142 = vrot.slane %v6134, %v6141
    %v6143 = vsel %vm597, %v6142, %v6138
    %v6145 = vsel %vm4672, %v6143, 0.0
    %6146 = vadd.xlane.f32.xlu0 %v6145
    %v6147 = vpop.xlane.xlu0 %6146
    %v6148 = vrcp.pop %v6147
    %v6150 = vlaneseq
    %v6151 = vshrl.u32 %v6150, 7
    %v6152 = vsub.s32 0, %v6151
    %v6153 = vrot.slane %v6148, %v6152
    %v6154 = vlaneseq
    %v6155 = vshrl.u32 %v6154, 7
    %v6156 = vsub.s32 1, %v6155
    %v6157 = vrot.slane %v6148, %v6156
    %v6160 = vmul.f32 %v6124, %v6153
    %v6161 = vmul.f32 %v6126, %v6157
    %6163 = vset.pattern.permute.xlu0 0
    %6164 = vperm.xlu0 %6163, %v6160
    %v6165 = vpop.permute.xlu0 %6164
    %6168 = vset.pattern.permute.xlu0 0
    %6169 = vperm.xlu0 %6168, %v6161
    %v6170 = vpop.permute.xlu0 %6169
    %v6172 = vmul.f32 %v6165, %v4387
    %v6173 = vmul.f32 %v6170, %v4388
    %v6174 = vsel %vm4740, %v6172, 0.0
    %v6175 = vrot.slane %v6174, 4
    %v6176 = vadd.f32 %v6174, %v6175
    %v6177 = vrot.slane %v6176, 2
    %v6178 = vadd.f32 %v6176, %v6177
    %v6179 = vrot.slane %v6178, 1
    %v6180 = vadd.f32 %v6178, %v6179
    %v6181 = vsel %vm4740, %v6173, 0.0
    %v6182 = vrot.slane %v6181, 4
    %v6183 = vadd.f32 %v6181, %v6182
    %v6184 = vrot.slane %v6183, 2
    %v6185 = vadd.f32 %v6183, %v6184
    %v6186 = vrot.slane %v6185, 1
    %v6187 = vadd.f32 %v6185, %v6186
    %v6190 = vsel %vm597, %v6187, %v6180
    %6191 = vrot.lane.b32.xlu0 %v6190, 32
    %v6192 = vpop.permute.xlu0 %6191
    %v6193 = vrot.slane %v4761, 3
    %v6194 = vrot.slane %v4762, 2
    %v6195 = vsel %vm597, %v6194, %v6193
    %v6197 = vsel %vm394, %v6192, 0
    %6199 = vmatprep.subr.mxu0 0.0
    %6200 = vmatpush1.msra.mxu0 0.0
    %6201 = vmatprep.subr.mxu0 0.0
    %6202 = vmatpush1.msra.mxu0 0.0
    %6203 = vmatprep.subr.mxu0 0.0
    %6204 = vmatpush1.msra.mxu0 0.0
    %6205 = vmatprep.subr.mxu0 0.0
    %6206 = vmatpush1.msra.mxu0 0.0
    %6207 = vmatprep.subr.mxu0 0.0
    %6208 = vmatpush1.msra.mxu0 0.0
    %6209 = vmatprep.subr.mxu0 0.0
    %6210 = vmatpush1.msra.mxu0 0.0
    %6211 = vmatprep.subr.mxu0 0.0
    %6212 = vmatpush1.msra.mxu0 0.0
    %6213 = vmatprep.subr.mxu0 0.0
    %6214 = vmatpush1.msra.mxu0 0.0
    %6215 = vmatprep.subr.mxu0 0.0
    %6216 = vmatpush1.msra.mxu0 0.0
    %6217 = vmatprep.subr.mxu0 0.0
    %6218 = vmatpush1.msra.mxu0 0.0
    %6219 = vmatprep.subr.mxu0 0.0
    %6220 = vmatpush1.msra.mxu0 0.0
    %6221 = vmatprep.subr.mxu0 0.0
    %6222 = vmatpush1.msra.mxu0 0.0
    %6223 = vmatprep.subr.mxu0 0.0
    %6224 = vmatpush1.msra.mxu0 %v233
    %6225 = vmatprep.subr.mxu0 0.0
    %6226 = vmatpush1.msra.mxu0 %v232
    %6227 = vmatprep.subr.mxu0 0.0
    %6228 = vmatpush1.msra.mxu0 %v231
    %6229 = vmatprep.subr.mxu0 0.0
    %6230 = vmatpush1.msra.mxu0 %v230
    %6231 = vmatprep.subr.mxu0 0.0
    %6232 = vmatpush2.msra.mxu0 0.0
    %6233 = vmatprep.subr.mxu0 0.0
    %6234 = vmatpush2.msra.mxu0 0.0
    %6235 = vmatprep.subr.mxu0 0.0
    %6236 = vmatpush2.msra.mxu0 0.0
    %6237 = vmatprep.subr.mxu0 0.0
    %6238 = vmatpush2.msra.mxu0 0.0
    %6239 = vmatprep.subr.mxu0 0.0
    %6240 = vmatpush2.msra.mxu0 0.0
    %6241 = vmatprep.subr.mxu0 0.0
    %6242 = vmatpush2.msra.mxu0 0.0
    %6243 = vmatprep.subr.mxu0 0.0
    %6244 = vmatpush2.msra.mxu0 0.0
    %6245 = vmatprep.subr.mxu0 0.0
    %6246 = vmatpush2.msra.mxu0 0.0
    %6247 = vmatprep.subr.mxu0 0.0
    %6248 = vmatpush2.msra.mxu0 0.0
    %6249 = vmatprep.subr.mxu0 0.0
    %6250 = vmatpush2.msra.mxu0 0.0
    %6251 = vmatprep.subr.mxu0 0.0
    %6252 = vmatpush2.msra.mxu0 0.0
    %6253 = vmatprep.subr.mxu0 0.0
    %6254 = vmatpush2.msra.mxu0 0.0
    %6255 = vmatprep.subr.mxu0 0.0
    %6256 = vmatpush2.msra.mxu0 0.0
    %6257 = vmatprep.subr.mxu0 0.0
    %6258 = vmatpush2.msra.mxu0 0.0
    %6259 = vmatprep.subr.mxu0 0.0
    %6260 = vmatpush2.msra.mxu0 0.0
    %6261 = vmatprep.subr.mxu0 0.0
    %6262 = vmatpush2.msra.mxu0 0.0
    %6263 = vmatprep.mubr.f32.mxu0 0.0
    %6264 = vmatmul.mubr.f32.gmra.mxu0 %v6197
    %v6265 = vpop.f32.mrf.mxu0
    %v6266 = vadd.f32 %v6195, %v6265
    %v6267 = vpop.f32.mrf.mxu0
    %6268 = vdwg.mxu0
    %v6269 = vadd.f32 %v6266, %v278
    %6271 = vset.pattern.permute.xlu0 0
    %6272 = vperm.xlu0 %6271, %v6269
    %v6273 = vpop.permute.xlu0 %6272
    %v6275 = vmul.f32 %v6273, %v4855
    %6276 = vmatprep.subr.mxu0 0.0
    %6277 = vmatpush1.msra.mxu0 0.0
    %6278 = vmatprep.subr.mxu0 0.0
    %6279 = vmatpush1.msra.mxu0 0.0
    %6280 = vmatprep.subr.mxu0 0.0
    %6281 = vmatpush1.msra.mxu0 0.0
    %6282 = vmatprep.subr.mxu0 0.0
    %6283 = vmatpush1.msra.mxu0 0.0
    %6284 = vmatprep.subr.mxu0 0.0
    %6285 = vmatpush1.msra.mxu0 0.0
    %6286 = vmatprep.subr.mxu0 0.0
    %6287 = vmatpush1.msra.mxu0 0.0
    %6288 = vmatprep.subr.mxu0 0.0
    %6289 = vmatpush1.msra.mxu0 0.0
    %6290 = vmatprep.subr.mxu0 0.0
    %6291 = vmatpush1.msra.mxu0 0.0
    %6292 = vmatprep.subr.mxu0 0.0
    %6293 = vmatpush1.msra.mxu0 0.0
    %6294 = vmatprep.subr.mxu0 0.0
    %6295 = vmatpush1.msra.mxu0 0.0
    %6296 = vmatprep.subr.mxu0 0.0
    %6297 = vmatpush1.msra.mxu0 0.0
    %6298 = vmatprep.subr.mxu0 0.0
    %6299 = vmatpush1.msra.mxu0 0.0
    %6300 = vmatprep.subr.mxu0 0.0
    %6301 = vmatpush1.msra.mxu0 %v239
    %6302 = vmatprep.subr.mxu0 0.0
    %6303 = vmatpush1.msra.mxu0 %v238
    %6304 = vmatprep.subr.mxu0 0.0
    %6305 = vmatpush1.msra.mxu0 %v237
    %6306 = vmatprep.subr.mxu0 0.0
    %6307 = vmatpush1.msra.mxu0 %v236
    %6308 = vmatprep.subr.mxu0 0.0
    %6309 = vmatpush2.msra.mxu0 0.0
    %6310 = vmatprep.subr.mxu0 0.0
    %6311 = vmatpush2.msra.mxu0 0.0
    %6312 = vmatprep.subr.mxu0 0.0
    %6313 = vmatpush2.msra.mxu0 0.0
    %6314 = vmatprep.subr.mxu0 0.0
    %6315 = vmatpush2.msra.mxu0 0.0
    %6316 = vmatprep.subr.mxu0 0.0
    %6317 = vmatpush2.msra.mxu0 0.0
    %6318 = vmatprep.subr.mxu0 0.0
    %6319 = vmatpush2.msra.mxu0 0.0
    %6320 = vmatprep.subr.mxu0 0.0
    %6321 = vmatpush2.msra.mxu0 0.0
    %6322 = vmatprep.subr.mxu0 0.0
    %6323 = vmatpush2.msra.mxu0 0.0
    %6324 = vmatprep.subr.mxu0 0.0
    %6325 = vmatpush2.msra.mxu0 0.0
    %6326 = vmatprep.subr.mxu0 0.0
    %6327 = vmatpush2.msra.mxu0 0.0
    %6328 = vmatprep.subr.mxu0 0.0
    %6329 = vmatpush2.msra.mxu0 0.0
    %6330 = vmatprep.subr.mxu0 0.0
    %6331 = vmatpush2.msra.mxu0 0.0
    %6332 = vmatprep.subr.mxu0 0.0
    %6333 = vmatpush2.msra.mxu0 0.0
    %6334 = vmatprep.subr.mxu0 0.0
    %6335 = vmatpush2.msra.mxu0 0.0
    %6336 = vmatprep.subr.mxu0 0.0
    %6337 = vmatpush2.msra.mxu0 0.0
    %6338 = vmatprep.subr.mxu0 0.0
    %6339 = vmatpush2.msra.mxu0 0.0
    %6340 = vmatprep.mubr.f32.mxu0 0.0
    %6341 = vmatmul.mubr.f32.gmra.mxu0 %v5977
    %v6342 = vpop.f32.mrf.mxu0
    %v6343 = vadd.f32 0.0, %v6342
    %v6344 = vpop.f32.mrf.mxu0
    %6345 = vdwg.mxu0
    %v6346 = vadd.f32 %v6275, %v6343
    %v6347 = vadd.f32 %v6346, %v285
    %v6348 = vxor.u32 %v6347, 2147483648
    %v6349 = vmul.f32 %v6348, 1.442695
    %v6350 = vpow.pop %v6349
    %v6351 = vadd.f32 %v6350, 1.0
    %v6352 = vrcp.pop %v6351
    %v6353 = vmul.f32 1.0, %v6352
    %v6354 = vtanh.pop %v6347
    %v6355 = vmul.f32 %v6353, %v5892
    %6357 = vrot.lane.b32.xlu0 %v6354, 64
    %v6358 = vpop.permute.xlu0 %6357
    %v6360 = vmul.f32 %v6353, %v6358
    %6362 = vrot.lane.b32.xlu0 %v6360, 32
    %v6363 = vpop.permute.xlu0 %6362
    %v6365 = vadd.f32 %v6355, %v6363
    %v6366 = vtanh.pop %v6365
    %6368 = vrot.lane.b32.xlu0 %v6366, 64
    %v6369 = vpop.permute.xlu0 %6368
    %v6371 = vmul.f32 %v6353, %v6369
    %6373 = vrot.lane.b32.xlu0 %v6365, 96
    %v6374 = vpop.permute.xlu0 %6373
    %v6375 = vsel %vm394, %v6374, 0
    %6377 = vmatprep.subr.mxu0 0.0
    %6378 = vmatpush1.msra.mxu0 0.0
    %6379 = vmatprep.subr.mxu0 0.0
    %6380 = vmatpush1.msra.mxu0 0.0
    %6381 = vmatprep.subr.mxu0 0.0
    %6382 = vmatpush1.msra.mxu0 0.0
    %6383 = vmatprep.subr.mxu0 0.0
    %6384 = vmatpush1.msra.mxu0 0.0
    %6385 = vmatprep.subr.mxu0 0.0
    %6386 = vmatpush1.msra.mxu0 0.0
    %6387 = vmatprep.subr.mxu0 0.0
    %6388 = vmatpush1.msra.mxu0 0.0
    %6389 = vmatprep.subr.mxu0 0.0
    %6390 = vmatpush1.msra.mxu0 0.0
    %6391 = vmatprep.subr.mxu0 0.0
    %6392 = vmatpush1.msra.mxu0 0.0
    %6393 = vmatprep.subr.mxu0 0.0
    %6394 = vmatpush1.msra.mxu0 0.0
    %6395 = vmatprep.subr.mxu0 0.0
    %6396 = vmatpush1.msra.mxu0 0.0
    %6397 = vmatprep.subr.mxu0 0.0
    %6398 = vmatpush1.msra.mxu0 0.0
    %6399 = vmatprep.subr.mxu0 0.0
    %6400 = vmatpush1.msra.mxu0 0.0
    %6401 = vmatprep.subr.mxu0 0.0
    %6402 = vmatpush1.msra.mxu0 %v225
    %6403 = vmatprep.subr.mxu0 0.0
    %6404 = vmatpush1.msra.mxu0 %v224
    %6405 = vmatprep.subr.mxu0 0.0
    %6406 = vmatpush1.msra.mxu0 %v223
    %6407 = vmatprep.subr.mxu0 0.0
    %6408 = vmatpush1.msra.mxu0 %v222
    %6409 = vmatprep.subr.mxu0 0.0
    %6410 = vmatpush2.msra.mxu0 0.0
    %6411 = vmatprep.subr.mxu0 0.0
    %6412 = vmatpush2.msra.mxu0 0.0
    %6413 = vmatprep.subr.mxu0 0.0
    %6414 = vmatpush2.msra.mxu0 0.0
    %6415 = vmatprep.subr.mxu0 0.0
    %6416 = vmatpush2.msra.mxu0 0.0
    %6417 = vmatprep.subr.mxu0 0.0
    %6418 = vmatpush2.msra.mxu0 0.0
    %6419 = vmatprep.subr.mxu0 0.0
    %6420 = vmatpush2.msra.mxu0 0.0
    %6421 = vmatprep.subr.mxu0 0.0
    %6422 = vmatpush2.msra.mxu0 0.0
    %6423 = vmatprep.subr.mxu0 0.0
    %6424 = vmatpush2.msra.mxu0 0.0
    %6425 = vmatprep.subr.mxu0 0.0
    %6426 = vmatpush2.msra.mxu0 0.0
    %6427 = vmatprep.subr.mxu0 0.0
    %6428 = vmatpush2.msra.mxu0 0.0
    %6429 = vmatprep.subr.mxu0 0.0
    %6430 = vmatpush2.msra.mxu0 0.0
    %6431 = vmatprep.subr.mxu0 0.0
    %6432 = vmatpush2.msra.mxu0 0.0
    %6433 = vmatprep.subr.mxu0 0.0
    %6434 = vmatpush2.msra.mxu0 0.0
    %6435 = vmatprep.subr.mxu0 0.0
    %6436 = vmatpush2.msra.mxu0 0.0
    %6437 = vmatprep.subr.mxu0 0.0
    %6438 = vmatpush2.msra.mxu0 0.0
    %6439 = vmatprep.subr.mxu0 0.0
    %6440 = vmatpush2.msra.mxu0 0.0
    %6441 = vmatprep.mubr.f32.mxu0 0.0
    %6442 = vmatmul.mubr.f32.gmra.mxu0 %v6375
    %v6443 = vpop.f32.mrf.mxu0
    %v6444 = vadd.f32 0.0, %v6443
    %v6445 = vpop.f32.mrf.mxu0
    %6446 = vdwg.mxu0
    %6448 = vrot.lane.b32.xlu0 %v6371, 32
    %v6449 = vpop.permute.xlu0 %6448
    %v6450 = vsel %vm394, %v6449, 0
    %6452 = vmatprep.subr.mxu0 0.0
    %6453 = vmatpush1.msra.mxu0 0.0
    %6454 = vmatprep.subr.mxu0 0.0
    %6455 = vmatpush1.msra.mxu0 0.0
    %6456 = vmatprep.subr.mxu0 0.0
    %6457 = vmatpush1.msra.mxu0 0.0
    %6458 = vmatprep.subr.mxu0 0.0
    %6459 = vmatpush1.msra.mxu0 0.0
    %6460 = vmatprep.subr.mxu0 0.0
    %6461 = vmatpush1.msra.mxu0 0.0
    %6462 = vmatprep.subr.mxu0 0.0
    %6463 = vmatpush1.msra.mxu0 0.0
    %6464 = vmatprep.subr.mxu0 0.0
    %6465 = vmatpush1.msra.mxu0 0.0
    %6466 = vmatprep.subr.mxu0 0.0
    %6467 = vmatpush1.msra.mxu0 0.0
    %6468 = vmatprep.subr.mxu0 0.0
    %6469 = vmatpush1.msra.mxu0 0.0
    %6470 = vmatprep.subr.mxu0 0.0
    %6471 = vmatpush1.msra.mxu0 0.0
    %6472 = vmatprep.subr.mxu0 0.0
    %6473 = vmatpush1.msra.mxu0 0.0
    %6474 = vmatprep.subr.mxu0 0.0
    %6475 = vmatpush1.msra.mxu0 0.0
    %6476 = vmatprep.subr.mxu0 0.0
    %6477 = vmatpush1.msra.mxu0 %v221
    %6478 = vmatprep.subr.mxu0 0.0
    %6479 = vmatpush1.msra.mxu0 %v220
    %6480 = vmatprep.subr.mxu0 0.0
    %6481 = vmatpush1.msra.mxu0 %v219
    %6482 = vmatprep.subr.mxu0 0.0
    %6483 = vmatpush1.msra.mxu0 %v218
    %6484 = vmatprep.subr.mxu0 0.0
    %6485 = vmatpush2.msra.mxu0 0.0
    %6486 = vmatprep.subr.mxu0 0.0
    %6487 = vmatpush2.msra.mxu0 0.0
    %6488 = vmatprep.subr.mxu0 0.0
    %6489 = vmatpush2.msra.mxu0 0.0
    %6490 = vmatprep.subr.mxu0 0.0
    %6491 = vmatpush2.msra.mxu0 0.0
    %6492 = vmatprep.subr.mxu0 0.0
    %6493 = vmatpush2.msra.mxu0 0.0
    %6494 = vmatprep.subr.mxu0 0.0
    %6495 = vmatpush2.msra.mxu0 0.0
    %6496 = vmatprep.subr.mxu0 0.0
    %6497 = vmatpush2.msra.mxu0 0.0
    %6498 = vmatprep.subr.mxu0 0.0
    %6499 = vmatpush2.msra.mxu0 0.0
    %6500 = vmatprep.subr.mxu0 0.0
    %6501 = vmatpush2.msra.mxu0 0.0
    %6502 = vmatprep.subr.mxu0 0.0
    %6503 = vmatpush2.msra.mxu0 0.0
    %6504 = vmatprep.subr.mxu0 0.0
    %6505 = vmatpush2.msra.mxu0 0.0
    %6506 = vmatprep.subr.mxu0 0.0
    %6507 = vmatpush2.msra.mxu0 0.0
    %6508 = vmatprep.subr.mxu0 0.0
    %6509 = vmatpush2.msra.mxu0 0.0
    %6510 = vmatprep.subr.mxu0 0.0
    %6511 = vmatpush2.msra.mxu0 0.0
    %6512 = vmatprep.subr.mxu0 0.0
    %6513 = vmatpush2.msra.mxu0 0.0
    %6514 = vmatprep.subr.mxu0 0.0
    %6515 = vmatpush2.msra.mxu0 0.0
    %6516 = vmatprep.mubr.f32.mxu0 0.0
    %6517 = vmatmul.mubr.f32.gmra.mxu0 %v6450
    %v6518 = vpop.f32.mrf.mxu0
    %v6519 = vadd.f32 %v6444, %v6518
    %v6520 = vpop.f32.mrf.mxu0
    %6521 = vdwg.mxu0
    %v6522 = vadd.f32 %v6519, %v271
    %v6525 = vunpack.c.l.s4 1966171168
    %v6526 = vunpack.c.0.s8 %v6525
    %v6527 = vlaneseq
    %v6528 = vshrl.u32 %v6527, 7
    %v6529 = vsub.s32 %v6526, %v6528
    %v6530 = vrot.slane %v6522, %v6529
    %v6531 = vcombine.high %v6530, %v6530
    %v6533 = vunpack.c.l.s4 1966171168
    %v6534 = vunpack.c.0.s8 %v6533
    %v6535 = vlaneseq
    %v6536 = vshrl.u32 %v6535, 7
    %v6537 = vsub.s32 %v6534, %v6536
    %v6538 = vrot.slane %v6530, %v6537
    %v6540 = vunpack.c.l.s4 1966171168
    %v6541 = vunpack.c.0.s8 %v6540
    %v6542 = vlaneseq
    %v6543 = vshrl.u32 %v6542, 7
    %v6544 = vsub.s32 %v6541, %v6543
    %v6545 = vrot.slane %v6531, %v6544
    %v6546 = vlaneseq
    %v6547 = vshrl.u32 %v6546, 7
    %v6548 = vsub.s32 0, %v6547
    %v6549 = vrot.slane %v6538, %v6548
    %v6550 = vlaneseq
    %v6551 = vshrl.u32 %v6550, 7
    %v6552 = vsub.s32 0, %v6551
    %v6553 = vrot.slane %v6545, %v6552
    %v6556 = vadd.f32 %v6549, %v4466
    %v6557 = vadd.f32 %v6553, %v4471
    %v6558 = vtanh.pop %v6556
    %v6559 = vtanh.pop %v6557
    %v6560 = vmul.f32 %v6558, %v313
    %v6561 = vmul.f32 %v6559, %v313
    %v6562 = vsel %vm394, %v6560, 0.0
    %6563 = vadd.xlane.f32.xlu0 %v6562
    %v6564 = vpop.xlane.xlu0 %6563
    %v6565 = vsel %vm394, %v6561, 0.0
    %6566 = vadd.xlane.f32.xlu0 %v6565
    %v6567 = vpop.xlane.xlu0 %6566
    %v6570 = vlaneseq
    %v6571 = vshrl.u32 %v6570, 7
    %v6572 = vsub.s32 %v588, %v6571
    %v6573 = vrot.slane %v6564, %v6572
    %v6574 = vlaneseq
    %v6575 = vshrl.u32 %v6574, 7
    %v6576 = vsub.s32 %v588, %v6575
    %v6577 = vrot.slane %v6567, %v6576
    %v6578 = vsel %vm597, %v6577, %v6573
    %v6580 = vsel %vm4672, %v6578, -inf
    %6581 = vmax.xlane.f32.xlu0 %v6580
    %v6582 = vpop.xlane.xlu0 %6581
    %v6584 = vlaneseq
    %v6585 = vshrl.u32 %v6584, 7
    %v6586 = vsub.s32 0, %v6585
    %v6587 = vrot.slane %v6582, %v6586
    %v6588 = vlaneseq
    %v6589 = vshrl.u32 %v6588, 7
    %v6590 = vsub.s32 1, %v6589
    %v6591 = vrot.slane %v6582, %v6590
    %v6594 = vsub.f32 %v6564, %v6587
    %v6595 = vsub.f32 %v6567, %v6591
    %v6596 = vmul.f32 %v6594, 1.442695
    %v6597 = vpow.pop %v6596
    %v6598 = vmul.f32 %v6595, 1.442695
    %v6599 = vpow.pop %v6598
    %6602 = vset.pattern.permute.xlu0 0
    %6603 = vperm.xlu0 %6602, %v6597
    %v6604 = vpop.permute.xlu0 %6603
    %6605 = vset.pattern.permute.xlu0 0
    %6606 = vperm.xlu0 %6605, %v6599
    %v6607 = vpop.permute.xlu0 %6606
    %v6608 = vlaneseq
    %v6609 = vshrl.u32 %v6608, 7
    %v6610 = vsub.s32 %v588, %v6609
    %v6611 = vrot.slane %v6604, %v6610
    %v6612 = vlaneseq
    %v6613 = vshrl.u32 %v6612, 7
    %v6614 = vsub.s32 %v588, %v6613
    %v6615 = vrot.slane %v6607, %v6614
    %v6616 = vsel %vm597, %v6615, %v6611
    %v6618 = vsel %vm4672, %v6616, 0.0
    %6619 = vadd.xlane.f32.xlu0 %v6618
    %v6620 = vpop.xlane.xlu0 %6619
    %v6621 = vrcp.pop %v6620
    %v6623 = vlaneseq
    %v6624 = vshrl.u32 %v6623, 7
    %v6625 = vsub.s32 0, %v6624
    %v6626 = vrot.slane %v6621, %v6625
    %v6627 = vlaneseq
    %v6628 = vshrl.u32 %v6627, 7
    %v6629 = vsub.s32 1, %v6628
    %v6630 = vrot.slane %v6621, %v6629
    %v6633 = vmul.f32 %v6597, %v6626
    %v6634 = vmul.f32 %v6599, %v6630
    %6636 = vset.pattern.permute.xlu0 0
    %6637 = vperm.xlu0 %6636, %v6633
    %v6638 = vpop.permute.xlu0 %6637
    %6641 = vset.pattern.permute.xlu0 0
    %6642 = vperm.xlu0 %6641, %v6634
    %v6643 = vpop.permute.xlu0 %6642
    %v6645 = vmul.f32 %v6638, %v4387
    %v6646 = vmul.f32 %v6643, %v4388
    %v6647 = vsel %vm4740, %v6645, 0.0
    %v6648 = vrot.slane %v6647, 4
    %v6649 = vadd.f32 %v6647, %v6648
    %v6650 = vrot.slane %v6649, 2
    %v6651 = vadd.f32 %v6649, %v6650
    %v6652 = vrot.slane %v6651, 1
    %v6653 = vadd.f32 %v6651, %v6652
    %v6654 = vsel %vm4740, %v6646, 0.0
    %v6655 = vrot.slane %v6654, 4
    %v6656 = vadd.f32 %v6654, %v6655
    %v6657 = vrot.slane %v6656, 2
    %v6658 = vadd.f32 %v6656, %v6657
    %v6659 = vrot.slane %v6658, 1
    %v6660 = vadd.f32 %v6658, %v6659
    %v6663 = vsel %vm597, %v6660, %v6653
    %6664 = vrot.lane.b32.xlu0 %v6663, 32
    %v6665 = vpop.permute.xlu0 %6664
    %v6666 = vrot.slane %v4761, 4
    %v6667 = vrot.slane %v4762, 3
    %v6668 = vsel %vm597, %v6667, %v6666
    %v6670 = vsel %vm394, %v6665, 0
    %6672 = vmatprep.subr.mxu0 0.0
    %6673 = vmatpush1.msra.mxu0 0.0
    %6674 = vmatprep.subr.mxu0 0.0
    %6675 = vmatpush1.msra.mxu0 0.0
    %6676 = vmatprep.subr.mxu0 0.0
    %6677 = vmatpush1.msra.mxu0 0.0
    %6678 = vmatprep.subr.mxu0 0.0
    %6679 = vmatpush1.msra.mxu0 0.0
    %6680 = vmatprep.subr.mxu0 0.0
    %6681 = vmatpush1.msra.mxu0 0.0
    %6682 = vmatprep.subr.mxu0 0.0
    %6683 = vmatpush1.msra.mxu0 0.0
    %6684 = vmatprep.subr.mxu0 0.0
    %6685 = vmatpush1.msra.mxu0 0.0
    %6686 = vmatprep.subr.mxu0 0.0
    %6687 = vmatpush1.msra.mxu0 0.0
    %6688 = vmatprep.subr.mxu0 0.0
    %6689 = vmatpush1.msra.mxu0 0.0
    %6690 = vmatprep.subr.mxu0 0.0
    %6691 = vmatpush1.msra.mxu0 0.0
    %6692 = vmatprep.subr.mxu0 0.0
    %6693 = vmatpush1.msra.mxu0 0.0
    %6694 = vmatprep.subr.mxu0 0.0
    %6695 = vmatpush1.msra.mxu0 0.0
    %6696 = vmatprep.subr.mxu0 0.0
    %6697 = vmatpush1.msra.mxu0 %v233
    %6698 = vmatprep.subr.mxu0 0.0
    %6699 = vmatpush1.msra.mxu0 %v232
    %6700 = vmatprep.subr.mxu0 0.0
    %6701 = vmatpush1.msra.mxu0 %v231
    %6702 = vmatprep.subr.mxu0 0.0
    %6703 = vmatpush1.msra.mxu0 %v230
    %6704 = vmatprep.subr.mxu0 0.0
    %6705 = vmatpush2.msra.mxu0 0.0
    %6706 = vmatprep.subr.mxu0 0.0
    %6707 = vmatpush2.msra.mxu0 0.0
    %6708 = vmatprep.subr.mxu0 0.0
    %6709 = vmatpush2.msra.mxu0 0.0
    %6710 = vmatprep.subr.mxu0 0.0
    %6711 = vmatpush2.msra.mxu0 0.0
    %6712 = vmatprep.subr.mxu0 0.0
    %6713 = vmatpush2.msra.mxu0 0.0
    %6714 = vmatprep.subr.mxu0 0.0
    %6715 = vmatpush2.msra.mxu0 0.0
    %6716 = vmatprep.subr.mxu0 0.0
    %6717 = vmatpush2.msra.mxu0 0.0
    %6718 = vmatprep.subr.mxu0 0.0
    %6719 = vmatpush2.msra.mxu0 0.0
    %6720 = vmatprep.subr.mxu0 0.0
    %6721 = vmatpush2.msra.mxu0 0.0
    %6722 = vmatprep.subr.mxu0 0.0
    %6723 = vmatpush2.msra.mxu0 0.0
    %6724 = vmatprep.subr.mxu0 0.0
    %6725 = vmatpush2.msra.mxu0 0.0
    %6726 = vmatprep.subr.mxu0 0.0
    %6727 = vmatpush2.msra.mxu0 0.0
    %6728 = vmatprep.subr.mxu0 0.0
    %6729 = vmatpush2.msra.mxu0 0.0
    %6730 = vmatprep.subr.mxu0 0.0
    %6731 = vmatpush2.msra.mxu0 0.0
    %6732 = vmatprep.subr.mxu0 0.0
    %6733 = vmatpush2.msra.mxu0 0.0
    %6734 = vmatprep.subr.mxu0 0.0
    %6735 = vmatpush2.msra.mxu0 0.0
    %6736 = vmatprep.mubr.f32.mxu0 0.0
    %6737 = vmatmul.mubr.f32.gmra.mxu0 %v6670
    %v6738 = vpop.f32.mrf.mxu0
    %v6739 = vadd.f32 %v6668, %v6738
    %v6740 = vpop.f32.mrf.mxu0
    %6741 = vdwg.mxu0
    %v6742 = vadd.f32 %v6739, %v278
    %6744 = vset.pattern.permute.xlu0 0
    %6745 = vperm.xlu0 %6744, %v6742
    %v6746 = vpop.permute.xlu0 %6745
    %v6748 = vmul.f32 %v6746, %v4855
    %6749 = vmatprep.subr.mxu0 0.0
    %6750 = vmatpush1.msra.mxu0 0.0
    %6751 = vmatprep.subr.mxu0 0.0
    %6752 = vmatpush1.msra.mxu0 0.0
    %6753 = vmatprep.subr.mxu0 0.0
    %6754 = vmatpush1.msra.mxu0 0.0
    %6755 = vmatprep.subr.mxu0 0.0
    %6756 = vmatpush1.msra.mxu0 0.0
    %6757 = vmatprep.subr.mxu0 0.0
    %6758 = vmatpush1.msra.mxu0 0.0
    %6759 = vmatprep.subr.mxu0 0.0
    %6760 = vmatpush1.msra.mxu0 0.0
    %6761 = vmatprep.subr.mxu0 0.0
    %6762 = vmatpush1.msra.mxu0 0.0
    %6763 = vmatprep.subr.mxu0 0.0
    %6764 = vmatpush1.msra.mxu0 0.0
    %6765 = vmatprep.subr.mxu0 0.0
    %6766 = vmatpush1.msra.mxu0 0.0
    %6767 = vmatprep.subr.mxu0 0.0
    %6768 = vmatpush1.msra.mxu0 0.0
    %6769 = vmatprep.subr.mxu0 0.0
    %6770 = vmatpush1.msra.mxu0 0.0
    %6771 = vmatprep.subr.mxu0 0.0
    %6772 = vmatpush1.msra.mxu0 0.0
    %6773 = vmatprep.subr.mxu0 0.0
    %6774 = vmatpush1.msra.mxu0 %v239
    %6775 = vmatprep.subr.mxu0 0.0
    %6776 = vmatpush1.msra.mxu0 %v238
    %6777 = vmatprep.subr.mxu0 0.0
    %6778 = vmatpush1.msra.mxu0 %v237
    %6779 = vmatprep.subr.mxu0 0.0
    %6780 = vmatpush1.msra.mxu0 %v236
    %6781 = vmatprep.subr.mxu0 0.0
    %6782 = vmatpush2.msra.mxu0 0.0
    %6783 = vmatprep.subr.mxu0 0.0
    %6784 = vmatpush2.msra.mxu0 0.0
    %6785 = vmatprep.subr.mxu0 0.0
    %6786 = vmatpush2.msra.mxu0 0.0
    %6787 = vmatprep.subr.mxu0 0.0
    %6788 = vmatpush2.msra.mxu0 0.0
    %6789 = vmatprep.subr.mxu0 0.0
    %6790 = vmatpush2.msra.mxu0 0.0
    %6791 = vmatprep.subr.mxu0 0.0
    %6792 = vmatpush2.msra.mxu0 0.0
    %6793 = vmatprep.subr.mxu0 0.0
    %6794 = vmatpush2.msra.mxu0 0.0
    %6795 = vmatprep.subr.mxu0 0.0
    %6796 = vmatpush2.msra.mxu0 0.0
    %6797 = vmatprep.subr.mxu0 0.0
    %6798 = vmatpush2.msra.mxu0 0.0
    %6799 = vmatprep.subr.mxu0 0.0
    %6800 = vmatpush2.msra.mxu0 0.0
    %6801 = vmatprep.subr.mxu0 0.0
    %6802 = vmatpush2.msra.mxu0 0.0
    %6803 = vmatprep.subr.mxu0 0.0
    %6804 = vmatpush2.msra.mxu0 0.0
    %6805 = vmatprep.subr.mxu0 0.0
    %6806 = vmatpush2.msra.mxu0 0.0
    %6807 = vmatprep.subr.mxu0 0.0
    %6808 = vmatpush2.msra.mxu0 0.0
    %6809 = vmatprep.subr.mxu0 0.0
    %6810 = vmatpush2.msra.mxu0 0.0
    %6811 = vmatprep.subr.mxu0 0.0
    %6812 = vmatpush2.msra.mxu0 0.0
    %6813 = vmatprep.mubr.f32.mxu0 0.0
    %6814 = vmatmul.mubr.f32.gmra.mxu0 %v6450
    %v6815 = vpop.f32.mrf.mxu0
    %v6816 = vadd.f32 0.0, %v6815
    %v6817 = vpop.f32.mrf.mxu0
    %6818 = vdwg.mxu0
    %v6819 = vadd.f32 %v6748, %v6816
    %v6820 = vadd.f32 %v6819, %v285
    %v6821 = vxor.u32 %v6820, 2147483648
    %v6822 = vmul.f32 %v6821, 1.442695
    %v6823 = vpow.pop %v6822
    %v6824 = vadd.f32 %v6823, 1.0
    %v6825 = vrcp.pop %v6824
    %v6826 = vmul.f32 1.0, %v6825
    %v6827 = vtanh.pop %v6820
    %v6828 = vmul.f32 %v6826, %v6365
    %6830 = vrot.lane.b32.xlu0 %v6827, 64
    %v6831 = vpop.permute.xlu0 %6830
    %v6833 = vmul.f32 %v6826, %v6831
    %6835 = vrot.lane.b32.xlu0 %v6833, 32
    %v6836 = vpop.permute.xlu0 %6835
    %v6838 = vadd.f32 %v6828, %v6836
    %v6839 = vtanh.pop %v6838
    %6841 = vrot.lane.b32.xlu0 %v6839, 64
    %v6842 = vpop.permute.xlu0 %6841
    %v6844 = vmul.f32 %v6826, %v6842
    %6846 = vrot.lane.b32.xlu0 %v6838, 96
    %v6847 = vpop.permute.xlu0 %6846
    %v6848 = vsel %vm394, %v6847, 0
    %6850 = vmatprep.subr.mxu0 0.0
    %6851 = vmatpush1.msra.mxu0 0.0
    %6852 = vmatprep.subr.mxu0 0.0
    %6853 = vmatpush1.msra.mxu0 0.0
    %6854 = vmatprep.subr.mxu0 0.0
    %6855 = vmatpush1.msra.mxu0 0.0
    %6856 = vmatprep.subr.mxu0 0.0
    %6857 = vmatpush1.msra.mxu0 0.0
    %6858 = vmatprep.subr.mxu0 0.0
    %6859 = vmatpush1.msra.mxu0 0.0
    %6860 = vmatprep.subr.mxu0 0.0
    %6861 = vmatpush1.msra.mxu0 0.0
    %6862 = vmatprep.subr.mxu0 0.0
    %6863 = vmatpush1.msra.mxu0 0.0
    %6864 = vmatprep.subr.mxu0 0.0
    %6865 = vmatpush1.msra.mxu0 0.0
    %6866 = vmatprep.subr.mxu0 0.0
    %6867 = vmatpush1.msra.mxu0 0.0
    %6868 = vmatprep.subr.mxu0 0.0
    %6869 = vmatpush1.msra.mxu0 0.0
    %6870 = vmatprep.subr.mxu0 0.0
    %6871 = vmatpush1.msra.mxu0 0.0
    %6872 = vmatprep.subr.mxu0 0.0
    %6873 = vmatpush1.msra.mxu0 0.0
    %6874 = vmatprep.subr.mxu0 0.0
    %6875 = vmatpush1.msra.mxu0 %v225
    %6876 = vmatprep.subr.mxu0 0.0
    %6877 = vmatpush1.msra.mxu0 %v224
    %6878 = vmatprep.subr.mxu0 0.0
    %6879 = vmatpush1.msra.mxu0 %v223
    %6880 = vmatprep.subr.mxu0 0.0
    %6881 = vmatpush1.msra.mxu0 %v222
    %6882 = vmatprep.subr.mxu0 0.0
    %6883 = vmatpush2.msra.mxu0 0.0
    %6884 = vmatprep.subr.mxu0 0.0
    %6885 = vmatpush2.msra.mxu0 0.0
    %6886 = vmatprep.subr.mxu0 0.0
    %6887 = vmatpush2.msra.mxu0 0.0
    %6888 = vmatprep.subr.mxu0 0.0
    %6889 = vmatpush2.msra.mxu0 0.0
    %6890 = vmatprep.subr.mxu0 0.0
    %6891 = vmatpush2.msra.mxu0 0.0
    %6892 = vmatprep.subr.mxu0 0.0
    %6893 = vmatpush2.msra.mxu0 0.0
    %6894 = vmatprep.subr.mxu0 0.0
    %6895 = vmatpush2.msra.mxu0 0.0
    %6896 = vmatprep.subr.mxu0 0.0
    %6897 = vmatpush2.msra.mxu0 0.0
    %6898 = vmatprep.subr.mxu0 0.0
    %6899 = vmatpush2.msra.mxu0 0.0
    %6900 = vmatprep.subr.mxu0 0.0
    %6901 = vmatpush2.msra.mxu0 0.0
    %6902 = vmatprep.subr.mxu0 0.0
    %6903 = vmatpush2.msra.mxu0 0.0
    %6904 = vmatprep.subr.mxu0 0.0
    %6905 = vmatpush2.msra.mxu0 0.0
    %6906 = vmatprep.subr.mxu0 0.0
    %6907 = vmatpush2.msra.mxu0 0.0
    %6908 = vmatprep.subr.mxu0 0.0
    %6909 = vmatpush2.msra.mxu0 0.0
    %6910 = vmatprep.subr.mxu0 0.0
    %6911 = vmatpush2.msra.mxu0 0.0
    %6912 = vmatprep.subr.mxu0 0.0
    %6913 = vmatpush2.msra.mxu0 0.0
    %6914 = vmatprep.mubr.f32.mxu0 0.0
    %6915 = vmatmul.mubr.f32.gmra.mxu0 %v6848
    %v6916 = vpop.f32.mrf.mxu0
    %v6917 = vadd.f32 0.0, %v6916
    %v6918 = vpop.f32.mrf.mxu0
    %6919 = vdwg.mxu0
    %6921 = vrot.lane.b32.xlu0 %v6844, 32
    %v6922 = vpop.permute.xlu0 %6921
    %v6923 = vsel %vm394, %v6922, 0
    %6925 = vmatprep.subr.mxu0 0.0
    %6926 = vmatpush1.msra.mxu0 0.0
    %6927 = vmatprep.subr.mxu0 0.0
    %6928 = vmatpush1.msra.mxu0 0.0
    %6929 = vmatprep.subr.mxu0 0.0
    %6930 = vmatpush1.msra.mxu0 0.0
    %6931 = vmatprep.subr.mxu0 0.0
    %6932 = vmatpush1.msra.mxu0 0.0
    %6933 = vmatprep.subr.mxu0 0.0
    %6934 = vmatpush1.msra.mxu0 0.0
    %6935 = vmatprep.subr.mxu0 0.0
    %6936 = vmatpush1.msra.mxu0 0.0
    %6937 = vmatprep.subr.mxu0 0.0
    %6938 = vmatpush1.msra.mxu0 0.0
    %6939 = vmatprep.subr.mxu0 0.0
    %6940 = vmatpush1.msra.mxu0 0.0
    %6941 = vmatprep.subr.mxu0 0.0
    %6942 = vmatpush1.msra.mxu0 0.0
    %6943 = vmatprep.subr.mxu0 0.0
    %6944 = vmatpush1.msra.mxu0 0.0
    %6945 = vmatprep.subr.mxu0 0.0
    %6946 = vmatpush1.msra.mxu0 0.0
    %6947 = vmatprep.subr.mxu0 0.0
    %6948 = vmatpush1.msra.mxu0 0.0
    %6949 = vmatprep.subr.mxu0 0.0
    %6950 = vmatpush1.msra.mxu0 %v221
    %6951 = vmatprep.subr.mxu0 0.0
    %6952 = vmatpush1.msra.mxu0 %v220
    %6953 = vmatprep.subr.mxu0 0.0
    %6954 = vmatpush1.msra.mxu0 %v219
    %6955 = vmatprep.subr.mxu0 0.0
    %6956 = vmatpush1.msra.mxu0 %v218
    %6957 = vmatprep.subr.mxu0 0.0
    %6958 = vmatpush2.msra.mxu0 0.0
    %6959 = vmatprep.subr.mxu0 0.0
    %6960 = vmatpush2.msra.mxu0 0.0
    %6961 = vmatprep.subr.mxu0 0.0
    %6962 = vmatpush2.msra.mxu0 0.0
    %6963 = vmatprep.subr.mxu0 0.0
    %6964 = vmatpush2.msra.mxu0 0.0
    %6965 = vmatprep.subr.mxu0 0.0
    %6966 = vmatpush2.msra.mxu0 0.0
    %6967 = vmatprep.subr.mxu0 0.0
    %6968 = vmatpush2.msra.mxu0 0.0
    %6969 = vmatprep.subr.mxu0 0.0
    %6970 = vmatpush2.msra.mxu0 0.0
    %6971 = vmatprep.subr.mxu0 0.0
    %6972 = vmatpush2.msra.mxu0 0.0
    %6973 = vmatprep.subr.mxu0 0.0
    %6974 = vmatpush2.msra.mxu0 0.0
    %6975 = vmatprep.subr.mxu0 0.0
    %6976 = vmatpush2.msra.mxu0 0.0
    %6977 = vmatprep.subr.mxu0 0.0
    %6978 = vmatpush2.msra.mxu0 0.0
    %6979 = vmatprep.subr.mxu0 0.0
    %6980 = vmatpush2.msra.mxu0 0.0
    %6981 = vmatprep.subr.mxu0 0.0
    %6982 = vmatpush2.msra.mxu0 0.0
    %6983 = vmatprep.subr.mxu0 0.0
    %6984 = vmatpush2.msra.mxu0 0.0
    %6985 = vmatprep.subr.mxu0 0.0
    %6986 = vmatpush2.msra.mxu0 0.0
    %6987 = vmatprep.subr.mxu0 0.0
    %6988 = vmatpush2.msra.mxu0 0.0
    %6989 = vmatprep.mubr.f32.mxu0 0.0
    %6990 = vmatmul.mubr.f32.gmra.mxu0 %v6923
    %v6991 = vpop.f32.mrf.mxu0
    %v6992 = vadd.f32 %v6917, %v6991
    %v6993 = vpop.f32.mrf.mxu0
    %6994 = vdwg.mxu0
    %v6995 = vadd.f32 %v6992, %v271
    %v6998 = vunpack.c.l.s4 1966171168
    %v6999 = vunpack.c.0.s8 %v6998
    %v7000 = vlaneseq
    %v7001 = vshrl.u32 %v7000, 7
    %v7002 = vsub.s32 %v6999, %v7001
    %v7003 = vrot.slane %v6995, %v7002
    %v7004 = vcombine.high %v7003, %v7003
    %v7006 = vunpack.c.l.s4 1966171168
    %v7007 = vunpack.c.0.s8 %v7006
    %v7008 = vlaneseq
    %v7009 = vshrl.u32 %v7008, 7
    %v7010 = vsub.s32 %v7007, %v7009
    %v7011 = vrot.slane %v7003, %v7010
    %v7013 = vunpack.c.l.s4 1966171168
    %v7014 = vunpack.c.0.s8 %v7013
    %v7015 = vlaneseq
    %v7016 = vshrl.u32 %v7015, 7
    %v7017 = vsub.s32 %v7014, %v7016
    %v7018 = vrot.slane %v7004, %v7017
    %v7019 = vlaneseq
    %v7020 = vshrl.u32 %v7019, 7
    %v7021 = vsub.s32 0, %v7020
    %v7022 = vrot.slane %v7011, %v7021
    %v7023 = vlaneseq
    %v7024 = vshrl.u32 %v7023, 7
    %v7025 = vsub.s32 0, %v7024
    %v7026 = vrot.slane %v7018, %v7025
    %v7029 = vadd.f32 %v7022, %v4466
    %v7030 = vadd.f32 %v7026, %v4471
    %v7031 = vtanh.pop %v7029
    %v7032 = vtanh.pop %v7030
    %v7033 = vmul.f32 %v7031, %v313
    %v7034 = vmul.f32 %v7032, %v313
    %v7035 = vsel %vm394, %v7033, 0.0
    %7036 = vadd.xlane.f32.xlu0 %v7035
    %v7037 = vpop.xlane.xlu0 %7036
    %v7038 = vsel %vm394, %v7034, 0.0
    %7039 = vadd.xlane.f32.xlu0 %v7038
    %v7040 = vpop.xlane.xlu0 %7039
    %v7043 = vlaneseq
    %v7044 = vshrl.u32 %v7043, 7
    %v7045 = vsub.s32 %v588, %v7044
    %v7046 = vrot.slane %v7037, %v7045
    %v7047 = vlaneseq
    %v7048 = vshrl.u32 %v7047, 7
    %v7049 = vsub.s32 %v588, %v7048
    %v7050 = vrot.slane %v7040, %v7049
    %v7051 = vsel %vm597, %v7050, %v7046
    %v7053 = vsel %vm4672, %v7051, -inf
    %7054 = vmax.xlane.f32.xlu0 %v7053
    %v7055 = vpop.xlane.xlu0 %7054
    %v7057 = vlaneseq
    %v7058 = vshrl.u32 %v7057, 7
    %v7059 = vsub.s32 0, %v7058
    %v7060 = vrot.slane %v7055, %v7059
    %v7061 = vlaneseq
    %v7062 = vshrl.u32 %v7061, 7
    %v7063 = vsub.s32 1, %v7062
    %v7064 = vrot.slane %v7055, %v7063
    %v7067 = vsub.f32 %v7037, %v7060
    %v7068 = vsub.f32 %v7040, %v7064
    %v7069 = vmul.f32 %v7067, 1.442695
    %v7070 = vpow.pop %v7069
    %v7071 = vmul.f32 %v7068, 1.442695
    %v7072 = vpow.pop %v7071
    %7075 = vset.pattern.permute.xlu0 0
    %7076 = vperm.xlu0 %7075, %v7070
    %v7077 = vpop.permute.xlu0 %7076
    %7078 = vset.pattern.permute.xlu0 0
    %7079 = vperm.xlu0 %7078, %v7072
    %v7080 = vpop.permute.xlu0 %7079
    %v7081 = vlaneseq
    %v7082 = vshrl.u32 %v7081, 7
    %v7083 = vsub.s32 %v588, %v7082
    %v7084 = vrot.slane %v7077, %v7083
    %v7085 = vlaneseq
    %v7086 = vshrl.u32 %v7085, 7
    %v7087 = vsub.s32 %v588, %v7086
    %v7088 = vrot.slane %v7080, %v7087
    %v7089 = vsel %vm597, %v7088, %v7084
    %v7091 = vsel %vm4672, %v7089, 0.0
    %7092 = vadd.xlane.f32.xlu0 %v7091
    %v7093 = vpop.xlane.xlu0 %7092
    %v7094 = vrcp.pop %v7093
    %v7096 = vlaneseq
    %v7097 = vshrl.u32 %v7096, 7
    %v7098 = vsub.s32 0, %v7097
    %v7099 = vrot.slane %v7094, %v7098
    %v7100 = vlaneseq
    %v7101 = vshrl.u32 %v7100, 7
    %v7102 = vsub.s32 1, %v7101
    %v7103 = vrot.slane %v7094, %v7102
    %v7106 = vmul.f32 %v7070, %v7099
    %v7107 = vmul.f32 %v7072, %v7103
    %7109 = vset.pattern.permute.xlu0 0
    %7110 = vperm.xlu0 %7109, %v7106
    %v7111 = vpop.permute.xlu0 %7110
    %7114 = vset.pattern.permute.xlu0 0
    %7115 = vperm.xlu0 %7114, %v7107
    %v7116 = vpop.permute.xlu0 %7115
    %v7118 = vmul.f32 %v7111, %v4387
    %v7119 = vmul.f32 %v7116, %v4388
    %v7120 = vsel %vm4740, %v7118, 0.0
    %v7121 = vrot.slane %v7120, 4
    %v7122 = vadd.f32 %v7120, %v7121
    %v7123 = vrot.slane %v7122, 2
    %v7124 = vadd.f32 %v7122, %v7123
    %v7125 = vrot.slane %v7124, 1
    %v7126 = vadd.f32 %v7124, %v7125
    %v7127 = vsel %vm4740, %v7119, 0.0
    %v7128 = vrot.slane %v7127, 4
    %v7129 = vadd.f32 %v7127, %v7128
    %v7130 = vrot.slane %v7129, 2
    %v7131 = vadd.f32 %v7129, %v7130
    %v7132 = vrot.slane %v7131, 1
    %v7133 = vadd.f32 %v7131, %v7132
    %v7136 = vsel %vm597, %v7133, %v7126
    %7137 = vrot.lane.b32.xlu0 %v7136, 32
    %v7138 = vpop.permute.xlu0 %7137
    %v7139 = vrot.slane %v4761, 5
    %v7140 = vrot.slane %v4762, 4
    %v7141 = vsel %vm597, %v7140, %v7139
    %v7143 = vsel %vm394, %v7138, 0
    %7145 = vmatprep.subr.mxu0 0.0
    %7146 = vmatpush1.msra.mxu0 0.0
    %7147 = vmatprep.subr.mxu0 0.0
    %7148 = vmatpush1.msra.mxu0 0.0
    %7149 = vmatprep.subr.mxu0 0.0
    %7150 = vmatpush1.msra.mxu0 0.0
    %7151 = vmatprep.subr.mxu0 0.0
    %7152 = vmatpush1.msra.mxu0 0.0
    %7153 = vmatprep.subr.mxu0 0.0
    %7154 = vmatpush1.msra.mxu0 0.0
    %7155 = vmatprep.subr.mxu0 0.0
    %7156 = vmatpush1.msra.mxu0 0.0
    %7157 = vmatprep.subr.mxu0 0.0
    %7158 = vmatpush1.msra.mxu0 0.0
    %7159 = vmatprep.subr.mxu0 0.0
    %7160 = vmatpush1.msra.mxu0 0.0
    %7161 = vmatprep.subr.mxu0 0.0
    %7162 = vmatpush1.msra.mxu0 0.0
    %7163 = vmatprep.subr.mxu0 0.0
    %7164 = vmatpush1.msra.mxu0 0.0
    %7165 = vmatprep.subr.mxu0 0.0
    %7166 = vmatpush1.msra.mxu0 0.0
    %7167 = vmatprep.subr.mxu0 0.0
    %7168 = vmatpush1.msra.mxu0 0.0
    %7169 = vmatprep.subr.mxu0 0.0
    %7170 = vmatpush1.msra.mxu0 %v233
    %7171 = vmatprep.subr.mxu0 0.0
    %7172 = vmatpush1.msra.mxu0 %v232
    %7173 = vmatprep.subr.mxu0 0.0
    %7174 = vmatpush1.msra.mxu0 %v231
    %7175 = vmatprep.subr.mxu0 0.0
    %7176 = vmatpush1.msra.mxu0 %v230
    %7177 = vmatprep.subr.mxu0 0.0
    %7178 = vmatpush2.msra.mxu0 0.0
    %7179 = vmatprep.subr.mxu0 0.0
    %7180 = vmatpush2.msra.mxu0 0.0
    %7181 = vmatprep.subr.mxu0 0.0
    %7182 = vmatpush2.msra.mxu0 0.0
    %7183 = vmatprep.subr.mxu0 0.0
    %7184 = vmatpush2.msra.mxu0 0.0
    %7185 = vmatprep.subr.mxu0 0.0
    %7186 = vmatpush2.msra.mxu0 0.0
    %7187 = vmatprep.subr.mxu0 0.0
    %7188 = vmatpush2.msra.mxu0 0.0
    %7189 = vmatprep.subr.mxu0 0.0
    %7190 = vmatpush2.msra.mxu0 0.0
    %7191 = vmatprep.subr.mxu0 0.0
    %7192 = vmatpush2.msra.mxu0 0.0
    %7193 = vmatprep.subr.mxu0 0.0
    %7194 = vmatpush2.msra.mxu0 0.0
    %7195 = vmatprep.subr.mxu0 0.0
    %7196 = vmatpush2.msra.mxu0 0.0
    %7197 = vmatprep.subr.mxu0 0.0
    %7198 = vmatpush2.msra.mxu0 0.0
    %7199 = vmatprep.subr.mxu0 0.0
    %7200 = vmatpush2.msra.mxu0 0.0
    %7201 = vmatprep.subr.mxu0 0.0
    %7202 = vmatpush2.msra.mxu0 0.0
    %7203 = vmatprep.subr.mxu0 0.0
    %7204 = vmatpush2.msra.mxu0 0.0
    %7205 = vmatprep.subr.mxu0 0.0
    %7206 = vmatpush2.msra.mxu0 0.0
    %7207 = vmatprep.subr.mxu0 0.0
    %7208 = vmatpush2.msra.mxu0 0.0
    %7209 = vmatprep.mubr.f32.mxu0 0.0
    %7210 = vmatmul.mubr.f32.gmra.mxu0 %v7143
    %v7211 = vpop.f32.mrf.mxu0
    %v7212 = vadd.f32 %v7141, %v7211
    %v7213 = vpop.f32.mrf.mxu0
    %7214 = vdwg.mxu0
    %v7215 = vadd.f32 %v7212, %v278
    %7217 = vset.pattern.permute.xlu0 0
    %7218 = vperm.xlu0 %7217, %v7215
    %v7219 = vpop.permute.xlu0 %7218
    %v7221 = vmul.f32 %v7219, %v4855
    %7222 = vmatprep.subr.mxu0 0.0
    %7223 = vmatpush1.msra.mxu0 0.0
    %7224 = vmatprep.subr.mxu0 0.0
    %7225 = vmatpush1.msra.mxu0 0.0
    %7226 = vmatprep.subr.mxu0 0.0
    %7227 = vmatpush1.msra.mxu0 0.0
    %7228 = vmatprep.subr.mxu0 0.0
    %7229 = vmatpush1.msra.mxu0 0.0
    %7230 = vmatprep.subr.mxu0 0.0
    %7231 = vmatpush1.msra.mxu0 0.0
    %7232 = vmatprep.subr.mxu0 0.0
    %7233 = vmatpush1.msra.mxu0 0.0
    %7234 = vmatprep.subr.mxu0 0.0
    %7235 = vmatpush1.msra.mxu0 0.0
    %7236 = vmatprep.subr.mxu0 0.0
    %7237 = vmatpush1.msra.mxu0 0.0
    %7238 = vmatprep.subr.mxu0 0.0
    %7239 = vmatpush1.msra.mxu0 0.0
    %7240 = vmatprep.subr.mxu0 0.0
    %7241 = vmatpush1.msra.mxu0 0.0
    %7242 = vmatprep.subr.mxu0 0.0
    %7243 = vmatpush1.msra.mxu0 0.0
    %7244 = vmatprep.subr.mxu0 0.0
    %7245 = vmatpush1.msra.mxu0 0.0
    %7246 = vmatprep.subr.mxu0 0.0
    %7247 = vmatpush1.msra.mxu0 %v239
    %7248 = vmatprep.subr.mxu0 0.0
    %7249 = vmatpush1.msra.mxu0 %v238
    %7250 = vmatprep.subr.mxu0 0.0
    %7251 = vmatpush1.msra.mxu0 %v237
    %7252 = vmatprep.subr.mxu0 0.0
    %7253 = vmatpush1.msra.mxu0 %v236
    %7254 = vmatprep.subr.mxu0 0.0
    %7255 = vmatpush2.msra.mxu0 0.0
    %7256 = vmatprep.subr.mxu0 0.0
    %7257 = vmatpush2.msra.mxu0 0.0
    %7258 = vmatprep.subr.mxu0 0.0
    %7259 = vmatpush2.msra.mxu0 0.0
    %7260 = vmatprep.subr.mxu0 0.0
    %7261 = vmatpush2.msra.mxu0 0.0
    %7262 = vmatprep.subr.mxu0 0.0
    %7263 = vmatpush2.msra.mxu0 0.0
    %7264 = vmatprep.subr.mxu0 0.0
    %7265 = vmatpush2.msra.mxu0 0.0
    %7266 = vmatprep.subr.mxu0 0.0
    %7267 = vmatpush2.msra.mxu0 0.0
    %7268 = vmatprep.subr.mxu0 0.0
    %7269 = vmatpush2.msra.mxu0 0.0
    %7270 = vmatprep.subr.mxu0 0.0
    %7271 = vmatpush2.msra.mxu0 0.0
    %7272 = vmatprep.subr.mxu0 0.0
    %7273 = vmatpush2.msra.mxu0 0.0
    %7274 = vmatprep.subr.mxu0 0.0
    %7275 = vmatpush2.msra.mxu0 0.0
    %7276 = vmatprep.subr.mxu0 0.0
    %7277 = vmatpush2.msra.mxu0 0.0
    %7278 = vmatprep.subr.mxu0 0.0
    %7279 = vmatpush2.msra.mxu0 0.0
    %7280 = vmatprep.subr.mxu0 0.0
    %7281 = vmatpush2.msra.mxu0 0.0
    %7282 = vmatprep.subr.mxu0 0.0
    %7283 = vmatpush2.msra.mxu0 0.0
    %7284 = vmatprep.subr.mxu0 0.0
    %7285 = vmatpush2.msra.mxu0 0.0
    %7286 = vmatprep.mubr.f32.mxu0 0.0
    %7287 = vmatmul.mubr.f32.gmra.mxu0 %v6923
    %v7288 = vpop.f32.mrf.mxu0
    %v7289 = vadd.f32 0.0, %v7288
    %v7290 = vpop.f32.mrf.mxu0
    %7291 = vdwg.mxu0
    %v7292 = vadd.f32 %v7221, %v7289
    %v7293 = vadd.f32 %v7292, %v285
    %v7294 = vxor.u32 %v7293, 2147483648
    %v7295 = vmul.f32 %v7294, 1.442695
    %v7296 = vpow.pop %v7295
    %v7297 = vadd.f32 %v7296, 1.0
    %v7298 = vrcp.pop %v7297
    %v7299 = vmul.f32 1.0, %v7298
    %v7300 = vtanh.pop %v7293
    %v7301 = vmul.f32 %v7299, %v6838
    %7303 = vrot.lane.b32.xlu0 %v7300, 64
    %v7304 = vpop.permute.xlu0 %7303
    %v7306 = vmul.f32 %v7299, %v7304
    %7308 = vrot.lane.b32.xlu0 %v7306, 32
    %v7309 = vpop.permute.xlu0 %7308
    %v7311 = vadd.f32 %v7301, %v7309
    %v7312 = vtanh.pop %v7311
    %7314 = vrot.lane.b32.xlu0 %v7312, 64
    %v7315 = vpop.permute.xlu0 %7314
    %v7317 = vmul.f32 %v7299, %v7315
    %7319 = vrot.lane.b32.xlu0 %v7311, 96
    %v7320 = vpop.permute.xlu0 %7319
    %v7321 = vsel %vm394, %v7320, 0
    %7323 = vmatprep.subr.mxu0 0.0
    %7324 = vmatpush1.msra.mxu0 0.0
    %7325 = vmatprep.subr.mxu0 0.0
    %7326 = vmatpush1.msra.mxu0 0.0
    %7327 = vmatprep.subr.mxu0 0.0
    %7328 = vmatpush1.msra.mxu0 0.0
    %7329 = vmatprep.subr.mxu0 0.0
    %7330 = vmatpush1.msra.mxu0 0.0
    %7331 = vmatprep.subr.mxu0 0.0
    %7332 = vmatpush1.msra.mxu0 0.0
    %7333 = vmatprep.subr.mxu0 0.0
    %7334 = vmatpush1.msra.mxu0 0.0
    %7335 = vmatprep.subr.mxu0 0.0
    %7336 = vmatpush1.msra.mxu0 0.0
    %7337 = vmatprep.subr.mxu0 0.0
    %7338 = vmatpush1.msra.mxu0 0.0
    %7339 = vmatprep.subr.mxu0 0.0
    %7340 = vmatpush1.msra.mxu0 0.0
    %7341 = vmatprep.subr.mxu0 0.0
    %7342 = vmatpush1.msra.mxu0 0.0
    %7343 = vmatprep.subr.mxu0 0.0
    %7344 = vmatpush1.msra.mxu0 0.0
    %7345 = vmatprep.subr.mxu0 0.0
    %7346 = vmatpush1.msra.mxu0 0.0
    %7347 = vmatprep.subr.mxu0 0.0
    %7348 = vmatpush1.msra.mxu0 %v225
    %7349 = vmatprep.subr.mxu0 0.0
    %7350 = vmatpush1.msra.mxu0 %v224
    %7351 = vmatprep.subr.mxu0 0.0
    %7352 = vmatpush1.msra.mxu0 %v223
    %7353 = vmatprep.subr.mxu0 0.0
    %7354 = vmatpush1.msra.mxu0 %v222
    %7355 = vmatprep.subr.mxu0 0.0
    %7356 = vmatpush2.msra.mxu0 0.0
    %7357 = vmatprep.subr.mxu0 0.0
    %7358 = vmatpush2.msra.mxu0 0.0
    %7359 = vmatprep.subr.mxu0 0.0
    %7360 = vmatpush2.msra.mxu0 0.0
    %7361 = vmatprep.subr.mxu0 0.0
    %7362 = vmatpush2.msra.mxu0 0.0
    %7363 = vmatprep.subr.mxu0 0.0
    %7364 = vmatpush2.msra.mxu0 0.0
    %7365 = vmatprep.subr.mxu0 0.0
    %7366 = vmatpush2.msra.mxu0 0.0
    %7367 = vmatprep.subr.mxu0 0.0
    %7368 = vmatpush2.msra.mxu0 0.0
    %7369 = vmatprep.subr.mxu0 0.0
    %7370 = vmatpush2.msra.mxu0 0.0
    %7371 = vmatprep.subr.mxu0 0.0
    %7372 = vmatpush2.msra.mxu0 0.0
    %7373 = vmatprep.subr.mxu0 0.0
    %7374 = vmatpush2.msra.mxu0 0.0
    %7375 = vmatprep.subr.mxu0 0.0
    %7376 = vmatpush2.msra.mxu0 0.0
    %7377 = vmatprep.subr.mxu0 0.0
    %7378 = vmatpush2.msra.mxu0 0.0
    %7379 = vmatprep.subr.mxu0 0.0
    %7380 = vmatpush2.msra.mxu0 0.0
    %7381 = vmatprep.subr.mxu0 0.0
    %7382 = vmatpush2.msra.mxu0 0.0
    %7383 = vmatprep.subr.mxu0 0.0
    %7384 = vmatpush2.msra.mxu0 0.0
    %7385 = vmatprep.subr.mxu0 0.0
    %7386 = vmatpush2.msra.mxu0 0.0
    %7387 = vmatprep.mubr.f32.mxu0 0.0
    %7388 = vmatmul.mubr.f32.gmra.mxu0 %v7321
    %v7389 = vpop.f32.mrf.mxu0
    %v7390 = vadd.f32 0.0, %v7389
    %v7391 = vpop.f32.mrf.mxu0
    %7392 = vdwg.mxu0
    %7394 = vrot.lane.b32.xlu0 %v7317, 32
    %v7395 = vpop.permute.xlu0 %7394
    %v7396 = vsel %vm394, %v7395, 0
    %7398 = vmatprep.subr.mxu0 0.0
    %7399 = vmatpush1.msra.mxu0 0.0
    %7400 = vmatprep.subr.mxu0 0.0
    %7401 = vmatpush1.msra.mxu0 0.0
    %7402 = vmatprep.subr.mxu0 0.0
    %7403 = vmatpush1.msra.mxu0 0.0
    %7404 = vmatprep.subr.mxu0 0.0
    %7405 = vmatpush1.msra.mxu0 0.0
    %7406 = vmatprep.subr.mxu0 0.0
    %7407 = vmatpush1.msra.mxu0 0.0
    %7408 = vmatprep.subr.mxu0 0.0
    %7409 = vmatpush1.msra.mxu0 0.0
    %7410 = vmatprep.subr.mxu0 0.0
    %7411 = vmatpush1.msra.mxu0 0.0
    %7412 = vmatprep.subr.mxu0 0.0
    %7413 = vmatpush1.msra.mxu0 0.0
    %7414 = vmatprep.subr.mxu0 0.0
    %7415 = vmatpush1.msra.mxu0 0.0
    %7416 = vmatprep.subr.mxu0 0.0
    %7417 = vmatpush1.msra.mxu0 0.0
    %7418 = vmatprep.subr.mxu0 0.0
    %7419 = vmatpush1.msra.mxu0 0.0
    %7420 = vmatprep.subr.mxu0 0.0
    %7421 = vmatpush1.msra.mxu0 0.0
    %7422 = vmatprep.subr.mxu0 0.0
    %7423 = vmatpush1.msra.mxu0 %v221
    %7424 = vmatprep.subr.mxu0 0.0
    %7425 = vmatpush1.msra.mxu0 %v220
    %7426 = vmatprep.subr.mxu0 0.0
    %7427 = vmatpush1.msra.mxu0 %v219
    %7428 = vmatprep.subr.mxu0 0.0
    %7429 = vmatpush1.msra.mxu0 %v218
    %7430 = vmatprep.subr.mxu0 0.0
    %7431 = vmatpush2.msra.mxu0 0.0
    %7432 = vmatprep.subr.mxu0 0.0
    %7433 = vmatpush2.msra.mxu0 0.0
    %7434 = vmatprep.subr.mxu0 0.0
    %7435 = vmatpush2.msra.mxu0 0.0
    %7436 = vmatprep.subr.mxu0 0.0
    %7437 = vmatpush2.msra.mxu0 0.0
    %7438 = vmatprep.subr.mxu0 0.0
    %7439 = vmatpush2.msra.mxu0 0.0
    %7440 = vmatprep.subr.mxu0 0.0
    %7441 = vmatpush2.msra.mxu0 0.0
    %7442 = vmatprep.subr.mxu0 0.0
    %7443 = vmatpush2.msra.mxu0 0.0
    %7444 = vmatprep.subr.mxu0 0.0
    %7445 = vmatpush2.msra.mxu0 0.0
    %7446 = vmatprep.subr.mxu0 0.0
    %7447 = vmatpush2.msra.mxu0 0.0
    %7448 = vmatprep.subr.mxu0 0.0
    %7449 = vmatpush2.msra.mxu0 0.0
    %7450 = vmatprep.subr.mxu0 0.0
    %7451 = vmatpush2.msra.mxu0 0.0
    %7452 = vmatprep.subr.mxu0 0.0
    %7453 = vmatpush2.msra.mxu0 0.0
    %7454 = vmatprep.subr.mxu0 0.0
    %7455 = vmatpush2.msra.mxu0 0.0
    %7456 = vmatprep.subr.mxu0 0.0
    %7457 = vmatpush2.msra.mxu0 0.0
    %7458 = vmatprep.subr.mxu0 0.0
    %7459 = vmatpush2.msra.mxu0 0.0
    %7460 = vmatprep.subr.mxu0 0.0
    %7461 = vmatpush2.msra.mxu0 0.0
    %7462 = vmatprep.mubr.f32.mxu0 0.0
    %7463 = vmatmul.mubr.f32.gmra.mxu0 %v7396
    %v7464 = vpop.f32.mrf.mxu0
    %v7465 = vadd.f32 %v7390, %v7464
    %v7466 = vpop.f32.mrf.mxu0
    %7467 = vdwg.mxu0
    %v7468 = vadd.f32 %v7465, %v271
    %v7471 = vunpack.c.l.s4 1966171168
    %v7472 = vunpack.c.0.s8 %v7471
    %v7473 = vlaneseq
    %v7474 = vshrl.u32 %v7473, 7
    %v7475 = vsub.s32 %v7472, %v7474
    %v7476 = vrot.slane %v7468, %v7475
    %v7477 = vcombine.high %v7476, %v7476
    %v7479 = vunpack.c.l.s4 1966171168
    %v7480 = vunpack.c.0.s8 %v7479
    %v7481 = vlaneseq
    %v7482 = vshrl.u32 %v7481, 7
    %v7483 = vsub.s32 %v7480, %v7482
    %v7484 = vrot.slane %v7476, %v7483
    %v7486 = vunpack.c.l.s4 1966171168
    %v7487 = vunpack.c.0.s8 %v7486
    %v7488 = vlaneseq
    %v7489 = vshrl.u32 %v7488, 7
    %v7490 = vsub.s32 %v7487, %v7489
    %v7491 = vrot.slane %v7477, %v7490
    %v7492 = vlaneseq
    %v7493 = vshrl.u32 %v7492, 7
    %v7494 = vsub.s32 0, %v7493
    %v7495 = vrot.slane %v7484, %v7494
    %v7496 = vlaneseq
    %v7497 = vshrl.u32 %v7496, 7
    %v7498 = vsub.s32 0, %v7497
    %v7499 = vrot.slane %v7491, %v7498
    %v7502 = vadd.f32 %v7495, %v4466
    %v7503 = vadd.f32 %v7499, %v4471
    %v7504 = vtanh.pop %v7502
    %v7505 = vtanh.pop %v7503
    %v7506 = vmul.f32 %v7504, %v313
    %v7507 = vmul.f32 %v7505, %v313
    %v7508 = vsel %vm394, %v7506, 0.0
    %7509 = vadd.xlane.f32.xlu0 %v7508
    %v7510 = vpop.xlane.xlu0 %7509
    %v7511 = vsel %vm394, %v7507, 0.0
    %7512 = vadd.xlane.f32.xlu0 %v7511
    %v7513 = vpop.xlane.xlu0 %7512
    %v7516 = vlaneseq
    %v7517 = vshrl.u32 %v7516, 7
    %v7518 = vsub.s32 %v588, %v7517
    %v7519 = vrot.slane %v7510, %v7518
    %v7520 = vlaneseq
    %v7521 = vshrl.u32 %v7520, 7
    %v7522 = vsub.s32 %v588, %v7521
    %v7523 = vrot.slane %v7513, %v7522
    %v7524 = vsel %vm597, %v7523, %v7519
    %v7526 = vsel %vm4672, %v7524, -inf
    %7527 = vmax.xlane.f32.xlu0 %v7526
    %v7528 = vpop.xlane.xlu0 %7527
    %v7530 = vlaneseq
    %v7531 = vshrl.u32 %v7530, 7
    %v7532 = vsub.s32 0, %v7531
    %v7533 = vrot.slane %v7528, %v7532
    %v7534 = vlaneseq
    %v7535 = vshrl.u32 %v7534, 7
    %v7536 = vsub.s32 1, %v7535
    %v7537 = vrot.slane %v7528, %v7536
    %v7540 = vsub.f32 %v7510, %v7533
    %v7541 = vsub.f32 %v7513, %v7537
    %v7542 = vmul.f32 %v7540, 1.442695
    %v7543 = vpow.pop %v7542
    %v7544 = vmul.f32 %v7541, 1.442695
    %v7545 = vpow.pop %v7544
    %7548 = vset.pattern.permute.xlu0 0
    %7549 = vperm.xlu0 %7548, %v7543
    %v7550 = vpop.permute.xlu0 %7549
    %7551 = vset.pattern.permute.xlu0 0
    %7552 = vperm.xlu0 %7551, %v7545
    %v7553 = vpop.permute.xlu0 %7552
    %v7554 = vlaneseq
    %v7555 = vshrl.u32 %v7554, 7
    %v7556 = vsub.s32 %v588, %v7555
    %v7557 = vrot.slane %v7550, %v7556
    %v7558 = vlaneseq
    %v7559 = vshrl.u32 %v7558, 7
    %v7560 = vsub.s32 %v588, %v7559
    %v7561 = vrot.slane %v7553, %v7560
    %v7562 = vsel %vm597, %v7561, %v7557
    %v7564 = vsel %vm4672, %v7562, 0.0
    %7565 = vadd.xlane.f32.xlu0 %v7564
    %v7566 = vpop.xlane.xlu0 %7565
    %v7567 = vrcp.pop %v7566
    %v7569 = vlaneseq
    %v7570 = vshrl.u32 %v7569, 7
    %v7571 = vsub.s32 0, %v7570
    %v7572 = vrot.slane %v7567, %v7571
    %v7573 = vlaneseq
    %v7574 = vshrl.u32 %v7573, 7
    %v7575 = vsub.s32 1, %v7574
    %v7576 = vrot.slane %v7567, %v7575
    %v7579 = vmul.f32 %v7543, %v7572
    %v7580 = vmul.f32 %v7545, %v7576
    %7582 = vset.pattern.permute.xlu0 0
    %7583 = vperm.xlu0 %7582, %v7579
    %v7584 = vpop.permute.xlu0 %7583
    %7587 = vset.pattern.permute.xlu0 0
    %7588 = vperm.xlu0 %7587, %v7580
    %v7589 = vpop.permute.xlu0 %7588
    %v7591 = vmul.f32 %v7584, %v4387
    %v7592 = vmul.f32 %v7589, %v4388
    %v7593 = vsel %vm4740, %v7591, 0.0
    %v7594 = vrot.slane %v7593, 4
    %v7595 = vadd.f32 %v7593, %v7594
    %v7596 = vrot.slane %v7595, 2
    %v7597 = vadd.f32 %v7595, %v7596
    %v7598 = vrot.slane %v7597, 1
    %v7599 = vadd.f32 %v7597, %v7598
    %v7600 = vsel %vm4740, %v7592, 0.0
    %v7601 = vrot.slane %v7600, 4
    %v7602 = vadd.f32 %v7600, %v7601
    %v7603 = vrot.slane %v7602, 2
    %v7604 = vadd.f32 %v7602, %v7603
    %v7605 = vrot.slane %v7604, 1
    %v7606 = vadd.f32 %v7604, %v7605
    %v7609 = vsel %vm597, %v7606, %v7599
    %7610 = vrot.lane.b32.xlu0 %v7609, 32
    %v7611 = vpop.permute.xlu0 %7610
    %v7612 = vrot.slane %v4761, 6
    %v7613 = vrot.slane %v4762, 5
    %v7614 = vsel %vm597, %v7613, %v7612
    %v7616 = vsel %vm394, %v7611, 0
    %7618 = vmatprep.subr.mxu0 0.0
    %7619 = vmatpush1.msra.mxu0 0.0
    %7620 = vmatprep.subr.mxu0 0.0
    %7621 = vmatpush1.msra.mxu0 0.0
    %7622 = vmatprep.subr.mxu0 0.0
    %7623 = vmatpush1.msra.mxu0 0.0
    %7624 = vmatprep.subr.mxu0 0.0
    %7625 = vmatpush1.msra.mxu0 0.0
    %7626 = vmatprep.subr.mxu0 0.0
    %7627 = vmatpush1.msra.mxu0 0.0
    %7628 = vmatprep.subr.mxu0 0.0
    %7629 = vmatpush1.msra.mxu0 0.0
    %7630 = vmatprep.subr.mxu0 0.0
    %7631 = vmatpush1.msra.mxu0 0.0
    %7632 = vmatprep.subr.mxu0 0.0
    %7633 = vmatpush1.msra.mxu0 0.0
    %7634 = vmatprep.subr.mxu0 0.0
    %7635 = vmatpush1.msra.mxu0 0.0
    %7636 = vmatprep.subr.mxu0 0.0
    %7637 = vmatpush1.msra.mxu0 0.0
    %7638 = vmatprep.subr.mxu0 0.0
    %7639 = vmatpush1.msra.mxu0 0.0
    %7640 = vmatprep.subr.mxu0 0.0
    %7641 = vmatpush1.msra.mxu0 0.0
    %7642 = vmatprep.subr.mxu0 0.0
    %7643 = vmatpush1.msra.mxu0 %v233
    %7644 = vmatprep.subr.mxu0 0.0
    %7645 = vmatpush1.msra.mxu0 %v232
    %7646 = vmatprep.subr.mxu0 0.0
    %7647 = vmatpush1.msra.mxu0 %v231
    %7648 = vmatprep.subr.mxu0 0.0
    %7649 = vmatpush1.msra.mxu0 %v230
    %7650 = vmatprep.subr.mxu0 0.0
    %7651 = vmatpush2.msra.mxu0 0.0
    %7652 = vmatprep.subr.mxu0 0.0
    %7653 = vmatpush2.msra.mxu0 0.0
    %7654 = vmatprep.subr.mxu0 0.0
    %7655 = vmatpush2.msra.mxu0 0.0
    %7656 = vmatprep.subr.mxu0 0.0
    %7657 = vmatpush2.msra.mxu0 0.0
    %7658 = vmatprep.subr.mxu0 0.0
    %7659 = vmatpush2.msra.mxu0 0.0
    %7660 = vmatprep.subr.mxu0 0.0
    %7661 = vmatpush2.msra.mxu0 0.0
    %7662 = vmatprep.subr.mxu0 0.0
    %7663 = vmatpush2.msra.mxu0 0.0
    %7664 = vmatprep.subr.mxu0 0.0
    %7665 = vmatpush2.msra.mxu0 0.0
    %7666 = vmatprep.subr.mxu0 0.0
    %7667 = vmatpush2.msra.mxu0 0.0
    %7668 = vmatprep.subr.mxu0 0.0
    %7669 = vmatpush2.msra.mxu0 0.0
    %7670 = vmatprep.subr.mxu0 0.0
    %7671 = vmatpush2.msra.mxu0 0.0
    %7672 = vmatprep.subr.mxu0 0.0
    %7673 = vmatpush2.msra.mxu0 0.0
    %7674 = vmatprep.subr.mxu0 0.0
    %7675 = vmatpush2.msra.mxu0 0.0
    %7676 = vmatprep.subr.mxu0 0.0
    %7677 = vmatpush2.msra.mxu0 0.0
    %7678 = vmatprep.subr.mxu0 0.0
    %7679 = vmatpush2.msra.mxu0 0.0
    %7680 = vmatprep.subr.mxu0 0.0
    %7681 = vmatpush2.msra.mxu0 0.0
    %7682 = vmatprep.mubr.f32.mxu0 0.0
    %7683 = vmatmul.mubr.f32.gmra.mxu0 %v7616
    %v7684 = vpop.f32.mrf.mxu0
    %v7685 = vadd.f32 %v7614, %v7684
    %v7686 = vpop.f32.mrf.mxu0
    %7687 = vdwg.mxu0
    %v7688 = vadd.f32 %v7685, %v278
    %7690 = vset.pattern.permute.xlu0 0
    %7691 = vperm.xlu0 %7690, %v7688
    %v7692 = vpop.permute.xlu0 %7691
    %v7694 = vmul.f32 %v7692, %v4855
    %7695 = vmatprep.subr.mxu0 0.0
    %7696 = vmatpush1.msra.mxu0 0.0
    %7697 = vmatprep.subr.mxu0 0.0
    %7698 = vmatpush1.msra.mxu0 0.0
    %7699 = vmatprep.subr.mxu0 0.0
    %7700 = vmatpush1.msra.mxu0 0.0
    %7701 = vmatprep.subr.mxu0 0.0
    %7702 = vmatpush1.msra.mxu0 0.0
    %7703 = vmatprep.subr.mxu0 0.0
    %7704 = vmatpush1.msra.mxu0 0.0
    %7705 = vmatprep.subr.mxu0 0.0
    %7706 = vmatpush1.msra.mxu0 0.0
    %7707 = vmatprep.subr.mxu0 0.0
    %7708 = vmatpush1.msra.mxu0 0.0
    %7709 = vmatprep.subr.mxu0 0.0
    %7710 = vmatpush1.msra.mxu0 0.0
    %7711 = vmatprep.subr.mxu0 0.0
    %7712 = vmatpush1.msra.mxu0 0.0
    %7713 = vmatprep.subr.mxu0 0.0
    %7714 = vmatpush1.msra.mxu0 0.0
    %7715 = vmatprep.subr.mxu0 0.0
    %7716 = vmatpush1.msra.mxu0 0.0
    %7717 = vmatprep.subr.mxu0 0.0
    %7718 = vmatpush1.msra.mxu0 0.0
    %7719 = vmatprep.subr.mxu0 0.0
    %7720 = vmatpush1.msra.mxu0 %v239
    %7721 = vmatprep.subr.mxu0 0.0
    %7722 = vmatpush1.msra.mxu0 %v238
    %7723 = vmatprep.subr.mxu0 0.0
    %7724 = vmatpush1.msra.mxu0 %v237
    %7725 = vmatprep.subr.mxu0 0.0
    %7726 = vmatpush1.msra.mxu0 %v236
    %7727 = vmatprep.subr.mxu0 0.0
    %7728 = vmatpush2.msra.mxu0 0.0
    %7729 = vmatprep.subr.mxu0 0.0
    %7730 = vmatpush2.msra.mxu0 0.0
    %7731 = vmatprep.subr.mxu0 0.0
    %7732 = vmatpush2.msra.mxu0 0.0
    %7733 = vmatprep.subr.mxu0 0.0
    %7734 = vmatpush2.msra.mxu0 0.0
    %7735 = vmatprep.subr.mxu0 0.0
    %7736 = vmatpush2.msra.mxu0 0.0
    %7737 = vmatprep.subr.mxu0 0.0
    %7738 = vmatpush2.msra.mxu0 0.0
    %7739 = vmatprep.subr.mxu0 0.0
    %7740 = vmatpush2.msra.mxu0 0.0
    %7741 = vmatprep.subr.mxu0 0.0
    %7742 = vmatpush2.msra.mxu0 0.0
    %7743 = vmatprep.subr.mxu0 0.0
    %7744 = vmatpush2.msra.mxu0 0.0
    %7745 = vmatprep.subr.mxu0 0.0
    %7746 = vmatpush2.msra.mxu0 0.0
    %7747 = vmatprep.subr.mxu0 0.0
    %7748 = vmatpush2.msra.mxu0 0.0
    %7749 = vmatprep.subr.mxu0 0.0
    %7750 = vmatpush2.msra.mxu0 0.0
    %7751 = vmatprep.subr.mxu0 0.0
    %7752 = vmatpush2.msra.mxu0 0.0
    %7753 = vmatprep.subr.mxu0 0.0
    %7754 = vmatpush2.msra.mxu0 0.0
    %7755 = vmatprep.subr.mxu0 0.0
    %7756 = vmatpush2.msra.mxu0 0.0
    %7757 = vmatprep.subr.mxu0 0.0
    %7758 = vmatpush2.msra.mxu0 0.0
    %7759 = vmatprep.mubr.f32.mxu0 0.0
    %7760 = vmatmul.mubr.f32.gmra.mxu0 %v7396
    %v7761 = vpop.f32.mrf.mxu0
    %v7762 = vadd.f32 0.0, %v7761
    %v7763 = vpop.f32.mrf.mxu0
    %7764 = vdwg.mxu0
    %v7765 = vadd.f32 %v7694, %v7762
    %v7766 = vadd.f32 %v7765, %v285
    %v7767 = vxor.u32 %v7766, 2147483648
    %v7768 = vmul.f32 %v7767, 1.442695
    %v7769 = vpow.pop %v7768
    %v7770 = vadd.f32 %v7769, 1.0
    %v7771 = vrcp.pop %v7770
    %v7772 = vmul.f32 1.0, %v7771
    %v7773 = vtanh.pop %v7766
    %v7774 = vmul.f32 %v7772, %v7311
    %7776 = vrot.lane.b32.xlu0 %v7773, 64
    %v7777 = vpop.permute.xlu0 %7776
    %v7779 = vmul.f32 %v7772, %v7777
    %7781 = vrot.lane.b32.xlu0 %v7779, 32
    %v7782 = vpop.permute.xlu0 %7781
    %v7784 = vadd.f32 %v7774, %v7782
    %v7785 = vtanh.pop %v7784
    %7787 = vrot.lane.b32.xlu0 %v7785, 64
    %v7788 = vpop.permute.xlu0 %7787
    %v7790 = vmul.f32 %v7772, %v7788
    %7791 = vmatprep.subr.mxu0 0.0
    %7792 = vmatpush1.msra.mxu0 0.0
    %7793 = vmatprep.subr.mxu0 0.0
    %7794 = vmatpush1.msra.mxu0 0.0
    %7795 = vmatprep.subr.mxu0 0.0
    %7796 = vmatpush1.msra.mxu0 0.0
    %7797 = vmatprep.subr.mxu0 0.0
    %7798 = vmatpush1.msra.mxu0 0.0
    %7799 = vmatprep.subr.mxu0 0.0
    %7800 = vmatpush1.msra.mxu0 0.0
    %7801 = vmatprep.subr.mxu0 0.0
    %7802 = vmatpush1.msra.mxu0 0.0
    %7803 = vmatprep.subr.mxu0 0.0
    %7804 = vmatpush1.msra.mxu0 0.0
    %7805 = vmatprep.subr.mxu0 0.0
    %7806 = vmatpush1.msra.mxu0 0.0
    %7807 = vmatprep.subr.mxu0 0.0
    %7808 = vmatpush1.msra.mxu0 0.0
    %7809 = vmatprep.subr.mxu0 0.0
    %7810 = vmatpush1.msra.mxu0 0.0
    %7811 = vmatprep.subr.mxu0 0.0
    %7812 = vmatpush1.msra.mxu0 0.0
    %7813 = vmatprep.subr.mxu0 0.0
    %7814 = vmatpush1.msra.mxu0 0.0
    %7815 = vmatprep.subr.mxu0 0.0
    %7816 = vmatpush1.msra.mxu0 %v247
    %7817 = vmatprep.subr.mxu0 0.0
    %7818 = vmatpush1.msra.mxu0 %v246
    %7819 = vmatprep.subr.mxu0 0.0
    %7820 = vmatpush1.msra.mxu0 %v245
    %7821 = vmatprep.subr.mxu0 0.0
    %7822 = vmatpush1.msra.mxu0 %v244
    %7823 = vmatprep.subr.mxu0 0.0
    %7824 = vmatpush2.msra.mxu0 0.0
    %7825 = vmatprep.subr.mxu0 0.0
    %7826 = vmatpush2.msra.mxu0 0.0
    %7827 = vmatprep.subr.mxu0 0.0
    %7828 = vmatpush2.msra.mxu0 0.0
    %7829 = vmatprep.subr.mxu0 0.0
    %7830 = vmatpush2.msra.mxu0 0.0
    %7831 = vmatprep.subr.mxu0 0.0
    %7832 = vmatpush2.msra.mxu0 0.0
    %7833 = vmatprep.subr.mxu0 0.0
    %7834 = vmatpush2.msra.mxu0 0.0
    %7835 = vmatprep.subr.mxu0 0.0
    %7836 = vmatpush2.msra.mxu0 0.0
    %7837 = vmatprep.subr.mxu0 0.0
    %7838 = vmatpush2.msra.mxu0 0.0
    %7839 = vmatprep.subr.mxu0 0.0
    %7840 = vmatpush2.msra.mxu0 0.0
    %7841 = vmatprep.subr.mxu0 0.0
    %7842 = vmatpush2.msra.mxu0 0.0
    %7843 = vmatprep.subr.mxu0 0.0
    %7844 = vmatpush2.msra.mxu0 0.0
    %7845 = vmatprep.subr.mxu0 0.0
    %7846 = vmatpush2.msra.mxu0 0.0
    %7847 = vmatprep.subr.mxu0 0.0
    %7848 = vmatpush2.msra.mxu0 0.0
    %7849 = vmatprep.subr.mxu0 0.0
    %7850 = vmatpush2.msra.mxu0 0.0
    %7851 = vmatprep.subr.mxu0 0.0
    %7852 = vmatpush2.msra.mxu0 0.0
    %7853 = vmatprep.subr.mxu0 0.0
    %7854 = vmatpush2.msra.mxu0 0.0
    %7855 = vmatprep.mubr.f32.mxu0 0.0
    %7856 = vmatmul.mubr.f32.gmra.mxu0 %v7616
    %v7857 = vpop.f32.mrf.mxu0
    %v7858 = vadd.f32 0.0, %v7857
    %v7859 = vpop.f32.mrf.mxu0
    %7860 = vdwg.mxu0
    %7862 = vrot.lane.b32.xlu0 %v7790, 32
    %v7863 = vpop.permute.xlu0 %7862
    %v7864 = vsel %vm394, %v7863, 0
    %7866 = vmatprep.subr.mxu0 0.0
    %7867 = vmatpush1.msra.mxu0 0.0
    %7868 = vmatprep.subr.mxu0 0.0
    %7869 = vmatpush1.msra.mxu0 0.0
    %7870 = vmatprep.subr.mxu0 0.0
    %7871 = vmatpush1.msra.mxu0 0.0
    %7872 = vmatprep.subr.mxu0 0.0
    %7873 = vmatpush1.msra.mxu0 0.0
    %7874 = vmatprep.subr.mxu0 0.0
    %7875 = vmatpush1.msra.mxu0 0.0
    %7876 = vmatprep.subr.mxu0 0.0
    %7877 = vmatpush1.msra.mxu0 0.0
    %7878 = vmatprep.subr.mxu0 0.0
    %7879 = vmatpush1.msra.mxu0 0.0
    %7880 = vmatprep.subr.mxu0 0.0
    %7881 = vmatpush1.msra.mxu0 0.0
    %7882 = vmatprep.subr.mxu0 0.0
    %7883 = vmatpush1.msra.mxu0 0.0
    %7884 = vmatprep.subr.mxu0 0.0
    %7885 = vmatpush1.msra.mxu0 0.0
    %7886 = vmatprep.subr.mxu0 0.0
    %7887 = vmatpush1.msra.mxu0 0.0
    %7888 = vmatprep.subr.mxu0 0.0
    %7889 = vmatpush1.msra.mxu0 0.0
    %7890 = vmatprep.subr.mxu0 0.0
    %7891 = vmatpush1.msra.mxu0 %v243
    %7892 = vmatprep.subr.mxu0 0.0
    %7893 = vmatpush1.msra.mxu0 %v242
    %7894 = vmatprep.subr.mxu0 0.0
    %7895 = vmatpush1.msra.mxu0 %v241
    %7896 = vmatprep.subr.mxu0 0.0
    %7897 = vmatpush1.msra.mxu0 %v240
    %7898 = vmatprep.subr.mxu0 0.0
    %7899 = vmatpush2.msra.mxu0 0.0
    %7900 = vmatprep.subr.mxu0 0.0
    %7901 = vmatpush2.msra.mxu0 0.0
    %7902 = vmatprep.subr.mxu0 0.0
    %7903 = vmatpush2.msra.mxu0 0.0
    %7904 = vmatprep.subr.mxu0 0.0
    %7905 = vmatpush2.msra.mxu0 0.0
    %7906 = vmatprep.subr.mxu0 0.0
    %7907 = vmatpush2.msra.mxu0 0.0
    %7908 = vmatprep.subr.mxu0 0.0
    %7909 = vmatpush2.msra.mxu0 0.0
    %7910 = vmatprep.subr.mxu0 0.0
    %7911 = vmatpush2.msra.mxu0 0.0
    %7912 = vmatprep.subr.mxu0 0.0
    %7913 = vmatpush2.msra.mxu0 0.0
    %7914 = vmatprep.subr.mxu0 0.0
    %7915 = vmatpush2.msra.mxu0 0.0
    %7916 = vmatprep.subr.mxu0 0.0
    %7917 = vmatpush2.msra.mxu0 0.0
    %7918 = vmatprep.subr.mxu0 0.0
    %7919 = vmatpush2.msra.mxu0 0.0
    %7920 = vmatprep.subr.mxu0 0.0
    %7921 = vmatpush2.msra.mxu0 0.0
    %7922 = vmatprep.subr.mxu0 0.0
    %7923 = vmatpush2.msra.mxu0 0.0
    %7924 = vmatprep.subr.mxu0 0.0
    %7925 = vmatpush2.msra.mxu0 0.0
    %7926 = vmatprep.subr.mxu0 0.0
    %7927 = vmatpush2.msra.mxu0 0.0
    %7928 = vmatprep.subr.mxu0 0.0
    %7929 = vmatpush2.msra.mxu0 0.0
    %7930 = vmatprep.mubr.f32.mxu0 0.0
    %7931 = vmatmul.mubr.f32.gmra.mxu0 %v7864
    %v7932 = vpop.f32.mrf.mxu0
    %v7933 = vadd.f32 %v7858, %v7932
    %v7934 = vpop.f32.mrf.mxu0
    %7935 = vdwg.mxu0
    %v7936 = vadd.f32 %v7933, %v292
    %v7938 = vsel %vm394, %v7936, 0
    %7940 = vmatprep.subr.mxu0 0.0
    %7941 = vmatpush1.msra.mxu0 0.0
    %7942 = vmatprep.subr.mxu0 0.0
    %7943 = vmatpush1.msra.mxu0 0.0
    %7944 = vmatprep.subr.mxu0 0.0
    %7945 = vmatpush1.msra.mxu0 0.0
    %7946 = vmatprep.subr.mxu0 0.0
    %7947 = vmatpush1.msra.mxu0 0.0
    %7948 = vmatprep.subr.mxu0 0.0
    %7949 = vmatpush1.msra.mxu0 0.0
    %7950 = vmatprep.subr.mxu0 0.0
    %7951 = vmatpush1.msra.mxu0 0.0
    %7952 = vmatprep.subr.mxu0 0.0
    %7953 = vmatpush1.msra.mxu0 0.0
    %7954 = vmatprep.subr.mxu0 0.0
    %7955 = vmatpush1.msra.mxu0 0.0
    %7956 = vmatprep.subr.mxu0 0.0
    %7957 = vmatpush1.msra.mxu0 0.0
    %7958 = vmatprep.subr.mxu0 0.0
    %7959 = vmatpush1.msra.mxu0 0.0
    %7960 = vmatprep.subr.mxu0 0.0
    %7961 = vmatpush1.msra.mxu0 0.0
    %7962 = vmatprep.subr.mxu0 0.0
    %7963 = vmatpush1.msra.mxu0 0.0
    %7964 = vmatprep.subr.mxu0 0.0
    %7965 = vmatpush1.msra.mxu0 %v251
    %7966 = vmatprep.subr.mxu0 0.0
    %7967 = vmatpush1.msra.mxu0 %v250
    %7968 = vmatprep.subr.mxu0 0.0
    %7969 = vmatpush1.msra.mxu0 %v249
    %7970 = vmatprep.subr.mxu0 0.0
    %7971 = vmatpush1.msra.mxu0 %v248
    %7972 = vmatprep.subr.mxu0 0.0
    %7973 = vmatpush2.msra.mxu0 0.0
    %7974 = vmatprep.subr.mxu0 0.0
    %7975 = vmatpush2.msra.mxu0 0.0
    %7976 = vmatprep.subr.mxu0 0.0
    %7977 = vmatpush2.msra.mxu0 0.0
    %7978 = vmatprep.subr.mxu0 0.0
    %7979 = vmatpush2.msra.mxu0 0.0
    %7980 = vmatprep.subr.mxu0 0.0
    %7981 = vmatpush2.msra.mxu0 0.0
    %7982 = vmatprep.subr.mxu0 0.0
    %7983 = vmatpush2.msra.mxu0 0.0
    %7984 = vmatprep.subr.mxu0 0.0
    %7985 = vmatpush2.msra.mxu0 0.0
    %7986 = vmatprep.subr.mxu0 0.0
    %7987 = vmatpush2.msra.mxu0 0.0
    %7988 = vmatprep.subr.mxu0 0.0
    %7989 = vmatpush2.msra.mxu0 0.0
    %7990 = vmatprep.subr.mxu0 0.0
    %7991 = vmatpush2.msra.mxu0 0.0
    %7992 = vmatprep.subr.mxu0 0.0
    %7993 = vmatpush2.msra.mxu0 0.0
    %7994 = vmatprep.subr.mxu0 0.0
    %7995 = vmatpush2.msra.mxu0 0.0
    %7996 = vmatprep.subr.mxu0 0.0
    %7997 = vmatpush2.msra.mxu0 0.0
    %7998 = vmatprep.subr.mxu0 0.0
    %7999 = vmatpush2.msra.mxu0 0.0
    %8000 = vmatprep.subr.mxu0 0.0
    %8001 = vmatpush2.msra.mxu0 0.0
    %8002 = vmatprep.subr.mxu0 0.0
    %8003 = vmatpush2.msra.mxu0 0.0
    %8004 = vmatprep.mubr.f32.mxu0 0.0
    %8005 = vmatmul.mubr.f32.gmra.mxu0 %v7938
    %v8006 = vpop.f32.mrf.mxu0
    %v8007 = vadd.f32 %v299, %v8006
    %v8008 = vpop.f32.mrf.mxu0
    %8009 = vdwg.mxu0
    %vm8010 = vcmask 1024
    %8011 = vst.msk [vmem:[%s27] sm:$0x3] %vm8010, %v8007
    // Predicated region
    $region146: #{tpu_custom_call.1} parent=1 // pred_check
      _
    $region147: #{tpu_custom_call.1} parent=1 // pred_check_branch
      %8013 = sbr.rel (0) target = $region149
    $region148: #{tpu_custom_call.1} parent=1 // pred_region
      _
    $region149: #{tpu_custom_call.1} parent=1 // pred_fallthru
      _
    // Predicated region
    $region150: #{tpu_custom_call.1} parent=1 // pred_check
      _
    $region151: #{tpu_custom_call.1} parent=1 // pred_check_branch
      %8015 = sbr.rel (0) target = $region153
    $region152: #{tpu_custom_call.1} parent=1 // pred_region
      _
    $region153: #{tpu_custom_call.1} parent=1 // pred_fallthru
      _
    %8016 = vsyncpa [#allocation6], 1
    %8017 = vsyncpa [#allocation8], 1
    %8018 = vsyncpa [#allocation11], 1
    %8019 = vsyncpa [#allocation14], 1
    %8020 = vsyncpa [#allocation17], 1

</llo_original>
